<compile_context>
chip_gen: v5e
topology: v5e:2x2
jax: 0.10.0
libtpu: 0.0.40
codegen_flags: <defaults>
</compile_context>

<pallas_src>
import functools

import numpy as np

import jax
import jax.numpy as jnp
from jax import lax
from jax.experimental import pallas as pl
from jax.experimental.pallas import tpu as pltpu

C = 64          # mid_channel in ResidualStack / conv1 out channels
C_IN = 2        # ResNet1D input channels
EPS = 1e-5      # BatchNorm eps
LANE = 128      # TPU lane width

PARAM_ORDER = [
    "c1w", "c1b",
    "s1w1", "s1w3", "s1b",
    "s2w1", "s2w3", "s2b",
    "mask1", "mask2", "pool1", "pool2",
    "fcw", "rsum", "fcb",
]


def _round_up(x, m):
    return -(-x // m) * m


# --------------------------------------------------------------------------
# Pallas kernel: full ResNet1D forward for B packed batch elements per step
# --------------------------------------------------------------------------
def resnet1d_kernel(x_ref,
                    c1w_ref, c1b_ref,
                    s1w1_ref, s1w3_ref, s1b_ref,
                    s2w1_ref, s2w3_ref, s2b_ref,
                    m1_ref, m2_ref, p1_ref, p2_ref,
                    fcw_ref, rsum_ref, fcb_ref,
                    out_ref):
    f32, bf16 = jnp.float32, jnp.bfloat16

    def shift(h, delta):
        # Lane roll by +/-1 (XLU slot, overlaps the MXU).  Wrapped columns land
        # in zero separator / masked lanes, so the wraparound is harmless.
        w = h.shape[-1]
        return pltpu.roll(h, delta % w, axis=1)

    def conv3_bn_relu(h, w_flat, bias, mask):
        # k=3, pad=1 conv (64->64) as ONE K=192 MXU matmul.  The three taps are
        # lane rolls of h (zero separator columns emulate the zero padding);
        # BN scale is already folded into w_flat, only bias remains.
        h3 = jnp.concatenate([shift(h, 1), h, shift(h, -1)], axis=0)   # (3C, W)
        y = jnp.dot(w_flat, h3.astype(bf16), preferred_element_type=f32)
        return jnp.maximum(y + bias, 0.0) * mask      # relu + keep separators 0

    def residual_stack(h, w1_ref, w3_ref, b_ref, mask, pool_ref):
        # NOTE: the PyTorch ResidualStack assigns `shortcut` but never adds it,
        # so the forward is a plain conv/bn(/relu) chain followed by maxpool.
        # conv1 (1x1) + bn1 (no relu in the PyTorch forward)
        h = jnp.dot(w1_ref[...], h.astype(bf16),
                    preferred_element_type=f32) + b_ref[0]
        h = h * mask                                  # zero separator columns
        for i in range(4):                            # conv2..conv5 (+bn+relu)
            h = conv3_bn_relu(h, w3_ref[i], b_ref[i + 1], mask)
        # MaxPool1d(2,2): max with the right lane neighbour, then a precomputed
        # 0/1 selection matmul that picks even data columns, re-packs the
        # layout for the next stage, and re-zeroes the separator columns.
        hmax = jnp.maximum(h, shift(h, -1))
        return jnp.dot(hmax.astype(bf16), pool_ref[...],
                       preferred_element_type=f32)

    # ---- conv1 (2 -> 64, k=3, pad=0, no bias) + bn1 + relu -----------------
    # the three taps were pre-stacked host-side on the channel axis -> one
    # K=6 matmul over the full packed width (BN scale folded into the weights).
    h = jnp.dot(c1w_ref[...], x_ref[0].astype(bf16), preferred_element_type=f32)
    h = jnp.maximum(h + c1b_ref[...], 0.0)
    # x.squeeze(2) in the PyTorch forward only triggers when the length is 1;
    # for any real sequence length it is a no-op, so nothing to do here.

    # ---- two residual stacks ----------------------------------------------
    h = residual_stack(h, s1w1_ref, s1w3_ref, s1b_ref, m1_ref[...], p1_ref)
    h = residual_stack(h, s2w1_ref, s2w3_ref, s2b_ref, m2_ref[...], p2_ref)
    # h: (C, B*L3); element b occupies lanes [b*L3, (b+1)*L3)

    # ---- fc: flatten (C, L3) row-major per element, apply Linear -----------
    # short per-class unrolled loop (n_class is small) keeps the working set
    # tiny instead of materializing one (n_class, C, B*L3) f32 product.
    n_class = fcw_ref.shape[0]
    rows = []
    for n in range(n_class):
        rows.append(jnp.sum(fcw_ref[n].astype(f32) * h, axis=0, keepdims=True))
    s = jnp.concatenate(rows, axis=0)                 # (n_class, B*L3)
    out_ref[0] = jnp.dot(s.astype(bf16), rsum_ref[...],
                         preferred_element_type=f32) + fcb_ref[...]


# --------------------------------------------------------------------------
# Host-side helpers: masks / pooling selection matrices / weight re-layout
# --------------------------------------------------------------------------
def _data_mask(B, L, S, W):
    m = np.zeros((1, W), np.float32)
    for b in range(B):
        m[0, b * S + 1:b * S + 1 + L] = 1.0
    return jnp.asarray(m)


def _pool_select(B, S_in, W_in, L_out, slot_out, W_out, sep_out):
    sel = np.zeros((W_in, W_out), np.float32)
    off = 1 if sep_out else 0
    for b in range(B):
        for t in range(L_out):
            sel[b * S_in + 1 + 2 * t, b * slot_out + off + t] = 1.0
    return jnp.asarray(sel)


def _rsum(B, L):
    r = np.zeros((B * L, B), np.float32)
    for b in range(B):
        r[b * L:(b + 1) * L, b] = 1.0
    return jnp.asarray(r)


def _flat3(w):
    # (..., Cout, Cin, 3) -> (..., Cout, 3*Cin) with contiguous per-tap blocks
    return jnp.swapaxes(w, -1, -2).reshape(
        *w.shape[:-3], w.shape[-3], 3 * w.shape[-2])


def fold_bn(p):
    """Fold the BatchNorm scale into the (f32) conv weights; scales become 1."""
    q = dict(p)
    q["c1w"] = p["c1w"] * p["c1s"][:, None, None]
    q["c1s"] = jnp.ones_like(p["c1s"])
    for nm in ("s1", "s2"):
        q[nm + "w1"] = p[nm + "w1"] * p[nm + "s"][0][:, None]
        q[nm + "w3"] = p[nm + "w3"] * p[nm + "s"][1:, :, None, None]
        q[nm + "s"] = jnp.ones_like(p[nm + "s"])
    return q


def pack_params(p, B, L0):
    p = fold_bn(p)                       # BN scale folded -> bf16 weights
    L1 = L0 - 2
    L2 = L1 // 2
    L3 = L2 // 2
    S1, S2 = L0, L2 + 2
    W1 = _round_up(B * S1, LANE)
    W2 = _round_up(B * S2, LANE)
    n_class = p["fcw"].shape[0]
    bf16 = jnp.bfloat16

    k = {}
    k["c1w"] = _flat3(p["c1w"]).astype(bf16)                 # (64, 6)
    k["c1b"] = p["c1b"].reshape(C, 1)
    for nm in ("s1", "s2"):
        k[nm + "w1"] = p[nm + "w1"].astype(bf16)             # (64, 64)
        k[nm + "w3"] = _flat3(p[nm + "w3"]).astype(bf16)     # (4, 64, 192)
        k[nm + "b"] = p[nm + "b"].reshape(5, C, 1)
    k["mask1"] = _data_mask(B, L1, S1, W1)                   # (1, W1)
    k["mask2"] = _data_mask(B, L2, S2, W2)                   # (1, W2)
    k["pool1"] = _pool_select(B, S1, W1, L2, S2, W2, True).astype(bf16)
    k["pool2"] = _pool_select(B, S2, W2, L3, L3, B * L3, False).astype(bf16)
    k["fcw"] = jnp.tile(p["fcw"].reshape(n_class, C, L3),
                        (1, 1, B)).astype(bf16)              # (n_class, C, B*L3)
    k["rsum"] = _rsum(B, L3).astype(bf16)                    # (B*L3, B)
    k["fcb"] = p["fcb"].reshape(n_class, 1)
    return k


# --------------------------------------------------------------------------
# Wrapper
# --------------------------------------------------------------------------
@functools.partial(jax.jit, static_argnames=("n_class", "batch_block"))
def resnet1d_forward(x, params, *, n_class, batch_block=4):
    N, cin, L0 = x.shape
    assert cin == C_IN
    B = batch_block
    Npad = -(-N // B) * B
    if Npad != N:
        x = jnp.concatenate(
            [x, jnp.zeros((Npad - N, cin, L0), x.dtype)], axis=0)
    G = Npad // B                       # keep even so v7x's 2 TCs split evenly

    L1 = L0 - 2
    L2 = L1 // 2
    L3 = L2 // 2
    assert L3 >= 1
    W1 = _round_up(B * L0, LANE)        # stack-1 packed width (slot = L0)
    W2 = _round_up(B * (L2 + 2), LANE)  # stack-2 packed width (slot = L2 + 2)

    kp = pack_params(params, B, L0)
    assert kp["fcw"].shape[0] == n_class

    # pack B batch elements side-by-side on the lane axis (zero-padded up to a
    # multiple of 128 lanes), then pre-stack the three conv1 taps on the
    # channel axis (host-side layout plumbing only).
    xp = x.reshape(G, B, C_IN, L0).transpose(0, 2, 1, 3).reshape(G, C_IN, B * L0)
    if W1 > B * L0:
        xp = jnp.pad(xp, ((0, 0), (0, 0), (0, W1 - B * L0)))
    xp3 = jnp.concatenate(
        [jnp.roll(xp, 1, axis=-1), xp, jnp.roll(xp, -1, axis=-1)], axis=1)

    def const_spec(a):
        # constant block index -> Pallas skips the re-DMA after the first step
        nd = a.ndim
        return pl.BlockSpec(a.shape, lambda g: (0,) * nd)

    in_specs = [pl.BlockSpec((1, 3 * C_IN, W1), lambda g: (g, 0, 0))]
    in_specs += [const_spec(kp[k]) for k in PARAM_ORDER]

    out = pl.pallas_call(
        resnet1d_kernel,
        out_shape=jax.ShapeDtypeStruct((G, n_class, B), jnp.float32),
        grid=(G,),
        in_specs=in_specs,
        out_specs=pl.BlockSpec((1, n_class, B), lambda g: (g, 0, 0)),
        compiler_params=pltpu.CompilerParams(
            dimension_semantics=("parallel",)),   # v7x: shard batch over 2 TCs
    )(xp3, *[kp[k] for k in PARAM_ORDER])

    out = out.transpose(0, 2, 1).reshape(Npad, n_class)
    return out[:N]


# --------------------------------------------------------------------------
# Deterministic parameter construction (BatchNorm folded, inference mode)
# --------------------------------------------------------------------------
def init_params(key, n_class, L0):
    L1 = L0 - 2
    L2 = L1 // 2
    L3 = L2 // 2
    keys = iter(jax.random.split(key, 64))

    def nrm(shape, fan_in):
        return jax.random.normal(next(keys), shape, jnp.float32) / jnp.sqrt(fan_in)

    def bn(c):
        gamma = jax.random.uniform(next(keys), (c,), jnp.float32, 0.5, 1.5)
        beta = jax.random.normal(next(keys), (c,), jnp.float32) * 0.1
        mean = jax.random.normal(next(keys), (c,), jnp.float32) * 0.1
        var = jax.random.uniform(next(keys), (c,), jnp.float32, 0.5, 1.5)
        scale = gamma / jnp.sqrt(var + EPS)
        bias = beta - mean * scale
        return scale, bias

    p = {}
    p["c1w"] = nrm((C, C_IN, 3), C_IN * 3)          # Conv1d(2, 64, k=3)
    p["c1s"], p["c1b"] = bn(C)
    for nm in ("s1", "s2"):
        p[nm + "w1"] = nrm((C, C), C)               # Conv1d(64, 64, k=1)
        p[nm + "w3"] = nrm((4, C, C, 3), C * 3)     # 4x Conv1d(64, 64, k=3)
        ss, bb = zip(*[bn(C) for _ in range(5)])
        p[nm + "s"] = jnp.stack(ss)
        p[nm + "b"] = jnp.stack(bb)
    flat = C * L3
    p["fcw"] = nrm((n_class, flat), flat)           # Linear weight (out, in)
    p["fcb"] = jax.random.normal(next(keys), (n_class,), jnp.float32) * 0.1
    return p


# --------------------------------------------------------------------------
# Pure-JAX reference
# --------------------------------------------------------------------------
def reference_forward(x, p, *, bf16_dots=False):
    """bf16_dots=True mirrors the kernel's numerics (BN scale folded into the
    weights before the bf16 cast, bf16 matmul operands, f32 accumulation,
    bf16-valued pooled activations, bf16 fc weight)."""
    f32 = jnp.float32
    if bf16_dots:
        p = fold_bn(p)
    cast = (lambda a: a.astype(jnp.bfloat16)) if bf16_dots else (lambda a: a)

    def conv1d(h, w, pad):
        return lax.conv_general_dilated(
            cast(h), cast(w), (1,), [(pad, pad)],
            dimension_numbers=("NCH", "OIH", "NCH"),
            preferred_element_type=f32)

    def bn(h, s, b):
        return h * s[None, :, None] + b[None, :, None]

    h = jax.nn.relu(bn(conv1d(x, p["c1w"], 0), p["c1s"], p["c1b"]))
    for nm in ("s1", "s2"):
        h = bn(conv1d(h, p[nm + "w1"][:, :, None], 0),
               p[nm + "s"][0], p[nm + "b"][0])
        for i in range(4):
            h = jax.nn.relu(bn(conv1d(h, p[nm + "w3"][i], 1),
                               p[nm + "s"][i + 1], p[nm + "b"][i + 1]))
        n, c, L = h.shape
        h = jnp.max(h[:, :, :(L // 2) * 2].reshape(n, c, L // 2, 2), axis=-1)
        if bf16_dots:
            h = h.astype(jnp.bfloat16).astype(f32)
    flat = h.reshape(h.shape[0], -1)
    fcw = cast(p["fcw"]).astype(f32) if bf16_dots else p["fcw"]
    return flat @ fcw.T + p["fcb"][None]


if __name__ == "__main__":
    N, L0, n_class, B = 8, 128, 8, 4      # input (N, 2, L0); B elems per step
    key = jax.random.PRNGKey(0)
    kx, kp = jax.random.split(key)
    x = jax.random.normal(kx, (N, C_IN, L0), jnp.float32)
    params = init_params(kp, n_class, L0)

    out = resnet1d_forward(x, params, n_class=n_class, batch_block=B)
    out = jax.block_until_ready(out)
    assert out.shape == (N, n_class)

    # structural check against a reference with matching bf16 matmul numerics
    ref_matched = reference_forward(x, params, bf16_dots=True)
    if not jnp.allclose(out, ref_matched, rtol=2e-2, atol=2e-2):
        err = float(jnp.max(jnp.abs(out - ref_matched)))
        raise AssertionError(f"mismatch vs bf16-matched reference (max {err})")

    # loose sanity check against the pure-f32 reference (kernel uses bf16 MXU
    # operands, so only a coarse bound is meaningful here)
    ref_f32 = reference_forward(x, params, bf16_dots=False)
    if not jnp.allclose(out, ref_f32, rtol=2.5e-1, atol=2.5e-1):
        err = float(jnp.max(jnp.abs(out - ref_f32)))
        raise AssertionError(f"excessive drift vs f32 reference (max {err})")

    print("KERNEL_OK")
</pallas_src>

<mosaic_0001>
module attributes {stable_mosaic.version = 11 : i64} {
  func.func @resnet1d_kernel(%arg0: i32, %arg1: memref<1x6x512xf32, #tpu.memory_space<vmem>>, %arg2: memref<64x6xbf16, #tpu.memory_space<vmem>>, %arg3: memref<64x1xf32, #tpu.memory_space<vmem>>, %arg4: memref<64x64xbf16, #tpu.memory_space<vmem>>, %arg5: memref<4x64x192xbf16, #tpu.memory_space<vmem>>, %arg6: memref<5x64x1xf32, #tpu.memory_space<vmem>>, %arg7: memref<64x64xbf16, #tpu.memory_space<vmem>>, %arg8: memref<4x64x192xbf16, #tpu.memory_space<vmem>>, %arg9: memref<5x64x1xf32, #tpu.memory_space<vmem>>, %arg10: memref<1x512xf32, #tpu.memory_space<vmem>>, %arg11: memref<1x384xf32, #tpu.memory_space<vmem>>, %arg12: memref<512x384xbf16, #tpu.memory_space<vmem>>, %arg13: memref<384x124xbf16, #tpu.memory_space<vmem>>, %arg14: memref<8x64x124xbf16, #tpu.memory_space<vmem>>, %arg15: memref<124x4xbf16, #tpu.memory_space<vmem>>, %arg16: memref<8x1xf32, #tpu.memory_space<vmem>>, %arg17: memref<1x8x4xf32, #tpu.memory_space<vmem>>) attributes {dimension_semantics = [#tpu.dimension_semantics<parallel>], iteration_bounds = array<i64: 2>, scalar_prefetch = 0 : i64, scratch_operands = 0 : i64, tpu.core_type = #tpu.core_type<tc>, window_params = [{transform_indices = @transform_0, window_bounds = array<i64: 1, 6, 512>}, {pipeline_mode = #tpu.pipeline_mode<synchronous>, transform_indices = @transform_1, window_bounds = array<i64: 64, 6>}, {pipeline_mode = #tpu.pipeline_mode<synchronous>, transform_indices = @transform_2, window_bounds = array<i64: 64, 1>}, {pipeline_mode = #tpu.pipeline_mode<synchronous>, transform_indices = @transform_3, window_bounds = array<i64: 64, 64>}, {pipeline_mode = #tpu.pipeline_mode<synchronous>, transform_indices = @transform_4, window_bounds = array<i64: 4, 64, 192>}, {pipeline_mode = #tpu.pipeline_mode<synchronous>, transform_indices = @transform_5, window_bounds = array<i64: 5, 64, 1>}, {pipeline_mode = #tpu.pipeline_mode<synchronous>, transform_indices = @transform_6, window_bounds = array<i64: 64, 64>}, {pipeline_mode = #tpu.pipeline_mode<synchronous>, transform_indices = @transform_7, window_bounds = array<i64: 4, 64, 192>}, {pipeline_mode = #tpu.pipeline_mode<synchronous>, transform_indices = @transform_8, window_bounds = array<i64: 5, 64, 1>}, {pipeline_mode = #tpu.pipeline_mode<synchronous>, transform_indices = @transform_9, window_bounds = array<i64: 1, 512>}, {pipeline_mode = #tpu.pipeline_mode<synchronous>, transform_indices = @transform_10, window_bounds = array<i64: 1, 384>}, {pipeline_mode = #tpu.pipeline_mode<synchronous>, transform_indices = @transform_11, window_bounds = array<i64: 512, 384>}, {pipeline_mode = #tpu.pipeline_mode<synchronous>, transform_indices = @transform_12, window_bounds = array<i64: 384, 124>}, {pipeline_mode = #tpu.pipeline_mode<synchronous>, transform_indices = @transform_13, window_bounds = array<i64: 8, 64, 124>}, {pipeline_mode = #tpu.pipeline_mode<synchronous>, transform_indices = @transform_14, window_bounds = array<i64: 124, 4>}, {pipeline_mode = #tpu.pipeline_mode<synchronous>, transform_indices = @transform_15, window_bounds = array<i64: 8, 1>}, {transform_indices = @transform_16, window_bounds = array<i64: 1, 8, 4>}]} {
    %c0 = arith.constant 0 : index
    %c0_0 = arith.constant 0 : index
    %0 = vector.load %arg2[%c0, %c0_0] : memref<64x6xbf16, #tpu.memory_space<vmem>>, vector<64x6xbf16>
    %c0_1 = arith.constant 0 : index
    %c0_2 = arith.constant 0 : index
    %c0_3 = arith.constant 0 : index
    %1 = vector.load %arg1[%c0_1, %c0_2, %c0_3] : memref<1x6x512xf32, #tpu.memory_space<vmem>>, vector<1x6x512xf32>
    %2 = vector.shape_cast %1 : vector<1x6x512xf32> to vector<6x512xf32>
    %3 = arith.truncf %2 : vector<6x512xf32> to vector<6x512xbf16>
    %cst = arith.constant dense<0.000000e+00> : vector<64x512xf32>
    %4 = tpu.matmul %0, %3, %cst {dimension_numbers = #tpu.dot_dimension_numbers<[1], [0], [0], [1], [0, 0, 1, 1], [], []>} : vector<64x6xbf16>, vector<6x512xbf16>, vector<64x512xf32> -> vector<64x512xf32>
    %c0_4 = arith.constant 0 : index
    %c0_5 = arith.constant 0 : index
    %5 = vector.load %arg3[%c0_4, %c0_5] : memref<64x1xf32, #tpu.memory_space<vmem>>, vector<64x1xf32>
    %6 = vector.broadcast %5 : vector<64x1xf32> to vector<64x512xf32>
    %7 = arith.addf %4, %6 : vector<64x512xf32>
    %cst_6 = arith.constant 0.000000e+00 : f32
    %8 = vector.broadcast %cst_6 : f32 to vector<64x512xf32>
    %9 = arith.maximumf %7, %8 : vector<64x512xf32>
    %c0_7 = arith.constant 0 : index
    %c0_8 = arith.constant 0 : index
    %10 = vector.load %arg10[%c0_7, %c0_8] : memref<1x512xf32, #tpu.memory_space<vmem>>, vector<1x512xf32>
    %c0_9 = arith.constant 0 : index
    %c0_10 = arith.constant 0 : index
    %11 = vector.load %arg4[%c0_9, %c0_10] : memref<64x64xbf16, #tpu.memory_space<vmem>>, vector<64x64xbf16>
    %12 = arith.truncf %9 : vector<64x512xf32> to vector<64x512xbf16>
    %cst_11 = arith.constant dense<0.000000e+00> : vector<64x512xf32>
    %13 = tpu.matmul %11, %12, %cst_11 {dimension_numbers = #tpu.dot_dimension_numbers<[1], [0], [0], [1], [0, 0, 1, 1], [], []>} : vector<64x64xbf16>, vector<64x512xbf16>, vector<64x512xf32> -> vector<64x512xf32>
    %c0_12 = arith.constant 0 : index
    %c0_13 = arith.constant 0 : index
    %c0_14 = arith.constant 0 : index
    %14 = vector.load %arg6[%c0_12, %c0_13, %c0_14] : memref<5x64x1xf32, #tpu.memory_space<vmem>>, vector<1x64x1xf32>
    %15 = vector.shape_cast %14 : vector<1x64x1xf32> to vector<64x1xf32>
    %16 = vector.broadcast %15 : vector<64x1xf32> to vector<64x512xf32>
    %17 = arith.addf %13, %16 : vector<64x512xf32>
    %18 = vector.broadcast %10 : vector<1x512xf32> to vector<64x512xf32>
    %19 = arith.mulf %17, %18 : vector<64x512xf32>
    %c0_15 = arith.constant 0 : index
    %c0_16 = arith.constant 0 : index
    %c0_17 = arith.constant 0 : index
    %20 = vector.load %arg5[%c0_15, %c0_16, %c0_17] : memref<4x64x192xbf16, #tpu.memory_space<vmem>>, vector<1x64x192xbf16>
    %21 = vector.shape_cast %20 : vector<1x64x192xbf16> to vector<64x192xbf16>
    %c1 = arith.constant 1 : index
    %c0_18 = arith.constant 0 : index
    %c0_19 = arith.constant 0 : index
    %22 = vector.load %arg6[%c1, %c0_18, %c0_19] : memref<5x64x1xf32, #tpu.memory_space<vmem>>, vector<1x64x1xf32>
    %23 = vector.shape_cast %22 : vector<1x64x1xf32> to vector<64x1xf32>
    %c1_i32 = arith.constant 1 : i32
    %24 = tpu.dynamic_rotate %19 by %c1_i32 dim 1 : vector<64x512xf32>, i32 -> vector<64x512xf32>
    %c511_i32 = arith.constant 511 : i32
    %25 = tpu.dynamic_rotate %19 by %c511_i32 dim 1 : vector<64x512xf32>, i32 -> vector<64x512xf32>
    %26 = tpu.concatenate %24, %19, %25 in 0 : vector<64x512xf32>, vector<64x512xf32>, vector<64x512xf32> -> vector<192x512xf32>
    %27 = arith.truncf %26 : vector<192x512xf32> to vector<192x512xbf16>
    %cst_20 = arith.constant dense<0.000000e+00> : vector<64x512xf32>
    %28 = tpu.matmul %21, %27, %cst_20 {dimension_numbers = #tpu.dot_dimension_numbers<[1], [0], [0], [1], [0, 0, 1, 1], [], []>} : vector<64x192xbf16>, vector<192x512xbf16>, vector<64x512xf32> -> vector<64x512xf32>
    %29 = vector.broadcast %23 : vector<64x1xf32> to vector<64x512xf32>
    %30 = arith.addf %28, %29 : vector<64x512xf32>
    %cst_21 = arith.constant 0.000000e+00 : f32
    %31 = vector.broadcast %cst_21 : f32 to vector<64x512xf32>
    %32 = arith.maximumf %30, %31 : vector<64x512xf32>
    %33 = vector.broadcast %10 : vector<1x512xf32> to vector<64x512xf32>
    %34 = arith.mulf %32, %33 : vector<64x512xf32>
    %c1_22 = arith.constant 1 : index
    %c0_23 = arith.constant 0 : index
    %c0_24 = arith.constant 0 : index
    %35 = vector.load %arg5[%c1_22, %c0_23, %c0_24] : memref<4x64x192xbf16, #tpu.memory_space<vmem>>, vector<1x64x192xbf16>
    %36 = vector.shape_cast %35 : vector<1x64x192xbf16> to vector<64x192xbf16>
    %c2 = arith.constant 2 : index
    %c0_25 = arith.constant 0 : index
    %c0_26 = arith.constant 0 : index
    %37 = vector.load %arg6[%c2, %c0_25, %c0_26] : memref<5x64x1xf32, #tpu.memory_space<vmem>>, vector<1x64x1xf32>
    %38 = vector.shape_cast %37 : vector<1x64x1xf32> to vector<64x1xf32>
    %c1_i32_27 = arith.constant 1 : i32
    %39 = tpu.dynamic_rotate %34 by %c1_i32_27 dim 1 : vector<64x512xf32>, i32 -> vector<64x512xf32>
    %c511_i32_28 = arith.constant 511 : i32
    %40 = tpu.dynamic_rotate %34 by %c511_i32_28 dim 1 : vector<64x512xf32>, i32 -> vector<64x512xf32>
    %41 = tpu.concatenate %39, %34, %40 in 0 : vector<64x512xf32>, vector<64x512xf32>, vector<64x512xf32> -> vector<192x512xf32>
    %42 = arith.truncf %41 : vector<192x512xf32> to vector<192x512xbf16>
    %cst_29 = arith.constant dense<0.000000e+00> : vector<64x512xf32>
    %43 = tpu.matmul %36, %42, %cst_29 {dimension_numbers = #tpu.dot_dimension_numbers<[1], [0], [0], [1], [0, 0, 1, 1], [], []>} : vector<64x192xbf16>, vector<192x512xbf16>, vector<64x512xf32> -> vector<64x512xf32>
    %44 = vector.broadcast %38 : vector<64x1xf32> to vector<64x512xf32>
    %45 = arith.addf %43, %44 : vector<64x512xf32>
    %cst_30 = arith.constant 0.000000e+00 : f32
    %46 = vector.broadcast %cst_30 : f32 to vector<64x512xf32>
    %47 = arith.maximumf %45, %46 : vector<64x512xf32>
    %48 = vector.broadcast %10 : vector<1x512xf32> to vector<64x512xf32>
    %49 = arith.mulf %47, %48 : vector<64x512xf32>
    %c2_31 = arith.constant 2 : index
    %c0_32 = arith.constant 0 : index
    %c0_33 = arith.constant 0 : index
    %50 = vector.load %arg5[%c2_31, %c0_32, %c0_33] : memref<4x64x192xbf16, #tpu.memory_space<vmem>>, vector<1x64x192xbf16>
    %51 = vector.shape_cast %50 : vector<1x64x192xbf16> to vector<64x192xbf16>
    %c3 = arith.constant 3 : index
    %c0_34 = arith.constant 0 : index
    %c0_35 = arith.constant 0 : index
    %52 = vector.load %arg6[%c3, %c0_34, %c0_35] : memref<5x64x1xf32, #tpu.memory_space<vmem>>, vector<1x64x1xf32>
    %53 = vector.shape_cast %52 : vector<1x64x1xf32> to vector<64x1xf32>
    %c1_i32_36 = arith.constant 1 : i32
    %54 = tpu.dynamic_rotate %49 by %c1_i32_36 dim 1 : vector<64x512xf32>, i32 -> vector<64x512xf32>
    %c511_i32_37 = arith.constant 511 : i32
    %55 = tpu.dynamic_rotate %49 by %c511_i32_37 dim 1 : vector<64x512xf32>, i32 -> vector<64x512xf32>
    %56 = tpu.concatenate %54, %49, %55 in 0 : vector<64x512xf32>, vector<64x512xf32>, vector<64x512xf32> -> vector<192x512xf32>
    %57 = arith.truncf %56 : vector<192x512xf32> to vector<192x512xbf16>
    %cst_38 = arith.constant dense<0.000000e+00> : vector<64x512xf32>
    %58 = tpu.matmul %51, %57, %cst_38 {dimension_numbers = #tpu.dot_dimension_numbers<[1], [0], [0], [1], [0, 0, 1, 1], [], []>} : vector<64x192xbf16>, vector<192x512xbf16>, vector<64x512xf32> -> vector<64x512xf32>
    %59 = vector.broadcast %53 : vector<64x1xf32> to vector<64x512xf32>
    %60 = arith.addf %58, %59 : vector<64x512xf32>
    %cst_39 = arith.constant 0.000000e+00 : f32
    %61 = vector.broadcast %cst_39 : f32 to vector<64x512xf32>
    %62 = arith.maximumf %60, %61 : vector<64x512xf32>
    %63 = vector.broadcast %10 : vector<1x512xf32> to vector<64x512xf32>
    %64 = arith.mulf %62, %63 : vector<64x512xf32>
    %c3_40 = arith.constant 3 : index
    %c0_41 = arith.constant 0 : index
    %c0_42 = arith.constant 0 : index
    %65 = vector.load %arg5[%c3_40, %c0_41, %c0_42] : memref<4x64x192xbf16, #tpu.memory_space<vmem>>, vector<1x64x192xbf16>
    %66 = vector.shape_cast %65 : vector<1x64x192xbf16> to vector<64x192xbf16>
    %c4 = arith.constant 4 : index
    %c0_43 = arith.constant 0 : index
    %c0_44 = arith.constant 0 : index
    %67 = vector.load %arg6[%c4, %c0_43, %c0_44] : memref<5x64x1xf32, #tpu.memory_space<vmem>>, vector<1x64x1xf32>
    %68 = vector.shape_cast %67 : vector<1x64x1xf32> to vector<64x1xf32>
    %c1_i32_45 = arith.constant 1 : i32
    %69 = tpu.dynamic_rotate %64 by %c1_i32_45 dim 1 : vector<64x512xf32>, i32 -> vector<64x512xf32>
    %c511_i32_46 = arith.constant 511 : i32
    %70 = tpu.dynamic_rotate %64 by %c511_i32_46 dim 1 : vector<64x512xf32>, i32 -> vector<64x512xf32>
    %71 = tpu.concatenate %69, %64, %70 in 0 : vector<64x512xf32>, vector<64x512xf32>, vector<64x512xf32> -> vector<192x512xf32>
    %72 = arith.truncf %71 : vector<192x512xf32> to vector<192x512xbf16>
    %cst_47 = arith.constant dense<0.000000e+00> : vector<64x512xf32>
    %73 = tpu.matmul %66, %72, %cst_47 {dimension_numbers = #tpu.dot_dimension_numbers<[1], [0], [0], [1], [0, 0, 1, 1], [], []>} : vector<64x192xbf16>, vector<192x512xbf16>, vector<64x512xf32> -> vector<64x512xf32>
    %74 = vector.broadcast %68 : vector<64x1xf32> to vector<64x512xf32>
    %75 = arith.addf %73, %74 : vector<64x512xf32>
    %cst_48 = arith.constant 0.000000e+00 : f32
    %76 = vector.broadcast %cst_48 : f32 to vector<64x512xf32>
    %77 = arith.maximumf %75, %76 : vector<64x512xf32>
    %78 = vector.broadcast %10 : vector<1x512xf32> to vector<64x512xf32>
    %79 = arith.mulf %77, %78 : vector<64x512xf32>
    %c511_i32_49 = arith.constant 511 : i32
    %80 = tpu.dynamic_rotate %79 by %c511_i32_49 dim 1 : vector<64x512xf32>, i32 -> vector<64x512xf32>
    %81 = arith.maximumf %79, %80 : vector<64x512xf32>
    %82 = arith.truncf %81 : vector<64x512xf32> to vector<64x512xbf16>
    %c0_50 = arith.constant 0 : index
    %c0_51 = arith.constant 0 : index
    %83 = vector.load %arg12[%c0_50, %c0_51] : memref<512x384xbf16, #tpu.memory_space<vmem>>, vector<512x384xbf16>
    %cst_52 = arith.constant dense<0.000000e+00> : vector<64x384xf32>
    %84 = tpu.matmul %82, %83, %cst_52 {dimension_numbers = #tpu.dot_dimension_numbers<[1], [0], [0], [1], [0, 0, 1, 1], [], []>} : vector<64x512xbf16>, vector<512x384xbf16>, vector<64x384xf32> -> vector<64x384xf32>
    %c0_53 = arith.constant 0 : index
    %c0_54 = arith.constant 0 : index
    %85 = vector.load %arg11[%c0_53, %c0_54] : memref<1x384xf32, #tpu.memory_space<vmem>>, vector<1x384xf32>
    %c0_55 = arith.constant 0 : index
    %c0_56 = arith.constant 0 : index
    %86 = vector.load %arg7[%c0_55, %c0_56] : memref<64x64xbf16, #tpu.memory_space<vmem>>, vector<64x64xbf16>
    %87 = arith.truncf %84 : vector<64x384xf32> to vector<64x384xbf16>
    %cst_57 = arith.constant dense<0.000000e+00> : vector<64x384xf32>
    %88 = tpu.matmul %86, %87, %cst_57 {dimension_numbers = #tpu.dot_dimension_numbers<[1], [0], [0], [1], [0, 0, 1, 1], [], []>} : vector<64x64xbf16>, vector<64x384xbf16>, vector<64x384xf32> -> vector<64x384xf32>
    %c0_58 = arith.constant 0 : index
    %c0_59 = arith.constant 0 : index
    %c0_60 = arith.constant 0 : index
    %89 = vector.load %arg9[%c0_58, %c0_59, %c0_60] : memref<5x64x1xf32, #tpu.memory_space<vmem>>, vector<1x64x1xf32>
    %90 = vector.shape_cast %89 : vector<1x64x1xf32> to vector<64x1xf32>
    %91 = vector.broadcast %90 : vector<64x1xf32> to vector<64x384xf32>
    %92 = arith.addf %88, %91 : vector<64x384xf32>
    %93 = vector.broadcast %85 : vector<1x384xf32> to vector<64x384xf32>
    %94 = arith.mulf %92, %93 : vector<64x384xf32>
    %c0_61 = arith.constant 0 : index
    %c0_62 = arith.constant 0 : index
    %c0_63 = arith.constant 0 : index
    %95 = vector.load %arg8[%c0_61, %c0_62, %c0_63] : memref<4x64x192xbf16, #tpu.memory_space<vmem>>, vector<1x64x192xbf16>
    %96 = vector.shape_cast %95 : vector<1x64x192xbf16> to vector<64x192xbf16>
    %c1_64 = arith.constant 1 : index
    %c0_65 = arith.constant 0 : index
    %c0_66 = arith.constant 0 : index
    %97 = vector.load %arg9[%c1_64, %c0_65, %c0_66] : memref<5x64x1xf32, #tpu.memory_space<vmem>>, vector<1x64x1xf32>
    %98 = vector.shape_cast %97 : vector<1x64x1xf32> to vector<64x1xf32>
    %c1_i32_67 = arith.constant 1 : i32
    %99 = tpu.dynamic_rotate %94 by %c1_i32_67 dim 1 : vector<64x384xf32>, i32 -> vector<64x384xf32>
    %c383_i32 = arith.constant 383 : i32
    %100 = tpu.dynamic_rotate %94 by %c383_i32 dim 1 : vector<64x384xf32>, i32 -> vector<64x384xf32>
    %101 = tpu.concatenate %99, %94, %100 in 0 : vector<64x384xf32>, vector<64x384xf32>, vector<64x384xf32> -> vector<192x384xf32>
    %102 = arith.truncf %101 : vector<192x384xf32> to vector<192x384xbf16>
    %cst_68 = arith.constant dense<0.000000e+00> : vector<64x384xf32>
    %103 = tpu.matmul %96, %102, %cst_68 {dimension_numbers = #tpu.dot_dimension_numbers<[1], [0], [0], [1], [0, 0, 1, 1], [], []>} : vector<64x192xbf16>, vector<192x384xbf16>, vector<64x384xf32> -> vector<64x384xf32>
    %104 = vector.broadcast %98 : vector<64x1xf32> to vector<64x384xf32>
    %105 = arith.addf %103, %104 : vector<64x384xf32>
    %cst_69 = arith.constant 0.000000e+00 : f32
    %106 = vector.broadcast %cst_69 : f32 to vector<64x384xf32>
    %107 = arith.maximumf %105, %106 : vector<64x384xf32>
    %108 = vector.broadcast %85 : vector<1x384xf32> to vector<64x384xf32>
    %109 = arith.mulf %107, %108 : vector<64x384xf32>
    %c1_70 = arith.constant 1 : index
    %c0_71 = arith.constant 0 : index
    %c0_72 = arith.constant 0 : index
    %110 = vector.load %arg8[%c1_70, %c0_71, %c0_72] : memref<4x64x192xbf16, #tpu.memory_space<vmem>>, vector<1x64x192xbf16>
    %111 = vector.shape_cast %110 : vector<1x64x192xbf16> to vector<64x192xbf16>
    %c2_73 = arith.constant 2 : index
    %c0_74 = arith.constant 0 : index
    %c0_75 = arith.constant 0 : index
    %112 = vector.load %arg9[%c2_73, %c0_74, %c0_75] : memref<5x64x1xf32, #tpu.memory_space<vmem>>, vector<1x64x1xf32>
    %113 = vector.shape_cast %112 : vector<1x64x1xf32> to vector<64x1xf32>
    %c1_i32_76 = arith.constant 1 : i32
    %114 = tpu.dynamic_rotate %109 by %c1_i32_76 dim 1 : vector<64x384xf32>, i32 -> vector<64x384xf32>
    %c383_i32_77 = arith.constant 383 : i32
    %115 = tpu.dynamic_rotate %109 by %c383_i32_77 dim 1 : vector<64x384xf32>, i32 -> vector<64x384xf32>
    %116 = tpu.concatenate %114, %109, %115 in 0 : vector<64x384xf32>, vector<64x384xf32>, vector<64x384xf32> -> vector<192x384xf32>
    %117 = arith.truncf %116 : vector<192x384xf32> to vector<192x384xbf16>
    %cst_78 = arith.constant dense<0.000000e+00> : vector<64x384xf32>
    %118 = tpu.matmul %111, %117, %cst_78 {dimension_numbers = #tpu.dot_dimension_numbers<[1], [0], [0], [1], [0, 0, 1, 1], [], []>} : vector<64x192xbf16>, vector<192x384xbf16>, vector<64x384xf32> -> vector<64x384xf32>
    %119 = vector.broadcast %113 : vector<64x1xf32> to vector<64x384xf32>
    %120 = arith.addf %118, %119 : vector<64x384xf32>
    %cst_79 = arith.constant 0.000000e+00 : f32
    %121 = vector.broadcast %cst_79 : f32 to vector<64x384xf32>
    %122 = arith.maximumf %120, %121 : vector<64x384xf32>
    %123 = vector.broadcast %85 : vector<1x384xf32> to vector<64x384xf32>
    %124 = arith.mulf %122, %123 : vector<64x384xf32>
    %c2_80 = arith.constant 2 : index
    %c0_81 = arith.constant 0 : index
    %c0_82 = arith.constant 0 : index
    %125 = vector.load %arg8[%c2_80, %c0_81, %c0_82] : memref<4x64x192xbf16, #tpu.memory_space<vmem>>, vector<1x64x192xbf16>
    %126 = vector.shape_cast %125 : vector<1x64x192xbf16> to vector<64x192xbf16>
    %c3_83 = arith.constant 3 : index
    %c0_84 = arith.constant 0 : index
    %c0_85 = arith.constant 0 : index
    %127 = vector.load %arg9[%c3_83, %c0_84, %c0_85] : memref<5x64x1xf32, #tpu.memory_space<vmem>>, vector<1x64x1xf32>
    %128 = vector.shape_cast %127 : vector<1x64x1xf32> to vector<64x1xf32>
    %c1_i32_86 = arith.constant 1 : i32
    %129 = tpu.dynamic_rotate %124 by %c1_i32_86 dim 1 : vector<64x384xf32>, i32 -> vector<64x384xf32>
    %c383_i32_87 = arith.constant 383 : i32
    %130 = tpu.dynamic_rotate %124 by %c383_i32_87 dim 1 : vector<64x384xf32>, i32 -> vector<64x384xf32>
    %131 = tpu.concatenate %129, %124, %130 in 0 : vector<64x384xf32>, vector<64x384xf32>, vector<64x384xf32> -> vector<192x384xf32>
    %132 = arith.truncf %131 : vector<192x384xf32> to vector<192x384xbf16>
    %cst_88 = arith.constant dense<0.000000e+00> : vector<64x384xf32>
    %133 = tpu.matmul %126, %132, %cst_88 {dimension_numbers = #tpu.dot_dimension_numbers<[1], [0], [0], [1], [0, 0, 1, 1], [], []>} : vector<64x192xbf16>, vector<192x384xbf16>, vector<64x384xf32> -> vector<64x384xf32>
    %134 = vector.broadcast %128 : vector<64x1xf32> to vector<64x384xf32>
    %135 = arith.addf %133, %134 : vector<64x384xf32>
    %cst_89 = arith.constant 0.000000e+00 : f32
    %136 = vector.broadcast %cst_89 : f32 to vector<64x384xf32>
    %137 = arith.maximumf %135, %136 : vector<64x384xf32>
    %138 = vector.broadcast %85 : vector<1x384xf32> to vector<64x384xf32>
    %139 = arith.mulf %137, %138 : vector<64x384xf32>
    %c3_90 = arith.constant 3 : index
    %c0_91 = arith.constant 0 : index
    %c0_92 = arith.constant 0 : index
    %140 = vector.load %arg8[%c3_90, %c0_91, %c0_92] : memref<4x64x192xbf16, #tpu.memory_space<vmem>>, vector<1x64x192xbf16>
    %141 = vector.shape_cast %140 : vector<1x64x192xbf16> to vector<64x192xbf16>
    %c4_93 = arith.constant 4 : index
    %c0_94 = arith.constant 0 : index
    %c0_95 = arith.constant 0 : index
    %142 = vector.load %arg9[%c4_93, %c0_94, %c0_95] : memref<5x64x1xf32, #tpu.memory_space<vmem>>, vector<1x64x1xf32>
    %143 = vector.shape_cast %142 : vector<1x64x1xf32> to vector<64x1xf32>
    %c1_i32_96 = arith.constant 1 : i32
    %144 = tpu.dynamic_rotate %139 by %c1_i32_96 dim 1 : vector<64x384xf32>, i32 -> vector<64x384xf32>
    %c383_i32_97 = arith.constant 383 : i32
    %145 = tpu.dynamic_rotate %139 by %c383_i32_97 dim 1 : vector<64x384xf32>, i32 -> vector<64x384xf32>
    %146 = tpu.concatenate %144, %139, %145 in 0 : vector<64x384xf32>, vector<64x384xf32>, vector<64x384xf32> -> vector<192x384xf32>
    %147 = arith.truncf %146 : vector<192x384xf32> to vector<192x384xbf16>
    %cst_98 = arith.constant dense<0.000000e+00> : vector<64x384xf32>
    %148 = tpu.matmul %141, %147, %cst_98 {dimension_numbers = #tpu.dot_dimension_numbers<[1], [0], [0], [1], [0, 0, 1, 1], [], []>} : vector<64x192xbf16>, vector<192x384xbf16>, vector<64x384xf32> -> vector<64x384xf32>
    %149 = vector.broadcast %143 : vector<64x1xf32> to vector<64x384xf32>
    %150 = arith.addf %148, %149 : vector<64x384xf32>
    %cst_99 = arith.constant 0.000000e+00 : f32
    %151 = vector.broadcast %cst_99 : f32 to vector<64x384xf32>
    %152 = arith.maximumf %150, %151 : vector<64x384xf32>
    %153 = vector.broadcast %85 : vector<1x384xf32> to vector<64x384xf32>
    %154 = arith.mulf %152, %153 : vector<64x384xf32>
    %c383_i32_100 = arith.constant 383 : i32
    %155 = tpu.dynamic_rotate %154 by %c383_i32_100 dim 1 : vector<64x384xf32>, i32 -> vector<64x384xf32>
    %156 = arith.maximumf %154, %155 : vector<64x384xf32>
    %157 = arith.truncf %156 : vector<64x384xf32> to vector<64x384xbf16>
    %c0_101 = arith.constant 0 : index
    %c0_102 = arith.constant 0 : index
    %158 = vector.load %arg13[%c0_101, %c0_102] : memref<384x124xbf16, #tpu.memory_space<vmem>>, vector<384x124xbf16>
    %cst_103 = arith.constant dense<0.000000e+00> : vector<64x124xf32>
    %159 = tpu.matmul %157, %158, %cst_103 {dimension_numbers = #tpu.dot_dimension_numbers<[1], [0], [0], [1], [0, 0, 1, 1], [], []>} : vector<64x384xbf16>, vector<384x124xbf16>, vector<64x124xf32> -> vector<64x124xf32>
    %c0_104 = arith.constant 0 : index
    %c0_105 = arith.constant 0 : index
    %c0_106 = arith.constant 0 : index
    %160 = vector.load %arg14[%c0_104, %c0_105, %c0_106] : memref<8x64x124xbf16, #tpu.memory_space<vmem>>, vector<1x64x124xbf16>
    %161 = vector.shape_cast %160 : vector<1x64x124xbf16> to vector<64x124xbf16>
    %162 = arith.extf %161 : vector<64x124xbf16> to vector<64x124xf32>
    %163 = arith.mulf %162, %159 : vector<64x124xf32>
    %cst_107 = arith.constant dense<0.000000e+00> : vector<124xf32>
    %164 = vector.multi_reduction <add>, %163, %cst_107 [0] : vector<64x124xf32> to vector<124xf32>
    %165 = vector.shape_cast %164 : vector<124xf32> to vector<1x124xf32>
    %c1_108 = arith.constant 1 : index
    %c0_109 = arith.constant 0 : index
    %c0_110 = arith.constant 0 : index
    %166 = vector.load %arg14[%c1_108, %c0_109, %c0_110] : memref<8x64x124xbf16, #tpu.memory_space<vmem>>, vector<1x64x124xbf16>
    %167 = vector.shape_cast %166 : vector<1x64x124xbf16> to vector<64x124xbf16>
    %168 = arith.extf %167 : vector<64x124xbf16> to vector<64x124xf32>
    %169 = arith.mulf %168, %159 : vector<64x124xf32>
    %cst_111 = arith.constant dense<0.000000e+00> : vector<124xf32>
    %170 = vector.multi_reduction <add>, %169, %cst_111 [0] : vector<64x124xf32> to vector<124xf32>
    %171 = vector.shape_cast %170 : vector<124xf32> to vector<1x124xf32>
    %c2_112 = arith.constant 2 : index
    %c0_113 = arith.constant 0 : index
    %c0_114 = arith.constant 0 : index
    %172 = vector.load %arg14[%c2_112, %c0_113, %c0_114] : memref<8x64x124xbf16, #tpu.memory_space<vmem>>, vector<1x64x124xbf16>
    %173 = vector.shape_cast %172 : vector<1x64x124xbf16> to vector<64x124xbf16>
    %174 = arith.extf %173 : vector<64x124xbf16> to vector<64x124xf32>
    %175 = arith.mulf %174, %159 : vector<64x124xf32>
    %cst_115 = arith.constant dense<0.000000e+00> : vector<124xf32>
    %176 = vector.multi_reduction <add>, %175, %cst_115 [0] : vector<64x124xf32> to vector<124xf32>
    %177 = vector.shape_cast %176 : vector<124xf32> to vector<1x124xf32>
    %c3_116 = arith.constant 3 : index
    %c0_117 = arith.constant 0 : index
    %c0_118 = arith.constant 0 : index
    %178 = vector.load %arg14[%c3_116, %c0_117, %c0_118] : memref<8x64x124xbf16, #tpu.memory_space<vmem>>, vector<1x64x124xbf16>
    %179 = vector.shape_cast %178 : vector<1x64x124xbf16> to vector<64x124xbf16>
    %180 = arith.extf %179 : vector<64x124xbf16> to vector<64x124xf32>
    %181 = arith.mulf %180, %159 : vector<64x124xf32>
    %cst_119 = arith.constant dense<0.000000e+00> : vector<124xf32>
    %182 = vector.multi_reduction <add>, %181, %cst_119 [0] : vector<64x124xf32> to vector<124xf32>
    %183 = vector.shape_cast %182 : vector<124xf32> to vector<1x124xf32>
    %c4_120 = arith.constant 4 : index
    %c0_121 = arith.constant 0 : index
    %c0_122 = arith.constant 0 : index
    %184 = vector.load %arg14[%c4_120, %c0_121, %c0_122] : memref<8x64x124xbf16, #tpu.memory_space<vmem>>, vector<1x64x124xbf16>
    %185 = vector.shape_cast %184 : vector<1x64x124xbf16> to vector<64x124xbf16>
    %186 = arith.extf %185 : vector<64x124xbf16> to vector<64x124xf32>
    %187 = arith.mulf %186, %159 : vector<64x124xf32>
    %cst_123 = arith.constant dense<0.000000e+00> : vector<124xf32>
    %188 = vector.multi_reduction <add>, %187, %cst_123 [0] : vector<64x124xf32> to vector<124xf32>
    %189 = vector.shape_cast %188 : vector<124xf32> to vector<1x124xf32>
    %c5 = arith.constant 5 : index
    %c0_124 = arith.constant 0 : index
    %c0_125 = arith.constant 0 : index
    %190 = vector.load %arg14[%c5, %c0_124, %c0_125] : memref<8x64x124xbf16, #tpu.memory_space<vmem>>, vector<1x64x124xbf16>
    %191 = vector.shape_cast %190 : vector<1x64x124xbf16> to vector<64x124xbf16>
    %192 = arith.extf %191 : vector<64x124xbf16> to vector<64x124xf32>
    %193 = arith.mulf %192, %159 : vector<64x124xf32>
    %cst_126 = arith.constant dense<0.000000e+00> : vector<124xf32>
    %194 = vector.multi_reduction <add>, %193, %cst_126 [0] : vector<64x124xf32> to vector<124xf32>
    %195 = vector.shape_cast %194 : vector<124xf32> to vector<1x124xf32>
    %c6 = arith.constant 6 : index
    %c0_127 = arith.constant 0 : index
    %c0_128 = arith.constant 0 : index
    %196 = vector.load %arg14[%c6, %c0_127, %c0_128] : memref<8x64x124xbf16, #tpu.memory_space<vmem>>, vector<1x64x124xbf16>
    %197 = vector.shape_cast %196 : vector<1x64x124xbf16> to vector<64x124xbf16>
    %198 = arith.extf %197 : vector<64x124xbf16> to vector<64x124xf32>
    %199 = arith.mulf %198, %159 : vector<64x124xf32>
    %cst_129 = arith.constant dense<0.000000e+00> : vector<124xf32>
    %200 = vector.multi_reduction <add>, %199, %cst_129 [0] : vector<64x124xf32> to vector<124xf32>
    %201 = vector.shape_cast %200 : vector<124xf32> to vector<1x124xf32>
    %c7 = arith.constant 7 : index
    %c0_130 = arith.constant 0 : index
    %c0_131 = arith.constant 0 : index
    %202 = vector.load %arg14[%c7, %c0_130, %c0_131] : memref<8x64x124xbf16, #tpu.memory_space<vmem>>, vector<1x64x124xbf16>
    %203 = vector.shape_cast %202 : vector<1x64x124xbf16> to vector<64x124xbf16>
    %204 = arith.extf %203 : vector<64x124xbf16> to vector<64x124xf32>
    %205 = arith.mulf %204, %159 : vector<64x124xf32>
    %cst_132 = arith.constant dense<0.000000e+00> : vector<124xf32>
    %206 = vector.multi_reduction <add>, %205, %cst_132 [0] : vector<64x124xf32> to vector<124xf32>
    %207 = vector.shape_cast %206 : vector<124xf32> to vector<1x124xf32>
    %208 = tpu.concatenate %165, %171, %177, %183, %189, %195, %201, %207 in 0 : vector<1x124xf32>, vector<1x124xf32>, vector<1x124xf32>, vector<1x124xf32>, vector<1x124xf32>, vector<1x124xf32>, vector<1x124xf32>, vector<1x124xf32> -> vector<8x124xf32>
    %209 = arith.truncf %208 : vector<8x124xf32> to vector<8x124xbf16>
    %c0_133 = arith.constant 0 : index
    %c0_134 = arith.constant 0 : index
    %210 = vector.load %arg15[%c0_133, %c0_134] : memref<124x4xbf16, #tpu.memory_space<vmem>>, vector<124x4xbf16>
    %cst_135 = arith.constant dense<0.000000e+00> : vector<8x4xf32>
    %211 = tpu.matmul %209, %210, %cst_135 {dimension_numbers = #tpu.dot_dimension_numbers<[1], [0], [0], [1], [0, 0, 1, 1], [], []>} : vector<8x124xbf16>, vector<124x4xbf16>, vector<8x4xf32> -> vector<8x4xf32>
    %c0_136 = arith.constant 0 : index
    %c0_137 = arith.constant 0 : index
    %212 = vector.load %arg16[%c0_136, %c0_137] : memref<8x1xf32, #tpu.memory_space<vmem>>, vector<8x1xf32>
    %213 = vector.broadcast %212 : vector<8x1xf32> to vector<8x4xf32>
    %214 = arith.addf %211, %213 : vector<8x4xf32>
    %c0_138 = arith.constant 0 : index
    %c0_139 = arith.constant 0 : index
    %c0_140 = arith.constant 0 : index
    %215 = vector.load %arg17[%c0_138, %c0_139, %c0_140] : memref<1x8x4xf32, #tpu.memory_space<vmem>>, vector<1x8x4xf32>
    %216 = vector.shape_cast %215 : vector<1x8x4xf32> to vector<8x4xf32>
    %217 = vector.shape_cast %214 : vector<8x4xf32> to vector<1x8x4xf32>
    tpu.vector_store %arg17[%c0_138, %c0_139, %c0_140], %217 {strides = array<i32>} : memref<1x8x4xf32, #tpu.memory_space<vmem>>, vector<1x8x4xf32>,
    return
  }
  func.func @transform_0(%arg0: i32) -> (i32, i32, i32) {
    %c0_i32 = arith.constant 0 : i32
    %c0_i32_0 = arith.constant 0 : i32
    %c0_i32_1 = arith.constant 0 : i32
    return %arg0, %c0_i32, %c0_i32_0 : i32, i32, i32
  }
  func.func @transform_1(%arg0: i32) -> (i32, i32) {
    %c0_i32 = arith.constant 0 : i32
    %c0_i32_0 = arith.constant 0 : i32
    %c0_i32_1 = arith.constant 0 : i32
    return %c0_i32, %c0_i32_0 : i32, i32
  }
  func.func @transform_2(%arg0: i32) -> (i32, i32) {
    %c0_i32 = arith.constant 0 : i32
    %c0_i32_0 = arith.constant 0 : i32
    %c0_i32_1 = arith.constant 0 : i32
    return %c0_i32, %c0_i32_0 : i32, i32
  }
  func.func @transform_3(%arg0: i32) -> (i32, i32) {
    %c0_i32 = arith.constant 0 : i32
    %c0_i32_0 = arith.constant 0 : i32
    %c0_i32_1 = arith.constant 0 : i32
    return %c0_i32, %c0_i32_0 : i32, i32
  }
  func.func @transform_4(%arg0: i32) -> (i32, i32, i32) {
    %c0_i32 = arith.constant 0 : i32
    %c0_i32_0 = arith.constant 0 : i32
    %c0_i32_1 = arith.constant 0 : i32
    %c0_i32_2 = arith.constant 0 : i32
    return %c0_i32, %c0_i32_0, %c0_i32_1 : i32, i32, i32
  }
  func.func @transform_5(%arg0: i32) -> (i32, i32, i32) {
    %c0_i32 = arith.constant 0 : i32
    %c0_i32_0 = arith.constant 0 : i32
    %c0_i32_1 = arith.constant 0 : i32
    %c0_i32_2 = arith.constant 0 : i32
    return %c0_i32, %c0_i32_0, %c0_i32_1 : i32, i32, i32
  }
  func.func @transform_6(%arg0: i32) -> (i32, i32) {
    %c0_i32 = arith.constant 0 : i32
    %c0_i32_0 = arith.constant 0 : i32
    %c0_i32_1 = arith.constant 0 : i32
    return %c0_i32, %c0_i32_0 : i32, i32
  }
  func.func @transform_7(%arg0: i32) -> (i32, i32, i32) {
    %c0_i32 = arith.constant 0 : i32
    %c0_i32_0 = arith.constant 0 : i32
    %c0_i32_1 = arith.constant 0 : i32
    %c0_i32_2 = arith.constant 0 : i32
    return %c0_i32, %c0_i32_0, %c0_i32_1 : i32, i32, i32
  }
  func.func @transform_8(%arg0: i32) -> (i32, i32, i32) {
    %c0_i32 = arith.constant 0 : i32
    %c0_i32_0 = arith.constant 0 : i32
    %c0_i32_1 = arith.constant 0 : i32
    %c0_i32_2 = arith.constant 0 : i32
    return %c0_i32, %c0_i32_0, %c0_i32_1 : i32, i32, i32
  }
  func.func @transform_9(%arg0: i32) -> (i32, i32) {
    %c0_i32 = arith.constant 0 : i32
    %c0_i32_0 = arith.constant 0 : i32
    %c0_i32_1 = arith.constant 0 : i32
    return %c0_i32, %c0_i32_0 : i32, i32
  }
  func.func @transform_10(%arg0: i32) -> (i32, i32) {
    %c0_i32 = arith.constant 0 : i32
    %c0_i32_0 = arith.constant 0 : i32
    %c0_i32_1 = arith.constant 0 : i32
    return %c0_i32, %c0_i32_0 : i32, i32
  }
  func.func @transform_11(%arg0: i32) -> (i32, i32) {
    %c0_i32 = arith.constant 0 : i32
    %c0_i32_0 = arith.constant 0 : i32
    %c0_i32_1 = arith.constant 0 : i32
    return %c0_i32, %c0_i32_0 : i32, i32
  }
  func.func @transform_12(%arg0: i32) -> (i32, i32) {
    %c0_i32 = arith.constant 0 : i32
    %c0_i32_0 = arith.constant 0 : i32
    %c0_i32_1 = arith.constant 0 : i32
    return %c0_i32, %c0_i32_0 : i32, i32
  }
  func.func @transform_13(%arg0: i32) -> (i32, i32, i32) {
    %c0_i32 = arith.constant 0 : i32
    %c0_i32_0 = arith.constant 0 : i32
    %c0_i32_1 = arith.constant 0 : i32
    %c0_i32_2 = arith.constant 0 : i32
    return %c0_i32, %c0_i32_0, %c0_i32_1 : i32, i32, i32
  }
  func.func @transform_14(%arg0: i32) -> (i32, i32) {
    %c0_i32 = arith.constant 0 : i32
    %c0_i32_0 = arith.constant 0 : i32
    %c0_i32_1 = arith.constant 0 : i32
    return %c0_i32, %c0_i32_0 : i32, i32
  }
  func.func @transform_15(%arg0: i32) -> (i32, i32) {
    %c0_i32 = arith.constant 0 : i32
    %c0_i32_0 = arith.constant 0 : i32
    %c0_i32_1 = arith.constant 0 : i32
    return %c0_i32, %c0_i32_0 : i32, i32
  }
  func.func @transform_16(%arg0: i32) -> (i32, i32, i32) {
    %c0_i32 = arith.constant 0 : i32
    %c0_i32_0 = arith.constant 0 : i32
    %c0_i32_1 = arith.constant 0 : i32
    return %arg0, %c0_i32, %c0_i32_0 : i32, i32, i32
  }
}

</mosaic_0001>

<llo_original>
// kernel: resnet1d_forward.1
$region0: #{resnet1d_forward.1}
  #allocation0 [shape = 'u32[]', space=smem, size = 0x4, offset = 0x4, fixed_abs, tag = 'smem constant byte address 0x4 - core index']
  #allocation1 [shape = 'u32[72,128]{1,0:T(1,128)}', space=vmem, size = 0x9000, scoped, tag = 'internal scratch']
  %s0 = inlined_call_operand.vmem [shape: f32[2,6,512], index: 0, kind: input, shape index: {}]
  %s1 = inlined_call_operand.vmem [shape: bf16[64,6], index: 1, kind: input, shape index: {}]
  %s2 = inlined_call_operand.vmem [shape: f32[64,1], index: 2, kind: input, shape index: {}]
  %s3 = inlined_call_operand.vmem [shape: bf16[64,64], index: 3, kind: input, shape index: {}]
  %s4 = inlined_call_operand.vmem [shape: bf16[4,64,192], index: 4, kind: input, shape index: {}]
  %s5 = inlined_call_operand.vmem [shape: f32[5,64,1], index: 5, kind: input, shape index: {}]
  %s6 = inlined_call_operand.vmem [shape: bf16[64,64], index: 6, kind: input, shape index: {}]
  %s7 = inlined_call_operand.vmem [shape: bf16[4,64,192], index: 7, kind: input, shape index: {}]
  %s8 = inlined_call_operand.vmem [shape: f32[5,64,1], index: 8, kind: input, shape index: {}]
  %s9 = inlined_call_operand.vmem [shape: f32[1,512], index: 9, kind: input, shape index: {}]
  %s10 = inlined_call_operand.vmem [shape: f32[1,384], index: 10, kind: input, shape index: {}]
  %s11 = inlined_call_operand.vmem [shape: bf16[512,384], index: 11, kind: input, shape index: {}]
  %s12 = inlined_call_operand.vmem [shape: bf16[384,124], index: 12, kind: input, shape index: {}]
  %s13 = inlined_call_operand.vmem [shape: bf16[8,64,124], index: 13, kind: input, shape index: {}]
  %s14 = inlined_call_operand.vmem [shape: bf16[124,4], index: 14, kind: input, shape index: {}]
  %s15 = inlined_call_operand.vmem [shape: f32[8,1], index: 15, kind: input, shape index: {}]
  %s16 = inlined_call_operand.vmem [shape: f32[2,8,4], index: 16, kind: output, shape index: {}]
  %s17 = sld [smem:[#allocation0]]
  $region97: #{resnet1d_forward.1} parent=0
    _
  %s19 = ssub.s32 1, %s17
  %s20 = scalar_select 0, %s19, %s17
  loop: start=0, step=1, limit=4
  $region2: #{resnet1d_forward.1} parent=0 // loop_pre_header
    _
  $region3: #{resnet1d_forward.1} parent=0 // loop_header
    %s22 = sphi 0, %s26
    %p23 = scmp.ge.s32.totalorder %s22, 4
    %s32 = sphi 0, %s34
    %s35 = sphi 0, %s32
    %s36 = sphi 0, %s35
    %s52 = sphi 0, %s36
    %s56 = sphi 0, %s56
    %s58 = sphi 0, %s56
    %s59 = sphi 0, %s58
    %s73 = sphi 0, %s59
    %s77 = sphi 0, %s77
    %s79 = sphi 0, %s77
    %s80 = sphi 0, %s79
    %s94 = sphi 0, %s80
    %s98 = sphi 0, %s98
    %s100 = sphi 0, %s98
    %s101 = sphi 0, %s100
    %s115 = sphi 0, %s101
    %s119 = sphi 0, %s119
    %s121 = sphi 0, %s119
    %s122 = sphi 0, %s121
    %s136 = sphi 0, %s122
    %s140 = sphi 0, %s140
    %s142 = sphi 0, %s140
    %s143 = sphi 0, %s142
    %s157 = sphi 0, %s143
    %s161 = sphi 0, %s161
    %s163 = sphi 0, %s161
    %s164 = sphi 0, %s163
    %s178 = sphi 0, %s164
    %s182 = sphi 0, %s182
    %s184 = sphi 0, %s182
    %s185 = sphi 0, %s184
    %s199 = sphi 0, %s185
    %s203 = sphi 0, %s203
    %s205 = sphi 0, %s203
    %s206 = sphi 0, %s205
    %s220 = sphi 0, %s206
    %s224 = sphi 0, %s224
    %s226 = sphi 0, %s224
    %s227 = sphi 0, %s226
    %s241 = sphi 0, %s227
    %s245 = sphi 0, %s245
    %s247 = sphi 0, %s245
    %s248 = sphi 0, %s247
    %s262 = sphi 0, %s248
    %s266 = sphi 0, %s266
    %s268 = sphi 0, %s266
    %s269 = sphi 0, %s268
    %s283 = sphi 0, %s269
    %s287 = sphi 0, %s287
    %s289 = sphi 0, %s287
    %s290 = sphi 0, %s289
    %s304 = sphi 0, %s290
    %s308 = sphi 0, %s308
    %s310 = sphi 0, %s308
    %s311 = sphi 0, %s310
    %s325 = sphi 0, %s311
    %s329 = sphi 0, %s329
    %s331 = sphi 0, %s329
    %s332 = sphi 0, %s331
    %s346 = sphi 0, %s332
    %s350 = sphi 0, %s350
    %s352 = sphi 0, %s350
    %s353 = sphi 0, %s352
    %s367 = sphi 0, %s353
    %s373 = sphi 0, %s375
    %s376 = sphi 0, %s373
    %s377 = sphi 0, %s376
    %s393 = sphi 0, %s377
  $region4: #{resnet1d_forward.1} parent=0 // loop_header_branch
    %25 = sbr.rel (%p23) target = $region8
  $region5: #{resnet1d_forward.1} parent=0 // loop_body
    %s27 = ssub.s32 %s22, 1
    %s28 = ssub.s32 %s22, 2
    %s29 = sadd.s32 %s22, 1
    %s30 = ssub.s32 %s22, %s29
    %p31 = scmp.eq.s32.totalorder %s30, 0
    %s33 = sadd.s32 %s32, 1
    %s34 = scalar_select %p31, %s32, %s33
    %p37 = pneg %p31
    %p38 = scmp.eq.s32.totalorder %s22, 1
    %p39 = por %p37, %p38
    %p40 = scmp.ne.s32.totalorder %s32, %s35
    %p41 = scmp.eq.s32.totalorder %s22, 0
    %p42 = por %p40, %p41
    %p43 = scmp.ne.s32.totalorder %s32, %s35
    %p44 = scmp.eq.s32.totalorder %s27, 1
    %p45 = por %p43, %p44
    %p46 = scmp.ne.s32.totalorder %s35, %s36
    %p47 = scmp.eq.s32.totalorder %s27, 0
    %p48 = por %p46, %p47
    %p49 = scmp.ne.s32.totalorder %s35, %s36
    %p50 = scmp.eq.s32.totalorder %s28, 1
    %p51 = por %p49, %p50
    %p53 = scmp.ne.s32.totalorder %s36, %s52
    %p54 = scmp.eq.s32.totalorder %s28, 0
    %p55 = por %p53, %p54
    %s57 = sadd.s32 %s56, 1
    %p60 = scmp.eq.s32.totalorder %s22, 1
    %p61 = scmp.ne.s32.totalorder %s56, %s58
    %p62 = scmp.eq.s32.totalorder %s22, 0
    %p63 = por %p61, %p62
    %p64 = scmp.ne.s32.totalorder %s56, %s58
    %p65 = scmp.eq.s32.totalorder %s27, 1
    %p66 = por %p64, %p65
    %p67 = scmp.ne.s32.totalorder %s58, %s59
    %p68 = scmp.eq.s32.totalorder %s27, 0
    %p69 = por %p67, %p68
    %p70 = scmp.ne.s32.totalorder %s58, %s59
    %p71 = scmp.eq.s32.totalorder %s28, 1
    %p72 = por %p70, %p71
    %p74 = scmp.ne.s32.totalorder %s59, %s73
    %p75 = scmp.eq.s32.totalorder %s28, 0
    %p76 = por %p74, %p75
    %s78 = sadd.s32 %s77, 1
    %p81 = scmp.eq.s32.totalorder %s22, 1
    %p82 = scmp.ne.s32.totalorder %s77, %s79
    %p83 = scmp.eq.s32.totalorder %s22, 0
    %p84 = por %p82, %p83
    %p85 = scmp.ne.s32.totalorder %s77, %s79
    %p86 = scmp.eq.s32.totalorder %s27, 1
    %p87 = por %p85, %p86
    %p88 = scmp.ne.s32.totalorder %s79, %s80
    %p89 = scmp.eq.s32.totalorder %s27, 0
    %p90 = por %p88, %p89
    %p91 = scmp.ne.s32.totalorder %s79, %s80
    %p92 = scmp.eq.s32.totalorder %s28, 1
    %p93 = por %p91, %p92
    %p95 = scmp.ne.s32.totalorder %s80, %s94
    %p96 = scmp.eq.s32.totalorder %s28, 0
    %p97 = por %p95, %p96
    %s99 = sadd.s32 %s98, 1
    %p102 = scmp.eq.s32.totalorder %s22, 1
    %p103 = scmp.ne.s32.totalorder %s98, %s100
    %p104 = scmp.eq.s32.totalorder %s22, 0
    %p105 = por %p103, %p104
    %p106 = scmp.ne.s32.totalorder %s98, %s100
    %p107 = scmp.eq.s32.totalorder %s27, 1
    %p108 = por %p106, %p107
    %p109 = scmp.ne.s32.totalorder %s100, %s101
    %p110 = scmp.eq.s32.totalorder %s27, 0
    %p111 = por %p109, %p110
    %p112 = scmp.ne.s32.totalorder %s100, %s101
    %p113 = scmp.eq.s32.totalorder %s28, 1
    %p114 = por %p112, %p113
    %p116 = scmp.ne.s32.totalorder %s101, %s115
    %p117 = scmp.eq.s32.totalorder %s28, 0
    %p118 = por %p116, %p117
    %s120 = sadd.s32 %s119, 1
    %p123 = scmp.eq.s32.totalorder %s22, 1
    %p124 = scmp.ne.s32.totalorder %s119, %s121
    %p125 = scmp.eq.s32.totalorder %s22, 0
    %p126 = por %p124, %p125
    %p127 = scmp.ne.s32.totalorder %s119, %s121
    %p128 = scmp.eq.s32.totalorder %s27, 1
    %p129 = por %p127, %p128
    %p130 = scmp.ne.s32.totalorder %s121, %s122
    %p131 = scmp.eq.s32.totalorder %s27, 0
    %p132 = por %p130, %p131
    %p133 = scmp.ne.s32.totalorder %s121, %s122
    %p134 = scmp.eq.s32.totalorder %s28, 1
    %p135 = por %p133, %p134
    %p137 = scmp.ne.s32.totalorder %s122, %s136
    %p138 = scmp.eq.s32.totalorder %s28, 0
    %p139 = por %p137, %p138
    %s141 = sadd.s32 %s140, 1
    %p144 = scmp.eq.s32.totalorder %s22, 1
    %p145 = scmp.ne.s32.totalorder %s140, %s142
    %p146 = scmp.eq.s32.totalorder %s22, 0
    %p147 = por %p145, %p146
    %p148 = scmp.ne.s32.totalorder %s140, %s142
    %p149 = scmp.eq.s32.totalorder %s27, 1
    %p150 = por %p148, %p149
    %p151 = scmp.ne.s32.totalorder %s142, %s143
    %p152 = scmp.eq.s32.totalorder %s27, 0
    %p153 = por %p151, %p152
    %p154 = scmp.ne.s32.totalorder %s142, %s143
    %p155 = scmp.eq.s32.totalorder %s28, 1
    %p156 = por %p154, %p155
    %p158 = scmp.ne.s32.totalorder %s143, %s157
    %p159 = scmp.eq.s32.totalorder %s28, 0
    %p160 = por %p158, %p159
    %s162 = sadd.s32 %s161, 1
    %p165 = scmp.eq.s32.totalorder %s22, 1
    %p166 = scmp.ne.s32.totalorder %s161, %s163
    %p167 = scmp.eq.s32.totalorder %s22, 0
    %p168 = por %p166, %p167
    %p169 = scmp.ne.s32.totalorder %s161, %s163
    %p170 = scmp.eq.s32.totalorder %s27, 1
    %p171 = por %p169, %p170
    %p172 = scmp.ne.s32.totalorder %s163, %s164
    %p173 = scmp.eq.s32.totalorder %s27, 0
    %p174 = por %p172, %p173
    %p175 = scmp.ne.s32.totalorder %s163, %s164
    %p176 = scmp.eq.s32.totalorder %s28, 1
    %p177 = por %p175, %p176
    %p179 = scmp.ne.s32.totalorder %s164, %s178
    %p180 = scmp.eq.s32.totalorder %s28, 0
    %p181 = por %p179, %p180
    %s183 = sadd.s32 %s182, 1
    %p186 = scmp.eq.s32.totalorder %s22, 1
    %p187 = scmp.ne.s32.totalorder %s182, %s184
    %p188 = scmp.eq.s32.totalorder %s22, 0
    %p189 = por %p187, %p188
    %p190 = scmp.ne.s32.totalorder %s182, %s184
    %p191 = scmp.eq.s32.totalorder %s27, 1
    %p192 = por %p190, %p191
    %p193 = scmp.ne.s32.totalorder %s184, %s185
    %p194 = scmp.eq.s32.totalorder %s27, 0
    %p195 = por %p193, %p194
    %p196 = scmp.ne.s32.totalorder %s184, %s185
    %p197 = scmp.eq.s32.totalorder %s28, 1
    %p198 = por %p196, %p197
    %p200 = scmp.ne.s32.totalorder %s185, %s199
    %p201 = scmp.eq.s32.totalorder %s28, 0
    %p202 = por %p200, %p201
    %s204 = sadd.s32 %s203, 1
    %p207 = scmp.eq.s32.totalorder %s22, 1
    %p208 = scmp.ne.s32.totalorder %s203, %s205
    %p209 = scmp.eq.s32.totalorder %s22, 0
    %p210 = por %p208, %p209
    %p211 = scmp.ne.s32.totalorder %s203, %s205
    %p212 = scmp.eq.s32.totalorder %s27, 1
    %p213 = por %p211, %p212
    %p214 = scmp.ne.s32.totalorder %s205, %s206
    %p215 = scmp.eq.s32.totalorder %s27, 0
    %p216 = por %p214, %p215
    %p217 = scmp.ne.s32.totalorder %s205, %s206
    %p218 = scmp.eq.s32.totalorder %s28, 1
    %p219 = por %p217, %p218
    %p221 = scmp.ne.s32.totalorder %s206, %s220
    %p222 = scmp.eq.s32.totalorder %s28, 0
    %p223 = por %p221, %p222
    %s225 = sadd.s32 %s224, 1
    %p228 = scmp.eq.s32.totalorder %s22, 1
    %p229 = scmp.ne.s32.totalorder %s224, %s226
    %p230 = scmp.eq.s32.totalorder %s22, 0
    %p231 = por %p229, %p230
    %p232 = scmp.ne.s32.totalorder %s224, %s226
    %p233 = scmp.eq.s32.totalorder %s27, 1
    %p234 = por %p232, %p233
    %p235 = scmp.ne.s32.totalorder %s226, %s227
    %p236 = scmp.eq.s32.totalorder %s27, 0
    %p237 = por %p235, %p236
    %p238 = scmp.ne.s32.totalorder %s226, %s227
    %p239 = scmp.eq.s32.totalorder %s28, 1
    %p240 = por %p238, %p239
    %p242 = scmp.ne.s32.totalorder %s227, %s241
    %p243 = scmp.eq.s32.totalorder %s28, 0
    %p244 = por %p242, %p243
    %s246 = sadd.s32 %s245, 1
    %p249 = scmp.eq.s32.totalorder %s22, 1
    %p250 = scmp.ne.s32.totalorder %s245, %s247
    %p251 = scmp.eq.s32.totalorder %s22, 0
    %p252 = por %p250, %p251
    %p253 = scmp.ne.s32.totalorder %s245, %s247
    %p254 = scmp.eq.s32.totalorder %s27, 1
    %p255 = por %p253, %p254
    %p256 = scmp.ne.s32.totalorder %s247, %s248
    %p257 = scmp.eq.s32.totalorder %s27, 0
    %p258 = por %p256, %p257
    %p259 = scmp.ne.s32.totalorder %s247, %s248
    %p260 = scmp.eq.s32.totalorder %s28, 1
    %p261 = por %p259, %p260
    %p263 = scmp.ne.s32.totalorder %s248, %s262
    %p264 = scmp.eq.s32.totalorder %s28, 0
    %p265 = por %p263, %p264
    %s267 = sadd.s32 %s266, 1
    %p270 = scmp.eq.s32.totalorder %s22, 1
    %p271 = scmp.ne.s32.totalorder %s266, %s268
    %p272 = scmp.eq.s32.totalorder %s22, 0
    %p273 = por %p271, %p272
    %p274 = scmp.ne.s32.totalorder %s266, %s268
    %p275 = scmp.eq.s32.totalorder %s27, 1
    %p276 = por %p274, %p275
    %p277 = scmp.ne.s32.totalorder %s268, %s269
    %p278 = scmp.eq.s32.totalorder %s27, 0
    %p279 = por %p277, %p278
    %p280 = scmp.ne.s32.totalorder %s268, %s269
    %p281 = scmp.eq.s32.totalorder %s28, 1
    %p282 = por %p280, %p281
    %p284 = scmp.ne.s32.totalorder %s269, %s283
    %p285 = scmp.eq.s32.totalorder %s28, 0
    %p286 = por %p284, %p285
    %s288 = sadd.s32 %s287, 1
    %p291 = scmp.eq.s32.totalorder %s22, 1
    %p292 = scmp.ne.s32.totalorder %s287, %s289
    %p293 = scmp.eq.s32.totalorder %s22, 0
    %p294 = por %p292, %p293
    %p295 = scmp.ne.s32.totalorder %s287, %s289
    %p296 = scmp.eq.s32.totalorder %s27, 1
    %p297 = por %p295, %p296
    %p298 = scmp.ne.s32.totalorder %s289, %s290
    %p299 = scmp.eq.s32.totalorder %s27, 0
    %p300 = por %p298, %p299
    %p301 = scmp.ne.s32.totalorder %s289, %s290
    %p302 = scmp.eq.s32.totalorder %s28, 1
    %p303 = por %p301, %p302
    %p305 = scmp.ne.s32.totalorder %s290, %s304
    %p306 = scmp.eq.s32.totalorder %s28, 0
    %p307 = por %p305, %p306
    %s309 = sadd.s32 %s308, 1
    %p312 = scmp.eq.s32.totalorder %s22, 1
    %p313 = scmp.ne.s32.totalorder %s308, %s310
    %p314 = scmp.eq.s32.totalorder %s22, 0
    %p315 = por %p313, %p314
    %p316 = scmp.ne.s32.totalorder %s308, %s310
    %p317 = scmp.eq.s32.totalorder %s27, 1
    %p318 = por %p316, %p317
    %p319 = scmp.ne.s32.totalorder %s310, %s311
    %p320 = scmp.eq.s32.totalorder %s27, 0
    %p321 = por %p319, %p320
    %p322 = scmp.ne.s32.totalorder %s310, %s311
    %p323 = scmp.eq.s32.totalorder %s28, 1
    %p324 = por %p322, %p323
    %p326 = scmp.ne.s32.totalorder %s311, %s325
    %p327 = scmp.eq.s32.totalorder %s28, 0
    %p328 = por %p326, %p327
    %s330 = sadd.s32 %s329, 1
    %p333 = scmp.eq.s32.totalorder %s22, 1
    %p334 = scmp.ne.s32.totalorder %s329, %s331
    %p335 = scmp.eq.s32.totalorder %s22, 0
    %p336 = por %p334, %p335
    %p337 = scmp.ne.s32.totalorder %s329, %s331
    %p338 = scmp.eq.s32.totalorder %s27, 1
    %p339 = por %p337, %p338
    %p340 = scmp.ne.s32.totalorder %s331, %s332
    %p341 = scmp.eq.s32.totalorder %s27, 0
    %p342 = por %p340, %p341
    %p343 = scmp.ne.s32.totalorder %s331, %s332
    %p344 = scmp.eq.s32.totalorder %s28, 1
    %p345 = por %p343, %p344
    %p347 = scmp.ne.s32.totalorder %s332, %s346
    %p348 = scmp.eq.s32.totalorder %s28, 0
    %p349 = por %p347, %p348
    %s351 = sadd.s32 %s350, 1
    %p354 = scmp.eq.s32.totalorder %s22, 1
    %p355 = scmp.ne.s32.totalorder %s350, %s352
    %p356 = scmp.eq.s32.totalorder %s22, 0
    %p357 = por %p355, %p356
    %p358 = scmp.ne.s32.totalorder %s350, %s352
    %p359 = scmp.eq.s32.totalorder %s27, 1
    %p360 = por %p358, %p359
    %p361 = scmp.ne.s32.totalorder %s352, %s353
    %p362 = scmp.eq.s32.totalorder %s27, 0
    %p363 = por %p361, %p362
    %p364 = scmp.ne.s32.totalorder %s352, %s353
    %p365 = scmp.eq.s32.totalorder %s28, 1
    %p366 = por %p364, %p365
    %p368 = scmp.ne.s32.totalorder %s353, %s367
    %p369 = scmp.eq.s32.totalorder %s28, 0
    %p370 = por %p368, %p369
    %s371 = ssub.s32 %s22, %s29
    %p372 = scmp.eq.s32.totalorder %s371, 0
    %s374 = sadd.s32 %s373, 1
    %s375 = scalar_select %p372, %s373, %s374
    %p378 = pneg %p372
    %p379 = scmp.eq.s32.totalorder %s22, 1
    %p380 = por %p378, %p379
    %p381 = scmp.ne.s32.totalorder %s373, %s376
    %p382 = scmp.eq.s32.totalorder %s22, 0
    %p383 = por %p381, %p382
    %p384 = scmp.ne.s32.totalorder %s373, %s376
    %p385 = scmp.eq.s32.totalorder %s27, 1
    %p386 = por %p384, %p385
    %p387 = scmp.ne.s32.totalorder %s376, %s377
    %p388 = scmp.eq.s32.totalorder %s27, 0
    %p389 = por %p387, %p388
    %p390 = scmp.ne.s32.totalorder %s376, %s377
    %p391 = scmp.eq.s32.totalorder %s28, 1
    %p392 = por %p390, %p391
    %p394 = scmp.ne.s32.totalorder %s377, %s393
    %p395 = scmp.eq.s32.totalorder %s28, 0
    %p396 = por %p394, %p395
    %p397 = scmp.le.s32.totalorder 1, %s22
    %p398 = scmp.lt.s32.totalorder %s22, 3
    %p399 = pnand %p397, %p398
    %p400 = pneg %p399
    // Predicated region
    $region9: #{resnet1d_forward.1} parent=5 // pred_check
      _
    $region10: #{resnet1d_forward.1} parent=5 // pred_check_branch
      %402 = sbr.rel (%p399) target = $region12
    $region11: #{resnet1d_forward.1} parent=5 // pred_region
      %s403 = ssub.s32 %s22, 1
      // Predicated region
      $region13: #{resnet1d_forward.1} parent=11 // pred_check
        %p404 = pneg %p69
      $region14: #{resnet1d_forward.1} parent=11 // pred_check_branch
        %406 = sbr.rel (%p404) target = $region16
      $region15: #{resnet1d_forward.1} parent=11 // pred_region
        _
      $region16: #{resnet1d_forward.1} parent=11 // pred_fallthru
        _
      // Predicated region
      $region17: #{resnet1d_forward.1} parent=11 // pred_check
        %p407 = pneg %p90
      $region18: #{resnet1d_forward.1} parent=11 // pred_check_branch
        %409 = sbr.rel (%p407) target = $region20
      $region19: #{resnet1d_forward.1} parent=11 // pred_region
        _
      $region20: #{resnet1d_forward.1} parent=11 // pred_fallthru
        _
      // Predicated region
      $region21: #{resnet1d_forward.1} parent=11 // pred_check
        %p410 = pneg %p111
      $region22: #{resnet1d_forward.1} parent=11 // pred_check_branch
        %412 = sbr.rel (%p410) target = $region24
      $region23: #{resnet1d_forward.1} parent=11 // pred_region
        _
      $region24: #{resnet1d_forward.1} parent=11 // pred_fallthru
        _
      // Predicated region
      $region25: #{resnet1d_forward.1} parent=11 // pred_check
        %p413 = pneg %p132
      $region26: #{resnet1d_forward.1} parent=11 // pred_check_branch
        %415 = sbr.rel (%p413) target = $region28
      $region27: #{resnet1d_forward.1} parent=11 // pred_region
        _
      $region28: #{resnet1d_forward.1} parent=11 // pred_fallthru
        _
      // Predicated region
      $region29: #{resnet1d_forward.1} parent=11 // pred_check
        %p416 = pneg %p153
      $region30: #{resnet1d_forward.1} parent=11 // pred_check_branch
        %418 = sbr.rel (%p416) target = $region32
      $region31: #{resnet1d_forward.1} parent=11 // pred_region
        _
      $region32: #{resnet1d_forward.1} parent=11 // pred_fallthru
        _
      // Predicated region
      $region33: #{resnet1d_forward.1} parent=11 // pred_check
        %p419 = pneg %p174
      $region34: #{resnet1d_forward.1} parent=11 // pred_check_branch
        %421 = sbr.rel (%p419) target = $region36
      $region35: #{resnet1d_forward.1} parent=11 // pred_region
        _
      $region36: #{resnet1d_forward.1} parent=11 // pred_fallthru
        _
      // Predicated region
      $region37: #{resnet1d_forward.1} parent=11 // pred_check
        %p422 = pneg %p195
      $region38: #{resnet1d_forward.1} parent=11 // pred_check_branch
        %424 = sbr.rel (%p422) target = $region40
      $region39: #{resnet1d_forward.1} parent=11 // pred_region
        _
      $region40: #{resnet1d_forward.1} parent=11 // pred_fallthru
        _
      // Predicated region
      $region41: #{resnet1d_forward.1} parent=11 // pred_check
        %p425 = pneg %p216
      $region42: #{resnet1d_forward.1} parent=11 // pred_check_branch
        %427 = sbr.rel (%p425) target = $region44
      $region43: #{resnet1d_forward.1} parent=11 // pred_region
        _
      $region44: #{resnet1d_forward.1} parent=11 // pred_fallthru
        _
      // Predicated region
      $region45: #{resnet1d_forward.1} parent=11 // pred_check
        %p428 = pneg %p237
      $region46: #{resnet1d_forward.1} parent=11 // pred_check_branch
        %430 = sbr.rel (%p428) target = $region48
      $region47: #{resnet1d_forward.1} parent=11 // pred_region
        _
      $region48: #{resnet1d_forward.1} parent=11 // pred_fallthru
        _
      // Predicated region
      $region49: #{resnet1d_forward.1} parent=11 // pred_check
        %p431 = pneg %p258
      $region50: #{resnet1d_forward.1} parent=11 // pred_check_branch
        %433 = sbr.rel (%p431) target = $region52
      $region51: #{resnet1d_forward.1} parent=11 // pred_region
        _
      $region52: #{resnet1d_forward.1} parent=11 // pred_fallthru
        _
      // Predicated region
      $region53: #{resnet1d_forward.1} parent=11 // pred_check
        %p434 = pneg %p279
      $region54: #{resnet1d_forward.1} parent=11 // pred_check_branch
        %436 = sbr.rel (%p434) target = $region56
      $region55: #{resnet1d_forward.1} parent=11 // pred_region
        _
      $region56: #{resnet1d_forward.1} parent=11 // pred_fallthru
        _
      // Predicated region
      $region57: #{resnet1d_forward.1} parent=11 // pred_check
        %p437 = pneg %p300
      $region58: #{resnet1d_forward.1} parent=11 // pred_check_branch
        %439 = sbr.rel (%p437) target = $region60
      $region59: #{resnet1d_forward.1} parent=11 // pred_region
        _
      $region60: #{resnet1d_forward.1} parent=11 // pred_fallthru
        _
      // Predicated region
      $region61: #{resnet1d_forward.1} parent=11 // pred_check
        %p440 = pneg %p321
      $region62: #{resnet1d_forward.1} parent=11 // pred_check_branch
        %442 = sbr.rel (%p440) target = $region64
      $region63: #{resnet1d_forward.1} parent=11 // pred_region
        _
      $region64: #{resnet1d_forward.1} parent=11 // pred_fallthru
        _
      // Predicated region
      $region65: #{resnet1d_forward.1} parent=11 // pred_check
        %p443 = pneg %p342
      $region66: #{resnet1d_forward.1} parent=11 // pred_check_branch
        %445 = sbr.rel (%p443) target = $region68
      $region67: #{resnet1d_forward.1} parent=11 // pred_region
        _
      $region68: #{resnet1d_forward.1} parent=11 // pred_fallthru
        _
      // Predicated region
      $region69: #{resnet1d_forward.1} parent=11 // pred_check
        %p446 = pneg %p363
      $region70: #{resnet1d_forward.1} parent=11 // pred_check_branch
        %448 = sbr.rel (%p446) target = $region72
      $region71: #{resnet1d_forward.1} parent=11 // pred_region
        _
      $region72: #{resnet1d_forward.1} parent=11 // pred_fallthru
        _
    $region12: #{resnet1d_forward.1} parent=5 // pred_fallthru
      _
    %p449 = scmp.lt.s32.totalorder %s22, 2
    // Predicated region
    $region73: #{resnet1d_forward.1} parent=5 // pred_check
      %p450 = pneg %p449
    $region74: #{resnet1d_forward.1} parent=5 // pred_check_branch
      %452 = sbr.rel (%p450) target = $region76
    $region75: #{resnet1d_forward.1} parent=5 // pred_region
      // Predicated region
      $region77: #{resnet1d_forward.1} parent=75 // pred_check
        %p453 = pneg %p42
      $region78: #{resnet1d_forward.1} parent=75 // pred_check_branch
        %455 = sbr.rel (%p453) target = $region80
      $region79: #{resnet1d_forward.1} parent=75 // pred_region
        %p456 = scmp.lt.s32.totalorder %s22, 1
        %s457 = scalar_select %p456, %s22, 1
        %s458 = smul.addr %s457, 4
        %s459 = smul.addr %s458, 8
        %s460 = scalar_lea.vmem %s0, %s459
      $region80: #{resnet1d_forward.1} parent=75 // pred_fallthru
        _
    $region76: #{resnet1d_forward.1} parent=5 // pred_fallthru
      _
    %p461 = scmp.le.s32.totalorder 1, %s22
    %p462 = scmp.lt.s32.totalorder %s22, 3
    %p463 = pnand %p461, %p462
    %p464 = pneg %p463
    // Predicated region
    $region81: #{resnet1d_forward.1} parent=5 // pred_check
      _
    $region82: #{resnet1d_forward.1} parent=5 // pred_check_branch
      %466 = sbr.rel (%p463) target = $region84
    $region83: #{resnet1d_forward.1} parent=5 // pred_region
      %s467 = ssub.s32 %s22, 1
      %p468 = scmp.lt.s32.totalorder %s27, 1
      %s469 = scalar_select %p468, %s27, 1
      %s470 = smul.addr %s469, 4
      %s471 = smul.addr %s470, 8
      %s472 = scalar_lea.vmem %s0, %s471
      %p473 = pneg %p48
      %p474 = pneg %p45
      %p475 = pneg %p69
      %p476 = pneg %p66
      %p477 = pneg %p90
      %p478 = pneg %p87
      %p479 = pneg %p111
      %p480 = pneg %p108
      %p481 = pneg %p132
      %p482 = pneg %p129
      %p483 = pneg %p153
      %p484 = pneg %p150
      %p485 = pneg %p174
      %p486 = pneg %p171
      %p487 = pneg %p195
      %p488 = pneg %p192
      %p489 = pneg %p216
      %p490 = pneg %p213
      %p491 = pneg %p237
      %p492 = pneg %p234
      %p493 = pneg %p258
      %p494 = pneg %p255
      %p495 = pneg %p279
      %p496 = pneg %p276
      %p497 = pneg %p300
      %p498 = pneg %p297
      %p499 = pneg %p321
      %p500 = pneg %p318
      %p501 = pneg %p342
      %p502 = pneg %p339
      %p503 = pneg %p363
      %p504 = pneg %p360
      %p505 = pneg %p389
      %p506 = pneg %p386
      %p507 = scmp.lt.s32.totalorder %s27, 1
      %s508 = scalar_select %p507, %s27, 1
      %s509 = smul.addr %s508, 8
      %s510 = scalar_lea.vmem %s16, %s509
      %p511 = scmp.lt.s32.totalorder %s27, 1
      %s512 = scalar_select %p511, %s27, 1
      %s513 = smul.addr %s512, 4
      %s514 = smul.addr %s513, 8
      %s515 = scalar_lea.vmem %s0, %s514
      %p516 = scmp.lt.s32.totalorder %s27, 1
      %s517 = scalar_select %p516, %s27, 1
      %s518 = smul.addr %s517, 8
      %s519 = scalar_lea.vmem %s16, %s518
      %v521 = vld [vmem:[%s1] sm:$0xf]
      %v522 = vld [vmem:[%s1 + $0x4] sm:$0xf]
      %v523 = vld [vmem:[%s1 + $0x8] sm:$0xf]
      %v524 = vld [vmem:[%s1 + $0xc] sm:$0xf]
      %v525 = vld [vmem:[%s1 + $0x10] sm:$0xf]
      %v526 = vld [vmem:[%s1 + $0x14] sm:$0xf]
      %v527 = vld [vmem:[%s1 + $0x18] sm:$0xf]
      %v528 = vld [vmem:[%s1 + $0x1c] sm:$0xf]
      %v529 = vld [vmem:[%s515] sm:$0x3f]
      %v530 = vld [vmem:[%s515 + $0x8] sm:$0x3f]
      %v531 = vld [vmem:[%s515 + $0x10] sm:$0x3f]
      %v532 = vld [vmem:[%s515 + $0x18] sm:$0x3f]
      %v533 = vpack.c.bf16 %v529, %v529
      %v534 = vpack.c.bf16 %v530, %v530
      %v535 = vpack.c.bf16 %v531, %v531
      %v536 = vpack.c.bf16 %v532, %v532
      %v537 = vld [vmem:[%s2] sm:$0xff]
      %v538 = vld [vmem:[%s2 + $0x8] sm:$0xff]
      %v539 = vld [vmem:[%s2 + $0x10] sm:$0xff]
      %v540 = vld [vmem:[%s2 + $0x18] sm:$0xff]
      %v541 = vld [vmem:[%s2 + $0x20] sm:$0xff]
      %v542 = vld [vmem:[%s2 + $0x28] sm:$0xff]
      %v543 = vld [vmem:[%s2 + $0x30] sm:$0xff]
      %v544 = vld [vmem:[%s2 + $0x38] sm:$0xff]
      %546 = vset.pattern.permute.xlu0 0
      %547 = vperm.xlu0 %546, %v537
      %v548 = vpop.permute.xlu0 %547
      %551 = vset.pattern.permute.xlu0 0
      %552 = vperm.xlu0 %551, %v538
      %v553 = vpop.permute.xlu0 %552
      %556 = vset.pattern.permute.xlu0 0
      %557 = vperm.xlu0 %556, %v539
      %v558 = vpop.permute.xlu0 %557
      %561 = vset.pattern.permute.xlu0 0
      %562 = vperm.xlu0 %561, %v540
      %v563 = vpop.permute.xlu0 %562
      %566 = vset.pattern.permute.xlu0 0
      %567 = vperm.xlu0 %566, %v541
      %v568 = vpop.permute.xlu0 %567
      %571 = vset.pattern.permute.xlu0 0
      %572 = vperm.xlu0 %571, %v542
      %v573 = vpop.permute.xlu0 %572
      %576 = vset.pattern.permute.xlu0 0
      %577 = vperm.xlu0 %576, %v543
      %v578 = vpop.permute.xlu0 %577
      %581 = vset.pattern.permute.xlu0 0
      %582 = vperm.xlu0 %581, %v544
      %v583 = vpop.permute.xlu0 %582
      %v593 = vunpack.c.l.b16 %v521
      %v594 = vunpack.c.l.b16 %v522
      %v595 = vunpack.c.l.b16 %v523
      %v596 = vunpack.c.l.b16 %v524
      %v597 = vunpack.c.l.b16 %v525
      %v598 = vunpack.c.l.b16 %v526
      %v599 = vunpack.c.l.b16 %v527
      %v600 = vunpack.c.l.b16 %v528
      %v601 = vpack.c.b16 %v594, %v593
      %v602 = vpack.c.b16 %v596, %v595
      %v603 = vpack.c.b16 %v598, %v597
      %v604 = vpack.c.b16 %v600, %v599
      %vm605 = vcmask 48128
      %v607 = vsel %vm605, %v601, 0
      %v610 = vsel %vm605, %v602, 0
      %v613 = vsel %vm605, %v603, 0
      %v616 = vsel %vm605, %v604, 0
      %vm618 = vcmask 1042432
      %v620 = vsel %vm618, %v533, 0
      %v623 = vsel %vm618, %v534, 0
      %v626 = vsel %vm618, %v535, 0
      %v629 = vsel %vm618, %v536, 0
      %631 = vmatpush.bf16.msra.mxu0 0
      %632 = vmatpush.bf16.msra.mxu0 0
      %633 = vmatpush.bf16.msra.mxu0 0
      %634 = vmatpush.bf16.msra.mxu0 0
      %635 = vmatpush.bf16.msra.mxu0 0
      %636 = vmatpush.bf16.msra.mxu0 0
      %637 = vmatpush.bf16.msra.mxu0 0
      %638 = vmatpush.bf16.msra.mxu0 %v620
      %639 = vmatmul.bf16.gmra.mxu0 %v607
      %v640 = vpop.f32.mrf.mxu0
      %v641 = vadd.f32 %v548, %v640
      %v642 = vpop.f32.mrf.mxu0
      %v643 = vadd.f32 %v553, %v642
      %644 = vmatmul.bf16.gmra.mxu0 %v610
      %v645 = vpop.f32.mrf.mxu0
      %v646 = vadd.f32 %v558, %v645
      %v647 = vpop.f32.mrf.mxu0
      %v648 = vadd.f32 %v563, %v647
      %649 = vmatmul.bf16.gmra.mxu0 %v613
      %v650 = vpop.f32.mrf.mxu0
      %v651 = vadd.f32 %v568, %v650
      %v652 = vpop.f32.mrf.mxu0
      %v653 = vadd.f32 %v573, %v652
      %654 = vmatmul.bf16.gmra.mxu0 %v616
      %v655 = vpop.f32.mrf.mxu0
      %v656 = vadd.f32 %v578, %v655
      %v657 = vpop.f32.mrf.mxu0
      %v658 = vadd.f32 %v583, %v657
      %659 = vdwg.mxu0
      %660 = vmatpush.bf16.msra.mxu0 0
      %661 = vmatpush.bf16.msra.mxu0 0
      %662 = vmatpush.bf16.msra.mxu0 0
      %663 = vmatpush.bf16.msra.mxu0 0
      %664 = vmatpush.bf16.msra.mxu0 0
      %665 = vmatpush.bf16.msra.mxu0 0
      %666 = vmatpush.bf16.msra.mxu0 0
      %667 = vmatpush.bf16.msra.mxu0 %v623
      %668 = vmatmul.bf16.gmra.mxu0 %v607
      %v669 = vpop.f32.mrf.mxu0
      %v670 = vadd.f32 %v548, %v669
      %v671 = vpop.f32.mrf.mxu0
      %v672 = vadd.f32 %v553, %v671
      %673 = vmatmul.bf16.gmra.mxu0 %v610
      %v674 = vpop.f32.mrf.mxu0
      %v675 = vadd.f32 %v558, %v674
      %v676 = vpop.f32.mrf.mxu0
      %v677 = vadd.f32 %v563, %v676
      %678 = vmatmul.bf16.gmra.mxu0 %v613
      %v679 = vpop.f32.mrf.mxu0
      %v680 = vadd.f32 %v568, %v679
      %v681 = vpop.f32.mrf.mxu0
      %v682 = vadd.f32 %v573, %v681
      %683 = vmatmul.bf16.gmra.mxu0 %v616
      %v684 = vpop.f32.mrf.mxu0
      %v685 = vadd.f32 %v578, %v684
      %v686 = vpop.f32.mrf.mxu0
      %v687 = vadd.f32 %v583, %v686
      %688 = vdwg.mxu0
      %689 = vmatpush.bf16.msra.mxu0 0
      %690 = vmatpush.bf16.msra.mxu0 0
      %691 = vmatpush.bf16.msra.mxu0 0
      %692 = vmatpush.bf16.msra.mxu0 0
      %693 = vmatpush.bf16.msra.mxu0 0
      %694 = vmatpush.bf16.msra.mxu0 0
      %695 = vmatpush.bf16.msra.mxu0 0
      %696 = vmatpush.bf16.msra.mxu0 %v626
      %697 = vmatmul.bf16.gmra.mxu0 %v607
      %v698 = vpop.f32.mrf.mxu0
      %v699 = vadd.f32 %v548, %v698
      %v700 = vpop.f32.mrf.mxu0
      %v701 = vadd.f32 %v553, %v700
      %702 = vmatmul.bf16.gmra.mxu0 %v610
      %v703 = vpop.f32.mrf.mxu0
      %v704 = vadd.f32 %v558, %v703
      %v705 = vpop.f32.mrf.mxu0
      %v706 = vadd.f32 %v563, %v705
      %707 = vmatmul.bf16.gmra.mxu0 %v613
      %v708 = vpop.f32.mrf.mxu0
      %v709 = vadd.f32 %v568, %v708
      %v710 = vpop.f32.mrf.mxu0
      %v711 = vadd.f32 %v573, %v710
      %712 = vmatmul.bf16.gmra.mxu0 %v616
      %v713 = vpop.f32.mrf.mxu0
      %v714 = vadd.f32 %v578, %v713
      %v715 = vpop.f32.mrf.mxu0
      %v716 = vadd.f32 %v583, %v715
      %717 = vdwg.mxu0
      %718 = vmatpush.bf16.msra.mxu0 0
      %719 = vmatpush.bf16.msra.mxu0 0
      %720 = vmatpush.bf16.msra.mxu0 0
      %721 = vmatpush.bf16.msra.mxu0 0
      %722 = vmatpush.bf16.msra.mxu0 0
      %723 = vmatpush.bf16.msra.mxu0 0
      %724 = vmatpush.bf16.msra.mxu0 0
      %725 = vmatpush.bf16.msra.mxu0 %v629
      %726 = vmatmul.bf16.gmra.mxu0 %v607
      %v727 = vpop.f32.mrf.mxu0
      %v728 = vadd.f32 %v548, %v727
      %v729 = vpop.f32.mrf.mxu0
      %v730 = vadd.f32 %v553, %v729
      %731 = vmatmul.bf16.gmra.mxu0 %v610
      %v732 = vpop.f32.mrf.mxu0
      %v733 = vadd.f32 %v558, %v732
      %v734 = vpop.f32.mrf.mxu0
      %v735 = vadd.f32 %v563, %v734
      %736 = vmatmul.bf16.gmra.mxu0 %v613
      %v737 = vpop.f32.mrf.mxu0
      %v738 = vadd.f32 %v568, %v737
      %v739 = vpop.f32.mrf.mxu0
      %v740 = vadd.f32 %v573, %v739
      %741 = vmatmul.bf16.gmra.mxu0 %v616
      %v742 = vpop.f32.mrf.mxu0
      %v743 = vadd.f32 %v578, %v742
      %v744 = vpop.f32.mrf.mxu0
      %v745 = vadd.f32 %v583, %v744
      %746 = vdwg.mxu0
      %v747 = vmax.f32 %v641, 0.0
      %v748 = vmax.f32 %v670, 0.0
      %v749 = vmax.f32 %v699, 0.0
      %v750 = vmax.f32 %v728, 0.0
      %v751 = vmax.f32 %v643, 0.0
      %v752 = vmax.f32 %v672, 0.0
      %v753 = vmax.f32 %v701, 0.0
      %v754 = vmax.f32 %v730, 0.0
      %v755 = vmax.f32 %v646, 0.0
      %v756 = vmax.f32 %v675, 0.0
      %v757 = vmax.f32 %v704, 0.0
      %v758 = vmax.f32 %v733, 0.0
      %v759 = vmax.f32 %v648, 0.0
      %v760 = vmax.f32 %v677, 0.0
      %v761 = vmax.f32 %v706, 0.0
      %v762 = vmax.f32 %v735, 0.0
      %v763 = vmax.f32 %v651, 0.0
      %v764 = vmax.f32 %v680, 0.0
      %v765 = vmax.f32 %v709, 0.0
      %v766 = vmax.f32 %v738, 0.0
      %v767 = vmax.f32 %v653, 0.0
      %v768 = vmax.f32 %v682, 0.0
      %v769 = vmax.f32 %v711, 0.0
      %v770 = vmax.f32 %v740, 0.0
      %v771 = vmax.f32 %v656, 0.0
      %v772 = vmax.f32 %v685, 0.0
      %v773 = vmax.f32 %v714, 0.0
      %v774 = vmax.f32 %v743, 0.0
      %v775 = vmax.f32 %v658, 0.0
      %v776 = vmax.f32 %v687, 0.0
      %v777 = vmax.f32 %v716, 0.0
      %v778 = vmax.f32 %v745, 0.0
      %v779 = vld [vmem:[%s9] sm:$0xf]
      %v780 = vld [vmem:[%s3] sm:$0xf]
      %v781 = vld [vmem:[%s3 + $0x4] sm:$0xf]
      %v782 = vld [vmem:[%s3 + $0x8] sm:$0xf]
      %v783 = vld [vmem:[%s3 + $0xc] sm:$0xf]
      %v784 = vld [vmem:[%s3 + $0x10] sm:$0xf]
      %v785 = vld [vmem:[%s3 + $0x14] sm:$0xf]
      %v786 = vld [vmem:[%s3 + $0x18] sm:$0xf]
      %v787 = vld [vmem:[%s3 + $0x1c] sm:$0xf]
      %v788 = vpack.c.bf16 %v751, %v747
      %v789 = vpack.c.bf16 %v752, %v748
      %v790 = vpack.c.bf16 %v753, %v749
      %v791 = vpack.c.bf16 %v754, %v750
      %v792 = vpack.c.bf16 %v759, %v755
      %v793 = vpack.c.bf16 %v760, %v756
      %v794 = vpack.c.bf16 %v761, %v757
      %v795 = vpack.c.bf16 %v762, %v758
      %v796 = vpack.c.bf16 %v767, %v763
      %v797 = vpack.c.bf16 %v768, %v764
      %v798 = vpack.c.bf16 %v769, %v765
      %v799 = vpack.c.bf16 %v770, %v766
      %v800 = vpack.c.bf16 %v775, %v771
      %v801 = vpack.c.bf16 %v776, %v772
      %v802 = vpack.c.bf16 %v777, %v773
      %v803 = vpack.c.bf16 %v778, %v774
      %v804 = vld [vmem:[%s5] sm:$0xff]
      %v805 = vld [vmem:[%s5 + $0x8] sm:$0xff]
      %v806 = vld [vmem:[%s5 + $0x10] sm:$0xff]
      %v807 = vld [vmem:[%s5 + $0x18] sm:$0xff]
      %v808 = vld [vmem:[%s5 + $0x20] sm:$0xff]
      %v809 = vld [vmem:[%s5 + $0x28] sm:$0xff]
      %v810 = vld [vmem:[%s5 + $0x30] sm:$0xff]
      %v811 = vld [vmem:[%s5 + $0x38] sm:$0xff]
      %813 = vset.pattern.permute.xlu0 0
      %814 = vperm.xlu0 %813, %v804
      %v815 = vpop.permute.xlu0 %814
      %818 = vset.pattern.permute.xlu0 0
      %819 = vperm.xlu0 %818, %v805
      %v820 = vpop.permute.xlu0 %819
      %823 = vset.pattern.permute.xlu0 0
      %824 = vperm.xlu0 %823, %v806
      %v825 = vpop.permute.xlu0 %824
      %828 = vset.pattern.permute.xlu0 0
      %829 = vperm.xlu0 %828, %v807
      %v830 = vpop.permute.xlu0 %829
      %833 = vset.pattern.permute.xlu0 0
      %834 = vperm.xlu0 %833, %v808
      %v835 = vpop.permute.xlu0 %834
      %838 = vset.pattern.permute.xlu0 0
      %839 = vperm.xlu0 %838, %v809
      %v840 = vpop.permute.xlu0 %839
      %843 = vset.pattern.permute.xlu0 0
      %844 = vperm.xlu0 %843, %v810
      %v845 = vpop.permute.xlu0 %844
      %848 = vset.pattern.permute.xlu0 0
      %849 = vperm.xlu0 %848, %v811
      %v850 = vpop.permute.xlu0 %849
      %v860 = vunpack.c.l.b16 %v780
      %v861 = vunpack.c.l.b16 %v781
      %v862 = vunpack.c.l.b16 %v782
      %v863 = vunpack.c.l.b16 %v783
      %v864 = vunpack.c.l.b16 %v784
      %v865 = vunpack.c.l.b16 %v785
      %v866 = vunpack.c.l.b16 %v786
      %v867 = vunpack.c.l.b16 %v787
      %v868 = vpack.c.b16 %v861, %v860
      %v869 = vpack.c.b16 %v863, %v862
      %v870 = vpack.c.b16 %v865, %v864
      %v871 = vpack.c.b16 %v867, %v866
      %vm872 = vcmask 523264
      %v874 = vsel %vm872, %v868, 0
      %v877 = vsel %vm872, %v869, 0
      %v880 = vsel %vm872, %v870, 0
      %v883 = vsel %vm872, %v871, 0
      %885 = vmatpush.bf16.msra.mxu0 0
      %886 = vmatpush.bf16.msra.mxu0 0
      %887 = vmatpush.bf16.msra.mxu0 0
      %888 = vmatpush.bf16.msra.mxu0 0
      %889 = vmatpush.bf16.msra.mxu0 %v800
      %890 = vmatpush.bf16.msra.mxu0 %v796
      %891 = vmatpush.bf16.msra.mxu0 %v792
      %892 = vmatpush.bf16.msra.mxu0 %v788
      %893 = vmatmul.bf16.gmra.mxu0 %v874
      %v894 = vpop.f32.mrf.mxu0
      %v895 = vadd.f32 %v815, %v894
      %v896 = vpop.f32.mrf.mxu0
      %v897 = vadd.f32 %v820, %v896
      %898 = vmatmul.bf16.gmra.mxu0 %v877
      %v899 = vpop.f32.mrf.mxu0
      %v900 = vadd.f32 %v825, %v899
      %v901 = vpop.f32.mrf.mxu0
      %v902 = vadd.f32 %v830, %v901
      %903 = vmatmul.bf16.gmra.mxu0 %v880
      %v904 = vpop.f32.mrf.mxu0
      %v905 = vadd.f32 %v835, %v904
      %v906 = vpop.f32.mrf.mxu0
      %v907 = vadd.f32 %v840, %v906
      %908 = vmatmul.bf16.gmra.mxu0 %v883
      %v909 = vpop.f32.mrf.mxu0
      %v910 = vadd.f32 %v845, %v909
      %v911 = vpop.f32.mrf.mxu0
      %v912 = vadd.f32 %v850, %v911
      %913 = vdwg.mxu0
      %914 = vmatpush.bf16.msra.mxu0 0
      %915 = vmatpush.bf16.msra.mxu0 0
      %916 = vmatpush.bf16.msra.mxu0 0
      %917 = vmatpush.bf16.msra.mxu0 0
      %918 = vmatpush.bf16.msra.mxu0 %v801
      %919 = vmatpush.bf16.msra.mxu0 %v797
      %920 = vmatpush.bf16.msra.mxu0 %v793
      %921 = vmatpush.bf16.msra.mxu0 %v789
      %922 = vmatmul.bf16.gmra.mxu0 %v874
      %v923 = vpop.f32.mrf.mxu0
      %v924 = vadd.f32 %v815, %v923
      %v925 = vpop.f32.mrf.mxu0
      %v926 = vadd.f32 %v820, %v925
      %927 = vmatmul.bf16.gmra.mxu0 %v877
      %v928 = vpop.f32.mrf.mxu0
      %v929 = vadd.f32 %v825, %v928
      %v930 = vpop.f32.mrf.mxu0
      %v931 = vadd.f32 %v830, %v930
      %932 = vmatmul.bf16.gmra.mxu0 %v880
      %v933 = vpop.f32.mrf.mxu0
      %v934 = vadd.f32 %v835, %v933
      %v935 = vpop.f32.mrf.mxu0
      %v936 = vadd.f32 %v840, %v935
      %937 = vmatmul.bf16.gmra.mxu0 %v883
      %v938 = vpop.f32.mrf.mxu0
      %v939 = vadd.f32 %v845, %v938
      %v940 = vpop.f32.mrf.mxu0
      %v941 = vadd.f32 %v850, %v940
      %942 = vdwg.mxu0
      %943 = vmatpush.bf16.msra.mxu0 0
      %944 = vmatpush.bf16.msra.mxu0 0
      %945 = vmatpush.bf16.msra.mxu0 0
      %946 = vmatpush.bf16.msra.mxu0 0
      %947 = vmatpush.bf16.msra.mxu0 %v802
      %948 = vmatpush.bf16.msra.mxu0 %v798
      %949 = vmatpush.bf16.msra.mxu0 %v794
      %950 = vmatpush.bf16.msra.mxu0 %v790
      %951 = vmatmul.bf16.gmra.mxu0 %v874
      %v952 = vpop.f32.mrf.mxu0
      %v953 = vadd.f32 %v815, %v952
      %v954 = vpop.f32.mrf.mxu0
      %v955 = vadd.f32 %v820, %v954
      %956 = vmatmul.bf16.gmra.mxu0 %v877
      %v957 = vpop.f32.mrf.mxu0
      %v958 = vadd.f32 %v825, %v957
      %v959 = vpop.f32.mrf.mxu0
      %v960 = vadd.f32 %v830, %v959
      %961 = vmatmul.bf16.gmra.mxu0 %v880
      %v962 = vpop.f32.mrf.mxu0
      %v963 = vadd.f32 %v835, %v962
      %v964 = vpop.f32.mrf.mxu0
      %v965 = vadd.f32 %v840, %v964
      %966 = vmatmul.bf16.gmra.mxu0 %v883
      %v967 = vpop.f32.mrf.mxu0
      %v968 = vadd.f32 %v845, %v967
      %v969 = vpop.f32.mrf.mxu0
      %v970 = vadd.f32 %v850, %v969
      %971 = vdwg.mxu0
      %972 = vmatpush.bf16.msra.mxu0 0
      %973 = vmatpush.bf16.msra.mxu0 0
      %974 = vmatpush.bf16.msra.mxu0 0
      %975 = vmatpush.bf16.msra.mxu0 0
      %976 = vmatpush.bf16.msra.mxu0 %v803
      %977 = vmatpush.bf16.msra.mxu0 %v799
      %978 = vmatpush.bf16.msra.mxu0 %v795
      %979 = vmatpush.bf16.msra.mxu0 %v791
      %980 = vmatmul.bf16.gmra.mxu0 %v874
      %v981 = vpop.f32.mrf.mxu0
      %v982 = vadd.f32 %v815, %v981
      %v983 = vpop.f32.mrf.mxu0
      %v984 = vadd.f32 %v820, %v983
      %985 = vmatmul.bf16.gmra.mxu0 %v877
      %v986 = vpop.f32.mrf.mxu0
      %v987 = vadd.f32 %v825, %v986
      %v988 = vpop.f32.mrf.mxu0
      %v989 = vadd.f32 %v830, %v988
      %990 = vmatmul.bf16.gmra.mxu0 %v880
      %v991 = vpop.f32.mrf.mxu0
      %v992 = vadd.f32 %v835, %v991
      %v993 = vpop.f32.mrf.mxu0
      %v994 = vadd.f32 %v840, %v993
      %995 = vmatmul.bf16.gmra.mxu0 %v883
      %v996 = vpop.f32.mrf.mxu0
      %v997 = vadd.f32 %v845, %v996
      %v998 = vpop.f32.mrf.mxu0
      %v999 = vadd.f32 %v850, %v998
      %1000 = vdwg.mxu0
      %v1002 = vperm.slane %v779, 0
      %v1003 = vperm.slane %v779, 1
      %v1004 = vperm.slane %v779, 2
      %v1005 = vperm.slane %v779, 3
      %v1010 = vmul.f32 %v895, %v1002
      %v1011 = vmul.f32 %v924, %v1003
      %v1012 = vmul.f32 %v953, %v1004
      %v1013 = vmul.f32 %v982, %v1005
      %v1014 = vmul.f32 %v897, %v1002
      %v1015 = vmul.f32 %v926, %v1003
      %v1016 = vmul.f32 %v955, %v1004
      %v1017 = vmul.f32 %v984, %v1005
      %v1018 = vmul.f32 %v900, %v1002
      %v1019 = vmul.f32 %v929, %v1003
      %v1020 = vmul.f32 %v958, %v1004
      %v1021 = vmul.f32 %v987, %v1005
      %v1022 = vmul.f32 %v902, %v1002
      %v1023 = vmul.f32 %v931, %v1003
      %v1024 = vmul.f32 %v960, %v1004
      %v1025 = vmul.f32 %v989, %v1005
      %v1026 = vmul.f32 %v905, %v1002
      %v1027 = vmul.f32 %v934, %v1003
      %v1028 = vmul.f32 %v963, %v1004
      %v1029 = vmul.f32 %v992, %v1005
      %v1030 = vmul.f32 %v907, %v1002
      %v1031 = vmul.f32 %v936, %v1003
      %v1032 = vmul.f32 %v965, %v1004
      %v1033 = vmul.f32 %v994, %v1005
      %v1034 = vmul.f32 %v910, %v1002
      %v1035 = vmul.f32 %v939, %v1003
      %v1036 = vmul.f32 %v968, %v1004
      %v1037 = vmul.f32 %v997, %v1005
      %v1038 = vmul.f32 %v912, %v1002
      %v1039 = vmul.f32 %v941, %v1003
      %v1040 = vmul.f32 %v970, %v1004
      %v1041 = vmul.f32 %v999, %v1005
      %v1042 = vld [vmem:[%s4] sm:$0xff]
      %v1043 = vld [vmem:[%s4 + $0x8] sm:$0xff]
      %v1044 = vld [vmem:[%s4 + $0x10] sm:$0xff]
      %v1045 = vld [vmem:[%s4 + $0x18] sm:$0xff]
      %v1046 = vld [vmem:[%s4 + $0x20] sm:$0xff]
      %v1047 = vld [vmem:[%s4 + $0x28] sm:$0xff]
      %v1048 = vld [vmem:[%s4 + $0x30] sm:$0xff]
      %v1049 = vld [vmem:[%s4 + $0x38] sm:$0xff]
      %s1050 = scalar_lea.vmem %s5, 64
      %v1051 = vld [vmem:[%s1050] sm:$0xff]
      %v1052 = vld [vmem:[%s1050 + $0x8] sm:$0xff]
      %v1053 = vld [vmem:[%s1050 + $0x10] sm:$0xff]
      %v1054 = vld [vmem:[%s1050 + $0x18] sm:$0xff]
      %v1055 = vld [vmem:[%s1050 + $0x20] sm:$0xff]
      %v1056 = vld [vmem:[%s1050 + $0x28] sm:$0xff]
      %v1057 = vld [vmem:[%s1050 + $0x30] sm:$0xff]
      %v1058 = vld [vmem:[%s1050 + $0x38] sm:$0xff]
      %1059 = vrot.lane.b32.xlu0 %v1010, 1
      %v1060 = vpop.permute.xlu0 %1059
      %1061 = vrot.lane.b32.xlu0 %v1014, 1
      %v1062 = vpop.permute.xlu0 %1061
      %1063 = vrot.lane.b32.xlu0 %v1018, 1
      %v1064 = vpop.permute.xlu0 %1063
      %1065 = vrot.lane.b32.xlu0 %v1022, 1
      %v1066 = vpop.permute.xlu0 %1065
      %1067 = vrot.lane.b32.xlu0 %v1026, 1
      %v1068 = vpop.permute.xlu0 %1067
      %1069 = vrot.lane.b32.xlu0 %v1030, 1
      %v1070 = vpop.permute.xlu0 %1069
      %1071 = vrot.lane.b32.xlu0 %v1034, 1
      %v1072 = vpop.permute.xlu0 %1071
      %1073 = vrot.lane.b32.xlu0 %v1038, 1
      %v1074 = vpop.permute.xlu0 %1073
      %1075 = vrot.lane.b32.xlu0 %v1011, 1
      %v1076 = vpop.permute.xlu0 %1075
      %1077 = vrot.lane.b32.xlu0 %v1015, 1
      %v1078 = vpop.permute.xlu0 %1077
      %1079 = vrot.lane.b32.xlu0 %v1019, 1
      %v1080 = vpop.permute.xlu0 %1079
      %1081 = vrot.lane.b32.xlu0 %v1023, 1
      %v1082 = vpop.permute.xlu0 %1081
      %1083 = vrot.lane.b32.xlu0 %v1027, 1
      %v1084 = vpop.permute.xlu0 %1083
      %1085 = vrot.lane.b32.xlu0 %v1031, 1
      %v1086 = vpop.permute.xlu0 %1085
      %1087 = vrot.lane.b32.xlu0 %v1035, 1
      %v1088 = vpop.permute.xlu0 %1087
      %1089 = vrot.lane.b32.xlu0 %v1039, 1
      %v1090 = vpop.permute.xlu0 %1089
      %1091 = vrot.lane.b32.xlu0 %v1012, 1
      %v1092 = vpop.permute.xlu0 %1091
      %1093 = vrot.lane.b32.xlu0 %v1016, 1
      %v1094 = vpop.permute.xlu0 %1093
      %1095 = vrot.lane.b32.xlu0 %v1020, 1
      %v1096 = vpop.permute.xlu0 %1095
      %1097 = vrot.lane.b32.xlu0 %v1024, 1
      %v1098 = vpop.permute.xlu0 %1097
      %1099 = vrot.lane.b32.xlu0 %v1028, 1
      %v1100 = vpop.permute.xlu0 %1099
      %1101 = vrot.lane.b32.xlu0 %v1032, 1
      %v1102 = vpop.permute.xlu0 %1101
      %1103 = vrot.lane.b32.xlu0 %v1036, 1
      %v1104 = vpop.permute.xlu0 %1103
      %1105 = vrot.lane.b32.xlu0 %v1040, 1
      %v1106 = vpop.permute.xlu0 %1105
      %1107 = vrot.lane.b32.xlu0 %v1013, 1
      %v1108 = vpop.permute.xlu0 %1107
      %1109 = vrot.lane.b32.xlu0 %v1017, 1
      %v1110 = vpop.permute.xlu0 %1109
      %1111 = vrot.lane.b32.xlu0 %v1021, 1
      %v1112 = vpop.permute.xlu0 %1111
      %1113 = vrot.lane.b32.xlu0 %v1025, 1
      %v1114 = vpop.permute.xlu0 %1113
      %1115 = vrot.lane.b32.xlu0 %v1029, 1
      %v1116 = vpop.permute.xlu0 %1115
      %1117 = vrot.lane.b32.xlu0 %v1033, 1
      %v1118 = vpop.permute.xlu0 %1117
      %1119 = vrot.lane.b32.xlu0 %v1037, 1
      %v1120 = vpop.permute.xlu0 %1119
      %1121 = vrot.lane.b32.xlu0 %v1041, 1
      %v1122 = vpop.permute.xlu0 %1121
      %v1123 = vlaneseq
      %v1124 = vand.u32 %v1123, 127
      %vm1125 = vcmp.lt.s32.totalorder %v1124, 1
      %v1126 = vsel %vm1125, %v1092, %v1108
      %v1127 = vsel %vm1125, %v1094, %v1110
      %v1128 = vsel %vm1125, %v1096, %v1112
      %v1129 = vsel %vm1125, %v1098, %v1114
      %v1130 = vsel %vm1125, %v1100, %v1116
      %v1131 = vsel %vm1125, %v1102, %v1118
      %v1132 = vsel %vm1125, %v1104, %v1120
      %v1133 = vsel %vm1125, %v1106, %v1122
      %v1134 = vsel %vm1125, %v1076, %v1092
      %v1135 = vsel %vm1125, %v1078, %v1094
      %v1136 = vsel %vm1125, %v1080, %v1096
      %v1137 = vsel %vm1125, %v1082, %v1098
      %v1138 = vsel %vm1125, %v1084, %v1100
      %v1139 = vsel %vm1125, %v1086, %v1102
      %v1140 = vsel %vm1125, %v1088, %v1104
      %v1141 = vsel %vm1125, %v1090, %v1106
      %v1142 = vsel %vm1125, %v1060, %v1076
      %v1143 = vsel %vm1125, %v1062, %v1078
      %v1144 = vsel %vm1125, %v1064, %v1080
      %v1145 = vsel %vm1125, %v1066, %v1082
      %v1146 = vsel %vm1125, %v1068, %v1084
      %v1147 = vsel %vm1125, %v1070, %v1086
      %v1148 = vsel %vm1125, %v1072, %v1088
      %v1149 = vsel %vm1125, %v1074, %v1090
      %v1150 = vsel %vm1125, %v1108, %v1060
      %v1151 = vsel %vm1125, %v1110, %v1062
      %v1152 = vsel %vm1125, %v1112, %v1064
      %v1153 = vsel %vm1125, %v1114, %v1066
      %v1154 = vsel %vm1125, %v1116, %v1068
      %v1155 = vsel %vm1125, %v1118, %v1070
      %v1156 = vsel %vm1125, %v1120, %v1072
      %v1157 = vsel %vm1125, %v1122, %v1074
      %1158 = vrot.lane.b32.xlu0 %v1010, 127
      %v1159 = vpop.permute.xlu0 %1158
      %1160 = vrot.lane.b32.xlu0 %v1014, 127
      %v1161 = vpop.permute.xlu0 %1160
      %1162 = vrot.lane.b32.xlu0 %v1018, 127
      %v1163 = vpop.permute.xlu0 %1162
      %1164 = vrot.lane.b32.xlu0 %v1022, 127
      %v1165 = vpop.permute.xlu0 %1164
      %1166 = vrot.lane.b32.xlu0 %v1026, 127
      %v1167 = vpop.permute.xlu0 %1166
      %1168 = vrot.lane.b32.xlu0 %v1030, 127
      %v1169 = vpop.permute.xlu0 %1168
      %1170 = vrot.lane.b32.xlu0 %v1034, 127
      %v1171 = vpop.permute.xlu0 %1170
      %1172 = vrot.lane.b32.xlu0 %v1038, 127
      %v1173 = vpop.permute.xlu0 %1172
      %1174 = vrot.lane.b32.xlu0 %v1011, 127
      %v1175 = vpop.permute.xlu0 %1174
      %1176 = vrot.lane.b32.xlu0 %v1015, 127
      %v1177 = vpop.permute.xlu0 %1176
      %1178 = vrot.lane.b32.xlu0 %v1019, 127
      %v1179 = vpop.permute.xlu0 %1178
      %1180 = vrot.lane.b32.xlu0 %v1023, 127
      %v1181 = vpop.permute.xlu0 %1180
      %1182 = vrot.lane.b32.xlu0 %v1027, 127
      %v1183 = vpop.permute.xlu0 %1182
      %1184 = vrot.lane.b32.xlu0 %v1031, 127
      %v1185 = vpop.permute.xlu0 %1184
      %1186 = vrot.lane.b32.xlu0 %v1035, 127
      %v1187 = vpop.permute.xlu0 %1186
      %1188 = vrot.lane.b32.xlu0 %v1039, 127
      %v1189 = vpop.permute.xlu0 %1188
      %1190 = vrot.lane.b32.xlu0 %v1012, 127
      %v1191 = vpop.permute.xlu0 %1190
      %1192 = vrot.lane.b32.xlu0 %v1016, 127
      %v1193 = vpop.permute.xlu0 %1192
      %1194 = vrot.lane.b32.xlu0 %v1020, 127
      %v1195 = vpop.permute.xlu0 %1194
      %1196 = vrot.lane.b32.xlu0 %v1024, 127
      %v1197 = vpop.permute.xlu0 %1196
      %1198 = vrot.lane.b32.xlu0 %v1028, 127
      %v1199 = vpop.permute.xlu0 %1198
      %1200 = vrot.lane.b32.xlu0 %v1032, 127
      %v1201 = vpop.permute.xlu0 %1200
      %1202 = vrot.lane.b32.xlu0 %v1036, 127
      %v1203 = vpop.permute.xlu0 %1202
      %1204 = vrot.lane.b32.xlu0 %v1040, 127
      %v1205 = vpop.permute.xlu0 %1204
      %1206 = vrot.lane.b32.xlu0 %v1013, 127
      %v1207 = vpop.permute.xlu0 %1206
      %1208 = vrot.lane.b32.xlu0 %v1017, 127
      %v1209 = vpop.permute.xlu0 %1208
      %1210 = vrot.lane.b32.xlu0 %v1021, 127
      %v1211 = vpop.permute.xlu0 %1210
      %1212 = vrot.lane.b32.xlu0 %v1025, 127
      %v1213 = vpop.permute.xlu0 %1212
      %1214 = vrot.lane.b32.xlu0 %v1029, 127
      %v1215 = vpop.permute.xlu0 %1214
      %1216 = vrot.lane.b32.xlu0 %v1033, 127
      %v1217 = vpop.permute.xlu0 %1216
      %1218 = vrot.lane.b32.xlu0 %v1037, 127
      %v1219 = vpop.permute.xlu0 %1218
      %1220 = vrot.lane.b32.xlu0 %v1041, 127
      %v1221 = vpop.permute.xlu0 %1220
      %vm1222 = vcmp.lt.s32.totalorder %v1124, 127
      %v1223 = vsel %vm1222, %v1191, %v1207
      %v1224 = vsel %vm1222, %v1193, %v1209
      %v1225 = vsel %vm1222, %v1195, %v1211
      %v1226 = vsel %vm1222, %v1197, %v1213
      %v1227 = vsel %vm1222, %v1199, %v1215
      %v1228 = vsel %vm1222, %v1201, %v1217
      %v1229 = vsel %vm1222, %v1203, %v1219
      %v1230 = vsel %vm1222, %v1205, %v1221
      %v1231 = vsel %vm1222, %v1175, %v1191
      %v1232 = vsel %vm1222, %v1177, %v1193
      %v1233 = vsel %vm1222, %v1179, %v1195
      %v1234 = vsel %vm1222, %v1181, %v1197
      %v1235 = vsel %vm1222, %v1183, %v1199
      %v1236 = vsel %vm1222, %v1185, %v1201
      %v1237 = vsel %vm1222, %v1187, %v1203
      %v1238 = vsel %vm1222, %v1189, %v1205
      %v1239 = vsel %vm1222, %v1159, %v1175
      %v1240 = vsel %vm1222, %v1161, %v1177
      %v1241 = vsel %vm1222, %v1163, %v1179
      %v1242 = vsel %vm1222, %v1165, %v1181
      %v1243 = vsel %vm1222, %v1167, %v1183
      %v1244 = vsel %vm1222, %v1169, %v1185
      %v1245 = vsel %vm1222, %v1171, %v1187
      %v1246 = vsel %vm1222, %v1173, %v1189
      %v1247 = vsel %vm1222, %v1207, %v1159
      %v1248 = vsel %vm1222, %v1209, %v1161
      %v1249 = vsel %vm1222, %v1211, %v1163
      %v1250 = vsel %vm1222, %v1213, %v1165
      %v1251 = vsel %vm1222, %v1215, %v1167
      %v1252 = vsel %vm1222, %v1217, %v1169
      %v1253 = vsel %vm1222, %v1219, %v1171
      %v1254 = vsel %vm1222, %v1221, %v1173
      %v1255 = vpack.c.bf16 %v1151, %v1150
      %v1256 = vpack.c.bf16 %v1143, %v1142
      %v1257 = vpack.c.bf16 %v1135, %v1134
      %v1258 = vpack.c.bf16 %v1127, %v1126
      %v1259 = vpack.c.bf16 %v1153, %v1152
      %v1260 = vpack.c.bf16 %v1145, %v1144
      %v1261 = vpack.c.bf16 %v1137, %v1136
      %v1262 = vpack.c.bf16 %v1129, %v1128
      %v1263 = vpack.c.bf16 %v1155, %v1154
      %v1264 = vpack.c.bf16 %v1147, %v1146
      %v1265 = vpack.c.bf16 %v1139, %v1138
      %v1266 = vpack.c.bf16 %v1131, %v1130
      %v1267 = vpack.c.bf16 %v1157, %v1156
      %v1268 = vpack.c.bf16 %v1149, %v1148
      %v1269 = vpack.c.bf16 %v1141, %v1140
      %v1270 = vpack.c.bf16 %v1133, %v1132
      %v1271 = vpack.c.bf16 %v1014, %v1010
      %v1272 = vpack.c.bf16 %v1015, %v1011
      %v1273 = vpack.c.bf16 %v1016, %v1012
      %v1274 = vpack.c.bf16 %v1017, %v1013
      %v1275 = vpack.c.bf16 %v1022, %v1018
      %v1276 = vpack.c.bf16 %v1023, %v1019
      %v1277 = vpack.c.bf16 %v1024, %v1020
      %v1278 = vpack.c.bf16 %v1025, %v1021
      %v1279 = vpack.c.bf16 %v1030, %v1026
      %v1280 = vpack.c.bf16 %v1031, %v1027
      %v1281 = vpack.c.bf16 %v1032, %v1028
      %v1282 = vpack.c.bf16 %v1033, %v1029
      %v1283 = vpack.c.bf16 %v1038, %v1034
      %v1284 = vpack.c.bf16 %v1039, %v1035
      %v1285 = vpack.c.bf16 %v1040, %v1036
      %v1286 = vpack.c.bf16 %v1041, %v1037
      %v1287 = vpack.c.bf16 %v1240, %v1239
      %v1288 = vpack.c.bf16 %v1232, %v1231
      %v1289 = vpack.c.bf16 %v1224, %v1223
      %v1290 = vpack.c.bf16 %v1248, %v1247
      %v1291 = vpack.c.bf16 %v1242, %v1241
      %v1292 = vpack.c.bf16 %v1234, %v1233
      %v1293 = vpack.c.bf16 %v1226, %v1225
      %v1294 = vpack.c.bf16 %v1250, %v1249
      %v1295 = vpack.c.bf16 %v1244, %v1243
      %v1296 = vpack.c.bf16 %v1236, %v1235
      %v1297 = vpack.c.bf16 %v1228, %v1227
      %v1298 = vpack.c.bf16 %v1252, %v1251
      %v1299 = vpack.c.bf16 %v1246, %v1245
      %v1300 = vpack.c.bf16 %v1238, %v1237
      %v1301 = vpack.c.bf16 %v1230, %v1229
      %v1302 = vpack.c.bf16 %v1254, %v1253
      %1304 = vset.pattern.permute.xlu0 0
      %1305 = vperm.xlu0 %1304, %v1051
      %v1306 = vpop.permute.xlu0 %1305
      %1309 = vset.pattern.permute.xlu0 0
      %1310 = vperm.xlu0 %1309, %v1052
      %v1311 = vpop.permute.xlu0 %1310
      %1314 = vset.pattern.permute.xlu0 0
      %1315 = vperm.xlu0 %1314, %v1053
      %v1316 = vpop.permute.xlu0 %1315
      %1319 = vset.pattern.permute.xlu0 0
      %1320 = vperm.xlu0 %1319, %v1054
      %v1321 = vpop.permute.xlu0 %1320
      %1324 = vset.pattern.permute.xlu0 0
      %1325 = vperm.xlu0 %1324, %v1055
      %v1326 = vpop.permute.xlu0 %1325
      %1329 = vset.pattern.permute.xlu0 0
      %1330 = vperm.xlu0 %1329, %v1056
      %v1331 = vpop.permute.xlu0 %1330
      %1334 = vset.pattern.permute.xlu0 0
      %1335 = vperm.xlu0 %1334, %v1057
      %v1336 = vpop.permute.xlu0 %1335
      %1339 = vset.pattern.permute.xlu0 0
      %1340 = vperm.xlu0 %1339, %v1058
      %v1341 = vpop.permute.xlu0 %1340
      %v1351 = vunpack.c.l.b16 %v1042
      %v1352 = vunpack.c.h.b16 %v1042
      %v1353 = vunpack.c.l.b16 %v1043
      %v1354 = vunpack.c.h.b16 %v1043
      %v1355 = vunpack.c.l.b16 %v1044
      %v1356 = vunpack.c.h.b16 %v1044
      %v1357 = vunpack.c.l.b16 %v1045
      %v1358 = vunpack.c.h.b16 %v1045
      %v1359 = vunpack.c.l.b16 %v1046
      %v1360 = vunpack.c.h.b16 %v1046
      %v1361 = vunpack.c.l.b16 %v1047
      %v1362 = vunpack.c.h.b16 %v1047
      %v1363 = vunpack.c.l.b16 %v1048
      %v1364 = vunpack.c.h.b16 %v1048
      %v1365 = vunpack.c.l.b16 %v1049
      %v1366 = vunpack.c.h.b16 %v1049
      %v1367 = vpack.c.b16 %v1353, %v1351
      %v1368 = vpack.c.b16 %v1354, %v1352
      %v1369 = vpack.c.b16 %v1357, %v1355
      %v1370 = vpack.c.b16 %v1358, %v1356
      %v1371 = vpack.c.b16 %v1361, %v1359
      %v1372 = vpack.c.b16 %v1362, %v1360
      %v1373 = vpack.c.b16 %v1365, %v1363
      %v1374 = vpack.c.b16 %v1366, %v1364
      %v1380 = vsel %vm872, %v1368, 0
      %v1383 = vsel %vm872, %v1370, 0
      %v1386 = vsel %vm872, %v1372, 0
      %v1389 = vsel %vm872, %v1374, 0
      %1391 = vmatpush.bf16.msra.mxu0 %v1283
      %1392 = vmatpush.bf16.msra.mxu0 %v1279
      %1393 = vmatpush.bf16.msra.mxu0 %v1275
      %1394 = vmatpush.bf16.msra.mxu0 %v1271
      %1395 = vmatpush.bf16.msra.mxu0 %v1267
      %1396 = vmatpush.bf16.msra.mxu0 %v1263
      %1397 = vmatpush.bf16.msra.mxu0 %v1259
      %1398 = vmatpush.bf16.msra.mxu0 %v1255
      %1399 = vmatmul.bf16.gmra.mxu0 %v1367
      %v1400 = vpop.f32.mrf.mxu0
      %v1401 = vadd.f32 %v1306, %v1400
      %v1402 = vpop.f32.mrf.mxu0
      %v1403 = vadd.f32 %v1311, %v1402
      %1404 = vmatmul.bf16.gmra.mxu0 %v1369
      %v1405 = vpop.f32.mrf.mxu0
      %v1406 = vadd.f32 %v1316, %v1405
      %v1407 = vpop.f32.mrf.mxu0
      %v1408 = vadd.f32 %v1321, %v1407
      %1409 = vmatmul.bf16.gmra.mxu0 %v1371
      %v1410 = vpop.f32.mrf.mxu0
      %v1411 = vadd.f32 %v1326, %v1410
      %v1412 = vpop.f32.mrf.mxu0
      %v1413 = vadd.f32 %v1331, %v1412
      %1414 = vmatmul.bf16.gmra.mxu0 %v1373
      %v1415 = vpop.f32.mrf.mxu0
      %v1416 = vadd.f32 %v1336, %v1415
      %v1417 = vpop.f32.mrf.mxu0
      %v1418 = vadd.f32 %v1341, %v1417
      %1419 = vdwg.mxu0
      %1420 = vmatpush.bf16.msra.mxu0 0
      %1421 = vmatpush.bf16.msra.mxu0 0
      %1422 = vmatpush.bf16.msra.mxu0 0
      %1423 = vmatpush.bf16.msra.mxu0 0
      %1424 = vmatpush.bf16.msra.mxu0 %v1299
      %1425 = vmatpush.bf16.msra.mxu0 %v1295
      %1426 = vmatpush.bf16.msra.mxu0 %v1291
      %1427 = vmatpush.bf16.msra.mxu0 %v1287
      %1428 = vmatmul.bf16.gmra.mxu0 %v1380
      %v1429 = vpop.f32.mrf.mxu0
      %v1430 = vadd.f32 %v1401, %v1429
      %v1431 = vpop.f32.mrf.mxu0
      %v1432 = vadd.f32 %v1403, %v1431
      %1433 = vmatmul.bf16.gmra.mxu0 %v1383
      %v1434 = vpop.f32.mrf.mxu0
      %v1435 = vadd.f32 %v1406, %v1434
      %v1436 = vpop.f32.mrf.mxu0
      %v1437 = vadd.f32 %v1408, %v1436
      %1438 = vmatmul.bf16.gmra.mxu0 %v1386
      %v1439 = vpop.f32.mrf.mxu0
      %v1440 = vadd.f32 %v1411, %v1439
      %v1441 = vpop.f32.mrf.mxu0
      %v1442 = vadd.f32 %v1413, %v1441
      %1443 = vmatmul.bf16.gmra.mxu0 %v1389
      %v1444 = vpop.f32.mrf.mxu0
      %v1445 = vadd.f32 %v1416, %v1444
      %v1446 = vpop.f32.mrf.mxu0
      %v1447 = vadd.f32 %v1418, %v1446
      %1448 = vdwg.mxu0
      %1449 = vmatpush.bf16.msra.mxu0 %v1284
      %1450 = vmatpush.bf16.msra.mxu0 %v1280
      %1451 = vmatpush.bf16.msra.mxu0 %v1276
      %1452 = vmatpush.bf16.msra.mxu0 %v1272
      %1453 = vmatpush.bf16.msra.mxu0 %v1268
      %1454 = vmatpush.bf16.msra.mxu0 %v1264
      %1455 = vmatpush.bf16.msra.mxu0 %v1260
      %1456 = vmatpush.bf16.msra.mxu0 %v1256
      %1457 = vmatmul.bf16.gmra.mxu0 %v1367
      %v1458 = vpop.f32.mrf.mxu0
      %v1459 = vadd.f32 %v1306, %v1458
      %v1460 = vpop.f32.mrf.mxu0
      %v1461 = vadd.f32 %v1311, %v1460
      %1462 = vmatmul.bf16.gmra.mxu0 %v1369
      %v1463 = vpop.f32.mrf.mxu0
      %v1464 = vadd.f32 %v1316, %v1463
      %v1465 = vpop.f32.mrf.mxu0
      %v1466 = vadd.f32 %v1321, %v1465
      %1467 = vmatmul.bf16.gmra.mxu0 %v1371
      %v1468 = vpop.f32.mrf.mxu0
      %v1469 = vadd.f32 %v1326, %v1468
      %v1470 = vpop.f32.mrf.mxu0
      %v1471 = vadd.f32 %v1331, %v1470
      %1472 = vmatmul.bf16.gmra.mxu0 %v1373
      %v1473 = vpop.f32.mrf.mxu0
      %v1474 = vadd.f32 %v1336, %v1473
      %v1475 = vpop.f32.mrf.mxu0
      %v1476 = vadd.f32 %v1341, %v1475
      %1477 = vdwg.mxu0
      %1478 = vmatpush.bf16.msra.mxu0 0
      %1479 = vmatpush.bf16.msra.mxu0 0
      %1480 = vmatpush.bf16.msra.mxu0 0
      %1481 = vmatpush.bf16.msra.mxu0 0
      %1482 = vmatpush.bf16.msra.mxu0 %v1300
      %1483 = vmatpush.bf16.msra.mxu0 %v1296
      %1484 = vmatpush.bf16.msra.mxu0 %v1292
      %1485 = vmatpush.bf16.msra.mxu0 %v1288
      %1486 = vmatmul.bf16.gmra.mxu0 %v1380
      %v1487 = vpop.f32.mrf.mxu0
      %v1488 = vadd.f32 %v1459, %v1487
      %v1489 = vpop.f32.mrf.mxu0
      %v1490 = vadd.f32 %v1461, %v1489
      %1491 = vmatmul.bf16.gmra.mxu0 %v1383
      %v1492 = vpop.f32.mrf.mxu0
      %v1493 = vadd.f32 %v1464, %v1492
      %v1494 = vpop.f32.mrf.mxu0
      %v1495 = vadd.f32 %v1466, %v1494
      %1496 = vmatmul.bf16.gmra.mxu0 %v1386
      %v1497 = vpop.f32.mrf.mxu0
      %v1498 = vadd.f32 %v1469, %v1497
      %v1499 = vpop.f32.mrf.mxu0
      %v1500 = vadd.f32 %v1471, %v1499
      %1501 = vmatmul.bf16.gmra.mxu0 %v1389
      %v1502 = vpop.f32.mrf.mxu0
      %v1503 = vadd.f32 %v1474, %v1502
      %v1504 = vpop.f32.mrf.mxu0
      %v1505 = vadd.f32 %v1476, %v1504
      %1506 = vdwg.mxu0
      %1507 = vmatpush.bf16.msra.mxu0 %v1285
      %1508 = vmatpush.bf16.msra.mxu0 %v1281
      %1509 = vmatpush.bf16.msra.mxu0 %v1277
      %1510 = vmatpush.bf16.msra.mxu0 %v1273
      %1511 = vmatpush.bf16.msra.mxu0 %v1269
      %1512 = vmatpush.bf16.msra.mxu0 %v1265
      %1513 = vmatpush.bf16.msra.mxu0 %v1261
      %1514 = vmatpush.bf16.msra.mxu0 %v1257
      %1515 = vmatmul.bf16.gmra.mxu0 %v1367
      %v1516 = vpop.f32.mrf.mxu0
      %v1517 = vadd.f32 %v1306, %v1516
      %v1518 = vpop.f32.mrf.mxu0
      %v1519 = vadd.f32 %v1311, %v1518
      %1520 = vmatmul.bf16.gmra.mxu0 %v1369
      %v1521 = vpop.f32.mrf.mxu0
      %v1522 = vadd.f32 %v1316, %v1521
      %v1523 = vpop.f32.mrf.mxu0
      %v1524 = vadd.f32 %v1321, %v1523
      %1525 = vmatmul.bf16.gmra.mxu0 %v1371
      %v1526 = vpop.f32.mrf.mxu0
      %v1527 = vadd.f32 %v1326, %v1526
      %v1528 = vpop.f32.mrf.mxu0
      %v1529 = vadd.f32 %v1331, %v1528
      %1530 = vmatmul.bf16.gmra.mxu0 %v1373
      %v1531 = vpop.f32.mrf.mxu0
      %v1532 = vadd.f32 %v1336, %v1531
      %v1533 = vpop.f32.mrf.mxu0
      %v1534 = vadd.f32 %v1341, %v1533
      %1535 = vdwg.mxu0
      %1536 = vmatpush.bf16.msra.mxu0 0
      %1537 = vmatpush.bf16.msra.mxu0 0
      %1538 = vmatpush.bf16.msra.mxu0 0
      %1539 = vmatpush.bf16.msra.mxu0 0
      %1540 = vmatpush.bf16.msra.mxu0 %v1301
      %1541 = vmatpush.bf16.msra.mxu0 %v1297
      %1542 = vmatpush.bf16.msra.mxu0 %v1293
      %1543 = vmatpush.bf16.msra.mxu0 %v1289
      %1544 = vmatmul.bf16.gmra.mxu0 %v1380
      %v1545 = vpop.f32.mrf.mxu0
      %v1546 = vadd.f32 %v1517, %v1545
      %v1547 = vpop.f32.mrf.mxu0
      %v1548 = vadd.f32 %v1519, %v1547
      %1549 = vmatmul.bf16.gmra.mxu0 %v1383
      %v1550 = vpop.f32.mrf.mxu0
      %v1551 = vadd.f32 %v1522, %v1550
      %v1552 = vpop.f32.mrf.mxu0
      %v1553 = vadd.f32 %v1524, %v1552
      %1554 = vmatmul.bf16.gmra.mxu0 %v1386
      %v1555 = vpop.f32.mrf.mxu0
      %v1556 = vadd.f32 %v1527, %v1555
      %v1557 = vpop.f32.mrf.mxu0
      %v1558 = vadd.f32 %v1529, %v1557
      %1559 = vmatmul.bf16.gmra.mxu0 %v1389
      %v1560 = vpop.f32.mrf.mxu0
      %v1561 = vadd.f32 %v1532, %v1560
      %v1562 = vpop.f32.mrf.mxu0
      %v1563 = vadd.f32 %v1534, %v1562
      %1564 = vdwg.mxu0
      %1565 = vmatpush.bf16.msra.mxu0 %v1286
      %1566 = vmatpush.bf16.msra.mxu0 %v1282
      %1567 = vmatpush.bf16.msra.mxu0 %v1278
      %1568 = vmatpush.bf16.msra.mxu0 %v1274
      %1569 = vmatpush.bf16.msra.mxu0 %v1270
      %1570 = vmatpush.bf16.msra.mxu0 %v1266
      %1571 = vmatpush.bf16.msra.mxu0 %v1262
      %1572 = vmatpush.bf16.msra.mxu0 %v1258
      %1573 = vmatmul.bf16.gmra.mxu0 %v1367
      %v1574 = vpop.f32.mrf.mxu0
      %v1575 = vadd.f32 %v1306, %v1574
      %v1576 = vpop.f32.mrf.mxu0
      %v1577 = vadd.f32 %v1311, %v1576
      %1578 = vmatmul.bf16.gmra.mxu0 %v1369
      %v1579 = vpop.f32.mrf.mxu0
      %v1580 = vadd.f32 %v1316, %v1579
      %v1581 = vpop.f32.mrf.mxu0
      %v1582 = vadd.f32 %v1321, %v1581
      %1583 = vmatmul.bf16.gmra.mxu0 %v1371
      %v1584 = vpop.f32.mrf.mxu0
      %v1585 = vadd.f32 %v1326, %v1584
      %v1586 = vpop.f32.mrf.mxu0
      %v1587 = vadd.f32 %v1331, %v1586
      %1588 = vmatmul.bf16.gmra.mxu0 %v1373
      %v1589 = vpop.f32.mrf.mxu0
      %v1590 = vadd.f32 %v1336, %v1589
      %v1591 = vpop.f32.mrf.mxu0
      %v1592 = vadd.f32 %v1341, %v1591
      %1593 = vdwg.mxu0
      %1594 = vmatpush.bf16.msra.mxu0 0
      %1595 = vmatpush.bf16.msra.mxu0 0
      %1596 = vmatpush.bf16.msra.mxu0 0
      %1597 = vmatpush.bf16.msra.mxu0 0
      %1598 = vmatpush.bf16.msra.mxu0 %v1302
      %1599 = vmatpush.bf16.msra.mxu0 %v1298
      %1600 = vmatpush.bf16.msra.mxu0 %v1294
      %1601 = vmatpush.bf16.msra.mxu0 %v1290
      %1602 = vmatmul.bf16.gmra.mxu0 %v1380
      %v1603 = vpop.f32.mrf.mxu0
      %v1604 = vadd.f32 %v1575, %v1603
      %v1605 = vpop.f32.mrf.mxu0
      %v1606 = vadd.f32 %v1577, %v1605
      %1607 = vmatmul.bf16.gmra.mxu0 %v1383
      %v1608 = vpop.f32.mrf.mxu0
      %v1609 = vadd.f32 %v1580, %v1608
      %v1610 = vpop.f32.mrf.mxu0
      %v1611 = vadd.f32 %v1582, %v1610
      %1612 = vmatmul.bf16.gmra.mxu0 %v1386
      %v1613 = vpop.f32.mrf.mxu0
      %v1614 = vadd.f32 %v1585, %v1613
      %v1615 = vpop.f32.mrf.mxu0
      %v1616 = vadd.f32 %v1587, %v1615
      %1617 = vmatmul.bf16.gmra.mxu0 %v1389
      %v1618 = vpop.f32.mrf.mxu0
      %v1619 = vadd.f32 %v1590, %v1618
      %v1620 = vpop.f32.mrf.mxu0
      %v1621 = vadd.f32 %v1592, %v1620
      %1622 = vdwg.mxu0
      %v1623 = vmax.f32 %v1430, 0.0
      %v1624 = vmax.f32 %v1488, 0.0
      %v1625 = vmax.f32 %v1546, 0.0
      %v1626 = vmax.f32 %v1604, 0.0
      %v1627 = vmax.f32 %v1432, 0.0
      %v1628 = vmax.f32 %v1490, 0.0
      %v1629 = vmax.f32 %v1548, 0.0
      %v1630 = vmax.f32 %v1606, 0.0
      %v1631 = vmax.f32 %v1435, 0.0
      %v1632 = vmax.f32 %v1493, 0.0
      %v1633 = vmax.f32 %v1551, 0.0
      %v1634 = vmax.f32 %v1609, 0.0
      %v1635 = vmax.f32 %v1437, 0.0
      %v1636 = vmax.f32 %v1495, 0.0
      %v1637 = vmax.f32 %v1553, 0.0
      %v1638 = vmax.f32 %v1611, 0.0
      %v1639 = vmax.f32 %v1440, 0.0
      %v1640 = vmax.f32 %v1498, 0.0
      %v1641 = vmax.f32 %v1556, 0.0
      %v1642 = vmax.f32 %v1614, 0.0
      %v1643 = vmax.f32 %v1442, 0.0
      %v1644 = vmax.f32 %v1500, 0.0
      %v1645 = vmax.f32 %v1558, 0.0
      %v1646 = vmax.f32 %v1616, 0.0
      %v1647 = vmax.f32 %v1445, 0.0
      %v1648 = vmax.f32 %v1503, 0.0
      %v1649 = vmax.f32 %v1561, 0.0
      %v1650 = vmax.f32 %v1619, 0.0
      %v1651 = vmax.f32 %v1447, 0.0
      %v1652 = vmax.f32 %v1505, 0.0
      %v1653 = vmax.f32 %v1563, 0.0
      %v1654 = vmax.f32 %v1621, 0.0
      %v1655 = vmul.f32 %v1623, %v1002
      %v1656 = vmul.f32 %v1624, %v1003
      %v1657 = vmul.f32 %v1625, %v1004
      %v1658 = vmul.f32 %v1626, %v1005
      %v1659 = vmul.f32 %v1627, %v1002
      %v1660 = vmul.f32 %v1628, %v1003
      %v1661 = vmul.f32 %v1629, %v1004
      %v1662 = vmul.f32 %v1630, %v1005
      %v1663 = vmul.f32 %v1631, %v1002
      %v1664 = vmul.f32 %v1632, %v1003
      %v1665 = vmul.f32 %v1633, %v1004
      %v1666 = vmul.f32 %v1634, %v1005
      %v1667 = vmul.f32 %v1635, %v1002
      %v1668 = vmul.f32 %v1636, %v1003
      %v1669 = vmul.f32 %v1637, %v1004
      %v1670 = vmul.f32 %v1638, %v1005
      %v1671 = vmul.f32 %v1639, %v1002
      %v1672 = vmul.f32 %v1640, %v1003
      %v1673 = vmul.f32 %v1641, %v1004
      %v1674 = vmul.f32 %v1642, %v1005
      %v1675 = vmul.f32 %v1643, %v1002
      %v1676 = vmul.f32 %v1644, %v1003
      %v1677 = vmul.f32 %v1645, %v1004
      %v1678 = vmul.f32 %v1646, %v1005
      %v1679 = vmul.f32 %v1647, %v1002
      %v1680 = vmul.f32 %v1648, %v1003
      %v1681 = vmul.f32 %v1649, %v1004
      %v1682 = vmul.f32 %v1650, %v1005
      %v1683 = vmul.f32 %v1651, %v1002
      %v1684 = vmul.f32 %v1652, %v1003
      %v1685 = vmul.f32 %v1653, %v1004
      %v1686 = vmul.f32 %v1654, %v1005
      %s1687 = scalar_lea.vmem %s4, 64
      %v1688 = vld [vmem:[%s1687] sm:$0xff]
      %v1689 = vld [vmem:[%s1687 + $0x8] sm:$0xff]
      %v1690 = vld [vmem:[%s1687 + $0x10] sm:$0xff]
      %v1691 = vld [vmem:[%s1687 + $0x18] sm:$0xff]
      %v1692 = vld [vmem:[%s1687 + $0x20] sm:$0xff]
      %v1693 = vld [vmem:[%s1687 + $0x28] sm:$0xff]
      %v1694 = vld [vmem:[%s1687 + $0x30] sm:$0xff]
      %v1695 = vld [vmem:[%s1687 + $0x38] sm:$0xff]
      %s1696 = scalar_lea.vmem %s5, 128
      %v1697 = vld [vmem:[%s1696] sm:$0xff]
      %v1698 = vld [vmem:[%s1696 + $0x8] sm:$0xff]
      %v1699 = vld [vmem:[%s1696 + $0x10] sm:$0xff]
      %v1700 = vld [vmem:[%s1696 + $0x18] sm:$0xff]
      %v1701 = vld [vmem:[%s1696 + $0x20] sm:$0xff]
      %v1702 = vld [vmem:[%s1696 + $0x28] sm:$0xff]
      %v1703 = vld [vmem:[%s1696 + $0x30] sm:$0xff]
      %v1704 = vld [vmem:[%s1696 + $0x38] sm:$0xff]
      %1705 = vrot.lane.b32.xlu0 %v1655, 1
      %v1706 = vpop.permute.xlu0 %1705
      %1707 = vrot.lane.b32.xlu0 %v1659, 1
      %v1708 = vpop.permute.xlu0 %1707
      %1709 = vrot.lane.b32.xlu0 %v1663, 1
      %v1710 = vpop.permute.xlu0 %1709
      %1711 = vrot.lane.b32.xlu0 %v1667, 1
      %v1712 = vpop.permute.xlu0 %1711
      %1713 = vrot.lane.b32.xlu0 %v1671, 1
      %v1714 = vpop.permute.xlu0 %1713
      %1715 = vrot.lane.b32.xlu0 %v1675, 1
      %v1716 = vpop.permute.xlu0 %1715
      %1717 = vrot.lane.b32.xlu0 %v1679, 1
      %v1718 = vpop.permute.xlu0 %1717
      %1719 = vrot.lane.b32.xlu0 %v1683, 1
      %v1720 = vpop.permute.xlu0 %1719
      %1721 = vrot.lane.b32.xlu0 %v1656, 1
      %v1722 = vpop.permute.xlu0 %1721
      %1723 = vrot.lane.b32.xlu0 %v1660, 1
      %v1724 = vpop.permute.xlu0 %1723
      %1725 = vrot.lane.b32.xlu0 %v1664, 1
      %v1726 = vpop.permute.xlu0 %1725
      %1727 = vrot.lane.b32.xlu0 %v1668, 1
      %v1728 = vpop.permute.xlu0 %1727
      %1729 = vrot.lane.b32.xlu0 %v1672, 1
      %v1730 = vpop.permute.xlu0 %1729
      %1731 = vrot.lane.b32.xlu0 %v1676, 1
      %v1732 = vpop.permute.xlu0 %1731
      %1733 = vrot.lane.b32.xlu0 %v1680, 1
      %v1734 = vpop.permute.xlu0 %1733
      %1735 = vrot.lane.b32.xlu0 %v1684, 1
      %v1736 = vpop.permute.xlu0 %1735
      %1737 = vrot.lane.b32.xlu0 %v1657, 1
      %v1738 = vpop.permute.xlu0 %1737
      %1739 = vrot.lane.b32.xlu0 %v1661, 1
      %v1740 = vpop.permute.xlu0 %1739
      %1741 = vrot.lane.b32.xlu0 %v1665, 1
      %v1742 = vpop.permute.xlu0 %1741
      %1743 = vrot.lane.b32.xlu0 %v1669, 1
      %v1744 = vpop.permute.xlu0 %1743
      %1745 = vrot.lane.b32.xlu0 %v1673, 1
      %v1746 = vpop.permute.xlu0 %1745
      %1747 = vrot.lane.b32.xlu0 %v1677, 1
      %v1748 = vpop.permute.xlu0 %1747
      %1749 = vrot.lane.b32.xlu0 %v1681, 1
      %v1750 = vpop.permute.xlu0 %1749
      %1751 = vrot.lane.b32.xlu0 %v1685, 1
      %v1752 = vpop.permute.xlu0 %1751
      %1753 = vrot.lane.b32.xlu0 %v1658, 1
      %v1754 = vpop.permute.xlu0 %1753
      %1755 = vrot.lane.b32.xlu0 %v1662, 1
      %v1756 = vpop.permute.xlu0 %1755
      %1757 = vrot.lane.b32.xlu0 %v1666, 1
      %v1758 = vpop.permute.xlu0 %1757
      %1759 = vrot.lane.b32.xlu0 %v1670, 1
      %v1760 = vpop.permute.xlu0 %1759
      %1761 = vrot.lane.b32.xlu0 %v1674, 1
      %v1762 = vpop.permute.xlu0 %1761
      %1763 = vrot.lane.b32.xlu0 %v1678, 1
      %v1764 = vpop.permute.xlu0 %1763
      %1765 = vrot.lane.b32.xlu0 %v1682, 1
      %v1766 = vpop.permute.xlu0 %1765
      %1767 = vrot.lane.b32.xlu0 %v1686, 1
      %v1768 = vpop.permute.xlu0 %1767
      %v1769 = vsel %vm1125, %v1738, %v1754
      %v1770 = vsel %vm1125, %v1740, %v1756
      %v1771 = vsel %vm1125, %v1742, %v1758
      %v1772 = vsel %vm1125, %v1744, %v1760
      %v1773 = vsel %vm1125, %v1746, %v1762
      %v1774 = vsel %vm1125, %v1748, %v1764
      %v1775 = vsel %vm1125, %v1750, %v1766
      %v1776 = vsel %vm1125, %v1752, %v1768
      %v1777 = vsel %vm1125, %v1722, %v1738
      %v1778 = vsel %vm1125, %v1724, %v1740
      %v1779 = vsel %vm1125, %v1726, %v1742
      %v1780 = vsel %vm1125, %v1728, %v1744
      %v1781 = vsel %vm1125, %v1730, %v1746
      %v1782 = vsel %vm1125, %v1732, %v1748
      %v1783 = vsel %vm1125, %v1734, %v1750
      %v1784 = vsel %vm1125, %v1736, %v1752
      %v1785 = vsel %vm1125, %v1706, %v1722
      %v1786 = vsel %vm1125, %v1708, %v1724
      %v1787 = vsel %vm1125, %v1710, %v1726
      %v1788 = vsel %vm1125, %v1712, %v1728
      %v1789 = vsel %vm1125, %v1714, %v1730
      %v1790 = vsel %vm1125, %v1716, %v1732
      %v1791 = vsel %vm1125, %v1718, %v1734
      %v1792 = vsel %vm1125, %v1720, %v1736
      %v1793 = vsel %vm1125, %v1754, %v1706
      %v1794 = vsel %vm1125, %v1756, %v1708
      %v1795 = vsel %vm1125, %v1758, %v1710
      %v1796 = vsel %vm1125, %v1760, %v1712
      %v1797 = vsel %vm1125, %v1762, %v1714
      %v1798 = vsel %vm1125, %v1764, %v1716
      %v1799 = vsel %vm1125, %v1766, %v1718
      %v1800 = vsel %vm1125, %v1768, %v1720
      %1801 = vrot.lane.b32.xlu0 %v1655, 127
      %v1802 = vpop.permute.xlu0 %1801
      %1803 = vrot.lane.b32.xlu0 %v1659, 127
      %v1804 = vpop.permute.xlu0 %1803
      %1805 = vrot.lane.b32.xlu0 %v1663, 127
      %v1806 = vpop.permute.xlu0 %1805
      %1807 = vrot.lane.b32.xlu0 %v1667, 127
      %v1808 = vpop.permute.xlu0 %1807
      %1809 = vrot.lane.b32.xlu0 %v1671, 127
      %v1810 = vpop.permute.xlu0 %1809
      %1811 = vrot.lane.b32.xlu0 %v1675, 127
      %v1812 = vpop.permute.xlu0 %1811
      %1813 = vrot.lane.b32.xlu0 %v1679, 127
      %v1814 = vpop.permute.xlu0 %1813
      %1815 = vrot.lane.b32.xlu0 %v1683, 127
      %v1816 = vpop.permute.xlu0 %1815
      %1817 = vrot.lane.b32.xlu0 %v1656, 127
      %v1818 = vpop.permute.xlu0 %1817
      %1819 = vrot.lane.b32.xlu0 %v1660, 127
      %v1820 = vpop.permute.xlu0 %1819
      %1821 = vrot.lane.b32.xlu0 %v1664, 127
      %v1822 = vpop.permute.xlu0 %1821
      %1823 = vrot.lane.b32.xlu0 %v1668, 127
      %v1824 = vpop.permute.xlu0 %1823
      %1825 = vrot.lane.b32.xlu0 %v1672, 127
      %v1826 = vpop.permute.xlu0 %1825
      %1827 = vrot.lane.b32.xlu0 %v1676, 127
      %v1828 = vpop.permute.xlu0 %1827
      %1829 = vrot.lane.b32.xlu0 %v1680, 127
      %v1830 = vpop.permute.xlu0 %1829
      %1831 = vrot.lane.b32.xlu0 %v1684, 127
      %v1832 = vpop.permute.xlu0 %1831
      %1833 = vrot.lane.b32.xlu0 %v1657, 127
      %v1834 = vpop.permute.xlu0 %1833
      %1835 = vrot.lane.b32.xlu0 %v1661, 127
      %v1836 = vpop.permute.xlu0 %1835
      %1837 = vrot.lane.b32.xlu0 %v1665, 127
      %v1838 = vpop.permute.xlu0 %1837
      %1839 = vrot.lane.b32.xlu0 %v1669, 127
      %v1840 = vpop.permute.xlu0 %1839
      %1841 = vrot.lane.b32.xlu0 %v1673, 127
      %v1842 = vpop.permute.xlu0 %1841
      %1843 = vrot.lane.b32.xlu0 %v1677, 127
      %v1844 = vpop.permute.xlu0 %1843
      %1845 = vrot.lane.b32.xlu0 %v1681, 127
      %v1846 = vpop.permute.xlu0 %1845
      %1847 = vrot.lane.b32.xlu0 %v1685, 127
      %v1848 = vpop.permute.xlu0 %1847
      %1849 = vrot.lane.b32.xlu0 %v1658, 127
      %v1850 = vpop.permute.xlu0 %1849
      %1851 = vrot.lane.b32.xlu0 %v1662, 127
      %v1852 = vpop.permute.xlu0 %1851
      %1853 = vrot.lane.b32.xlu0 %v1666, 127
      %v1854 = vpop.permute.xlu0 %1853
      %1855 = vrot.lane.b32.xlu0 %v1670, 127
      %v1856 = vpop.permute.xlu0 %1855
      %1857 = vrot.lane.b32.xlu0 %v1674, 127
      %v1858 = vpop.permute.xlu0 %1857
      %1859 = vrot.lane.b32.xlu0 %v1678, 127
      %v1860 = vpop.permute.xlu0 %1859
      %1861 = vrot.lane.b32.xlu0 %v1682, 127
      %v1862 = vpop.permute.xlu0 %1861
      %1863 = vrot.lane.b32.xlu0 %v1686, 127
      %v1864 = vpop.permute.xlu0 %1863
      %v1865 = vsel %vm1222, %v1834, %v1850
      %v1866 = vsel %vm1222, %v1836, %v1852
      %v1867 = vsel %vm1222, %v1838, %v1854
      %v1868 = vsel %vm1222, %v1840, %v1856
      %v1869 = vsel %vm1222, %v1842, %v1858
      %v1870 = vsel %vm1222, %v1844, %v1860
      %v1871 = vsel %vm1222, %v1846, %v1862
      %v1872 = vsel %vm1222, %v1848, %v1864
      %v1873 = vsel %vm1222, %v1818, %v1834
      %v1874 = vsel %vm1222, %v1820, %v1836
      %v1875 = vsel %vm1222, %v1822, %v1838
      %v1876 = vsel %vm1222, %v1824, %v1840
      %v1877 = vsel %vm1222, %v1826, %v1842
      %v1878 = vsel %vm1222, %v1828, %v1844
      %v1879 = vsel %vm1222, %v1830, %v1846
      %v1880 = vsel %vm1222, %v1832, %v1848
      %v1881 = vsel %vm1222, %v1802, %v1818
      %v1882 = vsel %vm1222, %v1804, %v1820
      %v1883 = vsel %vm1222, %v1806, %v1822
      %v1884 = vsel %vm1222, %v1808, %v1824
      %v1885 = vsel %vm1222, %v1810, %v1826
      %v1886 = vsel %vm1222, %v1812, %v1828
      %v1887 = vsel %vm1222, %v1814, %v1830
      %v1888 = vsel %vm1222, %v1816, %v1832
      %v1889 = vsel %vm1222, %v1850, %v1802
      %v1890 = vsel %vm1222, %v1852, %v1804
      %v1891 = vsel %vm1222, %v1854, %v1806
      %v1892 = vsel %vm1222, %v1856, %v1808
      %v1893 = vsel %vm1222, %v1858, %v1810
      %v1894 = vsel %vm1222, %v1860, %v1812
      %v1895 = vsel %vm1222, %v1862, %v1814
      %v1896 = vsel %vm1222, %v1864, %v1816
      %v1897 = vpack.c.bf16 %v1794, %v1793
      %v1898 = vpack.c.bf16 %v1786, %v1785
      %v1899 = vpack.c.bf16 %v1778, %v1777
      %v1900 = vpack.c.bf16 %v1770, %v1769
      %v1901 = vpack.c.bf16 %v1796, %v1795
      %v1902 = vpack.c.bf16 %v1788, %v1787
      %v1903 = vpack.c.bf16 %v1780, %v1779
      %v1904 = vpack.c.bf16 %v1772, %v1771
      %v1905 = vpack.c.bf16 %v1798, %v1797
      %v1906 = vpack.c.bf16 %v1790, %v1789
      %v1907 = vpack.c.bf16 %v1782, %v1781
      %v1908 = vpack.c.bf16 %v1774, %v1773
      %v1909 = vpack.c.bf16 %v1800, %v1799
      %v1910 = vpack.c.bf16 %v1792, %v1791
      %v1911 = vpack.c.bf16 %v1784, %v1783
      %v1912 = vpack.c.bf16 %v1776, %v1775
      %v1913 = vpack.c.bf16 %v1659, %v1655
      %v1914 = vpack.c.bf16 %v1660, %v1656
      %v1915 = vpack.c.bf16 %v1661, %v1657
      %v1916 = vpack.c.bf16 %v1662, %v1658
      %v1917 = vpack.c.bf16 %v1667, %v1663
      %v1918 = vpack.c.bf16 %v1668, %v1664
      %v1919 = vpack.c.bf16 %v1669, %v1665
      %v1920 = vpack.c.bf16 %v1670, %v1666
      %v1921 = vpack.c.bf16 %v1675, %v1671
      %v1922 = vpack.c.bf16 %v1676, %v1672
      %v1923 = vpack.c.bf16 %v1677, %v1673
      %v1924 = vpack.c.bf16 %v1678, %v1674
      %v1925 = vpack.c.bf16 %v1683, %v1679
      %v1926 = vpack.c.bf16 %v1684, %v1680
      %v1927 = vpack.c.bf16 %v1685, %v1681
      %v1928 = vpack.c.bf16 %v1686, %v1682
      %v1929 = vpack.c.bf16 %v1882, %v1881
      %v1930 = vpack.c.bf16 %v1874, %v1873
      %v1931 = vpack.c.bf16 %v1866, %v1865
      %v1932 = vpack.c.bf16 %v1890, %v1889
      %v1933 = vpack.c.bf16 %v1884, %v1883
      %v1934 = vpack.c.bf16 %v1876, %v1875
      %v1935 = vpack.c.bf16 %v1868, %v1867
      %v1936 = vpack.c.bf16 %v1892, %v1891
      %v1937 = vpack.c.bf16 %v1886, %v1885
      %v1938 = vpack.c.bf16 %v1878, %v1877
      %v1939 = vpack.c.bf16 %v1870, %v1869
      %v1940 = vpack.c.bf16 %v1894, %v1893
      %v1941 = vpack.c.bf16 %v1888, %v1887
      %v1942 = vpack.c.bf16 %v1880, %v1879
      %v1943 = vpack.c.bf16 %v1872, %v1871
      %v1944 = vpack.c.bf16 %v1896, %v1895
      %1946 = vset.pattern.permute.xlu0 0
      %1947 = vperm.xlu0 %1946, %v1697
      %v1948 = vpop.permute.xlu0 %1947
      %1951 = vset.pattern.permute.xlu0 0
      %1952 = vperm.xlu0 %1951, %v1698
      %v1953 = vpop.permute.xlu0 %1952
      %1956 = vset.pattern.permute.xlu0 0
      %1957 = vperm.xlu0 %1956, %v1699
      %v1958 = vpop.permute.xlu0 %1957
      %1961 = vset.pattern.permute.xlu0 0
      %1962 = vperm.xlu0 %1961, %v1700
      %v1963 = vpop.permute.xlu0 %1962
      %1966 = vset.pattern.permute.xlu0 0
      %1967 = vperm.xlu0 %1966, %v1701
      %v1968 = vpop.permute.xlu0 %1967
      %1971 = vset.pattern.permute.xlu0 0
      %1972 = vperm.xlu0 %1971, %v1702
      %v1973 = vpop.permute.xlu0 %1972
      %1976 = vset.pattern.permute.xlu0 0
      %1977 = vperm.xlu0 %1976, %v1703
      %v1978 = vpop.permute.xlu0 %1977
      %1981 = vset.pattern.permute.xlu0 0
      %1982 = vperm.xlu0 %1981, %v1704
      %v1983 = vpop.permute.xlu0 %1982
      %v1993 = vunpack.c.l.b16 %v1688
      %v1994 = vunpack.c.h.b16 %v1688
      %v1995 = vunpack.c.l.b16 %v1689
      %v1996 = vunpack.c.h.b16 %v1689
      %v1997 = vunpack.c.l.b16 %v1690
      %v1998 = vunpack.c.h.b16 %v1690
      %v1999 = vunpack.c.l.b16 %v1691
      %v2000 = vunpack.c.h.b16 %v1691
      %v2001 = vunpack.c.l.b16 %v1692
      %v2002 = vunpack.c.h.b16 %v1692
      %v2003 = vunpack.c.l.b16 %v1693
      %v2004 = vunpack.c.h.b16 %v1693
      %v2005 = vunpack.c.l.b16 %v1694
      %v2006 = vunpack.c.h.b16 %v1694
      %v2007 = vunpack.c.l.b16 %v1695
      %v2008 = vunpack.c.h.b16 %v1695
      %v2009 = vpack.c.b16 %v1995, %v1993
      %v2010 = vpack.c.b16 %v1996, %v1994
      %v2011 = vpack.c.b16 %v1999, %v1997
      %v2012 = vpack.c.b16 %v2000, %v1998
      %v2013 = vpack.c.b16 %v2003, %v2001
      %v2014 = vpack.c.b16 %v2004, %v2002
      %v2015 = vpack.c.b16 %v2007, %v2005
      %v2016 = vpack.c.b16 %v2008, %v2006
      %v2022 = vsel %vm872, %v2010, 0
      %v2025 = vsel %vm872, %v2012, 0
      %v2028 = vsel %vm872, %v2014, 0
      %v2031 = vsel %vm872, %v2016, 0
      %2033 = vmatpush.bf16.msra.mxu0 %v1925
      %2034 = vmatpush.bf16.msra.mxu0 %v1921
      %2035 = vmatpush.bf16.msra.mxu0 %v1917
      %2036 = vmatpush.bf16.msra.mxu0 %v1913
      %2037 = vmatpush.bf16.msra.mxu0 %v1909
      %2038 = vmatpush.bf16.msra.mxu0 %v1905
      %2039 = vmatpush.bf16.msra.mxu0 %v1901
      %2040 = vmatpush.bf16.msra.mxu0 %v1897
      %2041 = vmatmul.bf16.gmra.mxu0 %v2009
      %v2042 = vpop.f32.mrf.mxu0
      %v2043 = vadd.f32 %v1948, %v2042
      %v2044 = vpop.f32.mrf.mxu0
      %v2045 = vadd.f32 %v1953, %v2044
      %2046 = vmatmul.bf16.gmra.mxu0 %v2011
      %v2047 = vpop.f32.mrf.mxu0
      %v2048 = vadd.f32 %v1958, %v2047
      %v2049 = vpop.f32.mrf.mxu0
      %v2050 = vadd.f32 %v1963, %v2049
      %2051 = vmatmul.bf16.gmra.mxu0 %v2013
      %v2052 = vpop.f32.mrf.mxu0
      %v2053 = vadd.f32 %v1968, %v2052
      %v2054 = vpop.f32.mrf.mxu0
      %v2055 = vadd.f32 %v1973, %v2054
      %2056 = vmatmul.bf16.gmra.mxu0 %v2015
      %v2057 = vpop.f32.mrf.mxu0
      %v2058 = vadd.f32 %v1978, %v2057
      %v2059 = vpop.f32.mrf.mxu0
      %v2060 = vadd.f32 %v1983, %v2059
      %2061 = vdwg.mxu0
      %2062 = vmatpush.bf16.msra.mxu0 0
      %2063 = vmatpush.bf16.msra.mxu0 0
      %2064 = vmatpush.bf16.msra.mxu0 0
      %2065 = vmatpush.bf16.msra.mxu0 0
      %2066 = vmatpush.bf16.msra.mxu0 %v1941
      %2067 = vmatpush.bf16.msra.mxu0 %v1937
      %2068 = vmatpush.bf16.msra.mxu0 %v1933
      %2069 = vmatpush.bf16.msra.mxu0 %v1929
      %2070 = vmatmul.bf16.gmra.mxu0 %v2022
      %v2071 = vpop.f32.mrf.mxu0
      %v2072 = vadd.f32 %v2043, %v2071
      %v2073 = vpop.f32.mrf.mxu0
      %v2074 = vadd.f32 %v2045, %v2073
      %2075 = vmatmul.bf16.gmra.mxu0 %v2025
      %v2076 = vpop.f32.mrf.mxu0
      %v2077 = vadd.f32 %v2048, %v2076
      %v2078 = vpop.f32.mrf.mxu0
      %v2079 = vadd.f32 %v2050, %v2078
      %2080 = vmatmul.bf16.gmra.mxu0 %v2028
      %v2081 = vpop.f32.mrf.mxu0
      %v2082 = vadd.f32 %v2053, %v2081
      %v2083 = vpop.f32.mrf.mxu0
      %v2084 = vadd.f32 %v2055, %v2083
      %2085 = vmatmul.bf16.gmra.mxu0 %v2031
      %v2086 = vpop.f32.mrf.mxu0
      %v2087 = vadd.f32 %v2058, %v2086
      %v2088 = vpop.f32.mrf.mxu0
      %v2089 = vadd.f32 %v2060, %v2088
      %2090 = vdwg.mxu0
      %2091 = vmatpush.bf16.msra.mxu0 %v1926
      %2092 = vmatpush.bf16.msra.mxu0 %v1922
      %2093 = vmatpush.bf16.msra.mxu0 %v1918
      %2094 = vmatpush.bf16.msra.mxu0 %v1914
      %2095 = vmatpush.bf16.msra.mxu0 %v1910
      %2096 = vmatpush.bf16.msra.mxu0 %v1906
      %2097 = vmatpush.bf16.msra.mxu0 %v1902
      %2098 = vmatpush.bf16.msra.mxu0 %v1898
      %2099 = vmatmul.bf16.gmra.mxu0 %v2009
      %v2100 = vpop.f32.mrf.mxu0
      %v2101 = vadd.f32 %v1948, %v2100
      %v2102 = vpop.f32.mrf.mxu0
      %v2103 = vadd.f32 %v1953, %v2102
      %2104 = vmatmul.bf16.gmra.mxu0 %v2011
      %v2105 = vpop.f32.mrf.mxu0
      %v2106 = vadd.f32 %v1958, %v2105
      %v2107 = vpop.f32.mrf.mxu0
      %v2108 = vadd.f32 %v1963, %v2107
      %2109 = vmatmul.bf16.gmra.mxu0 %v2013
      %v2110 = vpop.f32.mrf.mxu0
      %v2111 = vadd.f32 %v1968, %v2110
      %v2112 = vpop.f32.mrf.mxu0
      %v2113 = vadd.f32 %v1973, %v2112
      %2114 = vmatmul.bf16.gmra.mxu0 %v2015
      %v2115 = vpop.f32.mrf.mxu0
      %v2116 = vadd.f32 %v1978, %v2115
      %v2117 = vpop.f32.mrf.mxu0
      %v2118 = vadd.f32 %v1983, %v2117
      %2119 = vdwg.mxu0
      %2120 = vmatpush.bf16.msra.mxu0 0
      %2121 = vmatpush.bf16.msra.mxu0 0
      %2122 = vmatpush.bf16.msra.mxu0 0
      %2123 = vmatpush.bf16.msra.mxu0 0
      %2124 = vmatpush.bf16.msra.mxu0 %v1942
      %2125 = vmatpush.bf16.msra.mxu0 %v1938
      %2126 = vmatpush.bf16.msra.mxu0 %v1934
      %2127 = vmatpush.bf16.msra.mxu0 %v1930
      %2128 = vmatmul.bf16.gmra.mxu0 %v2022
      %v2129 = vpop.f32.mrf.mxu0
      %v2130 = vadd.f32 %v2101, %v2129
      %v2131 = vpop.f32.mrf.mxu0
      %v2132 = vadd.f32 %v2103, %v2131
      %2133 = vmatmul.bf16.gmra.mxu0 %v2025
      %v2134 = vpop.f32.mrf.mxu0
      %v2135 = vadd.f32 %v2106, %v2134
      %v2136 = vpop.f32.mrf.mxu0
      %v2137 = vadd.f32 %v2108, %v2136
      %2138 = vmatmul.bf16.gmra.mxu0 %v2028
      %v2139 = vpop.f32.mrf.mxu0
      %v2140 = vadd.f32 %v2111, %v2139
      %v2141 = vpop.f32.mrf.mxu0
      %v2142 = vadd.f32 %v2113, %v2141
      %2143 = vmatmul.bf16.gmra.mxu0 %v2031
      %v2144 = vpop.f32.mrf.mxu0
      %v2145 = vadd.f32 %v2116, %v2144
      %v2146 = vpop.f32.mrf.mxu0
      %v2147 = vadd.f32 %v2118, %v2146
      %2148 = vdwg.mxu0
      %2149 = vmatpush.bf16.msra.mxu0 %v1927
      %2150 = vmatpush.bf16.msra.mxu0 %v1923
      %2151 = vmatpush.bf16.msra.mxu0 %v1919
      %2152 = vmatpush.bf16.msra.mxu0 %v1915
      %2153 = vmatpush.bf16.msra.mxu0 %v1911
      %2154 = vmatpush.bf16.msra.mxu0 %v1907
      %2155 = vmatpush.bf16.msra.mxu0 %v1903
      %2156 = vmatpush.bf16.msra.mxu0 %v1899
      %2157 = vmatmul.bf16.gmra.mxu0 %v2009
      %v2158 = vpop.f32.mrf.mxu0
      %v2159 = vadd.f32 %v1948, %v2158
      %v2160 = vpop.f32.mrf.mxu0
      %v2161 = vadd.f32 %v1953, %v2160
      %2162 = vmatmul.bf16.gmra.mxu0 %v2011
      %v2163 = vpop.f32.mrf.mxu0
      %v2164 = vadd.f32 %v1958, %v2163
      %v2165 = vpop.f32.mrf.mxu0
      %v2166 = vadd.f32 %v1963, %v2165
      %2167 = vmatmul.bf16.gmra.mxu0 %v2013
      %v2168 = vpop.f32.mrf.mxu0
      %v2169 = vadd.f32 %v1968, %v2168
      %v2170 = vpop.f32.mrf.mxu0
      %v2171 = vadd.f32 %v1973, %v2170
      %2172 = vmatmul.bf16.gmra.mxu0 %v2015
      %v2173 = vpop.f32.mrf.mxu0
      %v2174 = vadd.f32 %v1978, %v2173
      %v2175 = vpop.f32.mrf.mxu0
      %v2176 = vadd.f32 %v1983, %v2175
      %2177 = vdwg.mxu0
      %2178 = vmatpush.bf16.msra.mxu0 0
      %2179 = vmatpush.bf16.msra.mxu0 0
      %2180 = vmatpush.bf16.msra.mxu0 0
      %2181 = vmatpush.bf16.msra.mxu0 0
      %2182 = vmatpush.bf16.msra.mxu0 %v1943
      %2183 = vmatpush.bf16.msra.mxu0 %v1939
      %2184 = vmatpush.bf16.msra.mxu0 %v1935
      %2185 = vmatpush.bf16.msra.mxu0 %v1931
      %2186 = vmatmul.bf16.gmra.mxu0 %v2022
      %v2187 = vpop.f32.mrf.mxu0
      %v2188 = vadd.f32 %v2159, %v2187
      %v2189 = vpop.f32.mrf.mxu0
      %v2190 = vadd.f32 %v2161, %v2189
      %2191 = vmatmul.bf16.gmra.mxu0 %v2025
      %v2192 = vpop.f32.mrf.mxu0
      %v2193 = vadd.f32 %v2164, %v2192
      %v2194 = vpop.f32.mrf.mxu0
      %v2195 = vadd.f32 %v2166, %v2194
      %2196 = vmatmul.bf16.gmra.mxu0 %v2028
      %v2197 = vpop.f32.mrf.mxu0
      %v2198 = vadd.f32 %v2169, %v2197
      %v2199 = vpop.f32.mrf.mxu0
      %v2200 = vadd.f32 %v2171, %v2199
      %2201 = vmatmul.bf16.gmra.mxu0 %v2031
      %v2202 = vpop.f32.mrf.mxu0
      %v2203 = vadd.f32 %v2174, %v2202
      %v2204 = vpop.f32.mrf.mxu0
      %v2205 = vadd.f32 %v2176, %v2204
      %2206 = vdwg.mxu0
      %2207 = vmatpush.bf16.msra.mxu0 %v1928
      %2208 = vmatpush.bf16.msra.mxu0 %v1924
      %2209 = vmatpush.bf16.msra.mxu0 %v1920
      %2210 = vmatpush.bf16.msra.mxu0 %v1916
      %2211 = vmatpush.bf16.msra.mxu0 %v1912
      %2212 = vmatpush.bf16.msra.mxu0 %v1908
      %2213 = vmatpush.bf16.msra.mxu0 %v1904
      %2214 = vmatpush.bf16.msra.mxu0 %v1900
      %2215 = vmatmul.bf16.gmra.mxu0 %v2009
      %v2216 = vpop.f32.mrf.mxu0
      %v2217 = vadd.f32 %v1948, %v2216
      %v2218 = vpop.f32.mrf.mxu0
      %v2219 = vadd.f32 %v1953, %v2218
      %2220 = vmatmul.bf16.gmra.mxu0 %v2011
      %v2221 = vpop.f32.mrf.mxu0
      %v2222 = vadd.f32 %v1958, %v2221
      %v2223 = vpop.f32.mrf.mxu0
      %v2224 = vadd.f32 %v1963, %v2223
      %2225 = vmatmul.bf16.gmra.mxu0 %v2013
      %v2226 = vpop.f32.mrf.mxu0
      %v2227 = vadd.f32 %v1968, %v2226
      %v2228 = vpop.f32.mrf.mxu0
      %v2229 = vadd.f32 %v1973, %v2228
      %2230 = vmatmul.bf16.gmra.mxu0 %v2015
      %v2231 = vpop.f32.mrf.mxu0
      %v2232 = vadd.f32 %v1978, %v2231
      %v2233 = vpop.f32.mrf.mxu0
      %v2234 = vadd.f32 %v1983, %v2233
      %2235 = vdwg.mxu0
      %2236 = vmatpush.bf16.msra.mxu0 0
      %2237 = vmatpush.bf16.msra.mxu0 0
      %2238 = vmatpush.bf16.msra.mxu0 0
      %2239 = vmatpush.bf16.msra.mxu0 0
      %2240 = vmatpush.bf16.msra.mxu0 %v1944
      %2241 = vmatpush.bf16.msra.mxu0 %v1940
      %2242 = vmatpush.bf16.msra.mxu0 %v1936
      %2243 = vmatpush.bf16.msra.mxu0 %v1932
      %2244 = vmatmul.bf16.gmra.mxu0 %v2022
      %v2245 = vpop.f32.mrf.mxu0
      %v2246 = vadd.f32 %v2217, %v2245
      %v2247 = vpop.f32.mrf.mxu0
      %v2248 = vadd.f32 %v2219, %v2247
      %2249 = vmatmul.bf16.gmra.mxu0 %v2025
      %v2250 = vpop.f32.mrf.mxu0
      %v2251 = vadd.f32 %v2222, %v2250
      %v2252 = vpop.f32.mrf.mxu0
      %v2253 = vadd.f32 %v2224, %v2252
      %2254 = vmatmul.bf16.gmra.mxu0 %v2028
      %v2255 = vpop.f32.mrf.mxu0
      %v2256 = vadd.f32 %v2227, %v2255
      %v2257 = vpop.f32.mrf.mxu0
      %v2258 = vadd.f32 %v2229, %v2257
      %2259 = vmatmul.bf16.gmra.mxu0 %v2031
      %v2260 = vpop.f32.mrf.mxu0
      %v2261 = vadd.f32 %v2232, %v2260
      %v2262 = vpop.f32.mrf.mxu0
      %v2263 = vadd.f32 %v2234, %v2262
      %2264 = vdwg.mxu0
      %v2265 = vmax.f32 %v2072, 0.0
      %v2266 = vmax.f32 %v2130, 0.0
      %v2267 = vmax.f32 %v2188, 0.0
      %v2268 = vmax.f32 %v2246, 0.0
      %v2269 = vmax.f32 %v2074, 0.0
      %v2270 = vmax.f32 %v2132, 0.0
      %v2271 = vmax.f32 %v2190, 0.0
      %v2272 = vmax.f32 %v2248, 0.0
      %v2273 = vmax.f32 %v2077, 0.0
      %v2274 = vmax.f32 %v2135, 0.0
      %v2275 = vmax.f32 %v2193, 0.0
      %v2276 = vmax.f32 %v2251, 0.0
      %v2277 = vmax.f32 %v2079, 0.0
      %v2278 = vmax.f32 %v2137, 0.0
      %v2279 = vmax.f32 %v2195, 0.0
      %v2280 = vmax.f32 %v2253, 0.0
      %v2281 = vmax.f32 %v2082, 0.0
      %v2282 = vmax.f32 %v2140, 0.0
      %v2283 = vmax.f32 %v2198, 0.0
      %v2284 = vmax.f32 %v2256, 0.0
      %v2285 = vmax.f32 %v2084, 0.0
      %v2286 = vmax.f32 %v2142, 0.0
      %v2287 = vmax.f32 %v2200, 0.0
      %v2288 = vmax.f32 %v2258, 0.0
      %v2289 = vmax.f32 %v2087, 0.0
      %v2290 = vmax.f32 %v2145, 0.0
      %v2291 = vmax.f32 %v2203, 0.0
      %v2292 = vmax.f32 %v2261, 0.0
      %v2293 = vmax.f32 %v2089, 0.0
      %v2294 = vmax.f32 %v2147, 0.0
      %v2295 = vmax.f32 %v2205, 0.0
      %v2296 = vmax.f32 %v2263, 0.0
      %v2297 = vmul.f32 %v2265, %v1002
      %v2298 = vmul.f32 %v2266, %v1003
      %v2299 = vmul.f32 %v2267, %v1004
      %v2300 = vmul.f32 %v2268, %v1005
      %v2301 = vmul.f32 %v2269, %v1002
      %v2302 = vmul.f32 %v2270, %v1003
      %v2303 = vmul.f32 %v2271, %v1004
      %v2304 = vmul.f32 %v2272, %v1005
      %v2305 = vmul.f32 %v2273, %v1002
      %v2306 = vmul.f32 %v2274, %v1003
      %v2307 = vmul.f32 %v2275, %v1004
      %v2308 = vmul.f32 %v2276, %v1005
      %v2309 = vmul.f32 %v2277, %v1002
      %v2310 = vmul.f32 %v2278, %v1003
      %v2311 = vmul.f32 %v2279, %v1004
      %v2312 = vmul.f32 %v2280, %v1005
      %v2313 = vmul.f32 %v2281, %v1002
      %v2314 = vmul.f32 %v2282, %v1003
      %v2315 = vmul.f32 %v2283, %v1004
      %v2316 = vmul.f32 %v2284, %v1005
      %v2317 = vmul.f32 %v2285, %v1002
      %v2318 = vmul.f32 %v2286, %v1003
      %v2319 = vmul.f32 %v2287, %v1004
      %v2320 = vmul.f32 %v2288, %v1005
      %v2321 = vmul.f32 %v2289, %v1002
      %v2322 = vmul.f32 %v2290, %v1003
      %v2323 = vmul.f32 %v2291, %v1004
      %v2324 = vmul.f32 %v2292, %v1005
      %v2325 = vmul.f32 %v2293, %v1002
      %v2326 = vmul.f32 %v2294, %v1003
      %v2327 = vmul.f32 %v2295, %v1004
      %v2328 = vmul.f32 %v2296, %v1005
      %s2329 = scalar_lea.vmem %s4, 128
      %v2330 = vld [vmem:[%s2329] sm:$0xff]
      %v2331 = vld [vmem:[%s2329 + $0x8] sm:$0xff]
      %v2332 = vld [vmem:[%s2329 + $0x10] sm:$0xff]
      %v2333 = vld [vmem:[%s2329 + $0x18] sm:$0xff]
      %v2334 = vld [vmem:[%s2329 + $0x20] sm:$0xff]
      %v2335 = vld [vmem:[%s2329 + $0x28] sm:$0xff]
      %v2336 = vld [vmem:[%s2329 + $0x30] sm:$0xff]
      %v2337 = vld [vmem:[%s2329 + $0x38] sm:$0xff]
      %s2338 = scalar_lea.vmem %s5, 192
      %v2339 = vld [vmem:[%s2338] sm:$0xff]
      %v2340 = vld [vmem:[%s2338 + $0x8] sm:$0xff]
      %v2341 = vld [vmem:[%s2338 + $0x10] sm:$0xff]
      %v2342 = vld [vmem:[%s2338 + $0x18] sm:$0xff]
      %v2343 = vld [vmem:[%s2338 + $0x20] sm:$0xff]
      %v2344 = vld [vmem:[%s2338 + $0x28] sm:$0xff]
      %v2345 = vld [vmem:[%s2338 + $0x30] sm:$0xff]
      %v2346 = vld [vmem:[%s2338 + $0x38] sm:$0xff]
      %2347 = vrot.lane.b32.xlu0 %v2297, 1
      %v2348 = vpop.permute.xlu0 %2347
      %2349 = vrot.lane.b32.xlu0 %v2301, 1
      %v2350 = vpop.permute.xlu0 %2349
      %2351 = vrot.lane.b32.xlu0 %v2305, 1
      %v2352 = vpop.permute.xlu0 %2351
      %2353 = vrot.lane.b32.xlu0 %v2309, 1
      %v2354 = vpop.permute.xlu0 %2353
      %2355 = vrot.lane.b32.xlu0 %v2313, 1
      %v2356 = vpop.permute.xlu0 %2355
      %2357 = vrot.lane.b32.xlu0 %v2317, 1
      %v2358 = vpop.permute.xlu0 %2357
      %2359 = vrot.lane.b32.xlu0 %v2321, 1
      %v2360 = vpop.permute.xlu0 %2359
      %2361 = vrot.lane.b32.xlu0 %v2325, 1
      %v2362 = vpop.permute.xlu0 %2361
      %2363 = vrot.lane.b32.xlu0 %v2298, 1
      %v2364 = vpop.permute.xlu0 %2363
      %2365 = vrot.lane.b32.xlu0 %v2302, 1
      %v2366 = vpop.permute.xlu0 %2365
      %2367 = vrot.lane.b32.xlu0 %v2306, 1
      %v2368 = vpop.permute.xlu0 %2367
      %2369 = vrot.lane.b32.xlu0 %v2310, 1
      %v2370 = vpop.permute.xlu0 %2369
      %2371 = vrot.lane.b32.xlu0 %v2314, 1
      %v2372 = vpop.permute.xlu0 %2371
      %2373 = vrot.lane.b32.xlu0 %v2318, 1
      %v2374 = vpop.permute.xlu0 %2373
      %2375 = vrot.lane.b32.xlu0 %v2322, 1
      %v2376 = vpop.permute.xlu0 %2375
      %2377 = vrot.lane.b32.xlu0 %v2326, 1
      %v2378 = vpop.permute.xlu0 %2377
      %2379 = vrot.lane.b32.xlu0 %v2299, 1
      %v2380 = vpop.permute.xlu0 %2379
      %2381 = vrot.lane.b32.xlu0 %v2303, 1
      %v2382 = vpop.permute.xlu0 %2381
      %2383 = vrot.lane.b32.xlu0 %v2307, 1
      %v2384 = vpop.permute.xlu0 %2383
      %2385 = vrot.lane.b32.xlu0 %v2311, 1
      %v2386 = vpop.permute.xlu0 %2385
      %2387 = vrot.lane.b32.xlu0 %v2315, 1
      %v2388 = vpop.permute.xlu0 %2387
      %2389 = vrot.lane.b32.xlu0 %v2319, 1
      %v2390 = vpop.permute.xlu0 %2389
      %2391 = vrot.lane.b32.xlu0 %v2323, 1
      %v2392 = vpop.permute.xlu0 %2391
      %2393 = vrot.lane.b32.xlu0 %v2327, 1
      %v2394 = vpop.permute.xlu0 %2393
      %2395 = vrot.lane.b32.xlu0 %v2300, 1
      %v2396 = vpop.permute.xlu0 %2395
      %2397 = vrot.lane.b32.xlu0 %v2304, 1
      %v2398 = vpop.permute.xlu0 %2397
      %2399 = vrot.lane.b32.xlu0 %v2308, 1
      %v2400 = vpop.permute.xlu0 %2399
      %2401 = vrot.lane.b32.xlu0 %v2312, 1
      %v2402 = vpop.permute.xlu0 %2401
      %2403 = vrot.lane.b32.xlu0 %v2316, 1
      %v2404 = vpop.permute.xlu0 %2403
      %2405 = vrot.lane.b32.xlu0 %v2320, 1
      %v2406 = vpop.permute.xlu0 %2405
      %2407 = vrot.lane.b32.xlu0 %v2324, 1
      %v2408 = vpop.permute.xlu0 %2407
      %2409 = vrot.lane.b32.xlu0 %v2328, 1
      %v2410 = vpop.permute.xlu0 %2409
      %v2411 = vsel %vm1125, %v2380, %v2396
      %v2412 = vsel %vm1125, %v2382, %v2398
      %v2413 = vsel %vm1125, %v2384, %v2400
      %v2414 = vsel %vm1125, %v2386, %v2402
      %v2415 = vsel %vm1125, %v2388, %v2404
      %v2416 = vsel %vm1125, %v2390, %v2406
      %v2417 = vsel %vm1125, %v2392, %v2408
      %v2418 = vsel %vm1125, %v2394, %v2410
      %v2419 = vsel %vm1125, %v2364, %v2380
      %v2420 = vsel %vm1125, %v2366, %v2382
      %v2421 = vsel %vm1125, %v2368, %v2384
      %v2422 = vsel %vm1125, %v2370, %v2386
      %v2423 = vsel %vm1125, %v2372, %v2388
      %v2424 = vsel %vm1125, %v2374, %v2390
      %v2425 = vsel %vm1125, %v2376, %v2392
      %v2426 = vsel %vm1125, %v2378, %v2394
      %v2427 = vsel %vm1125, %v2348, %v2364
      %v2428 = vsel %vm1125, %v2350, %v2366
      %v2429 = vsel %vm1125, %v2352, %v2368
      %v2430 = vsel %vm1125, %v2354, %v2370
      %v2431 = vsel %vm1125, %v2356, %v2372
      %v2432 = vsel %vm1125, %v2358, %v2374
      %v2433 = vsel %vm1125, %v2360, %v2376
      %v2434 = vsel %vm1125, %v2362, %v2378
      %v2435 = vsel %vm1125, %v2396, %v2348
      %v2436 = vsel %vm1125, %v2398, %v2350
      %v2437 = vsel %vm1125, %v2400, %v2352
      %v2438 = vsel %vm1125, %v2402, %v2354
      %v2439 = vsel %vm1125, %v2404, %v2356
      %v2440 = vsel %vm1125, %v2406, %v2358
      %v2441 = vsel %vm1125, %v2408, %v2360
      %v2442 = vsel %vm1125, %v2410, %v2362
      %2443 = vrot.lane.b32.xlu0 %v2297, 127
      %v2444 = vpop.permute.xlu0 %2443
      %2445 = vrot.lane.b32.xlu0 %v2301, 127
      %v2446 = vpop.permute.xlu0 %2445
      %2447 = vrot.lane.b32.xlu0 %v2305, 127
      %v2448 = vpop.permute.xlu0 %2447
      %2449 = vrot.lane.b32.xlu0 %v2309, 127
      %v2450 = vpop.permute.xlu0 %2449
      %2451 = vrot.lane.b32.xlu0 %v2313, 127
      %v2452 = vpop.permute.xlu0 %2451
      %2453 = vrot.lane.b32.xlu0 %v2317, 127
      %v2454 = vpop.permute.xlu0 %2453
      %2455 = vrot.lane.b32.xlu0 %v2321, 127
      %v2456 = vpop.permute.xlu0 %2455
      %2457 = vrot.lane.b32.xlu0 %v2325, 127
      %v2458 = vpop.permute.xlu0 %2457
      %2459 = vrot.lane.b32.xlu0 %v2298, 127
      %v2460 = vpop.permute.xlu0 %2459
      %2461 = vrot.lane.b32.xlu0 %v2302, 127
      %v2462 = vpop.permute.xlu0 %2461
      %2463 = vrot.lane.b32.xlu0 %v2306, 127
      %v2464 = vpop.permute.xlu0 %2463
      %2465 = vrot.lane.b32.xlu0 %v2310, 127
      %v2466 = vpop.permute.xlu0 %2465
      %2467 = vrot.lane.b32.xlu0 %v2314, 127
      %v2468 = vpop.permute.xlu0 %2467
      %2469 = vrot.lane.b32.xlu0 %v2318, 127
      %v2470 = vpop.permute.xlu0 %2469
      %2471 = vrot.lane.b32.xlu0 %v2322, 127
      %v2472 = vpop.permute.xlu0 %2471
      %2473 = vrot.lane.b32.xlu0 %v2326, 127
      %v2474 = vpop.permute.xlu0 %2473
      %2475 = vrot.lane.b32.xlu0 %v2299, 127
      %v2476 = vpop.permute.xlu0 %2475
      %2477 = vrot.lane.b32.xlu0 %v2303, 127
      %v2478 = vpop.permute.xlu0 %2477
      %2479 = vrot.lane.b32.xlu0 %v2307, 127
      %v2480 = vpop.permute.xlu0 %2479
      %2481 = vrot.lane.b32.xlu0 %v2311, 127
      %v2482 = vpop.permute.xlu0 %2481
      %2483 = vrot.lane.b32.xlu0 %v2315, 127
      %v2484 = vpop.permute.xlu0 %2483
      %2485 = vrot.lane.b32.xlu0 %v2319, 127
      %v2486 = vpop.permute.xlu0 %2485
      %2487 = vrot.lane.b32.xlu0 %v2323, 127
      %v2488 = vpop.permute.xlu0 %2487
      %2489 = vrot.lane.b32.xlu0 %v2327, 127
      %v2490 = vpop.permute.xlu0 %2489
      %2491 = vrot.lane.b32.xlu0 %v2300, 127
      %v2492 = vpop.permute.xlu0 %2491
      %2493 = vrot.lane.b32.xlu0 %v2304, 127
      %v2494 = vpop.permute.xlu0 %2493
      %2495 = vrot.lane.b32.xlu0 %v2308, 127
      %v2496 = vpop.permute.xlu0 %2495
      %2497 = vrot.lane.b32.xlu0 %v2312, 127
      %v2498 = vpop.permute.xlu0 %2497
      %2499 = vrot.lane.b32.xlu0 %v2316, 127
      %v2500 = vpop.permute.xlu0 %2499
      %2501 = vrot.lane.b32.xlu0 %v2320, 127
      %v2502 = vpop.permute.xlu0 %2501
      %2503 = vrot.lane.b32.xlu0 %v2324, 127
      %v2504 = vpop.permute.xlu0 %2503
      %2505 = vrot.lane.b32.xlu0 %v2328, 127
      %v2506 = vpop.permute.xlu0 %2505
      %v2507 = vsel %vm1222, %v2476, %v2492
      %v2508 = vsel %vm1222, %v2478, %v2494
      %v2509 = vsel %vm1222, %v2480, %v2496
      %v2510 = vsel %vm1222, %v2482, %v2498
      %v2511 = vsel %vm1222, %v2484, %v2500
      %v2512 = vsel %vm1222, %v2486, %v2502
      %v2513 = vsel %vm1222, %v2488, %v2504
      %v2514 = vsel %vm1222, %v2490, %v2506
      %v2515 = vsel %vm1222, %v2460, %v2476
      %v2516 = vsel %vm1222, %v2462, %v2478
      %v2517 = vsel %vm1222, %v2464, %v2480
      %v2518 = vsel %vm1222, %v2466, %v2482
      %v2519 = vsel %vm1222, %v2468, %v2484
      %v2520 = vsel %vm1222, %v2470, %v2486
      %v2521 = vsel %vm1222, %v2472, %v2488
      %v2522 = vsel %vm1222, %v2474, %v2490
      %v2523 = vsel %vm1222, %v2444, %v2460
      %v2524 = vsel %vm1222, %v2446, %v2462
      %v2525 = vsel %vm1222, %v2448, %v2464
      %v2526 = vsel %vm1222, %v2450, %v2466
      %v2527 = vsel %vm1222, %v2452, %v2468
      %v2528 = vsel %vm1222, %v2454, %v2470
      %v2529 = vsel %vm1222, %v2456, %v2472
      %v2530 = vsel %vm1222, %v2458, %v2474
      %v2531 = vsel %vm1222, %v2492, %v2444
      %v2532 = vsel %vm1222, %v2494, %v2446
      %v2533 = vsel %vm1222, %v2496, %v2448
      %v2534 = vsel %vm1222, %v2498, %v2450
      %v2535 = vsel %vm1222, %v2500, %v2452
      %v2536 = vsel %vm1222, %v2502, %v2454
      %v2537 = vsel %vm1222, %v2504, %v2456
      %v2538 = vsel %vm1222, %v2506, %v2458
      %v2539 = vpack.c.bf16 %v2436, %v2435
      %v2540 = vpack.c.bf16 %v2428, %v2427
      %v2541 = vpack.c.bf16 %v2420, %v2419
      %v2542 = vpack.c.bf16 %v2412, %v2411
      %v2543 = vpack.c.bf16 %v2438, %v2437
      %v2544 = vpack.c.bf16 %v2430, %v2429
      %v2545 = vpack.c.bf16 %v2422, %v2421
      %v2546 = vpack.c.bf16 %v2414, %v2413
      %v2547 = vpack.c.bf16 %v2440, %v2439
      %v2548 = vpack.c.bf16 %v2432, %v2431
      %v2549 = vpack.c.bf16 %v2424, %v2423
      %v2550 = vpack.c.bf16 %v2416, %v2415
      %v2551 = vpack.c.bf16 %v2442, %v2441
      %v2552 = vpack.c.bf16 %v2434, %v2433
      %v2553 = vpack.c.bf16 %v2426, %v2425
      %v2554 = vpack.c.bf16 %v2418, %v2417
      %v2555 = vpack.c.bf16 %v2301, %v2297
      %v2556 = vpack.c.bf16 %v2302, %v2298
      %v2557 = vpack.c.bf16 %v2303, %v2299
      %v2558 = vpack.c.bf16 %v2304, %v2300
      %v2559 = vpack.c.bf16 %v2309, %v2305
      %v2560 = vpack.c.bf16 %v2310, %v2306
      %v2561 = vpack.c.bf16 %v2311, %v2307
      %v2562 = vpack.c.bf16 %v2312, %v2308
      %v2563 = vpack.c.bf16 %v2317, %v2313
      %v2564 = vpack.c.bf16 %v2318, %v2314
      %v2565 = vpack.c.bf16 %v2319, %v2315
      %v2566 = vpack.c.bf16 %v2320, %v2316
      %v2567 = vpack.c.bf16 %v2325, %v2321
      %v2568 = vpack.c.bf16 %v2326, %v2322
      %v2569 = vpack.c.bf16 %v2327, %v2323
      %v2570 = vpack.c.bf16 %v2328, %v2324
      %v2571 = vpack.c.bf16 %v2524, %v2523
      %v2572 = vpack.c.bf16 %v2516, %v2515
      %v2573 = vpack.c.bf16 %v2508, %v2507
      %v2574 = vpack.c.bf16 %v2532, %v2531
      %v2575 = vpack.c.bf16 %v2526, %v2525
      %v2576 = vpack.c.bf16 %v2518, %v2517
      %v2577 = vpack.c.bf16 %v2510, %v2509
      %v2578 = vpack.c.bf16 %v2534, %v2533
      %v2579 = vpack.c.bf16 %v2528, %v2527
      %v2580 = vpack.c.bf16 %v2520, %v2519
      %v2581 = vpack.c.bf16 %v2512, %v2511
      %v2582 = vpack.c.bf16 %v2536, %v2535
      %v2583 = vpack.c.bf16 %v2530, %v2529
      %v2584 = vpack.c.bf16 %v2522, %v2521
      %v2585 = vpack.c.bf16 %v2514, %v2513
      %v2586 = vpack.c.bf16 %v2538, %v2537
      %2588 = vset.pattern.permute.xlu0 0
      %2589 = vperm.xlu0 %2588, %v2339
      %v2590 = vpop.permute.xlu0 %2589
      %2593 = vset.pattern.permute.xlu0 0
      %2594 = vperm.xlu0 %2593, %v2340
      %v2595 = vpop.permute.xlu0 %2594
      %2598 = vset.pattern.permute.xlu0 0
      %2599 = vperm.xlu0 %2598, %v2341
      %v2600 = vpop.permute.xlu0 %2599
      %2603 = vset.pattern.permute.xlu0 0
      %2604 = vperm.xlu0 %2603, %v2342
      %v2605 = vpop.permute.xlu0 %2604
      %2608 = vset.pattern.permute.xlu0 0
      %2609 = vperm.xlu0 %2608, %v2343
      %v2610 = vpop.permute.xlu0 %2609
      %2613 = vset.pattern.permute.xlu0 0
      %2614 = vperm.xlu0 %2613, %v2344
      %v2615 = vpop.permute.xlu0 %2614
      %2618 = vset.pattern.permute.xlu0 0
      %2619 = vperm.xlu0 %2618, %v2345
      %v2620 = vpop.permute.xlu0 %2619
      %2623 = vset.pattern.permute.xlu0 0
      %2624 = vperm.xlu0 %2623, %v2346
      %v2625 = vpop.permute.xlu0 %2624
      %v2635 = vunpack.c.l.b16 %v2330
      %v2636 = vunpack.c.h.b16 %v2330
      %v2637 = vunpack.c.l.b16 %v2331
      %v2638 = vunpack.c.h.b16 %v2331
      %v2639 = vunpack.c.l.b16 %v2332
      %v2640 = vunpack.c.h.b16 %v2332
      %v2641 = vunpack.c.l.b16 %v2333
      %v2642 = vunpack.c.h.b16 %v2333
      %v2643 = vunpack.c.l.b16 %v2334
      %v2644 = vunpack.c.h.b16 %v2334
      %v2645 = vunpack.c.l.b16 %v2335
      %v2646 = vunpack.c.h.b16 %v2335
      %v2647 = vunpack.c.l.b16 %v2336
      %v2648 = vunpack.c.h.b16 %v2336
      %v2649 = vunpack.c.l.b16 %v2337
      %v2650 = vunpack.c.h.b16 %v2337
      %v2651 = vpack.c.b16 %v2637, %v2635
      %v2652 = vpack.c.b16 %v2638, %v2636
      %v2653 = vpack.c.b16 %v2641, %v2639
      %v2654 = vpack.c.b16 %v2642, %v2640
      %v2655 = vpack.c.b16 %v2645, %v2643
      %v2656 = vpack.c.b16 %v2646, %v2644
      %v2657 = vpack.c.b16 %v2649, %v2647
      %v2658 = vpack.c.b16 %v2650, %v2648
      %v2664 = vsel %vm872, %v2652, 0
      %v2667 = vsel %vm872, %v2654, 0
      %v2670 = vsel %vm872, %v2656, 0
      %v2673 = vsel %vm872, %v2658, 0
      %2675 = vmatpush.bf16.msra.mxu0 %v2567
      %2676 = vmatpush.bf16.msra.mxu0 %v2563
      %2677 = vmatpush.bf16.msra.mxu0 %v2559
      %2678 = vmatpush.bf16.msra.mxu0 %v2555
      %2679 = vmatpush.bf16.msra.mxu0 %v2551
      %2680 = vmatpush.bf16.msra.mxu0 %v2547
      %2681 = vmatpush.bf16.msra.mxu0 %v2543
      %2682 = vmatpush.bf16.msra.mxu0 %v2539
      %2683 = vmatmul.bf16.gmra.mxu0 %v2651
      %v2684 = vpop.f32.mrf.mxu0
      %v2685 = vadd.f32 %v2590, %v2684
      %v2686 = vpop.f32.mrf.mxu0
      %v2687 = vadd.f32 %v2595, %v2686
      %2688 = vmatmul.bf16.gmra.mxu0 %v2653
      %v2689 = vpop.f32.mrf.mxu0
      %v2690 = vadd.f32 %v2600, %v2689
      %v2691 = vpop.f32.mrf.mxu0
      %v2692 = vadd.f32 %v2605, %v2691
      %2693 = vmatmul.bf16.gmra.mxu0 %v2655
      %v2694 = vpop.f32.mrf.mxu0
      %v2695 = vadd.f32 %v2610, %v2694
      %v2696 = vpop.f32.mrf.mxu0
      %v2697 = vadd.f32 %v2615, %v2696
      %2698 = vmatmul.bf16.gmra.mxu0 %v2657
      %v2699 = vpop.f32.mrf.mxu0
      %v2700 = vadd.f32 %v2620, %v2699
      %v2701 = vpop.f32.mrf.mxu0
      %v2702 = vadd.f32 %v2625, %v2701
      %2703 = vdwg.mxu0
      %2704 = vmatpush.bf16.msra.mxu0 0
      %2705 = vmatpush.bf16.msra.mxu0 0
      %2706 = vmatpush.bf16.msra.mxu0 0
      %2707 = vmatpush.bf16.msra.mxu0 0
      %2708 = vmatpush.bf16.msra.mxu0 %v2583
      %2709 = vmatpush.bf16.msra.mxu0 %v2579
      %2710 = vmatpush.bf16.msra.mxu0 %v2575
      %2711 = vmatpush.bf16.msra.mxu0 %v2571
      %2712 = vmatmul.bf16.gmra.mxu0 %v2664
      %v2713 = vpop.f32.mrf.mxu0
      %v2714 = vadd.f32 %v2685, %v2713
      %v2715 = vpop.f32.mrf.mxu0
      %v2716 = vadd.f32 %v2687, %v2715
      %2717 = vmatmul.bf16.gmra.mxu0 %v2667
      %v2718 = vpop.f32.mrf.mxu0
      %v2719 = vadd.f32 %v2690, %v2718
      %v2720 = vpop.f32.mrf.mxu0
      %v2721 = vadd.f32 %v2692, %v2720
      %2722 = vmatmul.bf16.gmra.mxu0 %v2670
      %v2723 = vpop.f32.mrf.mxu0
      %v2724 = vadd.f32 %v2695, %v2723
      %v2725 = vpop.f32.mrf.mxu0
      %v2726 = vadd.f32 %v2697, %v2725
      %2727 = vmatmul.bf16.gmra.mxu0 %v2673
      %v2728 = vpop.f32.mrf.mxu0
      %v2729 = vadd.f32 %v2700, %v2728
      %v2730 = vpop.f32.mrf.mxu0
      %v2731 = vadd.f32 %v2702, %v2730
      %2732 = vdwg.mxu0
      %2733 = vmatpush.bf16.msra.mxu0 %v2568
      %2734 = vmatpush.bf16.msra.mxu0 %v2564
      %2735 = vmatpush.bf16.msra.mxu0 %v2560
      %2736 = vmatpush.bf16.msra.mxu0 %v2556
      %2737 = vmatpush.bf16.msra.mxu0 %v2552
      %2738 = vmatpush.bf16.msra.mxu0 %v2548
      %2739 = vmatpush.bf16.msra.mxu0 %v2544
      %2740 = vmatpush.bf16.msra.mxu0 %v2540
      %2741 = vmatmul.bf16.gmra.mxu0 %v2651
      %v2742 = vpop.f32.mrf.mxu0
      %v2743 = vadd.f32 %v2590, %v2742
      %v2744 = vpop.f32.mrf.mxu0
      %v2745 = vadd.f32 %v2595, %v2744
      %2746 = vmatmul.bf16.gmra.mxu0 %v2653
      %v2747 = vpop.f32.mrf.mxu0
      %v2748 = vadd.f32 %v2600, %v2747
      %v2749 = vpop.f32.mrf.mxu0
      %v2750 = vadd.f32 %v2605, %v2749
      %2751 = vmatmul.bf16.gmra.mxu0 %v2655
      %v2752 = vpop.f32.mrf.mxu0
      %v2753 = vadd.f32 %v2610, %v2752
      %v2754 = vpop.f32.mrf.mxu0
      %v2755 = vadd.f32 %v2615, %v2754
      %2756 = vmatmul.bf16.gmra.mxu0 %v2657
      %v2757 = vpop.f32.mrf.mxu0
      %v2758 = vadd.f32 %v2620, %v2757
      %v2759 = vpop.f32.mrf.mxu0
      %v2760 = vadd.f32 %v2625, %v2759
      %2761 = vdwg.mxu0
      %2762 = vmatpush.bf16.msra.mxu0 0
      %2763 = vmatpush.bf16.msra.mxu0 0
      %2764 = vmatpush.bf16.msra.mxu0 0
      %2765 = vmatpush.bf16.msra.mxu0 0
      %2766 = vmatpush.bf16.msra.mxu0 %v2584
      %2767 = vmatpush.bf16.msra.mxu0 %v2580
      %2768 = vmatpush.bf16.msra.mxu0 %v2576
      %2769 = vmatpush.bf16.msra.mxu0 %v2572
      %2770 = vmatmul.bf16.gmra.mxu0 %v2664
      %v2771 = vpop.f32.mrf.mxu0
      %v2772 = vadd.f32 %v2743, %v2771
      %v2773 = vpop.f32.mrf.mxu0
      %v2774 = vadd.f32 %v2745, %v2773
      %2775 = vmatmul.bf16.gmra.mxu0 %v2667
      %v2776 = vpop.f32.mrf.mxu0
      %v2777 = vadd.f32 %v2748, %v2776
      %v2778 = vpop.f32.mrf.mxu0
      %v2779 = vadd.f32 %v2750, %v2778
      %2780 = vmatmul.bf16.gmra.mxu0 %v2670
      %v2781 = vpop.f32.mrf.mxu0
      %v2782 = vadd.f32 %v2753, %v2781
      %v2783 = vpop.f32.mrf.mxu0
      %v2784 = vadd.f32 %v2755, %v2783
      %2785 = vmatmul.bf16.gmra.mxu0 %v2673
      %v2786 = vpop.f32.mrf.mxu0
      %v2787 = vadd.f32 %v2758, %v2786
      %v2788 = vpop.f32.mrf.mxu0
      %v2789 = vadd.f32 %v2760, %v2788
      %2790 = vdwg.mxu0
      %2791 = vmatpush.bf16.msra.mxu0 %v2569
      %2792 = vmatpush.bf16.msra.mxu0 %v2565
      %2793 = vmatpush.bf16.msra.mxu0 %v2561
      %2794 = vmatpush.bf16.msra.mxu0 %v2557
      %2795 = vmatpush.bf16.msra.mxu0 %v2553
      %2796 = vmatpush.bf16.msra.mxu0 %v2549
      %2797 = vmatpush.bf16.msra.mxu0 %v2545
      %2798 = vmatpush.bf16.msra.mxu0 %v2541
      %2799 = vmatmul.bf16.gmra.mxu0 %v2651
      %v2800 = vpop.f32.mrf.mxu0
      %v2801 = vadd.f32 %v2590, %v2800
      %v2802 = vpop.f32.mrf.mxu0
      %v2803 = vadd.f32 %v2595, %v2802
      %2804 = vmatmul.bf16.gmra.mxu0 %v2653
      %v2805 = vpop.f32.mrf.mxu0
      %v2806 = vadd.f32 %v2600, %v2805
      %v2807 = vpop.f32.mrf.mxu0
      %v2808 = vadd.f32 %v2605, %v2807
      %2809 = vmatmul.bf16.gmra.mxu0 %v2655
      %v2810 = vpop.f32.mrf.mxu0
      %v2811 = vadd.f32 %v2610, %v2810
      %v2812 = vpop.f32.mrf.mxu0
      %v2813 = vadd.f32 %v2615, %v2812
      %2814 = vmatmul.bf16.gmra.mxu0 %v2657
      %v2815 = vpop.f32.mrf.mxu0
      %v2816 = vadd.f32 %v2620, %v2815
      %v2817 = vpop.f32.mrf.mxu0
      %v2818 = vadd.f32 %v2625, %v2817
      %2819 = vdwg.mxu0
      %2820 = vmatpush.bf16.msra.mxu0 0
      %2821 = vmatpush.bf16.msra.mxu0 0
      %2822 = vmatpush.bf16.msra.mxu0 0
      %2823 = vmatpush.bf16.msra.mxu0 0
      %2824 = vmatpush.bf16.msra.mxu0 %v2585
      %2825 = vmatpush.bf16.msra.mxu0 %v2581
      %2826 = vmatpush.bf16.msra.mxu0 %v2577
      %2827 = vmatpush.bf16.msra.mxu0 %v2573
      %2828 = vmatmul.bf16.gmra.mxu0 %v2664
      %v2829 = vpop.f32.mrf.mxu0
      %v2830 = vadd.f32 %v2801, %v2829
      %v2831 = vpop.f32.mrf.mxu0
      %v2832 = vadd.f32 %v2803, %v2831
      %2833 = vmatmul.bf16.gmra.mxu0 %v2667
      %v2834 = vpop.f32.mrf.mxu0
      %v2835 = vadd.f32 %v2806, %v2834
      %v2836 = vpop.f32.mrf.mxu0
      %v2837 = vadd.f32 %v2808, %v2836
      %2838 = vmatmul.bf16.gmra.mxu0 %v2670
      %v2839 = vpop.f32.mrf.mxu0
      %v2840 = vadd.f32 %v2811, %v2839
      %v2841 = vpop.f32.mrf.mxu0
      %v2842 = vadd.f32 %v2813, %v2841
      %2843 = vmatmul.bf16.gmra.mxu0 %v2673
      %v2844 = vpop.f32.mrf.mxu0
      %v2845 = vadd.f32 %v2816, %v2844
      %v2846 = vpop.f32.mrf.mxu0
      %v2847 = vadd.f32 %v2818, %v2846
      %2848 = vdwg.mxu0
      %2849 = vmatpush.bf16.msra.mxu0 %v2570
      %2850 = vmatpush.bf16.msra.mxu0 %v2566
      %2851 = vmatpush.bf16.msra.mxu0 %v2562
      %2852 = vmatpush.bf16.msra.mxu0 %v2558
      %2853 = vmatpush.bf16.msra.mxu0 %v2554
      %2854 = vmatpush.bf16.msra.mxu0 %v2550
      %2855 = vmatpush.bf16.msra.mxu0 %v2546
      %2856 = vmatpush.bf16.msra.mxu0 %v2542
      %2857 = vmatmul.bf16.gmra.mxu0 %v2651
      %v2858 = vpop.f32.mrf.mxu0
      %v2859 = vadd.f32 %v2590, %v2858
      %v2860 = vpop.f32.mrf.mxu0
      %v2861 = vadd.f32 %v2595, %v2860
      %2862 = vmatmul.bf16.gmra.mxu0 %v2653
      %v2863 = vpop.f32.mrf.mxu0
      %v2864 = vadd.f32 %v2600, %v2863
      %v2865 = vpop.f32.mrf.mxu0
      %v2866 = vadd.f32 %v2605, %v2865
      %2867 = vmatmul.bf16.gmra.mxu0 %v2655
      %v2868 = vpop.f32.mrf.mxu0
      %v2869 = vadd.f32 %v2610, %v2868
      %v2870 = vpop.f32.mrf.mxu0
      %v2871 = vadd.f32 %v2615, %v2870
      %2872 = vmatmul.bf16.gmra.mxu0 %v2657
      %v2873 = vpop.f32.mrf.mxu0
      %v2874 = vadd.f32 %v2620, %v2873
      %v2875 = vpop.f32.mrf.mxu0
      %v2876 = vadd.f32 %v2625, %v2875
      %2877 = vdwg.mxu0
      %2878 = vmatpush.bf16.msra.mxu0 0
      %2879 = vmatpush.bf16.msra.mxu0 0
      %2880 = vmatpush.bf16.msra.mxu0 0
      %2881 = vmatpush.bf16.msra.mxu0 0
      %2882 = vmatpush.bf16.msra.mxu0 %v2586
      %2883 = vmatpush.bf16.msra.mxu0 %v2582
      %2884 = vmatpush.bf16.msra.mxu0 %v2578
      %2885 = vmatpush.bf16.msra.mxu0 %v2574
      %2886 = vmatmul.bf16.gmra.mxu0 %v2664
      %v2887 = vpop.f32.mrf.mxu0
      %v2888 = vadd.f32 %v2859, %v2887
      %v2889 = vpop.f32.mrf.mxu0
      %v2890 = vadd.f32 %v2861, %v2889
      %2891 = vmatmul.bf16.gmra.mxu0 %v2667
      %v2892 = vpop.f32.mrf.mxu0
      %v2893 = vadd.f32 %v2864, %v2892
      %v2894 = vpop.f32.mrf.mxu0
      %v2895 = vadd.f32 %v2866, %v2894
      %2896 = vmatmul.bf16.gmra.mxu0 %v2670
      %v2897 = vpop.f32.mrf.mxu0
      %v2898 = vadd.f32 %v2869, %v2897
      %v2899 = vpop.f32.mrf.mxu0
      %v2900 = vadd.f32 %v2871, %v2899
      %2901 = vmatmul.bf16.gmra.mxu0 %v2673
      %v2902 = vpop.f32.mrf.mxu0
      %v2903 = vadd.f32 %v2874, %v2902
      %v2904 = vpop.f32.mrf.mxu0
      %v2905 = vadd.f32 %v2876, %v2904
      %2906 = vdwg.mxu0
      %v2907 = vmax.f32 %v2714, 0.0
      %v2908 = vmax.f32 %v2772, 0.0
      %v2909 = vmax.f32 %v2830, 0.0
      %v2910 = vmax.f32 %v2888, 0.0
      %v2911 = vmax.f32 %v2716, 0.0
      %v2912 = vmax.f32 %v2774, 0.0
      %v2913 = vmax.f32 %v2832, 0.0
      %v2914 = vmax.f32 %v2890, 0.0
      %v2915 = vmax.f32 %v2719, 0.0
      %v2916 = vmax.f32 %v2777, 0.0
      %v2917 = vmax.f32 %v2835, 0.0
      %v2918 = vmax.f32 %v2893, 0.0
      %v2919 = vmax.f32 %v2721, 0.0
      %v2920 = vmax.f32 %v2779, 0.0
      %v2921 = vmax.f32 %v2837, 0.0
      %v2922 = vmax.f32 %v2895, 0.0
      %v2923 = vmax.f32 %v2724, 0.0
      %v2924 = vmax.f32 %v2782, 0.0
      %v2925 = vmax.f32 %v2840, 0.0
      %v2926 = vmax.f32 %v2898, 0.0
      %v2927 = vmax.f32 %v2726, 0.0
      %v2928 = vmax.f32 %v2784, 0.0
      %v2929 = vmax.f32 %v2842, 0.0
      %v2930 = vmax.f32 %v2900, 0.0
      %v2931 = vmax.f32 %v2729, 0.0
      %v2932 = vmax.f32 %v2787, 0.0
      %v2933 = vmax.f32 %v2845, 0.0
      %v2934 = vmax.f32 %v2903, 0.0
      %v2935 = vmax.f32 %v2731, 0.0
      %v2936 = vmax.f32 %v2789, 0.0
      %v2937 = vmax.f32 %v2847, 0.0
      %v2938 = vmax.f32 %v2905, 0.0
      %v2939 = vmul.f32 %v2907, %v1002
      %v2940 = vmul.f32 %v2908, %v1003
      %v2941 = vmul.f32 %v2909, %v1004
      %v2942 = vmul.f32 %v2910, %v1005
      %v2943 = vmul.f32 %v2911, %v1002
      %v2944 = vmul.f32 %v2912, %v1003
      %v2945 = vmul.f32 %v2913, %v1004
      %v2946 = vmul.f32 %v2914, %v1005
      %v2947 = vmul.f32 %v2915, %v1002
      %v2948 = vmul.f32 %v2916, %v1003
      %v2949 = vmul.f32 %v2917, %v1004
      %v2950 = vmul.f32 %v2918, %v1005
      %v2951 = vmul.f32 %v2919, %v1002
      %v2952 = vmul.f32 %v2920, %v1003
      %v2953 = vmul.f32 %v2921, %v1004
      %v2954 = vmul.f32 %v2922, %v1005
      %v2955 = vmul.f32 %v2923, %v1002
      %v2956 = vmul.f32 %v2924, %v1003
      %v2957 = vmul.f32 %v2925, %v1004
      %v2958 = vmul.f32 %v2926, %v1005
      %v2959 = vmul.f32 %v2927, %v1002
      %v2960 = vmul.f32 %v2928, %v1003
      %v2961 = vmul.f32 %v2929, %v1004
      %v2962 = vmul.f32 %v2930, %v1005
      %v2963 = vmul.f32 %v2931, %v1002
      %v2964 = vmul.f32 %v2932, %v1003
      %v2965 = vmul.f32 %v2933, %v1004
      %v2966 = vmul.f32 %v2934, %v1005
      %v2967 = vmul.f32 %v2935, %v1002
      %v2968 = vmul.f32 %v2936, %v1003
      %v2969 = vmul.f32 %v2937, %v1004
      %v2970 = vmul.f32 %v2938, %v1005
      %s2971 = scalar_lea.vmem %s4, 192
      %v2972 = vld [vmem:[%s2971] sm:$0xff]
      %v2973 = vld [vmem:[%s2971 + $0x8] sm:$0xff]
      %v2974 = vld [vmem:[%s2971 + $0x10] sm:$0xff]
      %v2975 = vld [vmem:[%s2971 + $0x18] sm:$0xff]
      %v2976 = vld [vmem:[%s2971 + $0x20] sm:$0xff]
      %v2977 = vld [vmem:[%s2971 + $0x28] sm:$0xff]
      %v2978 = vld [vmem:[%s2971 + $0x30] sm:$0xff]
      %v2979 = vld [vmem:[%s2971 + $0x38] sm:$0xff]
      %s2980 = scalar_lea.vmem %s5, 256
      %v2981 = vld [vmem:[%s2980] sm:$0xff]
      %v2982 = vld [vmem:[%s2980 + $0x8] sm:$0xff]
      %v2983 = vld [vmem:[%s2980 + $0x10] sm:$0xff]
      %v2984 = vld [vmem:[%s2980 + $0x18] sm:$0xff]
      %v2985 = vld [vmem:[%s2980 + $0x20] sm:$0xff]
      %v2986 = vld [vmem:[%s2980 + $0x28] sm:$0xff]
      %v2987 = vld [vmem:[%s2980 + $0x30] sm:$0xff]
      %v2988 = vld [vmem:[%s2980 + $0x38] sm:$0xff]
      %2989 = vrot.lane.b32.xlu0 %v2939, 1
      %v2990 = vpop.permute.xlu0 %2989
      %2991 = vrot.lane.b32.xlu0 %v2943, 1
      %v2992 = vpop.permute.xlu0 %2991
      %2993 = vrot.lane.b32.xlu0 %v2947, 1
      %v2994 = vpop.permute.xlu0 %2993
      %2995 = vrot.lane.b32.xlu0 %v2951, 1
      %v2996 = vpop.permute.xlu0 %2995
      %2997 = vrot.lane.b32.xlu0 %v2955, 1
      %v2998 = vpop.permute.xlu0 %2997
      %2999 = vrot.lane.b32.xlu0 %v2959, 1
      %v3000 = vpop.permute.xlu0 %2999
      %3001 = vrot.lane.b32.xlu0 %v2963, 1
      %v3002 = vpop.permute.xlu0 %3001
      %3003 = vrot.lane.b32.xlu0 %v2967, 1
      %v3004 = vpop.permute.xlu0 %3003
      %3005 = vrot.lane.b32.xlu0 %v2940, 1
      %v3006 = vpop.permute.xlu0 %3005
      %3007 = vrot.lane.b32.xlu0 %v2944, 1
      %v3008 = vpop.permute.xlu0 %3007
      %3009 = vrot.lane.b32.xlu0 %v2948, 1
      %v3010 = vpop.permute.xlu0 %3009
      %3011 = vrot.lane.b32.xlu0 %v2952, 1
      %v3012 = vpop.permute.xlu0 %3011
      %3013 = vrot.lane.b32.xlu0 %v2956, 1
      %v3014 = vpop.permute.xlu0 %3013
      %3015 = vrot.lane.b32.xlu0 %v2960, 1
      %v3016 = vpop.permute.xlu0 %3015
      %3017 = vrot.lane.b32.xlu0 %v2964, 1
      %v3018 = vpop.permute.xlu0 %3017
      %3019 = vrot.lane.b32.xlu0 %v2968, 1
      %v3020 = vpop.permute.xlu0 %3019
      %3021 = vrot.lane.b32.xlu0 %v2941, 1
      %v3022 = vpop.permute.xlu0 %3021
      %3023 = vrot.lane.b32.xlu0 %v2945, 1
      %v3024 = vpop.permute.xlu0 %3023
      %3025 = vrot.lane.b32.xlu0 %v2949, 1
      %v3026 = vpop.permute.xlu0 %3025
      %3027 = vrot.lane.b32.xlu0 %v2953, 1
      %v3028 = vpop.permute.xlu0 %3027
      %3029 = vrot.lane.b32.xlu0 %v2957, 1
      %v3030 = vpop.permute.xlu0 %3029
      %3031 = vrot.lane.b32.xlu0 %v2961, 1
      %v3032 = vpop.permute.xlu0 %3031
      %3033 = vrot.lane.b32.xlu0 %v2965, 1
      %v3034 = vpop.permute.xlu0 %3033
      %3035 = vrot.lane.b32.xlu0 %v2969, 1
      %v3036 = vpop.permute.xlu0 %3035
      %3037 = vrot.lane.b32.xlu0 %v2942, 1
      %v3038 = vpop.permute.xlu0 %3037
      %3039 = vrot.lane.b32.xlu0 %v2946, 1
      %v3040 = vpop.permute.xlu0 %3039
      %3041 = vrot.lane.b32.xlu0 %v2950, 1
      %v3042 = vpop.permute.xlu0 %3041
      %3043 = vrot.lane.b32.xlu0 %v2954, 1
      %v3044 = vpop.permute.xlu0 %3043
      %3045 = vrot.lane.b32.xlu0 %v2958, 1
      %v3046 = vpop.permute.xlu0 %3045
      %3047 = vrot.lane.b32.xlu0 %v2962, 1
      %v3048 = vpop.permute.xlu0 %3047
      %3049 = vrot.lane.b32.xlu0 %v2966, 1
      %v3050 = vpop.permute.xlu0 %3049
      %3051 = vrot.lane.b32.xlu0 %v2970, 1
      %v3052 = vpop.permute.xlu0 %3051
      %v3053 = vsel %vm1125, %v3022, %v3038
      %v3054 = vsel %vm1125, %v3024, %v3040
      %v3055 = vsel %vm1125, %v3026, %v3042
      %v3056 = vsel %vm1125, %v3028, %v3044
      %v3057 = vsel %vm1125, %v3030, %v3046
      %v3058 = vsel %vm1125, %v3032, %v3048
      %v3059 = vsel %vm1125, %v3034, %v3050
      %v3060 = vsel %vm1125, %v3036, %v3052
      %v3061 = vsel %vm1125, %v3006, %v3022
      %v3062 = vsel %vm1125, %v3008, %v3024
      %v3063 = vsel %vm1125, %v3010, %v3026
      %v3064 = vsel %vm1125, %v3012, %v3028
      %v3065 = vsel %vm1125, %v3014, %v3030
      %v3066 = vsel %vm1125, %v3016, %v3032
      %v3067 = vsel %vm1125, %v3018, %v3034
      %v3068 = vsel %vm1125, %v3020, %v3036
      %v3069 = vsel %vm1125, %v2990, %v3006
      %v3070 = vsel %vm1125, %v2992, %v3008
      %v3071 = vsel %vm1125, %v2994, %v3010
      %v3072 = vsel %vm1125, %v2996, %v3012
      %v3073 = vsel %vm1125, %v2998, %v3014
      %v3074 = vsel %vm1125, %v3000, %v3016
      %v3075 = vsel %vm1125, %v3002, %v3018
      %v3076 = vsel %vm1125, %v3004, %v3020
      %v3077 = vsel %vm1125, %v3038, %v2990
      %v3078 = vsel %vm1125, %v3040, %v2992
      %v3079 = vsel %vm1125, %v3042, %v2994
      %v3080 = vsel %vm1125, %v3044, %v2996
      %v3081 = vsel %vm1125, %v3046, %v2998
      %v3082 = vsel %vm1125, %v3048, %v3000
      %v3083 = vsel %vm1125, %v3050, %v3002
      %v3084 = vsel %vm1125, %v3052, %v3004
      %3085 = vrot.lane.b32.xlu0 %v2939, 127
      %v3086 = vpop.permute.xlu0 %3085
      %3087 = vrot.lane.b32.xlu0 %v2943, 127
      %v3088 = vpop.permute.xlu0 %3087
      %3089 = vrot.lane.b32.xlu0 %v2947, 127
      %v3090 = vpop.permute.xlu0 %3089
      %3091 = vrot.lane.b32.xlu0 %v2951, 127
      %v3092 = vpop.permute.xlu0 %3091
      %3093 = vrot.lane.b32.xlu0 %v2955, 127
      %v3094 = vpop.permute.xlu0 %3093
      %3095 = vrot.lane.b32.xlu0 %v2959, 127
      %v3096 = vpop.permute.xlu0 %3095
      %3097 = vrot.lane.b32.xlu0 %v2963, 127
      %v3098 = vpop.permute.xlu0 %3097
      %3099 = vrot.lane.b32.xlu0 %v2967, 127
      %v3100 = vpop.permute.xlu0 %3099
      %3101 = vrot.lane.b32.xlu0 %v2940, 127
      %v3102 = vpop.permute.xlu0 %3101
      %3103 = vrot.lane.b32.xlu0 %v2944, 127
      %v3104 = vpop.permute.xlu0 %3103
      %3105 = vrot.lane.b32.xlu0 %v2948, 127
      %v3106 = vpop.permute.xlu0 %3105
      %3107 = vrot.lane.b32.xlu0 %v2952, 127
      %v3108 = vpop.permute.xlu0 %3107
      %3109 = vrot.lane.b32.xlu0 %v2956, 127
      %v3110 = vpop.permute.xlu0 %3109
      %3111 = vrot.lane.b32.xlu0 %v2960, 127
      %v3112 = vpop.permute.xlu0 %3111
      %3113 = vrot.lane.b32.xlu0 %v2964, 127
      %v3114 = vpop.permute.xlu0 %3113
      %3115 = vrot.lane.b32.xlu0 %v2968, 127
      %v3116 = vpop.permute.xlu0 %3115
      %3117 = vrot.lane.b32.xlu0 %v2941, 127
      %v3118 = vpop.permute.xlu0 %3117
      %3119 = vrot.lane.b32.xlu0 %v2945, 127
      %v3120 = vpop.permute.xlu0 %3119
      %3121 = vrot.lane.b32.xlu0 %v2949, 127
      %v3122 = vpop.permute.xlu0 %3121
      %3123 = vrot.lane.b32.xlu0 %v2953, 127
      %v3124 = vpop.permute.xlu0 %3123
      %3125 = vrot.lane.b32.xlu0 %v2957, 127
      %v3126 = vpop.permute.xlu0 %3125
      %3127 = vrot.lane.b32.xlu0 %v2961, 127
      %v3128 = vpop.permute.xlu0 %3127
      %3129 = vrot.lane.b32.xlu0 %v2965, 127
      %v3130 = vpop.permute.xlu0 %3129
      %3131 = vrot.lane.b32.xlu0 %v2969, 127
      %v3132 = vpop.permute.xlu0 %3131
      %3133 = vrot.lane.b32.xlu0 %v2942, 127
      %v3134 = vpop.permute.xlu0 %3133
      %3135 = vrot.lane.b32.xlu0 %v2946, 127
      %v3136 = vpop.permute.xlu0 %3135
      %3137 = vrot.lane.b32.xlu0 %v2950, 127
      %v3138 = vpop.permute.xlu0 %3137
      %3139 = vrot.lane.b32.xlu0 %v2954, 127
      %v3140 = vpop.permute.xlu0 %3139
      %3141 = vrot.lane.b32.xlu0 %v2958, 127
      %v3142 = vpop.permute.xlu0 %3141
      %3143 = vrot.lane.b32.xlu0 %v2962, 127
      %v3144 = vpop.permute.xlu0 %3143
      %3145 = vrot.lane.b32.xlu0 %v2966, 127
      %v3146 = vpop.permute.xlu0 %3145
      %3147 = vrot.lane.b32.xlu0 %v2970, 127
      %v3148 = vpop.permute.xlu0 %3147
      %v3149 = vsel %vm1222, %v3118, %v3134
      %v3150 = vsel %vm1222, %v3120, %v3136
      %v3151 = vsel %vm1222, %v3122, %v3138
      %v3152 = vsel %vm1222, %v3124, %v3140
      %v3153 = vsel %vm1222, %v3126, %v3142
      %v3154 = vsel %vm1222, %v3128, %v3144
      %v3155 = vsel %vm1222, %v3130, %v3146
      %v3156 = vsel %vm1222, %v3132, %v3148
      %v3157 = vsel %vm1222, %v3102, %v3118
      %v3158 = vsel %vm1222, %v3104, %v3120
      %v3159 = vsel %vm1222, %v3106, %v3122
      %v3160 = vsel %vm1222, %v3108, %v3124
      %v3161 = vsel %vm1222, %v3110, %v3126
      %v3162 = vsel %vm1222, %v3112, %v3128
      %v3163 = vsel %vm1222, %v3114, %v3130
      %v3164 = vsel %vm1222, %v3116, %v3132
      %v3165 = vsel %vm1222, %v3086, %v3102
      %v3166 = vsel %vm1222, %v3088, %v3104
      %v3167 = vsel %vm1222, %v3090, %v3106
      %v3168 = vsel %vm1222, %v3092, %v3108
      %v3169 = vsel %vm1222, %v3094, %v3110
      %v3170 = vsel %vm1222, %v3096, %v3112
      %v3171 = vsel %vm1222, %v3098, %v3114
      %v3172 = vsel %vm1222, %v3100, %v3116
      %v3173 = vsel %vm1222, %v3134, %v3086
      %v3174 = vsel %vm1222, %v3136, %v3088
      %v3175 = vsel %vm1222, %v3138, %v3090
      %v3176 = vsel %vm1222, %v3140, %v3092
      %v3177 = vsel %vm1222, %v3142, %v3094
      %v3178 = vsel %vm1222, %v3144, %v3096
      %v3179 = vsel %vm1222, %v3146, %v3098
      %v3180 = vsel %vm1222, %v3148, %v3100
      %v3181 = vpack.c.bf16 %v3078, %v3077
      %v3182 = vpack.c.bf16 %v3070, %v3069
      %v3183 = vpack.c.bf16 %v3062, %v3061
      %v3184 = vpack.c.bf16 %v3054, %v3053
      %v3185 = vpack.c.bf16 %v3080, %v3079
      %v3186 = vpack.c.bf16 %v3072, %v3071
      %v3187 = vpack.c.bf16 %v3064, %v3063
      %v3188 = vpack.c.bf16 %v3056, %v3055
      %v3189 = vpack.c.bf16 %v3082, %v3081
      %v3190 = vpack.c.bf16 %v3074, %v3073
      %v3191 = vpack.c.bf16 %v3066, %v3065
      %v3192 = vpack.c.bf16 %v3058, %v3057
      %v3193 = vpack.c.bf16 %v3084, %v3083
      %v3194 = vpack.c.bf16 %v3076, %v3075
      %v3195 = vpack.c.bf16 %v3068, %v3067
      %v3196 = vpack.c.bf16 %v3060, %v3059
      %v3197 = vpack.c.bf16 %v2943, %v2939
      %v3198 = vpack.c.bf16 %v2944, %v2940
      %v3199 = vpack.c.bf16 %v2945, %v2941
      %v3200 = vpack.c.bf16 %v2946, %v2942
      %v3201 = vpack.c.bf16 %v2951, %v2947
      %v3202 = vpack.c.bf16 %v2952, %v2948
      %v3203 = vpack.c.bf16 %v2953, %v2949
      %v3204 = vpack.c.bf16 %v2954, %v2950
      %v3205 = vpack.c.bf16 %v2959, %v2955
      %v3206 = vpack.c.bf16 %v2960, %v2956
      %v3207 = vpack.c.bf16 %v2961, %v2957
      %v3208 = vpack.c.bf16 %v2962, %v2958
      %v3209 = vpack.c.bf16 %v2967, %v2963
      %v3210 = vpack.c.bf16 %v2968, %v2964
      %v3211 = vpack.c.bf16 %v2969, %v2965
      %v3212 = vpack.c.bf16 %v2970, %v2966
      %v3213 = vpack.c.bf16 %v3166, %v3165
      %v3214 = vpack.c.bf16 %v3158, %v3157
      %v3215 = vpack.c.bf16 %v3150, %v3149
      %v3216 = vpack.c.bf16 %v3174, %v3173
      %v3217 = vpack.c.bf16 %v3168, %v3167
      %v3218 = vpack.c.bf16 %v3160, %v3159
      %v3219 = vpack.c.bf16 %v3152, %v3151
      %v3220 = vpack.c.bf16 %v3176, %v3175
      %v3221 = vpack.c.bf16 %v3170, %v3169
      %v3222 = vpack.c.bf16 %v3162, %v3161
      %v3223 = vpack.c.bf16 %v3154, %v3153
      %v3224 = vpack.c.bf16 %v3178, %v3177
      %v3225 = vpack.c.bf16 %v3172, %v3171
      %v3226 = vpack.c.bf16 %v3164, %v3163
      %v3227 = vpack.c.bf16 %v3156, %v3155
      %v3228 = vpack.c.bf16 %v3180, %v3179
      %3230 = vset.pattern.permute.xlu0 0
      %3231 = vperm.xlu0 %3230, %v2981
      %v3232 = vpop.permute.xlu0 %3231
      %3235 = vset.pattern.permute.xlu0 0
      %3236 = vperm.xlu0 %3235, %v2982
      %v3237 = vpop.permute.xlu0 %3236
      %3240 = vset.pattern.permute.xlu0 0
      %3241 = vperm.xlu0 %3240, %v2983
      %v3242 = vpop.permute.xlu0 %3241
      %3245 = vset.pattern.permute.xlu0 0
      %3246 = vperm.xlu0 %3245, %v2984
      %v3247 = vpop.permute.xlu0 %3246
      %3250 = vset.pattern.permute.xlu0 0
      %3251 = vperm.xlu0 %3250, %v2985
      %v3252 = vpop.permute.xlu0 %3251
      %3255 = vset.pattern.permute.xlu0 0
      %3256 = vperm.xlu0 %3255, %v2986
      %v3257 = vpop.permute.xlu0 %3256
      %3260 = vset.pattern.permute.xlu0 0
      %3261 = vperm.xlu0 %3260, %v2987
      %v3262 = vpop.permute.xlu0 %3261
      %3265 = vset.pattern.permute.xlu0 0
      %3266 = vperm.xlu0 %3265, %v2988
      %v3267 = vpop.permute.xlu0 %3266
      %v3277 = vunpack.c.l.b16 %v2972
      %v3278 = vunpack.c.h.b16 %v2972
      %v3279 = vunpack.c.l.b16 %v2973
      %v3280 = vunpack.c.h.b16 %v2973
      %v3281 = vunpack.c.l.b16 %v2974
      %v3282 = vunpack.c.h.b16 %v2974
      %v3283 = vunpack.c.l.b16 %v2975
      %v3284 = vunpack.c.h.b16 %v2975
      %v3285 = vunpack.c.l.b16 %v2976
      %v3286 = vunpack.c.h.b16 %v2976
      %v3287 = vunpack.c.l.b16 %v2977
      %v3288 = vunpack.c.h.b16 %v2977
      %v3289 = vunpack.c.l.b16 %v2978
      %v3290 = vunpack.c.h.b16 %v2978
      %v3291 = vunpack.c.l.b16 %v2979
      %v3292 = vunpack.c.h.b16 %v2979
      %v3293 = vpack.c.b16 %v3279, %v3277
      %v3294 = vpack.c.b16 %v3280, %v3278
      %v3295 = vpack.c.b16 %v3283, %v3281
      %v3296 = vpack.c.b16 %v3284, %v3282
      %v3297 = vpack.c.b16 %v3287, %v3285
      %v3298 = vpack.c.b16 %v3288, %v3286
      %v3299 = vpack.c.b16 %v3291, %v3289
      %v3300 = vpack.c.b16 %v3292, %v3290
      %v3306 = vsel %vm872, %v3294, 0
      %v3309 = vsel %vm872, %v3296, 0
      %v3312 = vsel %vm872, %v3298, 0
      %v3315 = vsel %vm872, %v3300, 0
      %3317 = vmatpush.bf16.msra.mxu0 %v3209
      %3318 = vmatpush.bf16.msra.mxu0 %v3205
      %3319 = vmatpush.bf16.msra.mxu0 %v3201
      %3320 = vmatpush.bf16.msra.mxu0 %v3197
      %3321 = vmatpush.bf16.msra.mxu0 %v3193
      %3322 = vmatpush.bf16.msra.mxu0 %v3189
      %3323 = vmatpush.bf16.msra.mxu0 %v3185
      %3324 = vmatpush.bf16.msra.mxu0 %v3181
      %3325 = vmatmul.bf16.gmra.mxu0 %v3293
      %v3326 = vpop.f32.mrf.mxu0
      %v3327 = vadd.f32 %v3232, %v3326
      %v3328 = vpop.f32.mrf.mxu0
      %v3329 = vadd.f32 %v3237, %v3328
      %3330 = vmatmul.bf16.gmra.mxu0 %v3295
      %v3331 = vpop.f32.mrf.mxu0
      %v3332 = vadd.f32 %v3242, %v3331
      %v3333 = vpop.f32.mrf.mxu0
      %v3334 = vadd.f32 %v3247, %v3333
      %3335 = vmatmul.bf16.gmra.mxu0 %v3297
      %v3336 = vpop.f32.mrf.mxu0
      %v3337 = vadd.f32 %v3252, %v3336
      %v3338 = vpop.f32.mrf.mxu0
      %v3339 = vadd.f32 %v3257, %v3338
      %3340 = vmatmul.bf16.gmra.mxu0 %v3299
      %v3341 = vpop.f32.mrf.mxu0
      %v3342 = vadd.f32 %v3262, %v3341
      %v3343 = vpop.f32.mrf.mxu0
      %v3344 = vadd.f32 %v3267, %v3343
      %3345 = vdwg.mxu0
      %3346 = vmatpush.bf16.msra.mxu0 0
      %3347 = vmatpush.bf16.msra.mxu0 0
      %3348 = vmatpush.bf16.msra.mxu0 0
      %3349 = vmatpush.bf16.msra.mxu0 0
      %3350 = vmatpush.bf16.msra.mxu0 %v3225
      %3351 = vmatpush.bf16.msra.mxu0 %v3221
      %3352 = vmatpush.bf16.msra.mxu0 %v3217
      %3353 = vmatpush.bf16.msra.mxu0 %v3213
      %3354 = vmatmul.bf16.gmra.mxu0 %v3306
      %v3355 = vpop.f32.mrf.mxu0
      %v3356 = vadd.f32 %v3327, %v3355
      %v3357 = vpop.f32.mrf.mxu0
      %v3358 = vadd.f32 %v3329, %v3357
      %3359 = vmatmul.bf16.gmra.mxu0 %v3309
      %v3360 = vpop.f32.mrf.mxu0
      %v3361 = vadd.f32 %v3332, %v3360
      %v3362 = vpop.f32.mrf.mxu0
      %v3363 = vadd.f32 %v3334, %v3362
      %3364 = vmatmul.bf16.gmra.mxu0 %v3312
      %v3365 = vpop.f32.mrf.mxu0
      %v3366 = vadd.f32 %v3337, %v3365
      %v3367 = vpop.f32.mrf.mxu0
      %v3368 = vadd.f32 %v3339, %v3367
      %3369 = vmatmul.bf16.gmra.mxu0 %v3315
      %v3370 = vpop.f32.mrf.mxu0
      %v3371 = vadd.f32 %v3342, %v3370
      %v3372 = vpop.f32.mrf.mxu0
      %v3373 = vadd.f32 %v3344, %v3372
      %3374 = vdwg.mxu0
      %3375 = vmatpush.bf16.msra.mxu0 %v3210
      %3376 = vmatpush.bf16.msra.mxu0 %v3206
      %3377 = vmatpush.bf16.msra.mxu0 %v3202
      %3378 = vmatpush.bf16.msra.mxu0 %v3198
      %3379 = vmatpush.bf16.msra.mxu0 %v3194
      %3380 = vmatpush.bf16.msra.mxu0 %v3190
      %3381 = vmatpush.bf16.msra.mxu0 %v3186
      %3382 = vmatpush.bf16.msra.mxu0 %v3182
      %3383 = vmatmul.bf16.gmra.mxu0 %v3293
      %v3384 = vpop.f32.mrf.mxu0
      %v3385 = vadd.f32 %v3232, %v3384
      %v3386 = vpop.f32.mrf.mxu0
      %v3387 = vadd.f32 %v3237, %v3386
      %3388 = vmatmul.bf16.gmra.mxu0 %v3295
      %v3389 = vpop.f32.mrf.mxu0
      %v3390 = vadd.f32 %v3242, %v3389
      %v3391 = vpop.f32.mrf.mxu0
      %v3392 = vadd.f32 %v3247, %v3391
      %3393 = vmatmul.bf16.gmra.mxu0 %v3297
      %v3394 = vpop.f32.mrf.mxu0
      %v3395 = vadd.f32 %v3252, %v3394
      %v3396 = vpop.f32.mrf.mxu0
      %v3397 = vadd.f32 %v3257, %v3396
      %3398 = vmatmul.bf16.gmra.mxu0 %v3299
      %v3399 = vpop.f32.mrf.mxu0
      %v3400 = vadd.f32 %v3262, %v3399
      %v3401 = vpop.f32.mrf.mxu0
      %v3402 = vadd.f32 %v3267, %v3401
      %3403 = vdwg.mxu0
      %3404 = vmatpush.bf16.msra.mxu0 0
      %3405 = vmatpush.bf16.msra.mxu0 0
      %3406 = vmatpush.bf16.msra.mxu0 0
      %3407 = vmatpush.bf16.msra.mxu0 0
      %3408 = vmatpush.bf16.msra.mxu0 %v3226
      %3409 = vmatpush.bf16.msra.mxu0 %v3222
      %3410 = vmatpush.bf16.msra.mxu0 %v3218
      %3411 = vmatpush.bf16.msra.mxu0 %v3214
      %3412 = vmatmul.bf16.gmra.mxu0 %v3306
      %v3413 = vpop.f32.mrf.mxu0
      %v3414 = vadd.f32 %v3385, %v3413
      %v3415 = vpop.f32.mrf.mxu0
      %v3416 = vadd.f32 %v3387, %v3415
      %3417 = vmatmul.bf16.gmra.mxu0 %v3309
      %v3418 = vpop.f32.mrf.mxu0
      %v3419 = vadd.f32 %v3390, %v3418
      %v3420 = vpop.f32.mrf.mxu0
      %v3421 = vadd.f32 %v3392, %v3420
      %3422 = vmatmul.bf16.gmra.mxu0 %v3312
      %v3423 = vpop.f32.mrf.mxu0
      %v3424 = vadd.f32 %v3395, %v3423
      %v3425 = vpop.f32.mrf.mxu0
      %v3426 = vadd.f32 %v3397, %v3425
      %3427 = vmatmul.bf16.gmra.mxu0 %v3315
      %v3428 = vpop.f32.mrf.mxu0
      %v3429 = vadd.f32 %v3400, %v3428
      %v3430 = vpop.f32.mrf.mxu0
      %v3431 = vadd.f32 %v3402, %v3430
      %3432 = vdwg.mxu0
      %3433 = vmatpush.bf16.msra.mxu0 %v3211
      %3434 = vmatpush.bf16.msra.mxu0 %v3207
      %3435 = vmatpush.bf16.msra.mxu0 %v3203
      %3436 = vmatpush.bf16.msra.mxu0 %v3199
      %3437 = vmatpush.bf16.msra.mxu0 %v3195
      %3438 = vmatpush.bf16.msra.mxu0 %v3191
      %3439 = vmatpush.bf16.msra.mxu0 %v3187
      %3440 = vmatpush.bf16.msra.mxu0 %v3183
      %3441 = vmatmul.bf16.gmra.mxu0 %v3293
      %v3442 = vpop.f32.mrf.mxu0
      %v3443 = vadd.f32 %v3232, %v3442
      %v3444 = vpop.f32.mrf.mxu0
      %v3445 = vadd.f32 %v3237, %v3444
      %3446 = vmatmul.bf16.gmra.mxu0 %v3295
      %v3447 = vpop.f32.mrf.mxu0
      %v3448 = vadd.f32 %v3242, %v3447
      %v3449 = vpop.f32.mrf.mxu0
      %v3450 = vadd.f32 %v3247, %v3449
      %3451 = vmatmul.bf16.gmra.mxu0 %v3297
      %v3452 = vpop.f32.mrf.mxu0
      %v3453 = vadd.f32 %v3252, %v3452
      %v3454 = vpop.f32.mrf.mxu0
      %v3455 = vadd.f32 %v3257, %v3454
      %3456 = vmatmul.bf16.gmra.mxu0 %v3299
      %v3457 = vpop.f32.mrf.mxu0
      %v3458 = vadd.f32 %v3262, %v3457
      %v3459 = vpop.f32.mrf.mxu0
      %v3460 = vadd.f32 %v3267, %v3459
      %3461 = vdwg.mxu0
      %3462 = vmatpush.bf16.msra.mxu0 0
      %3463 = vmatpush.bf16.msra.mxu0 0
      %3464 = vmatpush.bf16.msra.mxu0 0
      %3465 = vmatpush.bf16.msra.mxu0 0
      %3466 = vmatpush.bf16.msra.mxu0 %v3227
      %3467 = vmatpush.bf16.msra.mxu0 %v3223
      %3468 = vmatpush.bf16.msra.mxu0 %v3219
      %3469 = vmatpush.bf16.msra.mxu0 %v3215
      %3470 = vmatmul.bf16.gmra.mxu0 %v3306
      %v3471 = vpop.f32.mrf.mxu0
      %v3472 = vadd.f32 %v3443, %v3471
      %v3473 = vpop.f32.mrf.mxu0
      %v3474 = vadd.f32 %v3445, %v3473
      %3475 = vmatmul.bf16.gmra.mxu0 %v3309
      %v3476 = vpop.f32.mrf.mxu0
      %v3477 = vadd.f32 %v3448, %v3476
      %v3478 = vpop.f32.mrf.mxu0
      %v3479 = vadd.f32 %v3450, %v3478
      %3480 = vmatmul.bf16.gmra.mxu0 %v3312
      %v3481 = vpop.f32.mrf.mxu0
      %v3482 = vadd.f32 %v3453, %v3481
      %v3483 = vpop.f32.mrf.mxu0
      %v3484 = vadd.f32 %v3455, %v3483
      %3485 = vmatmul.bf16.gmra.mxu0 %v3315
      %v3486 = vpop.f32.mrf.mxu0
      %v3487 = vadd.f32 %v3458, %v3486
      %v3488 = vpop.f32.mrf.mxu0
      %v3489 = vadd.f32 %v3460, %v3488
      %3490 = vdwg.mxu0
      %3491 = vmatpush.bf16.msra.mxu0 %v3212
      %3492 = vmatpush.bf16.msra.mxu0 %v3208
      %3493 = vmatpush.bf16.msra.mxu0 %v3204
      %3494 = vmatpush.bf16.msra.mxu0 %v3200
      %3495 = vmatpush.bf16.msra.mxu0 %v3196
      %3496 = vmatpush.bf16.msra.mxu0 %v3192
      %3497 = vmatpush.bf16.msra.mxu0 %v3188
      %3498 = vmatpush.bf16.msra.mxu0 %v3184
      %3499 = vmatmul.bf16.gmra.mxu0 %v3293
      %v3500 = vpop.f32.mrf.mxu0
      %v3501 = vadd.f32 %v3232, %v3500
      %v3502 = vpop.f32.mrf.mxu0
      %v3503 = vadd.f32 %v3237, %v3502
      %3504 = vmatmul.bf16.gmra.mxu0 %v3295
      %v3505 = vpop.f32.mrf.mxu0
      %v3506 = vadd.f32 %v3242, %v3505
      %v3507 = vpop.f32.mrf.mxu0
      %v3508 = vadd.f32 %v3247, %v3507
      %3509 = vmatmul.bf16.gmra.mxu0 %v3297
      %v3510 = vpop.f32.mrf.mxu0
      %v3511 = vadd.f32 %v3252, %v3510
      %v3512 = vpop.f32.mrf.mxu0
      %v3513 = vadd.f32 %v3257, %v3512
      %3514 = vmatmul.bf16.gmra.mxu0 %v3299
      %v3515 = vpop.f32.mrf.mxu0
      %v3516 = vadd.f32 %v3262, %v3515
      %v3517 = vpop.f32.mrf.mxu0
      %v3518 = vadd.f32 %v3267, %v3517
      %3519 = vdwg.mxu0
      %3520 = vmatpush.bf16.msra.mxu0 0
      %3521 = vmatpush.bf16.msra.mxu0 0
      %3522 = vmatpush.bf16.msra.mxu0 0
      %3523 = vmatpush.bf16.msra.mxu0 0
      %3524 = vmatpush.bf16.msra.mxu0 %v3228
      %3525 = vmatpush.bf16.msra.mxu0 %v3224
      %3526 = vmatpush.bf16.msra.mxu0 %v3220
      %3527 = vmatpush.bf16.msra.mxu0 %v3216
      %3528 = vmatmul.bf16.gmra.mxu0 %v3306
      %v3529 = vpop.f32.mrf.mxu0
      %v3530 = vadd.f32 %v3501, %v3529
      %v3531 = vpop.f32.mrf.mxu0
      %v3532 = vadd.f32 %v3503, %v3531
      %3533 = vmatmul.bf16.gmra.mxu0 %v3309
      %v3534 = vpop.f32.mrf.mxu0
      %v3535 = vadd.f32 %v3506, %v3534
      %v3536 = vpop.f32.mrf.mxu0
      %v3537 = vadd.f32 %v3508, %v3536
      %3538 = vmatmul.bf16.gmra.mxu0 %v3312
      %v3539 = vpop.f32.mrf.mxu0
      %v3540 = vadd.f32 %v3511, %v3539
      %v3541 = vpop.f32.mrf.mxu0
      %v3542 = vadd.f32 %v3513, %v3541
      %3543 = vmatmul.bf16.gmra.mxu0 %v3315
      %v3544 = vpop.f32.mrf.mxu0
      %v3545 = vadd.f32 %v3516, %v3544
      %v3546 = vpop.f32.mrf.mxu0
      %v3547 = vadd.f32 %v3518, %v3546
      %3548 = vdwg.mxu0
      %v3549 = vmax.f32 %v3356, 0.0
      %v3550 = vmax.f32 %v3414, 0.0
      %v3551 = vmax.f32 %v3472, 0.0
      %v3552 = vmax.f32 %v3530, 0.0
      %v3553 = vmax.f32 %v3358, 0.0
      %v3554 = vmax.f32 %v3416, 0.0
      %v3555 = vmax.f32 %v3474, 0.0
      %v3556 = vmax.f32 %v3532, 0.0
      %v3557 = vmax.f32 %v3361, 0.0
      %v3558 = vmax.f32 %v3419, 0.0
      %v3559 = vmax.f32 %v3477, 0.0
      %v3560 = vmax.f32 %v3535, 0.0
      %v3561 = vmax.f32 %v3363, 0.0
      %v3562 = vmax.f32 %v3421, 0.0
      %v3563 = vmax.f32 %v3479, 0.0
      %v3564 = vmax.f32 %v3537, 0.0
      %v3565 = vmax.f32 %v3366, 0.0
      %v3566 = vmax.f32 %v3424, 0.0
      %v3567 = vmax.f32 %v3482, 0.0
      %v3568 = vmax.f32 %v3540, 0.0
      %v3569 = vmax.f32 %v3368, 0.0
      %v3570 = vmax.f32 %v3426, 0.0
      %v3571 = vmax.f32 %v3484, 0.0
      %v3572 = vmax.f32 %v3542, 0.0
      %v3573 = vmax.f32 %v3371, 0.0
      %v3574 = vmax.f32 %v3429, 0.0
      %v3575 = vmax.f32 %v3487, 0.0
      %v3576 = vmax.f32 %v3545, 0.0
      %v3577 = vmax.f32 %v3373, 0.0
      %v3578 = vmax.f32 %v3431, 0.0
      %v3579 = vmax.f32 %v3489, 0.0
      %v3580 = vmax.f32 %v3547, 0.0
      %v3581 = vmul.f32 %v3549, %v1002
      %v3582 = vmul.f32 %v3550, %v1003
      %v3583 = vmul.f32 %v3551, %v1004
      %v3584 = vmul.f32 %v3552, %v1005
      %v3585 = vmul.f32 %v3553, %v1002
      %v3586 = vmul.f32 %v3554, %v1003
      %v3587 = vmul.f32 %v3555, %v1004
      %v3588 = vmul.f32 %v3556, %v1005
      %v3589 = vmul.f32 %v3557, %v1002
      %v3590 = vmul.f32 %v3558, %v1003
      %v3591 = vmul.f32 %v3559, %v1004
      %v3592 = vmul.f32 %v3560, %v1005
      %v3593 = vmul.f32 %v3561, %v1002
      %v3594 = vmul.f32 %v3562, %v1003
      %v3595 = vmul.f32 %v3563, %v1004
      %v3596 = vmul.f32 %v3564, %v1005
      %v3597 = vmul.f32 %v3565, %v1002
      %v3598 = vmul.f32 %v3566, %v1003
      %v3599 = vmul.f32 %v3567, %v1004
      %v3600 = vmul.f32 %v3568, %v1005
      %v3601 = vmul.f32 %v3569, %v1002
      %v3602 = vmul.f32 %v3570, %v1003
      %v3603 = vmul.f32 %v3571, %v1004
      %v3604 = vmul.f32 %v3572, %v1005
      %v3605 = vmul.f32 %v3573, %v1002
      %v3606 = vmul.f32 %v3574, %v1003
      %v3607 = vmul.f32 %v3575, %v1004
      %v3608 = vmul.f32 %v3576, %v1005
      %v3609 = vmul.f32 %v3577, %v1002
      %v3610 = vmul.f32 %v3578, %v1003
      %v3611 = vmul.f32 %v3579, %v1004
      %v3612 = vmul.f32 %v3580, %v1005
      %3613 = vrot.lane.b32.xlu0 %v3581, 127
      %v3614 = vpop.permute.xlu0 %3613
      %3615 = vrot.lane.b32.xlu0 %v3585, 127
      %v3616 = vpop.permute.xlu0 %3615
      %3617 = vrot.lane.b32.xlu0 %v3589, 127
      %v3618 = vpop.permute.xlu0 %3617
      %3619 = vrot.lane.b32.xlu0 %v3593, 127
      %v3620 = vpop.permute.xlu0 %3619
      %3621 = vrot.lane.b32.xlu0 %v3597, 127
      %v3622 = vpop.permute.xlu0 %3621
      %3623 = vrot.lane.b32.xlu0 %v3601, 127
      %v3624 = vpop.permute.xlu0 %3623
      %3625 = vrot.lane.b32.xlu0 %v3605, 127
      %v3626 = vpop.permute.xlu0 %3625
      %3627 = vrot.lane.b32.xlu0 %v3609, 127
      %v3628 = vpop.permute.xlu0 %3627
      %3629 = vrot.lane.b32.xlu0 %v3582, 127
      %v3630 = vpop.permute.xlu0 %3629
      %3631 = vrot.lane.b32.xlu0 %v3586, 127
      %v3632 = vpop.permute.xlu0 %3631
      %3633 = vrot.lane.b32.xlu0 %v3590, 127
      %v3634 = vpop.permute.xlu0 %3633
      %3635 = vrot.lane.b32.xlu0 %v3594, 127
      %v3636 = vpop.permute.xlu0 %3635
      %3637 = vrot.lane.b32.xlu0 %v3598, 127
      %v3638 = vpop.permute.xlu0 %3637
      %3639 = vrot.lane.b32.xlu0 %v3602, 127
      %v3640 = vpop.permute.xlu0 %3639
      %3641 = vrot.lane.b32.xlu0 %v3606, 127
      %v3642 = vpop.permute.xlu0 %3641
      %3643 = vrot.lane.b32.xlu0 %v3610, 127
      %v3644 = vpop.permute.xlu0 %3643
      %3645 = vrot.lane.b32.xlu0 %v3583, 127
      %v3646 = vpop.permute.xlu0 %3645
      %3647 = vrot.lane.b32.xlu0 %v3587, 127
      %v3648 = vpop.permute.xlu0 %3647
      %3649 = vrot.lane.b32.xlu0 %v3591, 127
      %v3650 = vpop.permute.xlu0 %3649
      %3651 = vrot.lane.b32.xlu0 %v3595, 127
      %v3652 = vpop.permute.xlu0 %3651
      %3653 = vrot.lane.b32.xlu0 %v3599, 127
      %v3654 = vpop.permute.xlu0 %3653
      %3655 = vrot.lane.b32.xlu0 %v3603, 127
      %v3656 = vpop.permute.xlu0 %3655
      %3657 = vrot.lane.b32.xlu0 %v3607, 127
      %v3658 = vpop.permute.xlu0 %3657
      %3659 = vrot.lane.b32.xlu0 %v3611, 127
      %v3660 = vpop.permute.xlu0 %3659
      %3661 = vrot.lane.b32.xlu0 %v3584, 127
      %v3662 = vpop.permute.xlu0 %3661
      %3663 = vrot.lane.b32.xlu0 %v3588, 127
      %v3664 = vpop.permute.xlu0 %3663
      %3665 = vrot.lane.b32.xlu0 %v3592, 127
      %v3666 = vpop.permute.xlu0 %3665
      %3667 = vrot.lane.b32.xlu0 %v3596, 127
      %v3668 = vpop.permute.xlu0 %3667
      %3669 = vrot.lane.b32.xlu0 %v3600, 127
      %v3670 = vpop.permute.xlu0 %3669
      %3671 = vrot.lane.b32.xlu0 %v3604, 127
      %v3672 = vpop.permute.xlu0 %3671
      %3673 = vrot.lane.b32.xlu0 %v3608, 127
      %v3674 = vpop.permute.xlu0 %3673
      %3675 = vrot.lane.b32.xlu0 %v3612, 127
      %v3676 = vpop.permute.xlu0 %3675
      %v3677 = vsel %vm1222, %v3646, %v3662
      %v3678 = vsel %vm1222, %v3648, %v3664
      %v3679 = vsel %vm1222, %v3650, %v3666
      %v3680 = vsel %vm1222, %v3652, %v3668
      %v3681 = vsel %vm1222, %v3654, %v3670
      %v3682 = vsel %vm1222, %v3656, %v3672
      %v3683 = vsel %vm1222, %v3658, %v3674
      %v3684 = vsel %vm1222, %v3660, %v3676
      %v3685 = vsel %vm1222, %v3630, %v3646
      %v3686 = vsel %vm1222, %v3632, %v3648
      %v3687 = vsel %vm1222, %v3634, %v3650
      %v3688 = vsel %vm1222, %v3636, %v3652
      %v3689 = vsel %vm1222, %v3638, %v3654
      %v3690 = vsel %vm1222, %v3640, %v3656
      %v3691 = vsel %vm1222, %v3642, %v3658
      %v3692 = vsel %vm1222, %v3644, %v3660
      %v3693 = vsel %vm1222, %v3614, %v3630
      %v3694 = vsel %vm1222, %v3616, %v3632
      %v3695 = vsel %vm1222, %v3618, %v3634
      %v3696 = vsel %vm1222, %v3620, %v3636
      %v3697 = vsel %vm1222, %v3622, %v3638
      %v3698 = vsel %vm1222, %v3624, %v3640
      %v3699 = vsel %vm1222, %v3626, %v3642
      %v3700 = vsel %vm1222, %v3628, %v3644
      %v3701 = vsel %vm1222, %v3662, %v3614
      %v3702 = vsel %vm1222, %v3664, %v3616
      %v3703 = vsel %vm1222, %v3666, %v3618
      %v3704 = vsel %vm1222, %v3668, %v3620
      %v3705 = vsel %vm1222, %v3670, %v3622
      %v3706 = vsel %vm1222, %v3672, %v3624
      %v3707 = vsel %vm1222, %v3674, %v3626
      %v3708 = vsel %vm1222, %v3676, %v3628
      %v3709 = vmax.f32 %v3581, %v3693
      %v3710 = vmax.f32 %v3582, %v3685
      %v3711 = vmax.f32 %v3583, %v3677
      %v3712 = vmax.f32 %v3584, %v3701
      %v3713 = vmax.f32 %v3585, %v3694
      %v3714 = vmax.f32 %v3586, %v3686
      %v3715 = vmax.f32 %v3587, %v3678
      %v3716 = vmax.f32 %v3588, %v3702
      %v3717 = vmax.f32 %v3589, %v3695
      %v3718 = vmax.f32 %v3590, %v3687
      %v3719 = vmax.f32 %v3591, %v3679
      %v3720 = vmax.f32 %v3592, %v3703
      %v3721 = vmax.f32 %v3593, %v3696
      %v3722 = vmax.f32 %v3594, %v3688
      %v3723 = vmax.f32 %v3595, %v3680
      %v3724 = vmax.f32 %v3596, %v3704
      %v3725 = vmax.f32 %v3597, %v3697
      %v3726 = vmax.f32 %v3598, %v3689
      %v3727 = vmax.f32 %v3599, %v3681
      %v3728 = vmax.f32 %v3600, %v3705
      %v3729 = vmax.f32 %v3601, %v3698
      %v3730 = vmax.f32 %v3602, %v3690
      %v3731 = vmax.f32 %v3603, %v3682
      %v3732 = vmax.f32 %v3604, %v3706
      %v3733 = vmax.f32 %v3605, %v3699
      %v3734 = vmax.f32 %v3606, %v3691
      %v3735 = vmax.f32 %v3607, %v3683
      %v3736 = vmax.f32 %v3608, %v3707
      %v3737 = vmax.f32 %v3609, %v3700
      %v3738 = vmax.f32 %v3610, %v3692
      %v3739 = vmax.f32 %v3611, %v3684
      %v3740 = vmax.f32 %v3612, %v3708
      %v3741 = vpack.c.bf16 %v3713, %v3709
      %v3742 = vpack.c.bf16 %v3714, %v3710
      %v3743 = vpack.c.bf16 %v3715, %v3711
      %v3744 = vpack.c.bf16 %v3716, %v3712
      %v3745 = vpack.c.bf16 %v3721, %v3717
      %v3746 = vpack.c.bf16 %v3722, %v3718
      %v3747 = vpack.c.bf16 %v3723, %v3719
      %v3748 = vpack.c.bf16 %v3724, %v3720
      %v3749 = vpack.c.bf16 %v3729, %v3725
      %v3750 = vpack.c.bf16 %v3730, %v3726
      %v3751 = vpack.c.bf16 %v3731, %v3727
      %v3752 = vpack.c.bf16 %v3732, %v3728
      %v3753 = vpack.c.bf16 %v3737, %v3733
      %v3754 = vpack.c.bf16 %v3738, %v3734
      %v3755 = vpack.c.bf16 %v3739, %v3735
      %v3756 = vpack.c.bf16 %v3740, %v3736
      %v3757 = vld [vmem:[%s11] sm:$0xff]
      %v3758 = vld [vmem:[%s11 + $0x8] sm:$0xf]
      %v3759 = vld [vmem:[%s11 + $0xc] sm:$0xff]
      %v3760 = vld [vmem:[%s11 + $0x14] sm:$0xf]
      %v3761 = vld [vmem:[%s11 + $0x18] sm:$0xff]
      %v3762 = vld [vmem:[%s11 + $0x20] sm:$0xf]
      %v3763 = vld [vmem:[%s11 + $0x24] sm:$0xff]
      %v3764 = vld [vmem:[%s11 + $0x2c] sm:$0xf]
      %v3765 = vld [vmem:[%s11 + $0x30] sm:$0xff]
      %v3766 = vld [vmem:[%s11 + $0x38] sm:$0xf]
      %v3767 = vld [vmem:[%s11 + $0x3c] sm:$0xff]
      %v3768 = vld [vmem:[%s11 + $0x44] sm:$0xf]
      %v3769 = vld [vmem:[%s11 + $0x48] sm:$0xff]
      %v3770 = vld [vmem:[%s11 + $0x50] sm:$0xf]
      %v3771 = vld [vmem:[%s11 + $0x54] sm:$0xff]
      %v3772 = vld [vmem:[%s11 + $0x5c] sm:$0xf]
      %v3773 = vld [vmem:[%s11 + $0x60] sm:$0xff]
      %v3774 = vld [vmem:[%s11 + $0x68] sm:$0xf]
      %v3775 = vld [vmem:[%s11 + $0x6c] sm:$0xff]
      %v3776 = vld [vmem:[%s11 + $0x74] sm:$0xf]
      %v3777 = vld [vmem:[%s11 + $0x78] sm:$0xff]
      %v3778 = vld [vmem:[%s11 + $0x80] sm:$0xf]
      %v3779 = vld [vmem:[%s11 + $0x84] sm:$0xff]
      %v3780 = vld [vmem:[%s11 + $0x8c] sm:$0xf]
      %v3781 = vld [vmem:[%s11 + $0x90] sm:$0xff]
      %v3782 = vld [vmem:[%s11 + $0x98] sm:$0xf]
      %v3783 = vld [vmem:[%s11 + $0x9c] sm:$0xff]
      %v3784 = vld [vmem:[%s11 + $0xa4] sm:$0xf]
      %v3785 = vld [vmem:[%s11 + $0xa8] sm:$0xff]
      %v3786 = vld [vmem:[%s11 + $0xb0] sm:$0xf]
      %v3787 = vld [vmem:[%s11 + $0xb4] sm:$0xff]
      %v3788 = vld [vmem:[%s11 + $0xbc] sm:$0xf]
      %v3789 = vld [vmem:[%s11 + $0xc0] sm:$0xff]
      %v3790 = vld [vmem:[%s11 + $0xc8] sm:$0xf]
      %v3791 = vld [vmem:[%s11 + $0xcc] sm:$0xff]
      %v3792 = vld [vmem:[%s11 + $0xd4] sm:$0xf]
      %v3793 = vld [vmem:[%s11 + $0xd8] sm:$0xff]
      %v3794 = vld [vmem:[%s11 + $0xe0] sm:$0xf]
      %v3795 = vld [vmem:[%s11 + $0xe4] sm:$0xff]
      %v3796 = vld [vmem:[%s11 + $0xec] sm:$0xf]
      %v3797 = vld [vmem:[%s11 + $0xf0] sm:$0xff]
      %v3798 = vld [vmem:[%s11 + $0xf8] sm:$0xf]
      %v3799 = vld [vmem:[%s11 + $0xfc] sm:$0xff]
      %v3800 = vld [vmem:[%s11 + $0x104] sm:$0xf]
      %v3801 = vld [vmem:[%s11 + $0x108] sm:$0xff]
      %v3802 = vld [vmem:[%s11 + $0x110] sm:$0xf]
      %v3803 = vld [vmem:[%s11 + $0x114] sm:$0xff]
      %v3804 = vld [vmem:[%s11 + $0x11c] sm:$0xf]
      %v3805 = vld [vmem:[%s11 + $0x120] sm:$0xff]
      %v3806 = vld [vmem:[%s11 + $0x128] sm:$0xf]
      %v3807 = vld [vmem:[%s11 + $0x12c] sm:$0xff]
      %v3808 = vld [vmem:[%s11 + $0x134] sm:$0xf]
      %v3809 = vld [vmem:[%s11 + $0x138] sm:$0xff]
      %v3810 = vld [vmem:[%s11 + $0x140] sm:$0xf]
      %v3811 = vld [vmem:[%s11 + $0x144] sm:$0xff]
      %v3812 = vld [vmem:[%s11 + $0x14c] sm:$0xf]
      %v3813 = vld [vmem:[%s11 + $0x150] sm:$0xff]
      %v3814 = vld [vmem:[%s11 + $0x158] sm:$0xf]
      %v3815 = vld [vmem:[%s11 + $0x15c] sm:$0xff]
      %v3816 = vld [vmem:[%s11 + $0x164] sm:$0xf]
      %v3817 = vld [vmem:[%s11 + $0x168] sm:$0xff]
      %v3818 = vld [vmem:[%s11 + $0x170] sm:$0xf]
      %v3819 = vld [vmem:[%s11 + $0x174] sm:$0xff]
      %v3820 = vld [vmem:[%s11 + $0x17c] sm:$0xf]
      %v3821 = vld [vmem:[%s11 + $0x180] sm:$0xff]
      %v3822 = vld [vmem:[%s11 + $0x188] sm:$0xf]
      %v3823 = vld [vmem:[%s11 + $0x18c] sm:$0xff]
      %v3824 = vld [vmem:[%s11 + $0x194] sm:$0xf]
      %v3825 = vld [vmem:[%s11 + $0x198] sm:$0xff]
      %v3826 = vld [vmem:[%s11 + $0x1a0] sm:$0xf]
      %v3827 = vld [vmem:[%s11 + $0x1a4] sm:$0xff]
      %v3828 = vld [vmem:[%s11 + $0x1ac] sm:$0xf]
      %v3829 = vld [vmem:[%s11 + $0x1b0] sm:$0xff]
      %v3830 = vld [vmem:[%s11 + $0x1b8] sm:$0xf]
      %v3831 = vld [vmem:[%s11 + $0x1bc] sm:$0xff]
      %v3832 = vld [vmem:[%s11 + $0x1c4] sm:$0xf]
      %v3833 = vld [vmem:[%s11 + $0x1c8] sm:$0xff]
      %v3834 = vld [vmem:[%s11 + $0x1d0] sm:$0xf]
      %v3835 = vld [vmem:[%s11 + $0x1d4] sm:$0xff]
      %v3836 = vld [vmem:[%s11 + $0x1dc] sm:$0xf]
      %v3837 = vld [vmem:[%s11 + $0x1e0] sm:$0xff]
      %v3838 = vld [vmem:[%s11 + $0x1e8] sm:$0xf]
      %v3839 = vld [vmem:[%s11 + $0x1ec] sm:$0xff]
      %v3840 = vld [vmem:[%s11 + $0x1f4] sm:$0xf]
      %v3841 = vld [vmem:[%s11 + $0x1f8] sm:$0xff]
      %v3842 = vld [vmem:[%s11 + $0x200] sm:$0xf]
      %v3843 = vld [vmem:[%s11 + $0x204] sm:$0xff]
      %v3844 = vld [vmem:[%s11 + $0x20c] sm:$0xf]
      %v3845 = vld [vmem:[%s11 + $0x210] sm:$0xff]
      %v3846 = vld [vmem:[%s11 + $0x218] sm:$0xf]
      %v3847 = vld [vmem:[%s11 + $0x21c] sm:$0xff]
      %v3848 = vld [vmem:[%s11 + $0x224] sm:$0xf]
      %v3849 = vld [vmem:[%s11 + $0x228] sm:$0xff]
      %v3850 = vld [vmem:[%s11 + $0x230] sm:$0xf]
      %v3851 = vld [vmem:[%s11 + $0x234] sm:$0xff]
      %v3852 = vld [vmem:[%s11 + $0x23c] sm:$0xf]
      %v3853 = vld [vmem:[%s11 + $0x240] sm:$0xff]
      %v3854 = vld [vmem:[%s11 + $0x248] sm:$0xf]
      %v3855 = vld [vmem:[%s11 + $0x24c] sm:$0xff]
      %v3856 = vld [vmem:[%s11 + $0x254] sm:$0xf]
      %v3857 = vld [vmem:[%s11 + $0x258] sm:$0xff]
      %v3858 = vld [vmem:[%s11 + $0x260] sm:$0xf]
      %v3859 = vld [vmem:[%s11 + $0x264] sm:$0xff]
      %v3860 = vld [vmem:[%s11 + $0x26c] sm:$0xf]
      %v3861 = vld [vmem:[%s11 + $0x270] sm:$0xff]
      %v3862 = vld [vmem:[%s11 + $0x278] sm:$0xf]
      %v3863 = vld [vmem:[%s11 + $0x27c] sm:$0xff]
      %v3864 = vld [vmem:[%s11 + $0x284] sm:$0xf]
      %v3865 = vld [vmem:[%s11 + $0x288] sm:$0xff]
      %v3866 = vld [vmem:[%s11 + $0x290] sm:$0xf]
      %v3867 = vld [vmem:[%s11 + $0x294] sm:$0xff]
      %v3868 = vld [vmem:[%s11 + $0x29c] sm:$0xf]
      %v3869 = vld [vmem:[%s11 + $0x2a0] sm:$0xff]
      %v3870 = vld [vmem:[%s11 + $0x2a8] sm:$0xf]
      %v3871 = vld [vmem:[%s11 + $0x2ac] sm:$0xff]
      %v3872 = vld [vmem:[%s11 + $0x2b4] sm:$0xf]
      %v3873 = vld [vmem:[%s11 + $0x2b8] sm:$0xff]
      %v3874 = vld [vmem:[%s11 + $0x2c0] sm:$0xf]
      %v3875 = vld [vmem:[%s11 + $0x2c4] sm:$0xff]
      %v3876 = vld [vmem:[%s11 + $0x2cc] sm:$0xf]
      %v3877 = vld [vmem:[%s11 + $0x2d0] sm:$0xff]
      %v3878 = vld [vmem:[%s11 + $0x2d8] sm:$0xf]
      %v3879 = vld [vmem:[%s11 + $0x2dc] sm:$0xff]
      %v3880 = vld [vmem:[%s11 + $0x2e4] sm:$0xf]
      %v3881 = vld [vmem:[%s11 + $0x2e8] sm:$0xff]
      %v3882 = vld [vmem:[%s11 + $0x2f0] sm:$0xf]
      %v3883 = vld [vmem:[%s11 + $0x2f4] sm:$0xff]
      %v3884 = vld [vmem:[%s11 + $0x2fc] sm:$0xf]
      %v4013 = vunpack.c.l.b16 %v3757
      %v4014 = vunpack.c.h.b16 %v3757
      %v4015 = vunpack.c.l.b16 %v3758
      %v4016 = vunpack.c.l.b16 %v3759
      %v4017 = vunpack.c.h.b16 %v3759
      %v4018 = vunpack.c.l.b16 %v3760
      %v4019 = vunpack.c.l.b16 %v3761
      %v4020 = vunpack.c.h.b16 %v3761
      %v4021 = vunpack.c.l.b16 %v3762
      %v4022 = vunpack.c.l.b16 %v3763
      %v4023 = vunpack.c.h.b16 %v3763
      %v4024 = vunpack.c.l.b16 %v3764
      %v4025 = vunpack.c.l.b16 %v3765
      %v4026 = vunpack.c.h.b16 %v3765
      %v4027 = vunpack.c.l.b16 %v3766
      %v4028 = vunpack.c.l.b16 %v3767
      %v4029 = vunpack.c.h.b16 %v3767
      %v4030 = vunpack.c.l.b16 %v3768
      %v4031 = vunpack.c.l.b16 %v3769
      %v4032 = vunpack.c.h.b16 %v3769
      %v4033 = vunpack.c.l.b16 %v3770
      %v4034 = vunpack.c.l.b16 %v3771
      %v4035 = vunpack.c.h.b16 %v3771
      %v4036 = vunpack.c.l.b16 %v3772
      %v4037 = vunpack.c.l.b16 %v3773
      %v4038 = vunpack.c.h.b16 %v3773
      %v4039 = vunpack.c.l.b16 %v3774
      %v4040 = vunpack.c.l.b16 %v3775
      %v4041 = vunpack.c.h.b16 %v3775
      %v4042 = vunpack.c.l.b16 %v3776
      %v4043 = vunpack.c.l.b16 %v3777
      %v4044 = vunpack.c.h.b16 %v3777
      %v4045 = vunpack.c.l.b16 %v3778
      %v4046 = vunpack.c.l.b16 %v3779
      %v4047 = vunpack.c.h.b16 %v3779
      %v4048 = vunpack.c.l.b16 %v3780
      %v4049 = vunpack.c.l.b16 %v3781
      %v4050 = vunpack.c.h.b16 %v3781
      %v4051 = vunpack.c.l.b16 %v3782
      %v4052 = vunpack.c.l.b16 %v3783
      %v4053 = vunpack.c.h.b16 %v3783
      %v4054 = vunpack.c.l.b16 %v3784
      %v4055 = vunpack.c.l.b16 %v3785
      %v4056 = vunpack.c.h.b16 %v3785
      %v4057 = vunpack.c.l.b16 %v3786
      %v4058 = vunpack.c.l.b16 %v3787
      %v4059 = vunpack.c.h.b16 %v3787
      %v4060 = vunpack.c.l.b16 %v3788
      %v4061 = vunpack.c.l.b16 %v3789
      %v4062 = vunpack.c.h.b16 %v3789
      %v4063 = vunpack.c.l.b16 %v3790
      %v4064 = vunpack.c.l.b16 %v3791
      %v4065 = vunpack.c.h.b16 %v3791
      %v4066 = vunpack.c.l.b16 %v3792
      %v4067 = vunpack.c.l.b16 %v3793
      %v4068 = vunpack.c.h.b16 %v3793
      %v4069 = vunpack.c.l.b16 %v3794
      %v4070 = vunpack.c.l.b16 %v3795
      %v4071 = vunpack.c.h.b16 %v3795
      %v4072 = vunpack.c.l.b16 %v3796
      %v4073 = vunpack.c.l.b16 %v3797
      %v4074 = vunpack.c.h.b16 %v3797
      %v4075 = vunpack.c.l.b16 %v3798
      %v4076 = vunpack.c.l.b16 %v3799
      %v4077 = vunpack.c.h.b16 %v3799
      %v4078 = vunpack.c.l.b16 %v3800
      %v4079 = vunpack.c.l.b16 %v3801
      %v4080 = vunpack.c.h.b16 %v3801
      %v4081 = vunpack.c.l.b16 %v3802
      %v4082 = vunpack.c.l.b16 %v3803
      %v4083 = vunpack.c.h.b16 %v3803
      %v4084 = vunpack.c.l.b16 %v3804
      %v4085 = vunpack.c.l.b16 %v3805
      %v4086 = vunpack.c.h.b16 %v3805
      %v4087 = vunpack.c.l.b16 %v3806
      %v4088 = vunpack.c.l.b16 %v3807
      %v4089 = vunpack.c.h.b16 %v3807
      %v4090 = vunpack.c.l.b16 %v3808
      %v4091 = vunpack.c.l.b16 %v3809
      %v4092 = vunpack.c.h.b16 %v3809
      %v4093 = vunpack.c.l.b16 %v3810
      %v4094 = vunpack.c.l.b16 %v3811
      %v4095 = vunpack.c.h.b16 %v3811
      %v4096 = vunpack.c.l.b16 %v3812
      %v4097 = vunpack.c.l.b16 %v3813
      %v4098 = vunpack.c.h.b16 %v3813
      %v4099 = vunpack.c.l.b16 %v3814
      %v4100 = vunpack.c.l.b16 %v3815
      %v4101 = vunpack.c.h.b16 %v3815
      %v4102 = vunpack.c.l.b16 %v3816
      %v4103 = vunpack.c.l.b16 %v3817
      %v4104 = vunpack.c.h.b16 %v3817
      %v4105 = vunpack.c.l.b16 %v3818
      %v4106 = vunpack.c.l.b16 %v3819
      %v4107 = vunpack.c.h.b16 %v3819
      %v4108 = vunpack.c.l.b16 %v3820
      %v4109 = vunpack.c.l.b16 %v3821
      %v4110 = vunpack.c.h.b16 %v3821
      %v4111 = vunpack.c.l.b16 %v3822
      %v4112 = vunpack.c.l.b16 %v3823
      %v4113 = vunpack.c.h.b16 %v3823
      %v4114 = vunpack.c.l.b16 %v3824
      %v4115 = vunpack.c.l.b16 %v3825
      %v4116 = vunpack.c.h.b16 %v3825
      %v4117 = vunpack.c.l.b16 %v3826
      %v4118 = vunpack.c.l.b16 %v3827
      %v4119 = vunpack.c.h.b16 %v3827
      %v4120 = vunpack.c.l.b16 %v3828
      %v4121 = vunpack.c.l.b16 %v3829
      %v4122 = vunpack.c.h.b16 %v3829
      %v4123 = vunpack.c.l.b16 %v3830
      %v4124 = vunpack.c.l.b16 %v3831
      %v4125 = vunpack.c.h.b16 %v3831
      %v4126 = vunpack.c.l.b16 %v3832
      %v4127 = vunpack.c.l.b16 %v3833
      %v4128 = vunpack.c.h.b16 %v3833
      %v4129 = vunpack.c.l.b16 %v3834
      %v4130 = vunpack.c.l.b16 %v3835
      %v4131 = vunpack.c.h.b16 %v3835
      %v4132 = vunpack.c.l.b16 %v3836
      %v4133 = vunpack.c.l.b16 %v3837
      %v4134 = vunpack.c.h.b16 %v3837
      %v4135 = vunpack.c.l.b16 %v3838
      %v4136 = vunpack.c.l.b16 %v3839
      %v4137 = vunpack.c.h.b16 %v3839
      %v4138 = vunpack.c.l.b16 %v3840
      %v4139 = vunpack.c.l.b16 %v3841
      %v4140 = vunpack.c.h.b16 %v3841
      %v4141 = vunpack.c.l.b16 %v3842
      %v4142 = vunpack.c.l.b16 %v3843
      %v4143 = vunpack.c.h.b16 %v3843
      %v4144 = vunpack.c.l.b16 %v3844
      %v4145 = vunpack.c.l.b16 %v3845
      %v4146 = vunpack.c.h.b16 %v3845
      %v4147 = vunpack.c.l.b16 %v3846
      %v4148 = vunpack.c.l.b16 %v3847
      %v4149 = vunpack.c.h.b16 %v3847
      %v4150 = vunpack.c.l.b16 %v3848
      %v4151 = vunpack.c.l.b16 %v3849
      %v4152 = vunpack.c.h.b16 %v3849
      %v4153 = vunpack.c.l.b16 %v3850
      %v4154 = vunpack.c.l.b16 %v3851
      %v4155 = vunpack.c.h.b16 %v3851
      %v4156 = vunpack.c.l.b16 %v3852
      %v4157 = vunpack.c.l.b16 %v3853
      %v4158 = vunpack.c.h.b16 %v3853
      %v4159 = vunpack.c.l.b16 %v3854
      %v4160 = vunpack.c.l.b16 %v3855
      %v4161 = vunpack.c.h.b16 %v3855
      %v4162 = vunpack.c.l.b16 %v3856
      %v4163 = vunpack.c.l.b16 %v3857
      %v4164 = vunpack.c.h.b16 %v3857
      %v4165 = vunpack.c.l.b16 %v3858
      %v4166 = vunpack.c.l.b16 %v3859
      %v4167 = vunpack.c.h.b16 %v3859
      %v4168 = vunpack.c.l.b16 %v3860
      %v4169 = vunpack.c.l.b16 %v3861
      %v4170 = vunpack.c.h.b16 %v3861
      %v4171 = vunpack.c.l.b16 %v3862
      %v4172 = vunpack.c.l.b16 %v3863
      %v4173 = vunpack.c.h.b16 %v3863
      %v4174 = vunpack.c.l.b16 %v3864
      %v4175 = vunpack.c.l.b16 %v3865
      %v4176 = vunpack.c.h.b16 %v3865
      %v4177 = vunpack.c.l.b16 %v3866
      %v4178 = vunpack.c.l.b16 %v3867
      %v4179 = vunpack.c.h.b16 %v3867
      %v4180 = vunpack.c.l.b16 %v3868
      %v4181 = vunpack.c.l.b16 %v3869
      %v4182 = vunpack.c.h.b16 %v3869
      %v4183 = vunpack.c.l.b16 %v3870
      %v4184 = vunpack.c.l.b16 %v3871
      %v4185 = vunpack.c.h.b16 %v3871
      %v4186 = vunpack.c.l.b16 %v3872
      %v4187 = vunpack.c.l.b16 %v3873
      %v4188 = vunpack.c.h.b16 %v3873
      %v4189 = vunpack.c.l.b16 %v3874
      %v4190 = vunpack.c.l.b16 %v3875
      %v4191 = vunpack.c.h.b16 %v3875
      %v4192 = vunpack.c.l.b16 %v3876
      %v4193 = vunpack.c.l.b16 %v3877
      %v4194 = vunpack.c.h.b16 %v3877
      %v4195 = vunpack.c.l.b16 %v3878
      %v4196 = vunpack.c.l.b16 %v3879
      %v4197 = vunpack.c.h.b16 %v3879
      %v4198 = vunpack.c.l.b16 %v3880
      %v4199 = vunpack.c.l.b16 %v3881
      %v4200 = vunpack.c.h.b16 %v3881
      %v4201 = vunpack.c.l.b16 %v3882
      %v4202 = vunpack.c.l.b16 %v3883
      %v4203 = vunpack.c.h.b16 %v3883
      %v4204 = vunpack.c.l.b16 %v3884
      %v4205 = vpack.c.b16 %v4016, %v4013
      %v4206 = vpack.c.b16 %v4017, %v4014
      %v4207 = vpack.c.b16 %v4018, %v4015
      %v4208 = vpack.c.b16 %v4022, %v4019
      %v4209 = vpack.c.b16 %v4023, %v4020
      %v4210 = vpack.c.b16 %v4024, %v4021
      %v4211 = vpack.c.b16 %v4028, %v4025
      %v4212 = vpack.c.b16 %v4029, %v4026
      %v4213 = vpack.c.b16 %v4030, %v4027
      %v4214 = vpack.c.b16 %v4034, %v4031
      %v4215 = vpack.c.b16 %v4035, %v4032
      %v4216 = vpack.c.b16 %v4036, %v4033
      %v4217 = vpack.c.b16 %v4040, %v4037
      %v4218 = vpack.c.b16 %v4041, %v4038
      %v4219 = vpack.c.b16 %v4042, %v4039
      %v4220 = vpack.c.b16 %v4046, %v4043
      %v4221 = vpack.c.b16 %v4047, %v4044
      %v4222 = vpack.c.b16 %v4048, %v4045
      %v4223 = vpack.c.b16 %v4052, %v4049
      %v4224 = vpack.c.b16 %v4053, %v4050
      %v4225 = vpack.c.b16 %v4054, %v4051
      %v4226 = vpack.c.b16 %v4058, %v4055
      %v4227 = vpack.c.b16 %v4059, %v4056
      %v4228 = vpack.c.b16 %v4060, %v4057
      %v4229 = vpack.c.b16 %v4064, %v4061
      %v4230 = vpack.c.b16 %v4065, %v4062
      %v4231 = vpack.c.b16 %v4066, %v4063
      %v4232 = vpack.c.b16 %v4070, %v4067
      %v4233 = vpack.c.b16 %v4071, %v4068
      %v4234 = vpack.c.b16 %v4072, %v4069
      %v4235 = vpack.c.b16 %v4076, %v4073
      %v4236 = vpack.c.b16 %v4077, %v4074
      %v4237 = vpack.c.b16 %v4078, %v4075
      %v4238 = vpack.c.b16 %v4082, %v4079
      %v4239 = vpack.c.b16 %v4083, %v4080
      %v4240 = vpack.c.b16 %v4084, %v4081
      %v4241 = vpack.c.b16 %v4088, %v4085
      %v4242 = vpack.c.b16 %v4089, %v4086
      %v4243 = vpack.c.b16 %v4090, %v4087
      %v4244 = vpack.c.b16 %v4094, %v4091
      %v4245 = vpack.c.b16 %v4095, %v4092
      %v4246 = vpack.c.b16 %v4096, %v4093
      %v4247 = vpack.c.b16 %v4100, %v4097
      %v4248 = vpack.c.b16 %v4101, %v4098
      %v4249 = vpack.c.b16 %v4102, %v4099
      %v4250 = vpack.c.b16 %v4106, %v4103
      %v4251 = vpack.c.b16 %v4107, %v4104
      %v4252 = vpack.c.b16 %v4108, %v4105
      %v4253 = vpack.c.b16 %v4112, %v4109
      %v4254 = vpack.c.b16 %v4113, %v4110
      %v4255 = vpack.c.b16 %v4114, %v4111
      %v4256 = vpack.c.b16 %v4118, %v4115
      %v4257 = vpack.c.b16 %v4119, %v4116
      %v4258 = vpack.c.b16 %v4120, %v4117
      %v4259 = vpack.c.b16 %v4124, %v4121
      %v4260 = vpack.c.b16 %v4125, %v4122
      %v4261 = vpack.c.b16 %v4126, %v4123
      %v4262 = vpack.c.b16 %v4130, %v4127
      %v4263 = vpack.c.b16 %v4131, %v4128
      %v4264 = vpack.c.b16 %v4132, %v4129
      %v4265 = vpack.c.b16 %v4136, %v4133
      %v4266 = vpack.c.b16 %v4137, %v4134
      %v4267 = vpack.c.b16 %v4138, %v4135
      %v4268 = vpack.c.b16 %v4142, %v4139
      %v4269 = vpack.c.b16 %v4143, %v4140
      %v4270 = vpack.c.b16 %v4144, %v4141
      %v4271 = vpack.c.b16 %v4148, %v4145
      %v4272 = vpack.c.b16 %v4149, %v4146
      %v4273 = vpack.c.b16 %v4150, %v4147
      %v4274 = vpack.c.b16 %v4154, %v4151
      %v4275 = vpack.c.b16 %v4155, %v4152
      %v4276 = vpack.c.b16 %v4156, %v4153
      %v4277 = vpack.c.b16 %v4160, %v4157
      %v4278 = vpack.c.b16 %v4161, %v4158
      %v4279 = vpack.c.b16 %v4162, %v4159
      %v4280 = vpack.c.b16 %v4166, %v4163
      %v4281 = vpack.c.b16 %v4167, %v4164
      %v4282 = vpack.c.b16 %v4168, %v4165
      %v4283 = vpack.c.b16 %v4172, %v4169
      %v4284 = vpack.c.b16 %v4173, %v4170
      %v4285 = vpack.c.b16 %v4174, %v4171
      %v4286 = vpack.c.b16 %v4178, %v4175
      %v4287 = vpack.c.b16 %v4179, %v4176
      %v4288 = vpack.c.b16 %v4180, %v4177
      %v4289 = vpack.c.b16 %v4184, %v4181
      %v4290 = vpack.c.b16 %v4185, %v4182
      %v4291 = vpack.c.b16 %v4186, %v4183
      %v4292 = vpack.c.b16 %v4190, %v4187
      %v4293 = vpack.c.b16 %v4191, %v4188
      %v4294 = vpack.c.b16 %v4192, %v4189
      %v4295 = vpack.c.b16 %v4196, %v4193
      %v4296 = vpack.c.b16 %v4197, %v4194
      %v4297 = vpack.c.b16 %v4198, %v4195
      %v4298 = vpack.c.b16 %v4202, %v4199
      %v4299 = vpack.c.b16 %v4203, %v4200
      %v4300 = vpack.c.b16 %v4204, %v4201
      %4397 = vmatpush.bf16.msra.mxu0 %v4226
      %4398 = vmatpush.bf16.msra.mxu0 %v4223
      %4399 = vmatpush.bf16.msra.mxu0 %v4220
      %4400 = vmatpush.bf16.msra.mxu0 %v4217
      %4401 = vmatpush.bf16.msra.mxu0 %v4214
      %4402 = vmatpush.bf16.msra.mxu0 %v4211
      %4403 = vmatpush.bf16.msra.mxu0 %v4208
      %4404 = vmatpush.bf16.msra.mxu0 %v4205
      %4405 = vmatmul.bf16.gmra.mxu0 %v3741
      %v4406 = vpop.f32.mrf.mxu0
      %v4407 = vadd.f32 0.0, %v4406
      %v4408 = vpop.f32.mrf.mxu0
      %v4409 = vadd.f32 0.0, %v4408
      %4410 = vmatmul.bf16.gmra.mxu0 %v3745
      %v4411 = vpop.f32.mrf.mxu0
      %v4412 = vadd.f32 0.0, %v4411
      %v4413 = vpop.f32.mrf.mxu0
      %v4414 = vadd.f32 0.0, %v4413
      %4415 = vmatmul.bf16.gmra.mxu0 %v3749
      %v4416 = vpop.f32.mrf.mxu0
      %v4417 = vadd.f32 0.0, %v4416
      %v4418 = vpop.f32.mrf.mxu0
      %v4419 = vadd.f32 0.0, %v4418
      %4420 = vmatmul.bf16.gmra.mxu0 %v3753
      %v4421 = vpop.f32.mrf.mxu0
      %v4422 = vadd.f32 0.0, %v4421
      %v4423 = vpop.f32.mrf.mxu0
      %v4424 = vadd.f32 0.0, %v4423
      %4425 = vdwg.mxu0
      %4426 = vmatpush.bf16.msra.mxu0 %v4250
      %4427 = vmatpush.bf16.msra.mxu0 %v4247
      %4428 = vmatpush.bf16.msra.mxu0 %v4244
      %4429 = vmatpush.bf16.msra.mxu0 %v4241
      %4430 = vmatpush.bf16.msra.mxu0 %v4238
      %4431 = vmatpush.bf16.msra.mxu0 %v4235
      %4432 = vmatpush.bf16.msra.mxu0 %v4232
      %4433 = vmatpush.bf16.msra.mxu0 %v4229
      %4434 = vmatmul.bf16.gmra.mxu0 %v3742
      %v4435 = vpop.f32.mrf.mxu0
      %v4436 = vadd.f32 %v4407, %v4435
      %v4437 = vpop.f32.mrf.mxu0
      %v4438 = vadd.f32 %v4409, %v4437
      %4439 = vmatmul.bf16.gmra.mxu0 %v3746
      %v4440 = vpop.f32.mrf.mxu0
      %v4441 = vadd.f32 %v4412, %v4440
      %v4442 = vpop.f32.mrf.mxu0
      %v4443 = vadd.f32 %v4414, %v4442
      %4444 = vmatmul.bf16.gmra.mxu0 %v3750
      %v4445 = vpop.f32.mrf.mxu0
      %v4446 = vadd.f32 %v4417, %v4445
      %v4447 = vpop.f32.mrf.mxu0
      %v4448 = vadd.f32 %v4419, %v4447
      %4449 = vmatmul.bf16.gmra.mxu0 %v3754
      %v4450 = vpop.f32.mrf.mxu0
      %v4451 = vadd.f32 %v4422, %v4450
      %v4452 = vpop.f32.mrf.mxu0
      %v4453 = vadd.f32 %v4424, %v4452
      %4454 = vdwg.mxu0
      %4455 = vmatpush.bf16.msra.mxu0 %v4274
      %4456 = vmatpush.bf16.msra.mxu0 %v4271
      %4457 = vmatpush.bf16.msra.mxu0 %v4268
      %4458 = vmatpush.bf16.msra.mxu0 %v4265
      %4459 = vmatpush.bf16.msra.mxu0 %v4262
      %4460 = vmatpush.bf16.msra.mxu0 %v4259
      %4461 = vmatpush.bf16.msra.mxu0 %v4256
      %4462 = vmatpush.bf16.msra.mxu0 %v4253
      %4463 = vmatmul.bf16.gmra.mxu0 %v3743
      %v4464 = vpop.f32.mrf.mxu0
      %v4465 = vadd.f32 %v4436, %v4464
      %v4466 = vpop.f32.mrf.mxu0
      %v4467 = vadd.f32 %v4438, %v4466
      %4468 = vmatmul.bf16.gmra.mxu0 %v3747
      %v4469 = vpop.f32.mrf.mxu0
      %v4470 = vadd.f32 %v4441, %v4469
      %v4471 = vpop.f32.mrf.mxu0
      %v4472 = vadd.f32 %v4443, %v4471
      %4473 = vmatmul.bf16.gmra.mxu0 %v3751
      %v4474 = vpop.f32.mrf.mxu0
      %v4475 = vadd.f32 %v4446, %v4474
      %v4476 = vpop.f32.mrf.mxu0
      %v4477 = vadd.f32 %v4448, %v4476
      %4478 = vmatmul.bf16.gmra.mxu0 %v3755
      %v4479 = vpop.f32.mrf.mxu0
      %v4480 = vadd.f32 %v4451, %v4479
      %v4481 = vpop.f32.mrf.mxu0
      %v4482 = vadd.f32 %v4453, %v4481
      %4483 = vdwg.mxu0
      %4484 = vmatpush.bf16.msra.mxu0 %v4298
      %4485 = vmatpush.bf16.msra.mxu0 %v4295
      %4486 = vmatpush.bf16.msra.mxu0 %v4292
      %4487 = vmatpush.bf16.msra.mxu0 %v4289
      %4488 = vmatpush.bf16.msra.mxu0 %v4286
      %4489 = vmatpush.bf16.msra.mxu0 %v4283
      %4490 = vmatpush.bf16.msra.mxu0 %v4280
      %4491 = vmatpush.bf16.msra.mxu0 %v4277
      %4492 = vmatmul.bf16.gmra.mxu0 %v3744
      %v4493 = vpop.f32.mrf.mxu0
      %v4494 = vadd.f32 %v4465, %v4493
      %v4495 = vpop.f32.mrf.mxu0
      %v4496 = vadd.f32 %v4467, %v4495
      %4497 = vmatmul.bf16.gmra.mxu0 %v3748
      %v4498 = vpop.f32.mrf.mxu0
      %v4499 = vadd.f32 %v4470, %v4498
      %v4500 = vpop.f32.mrf.mxu0
      %v4501 = vadd.f32 %v4472, %v4500
      %4502 = vmatmul.bf16.gmra.mxu0 %v3752
      %v4503 = vpop.f32.mrf.mxu0
      %v4504 = vadd.f32 %v4475, %v4503
      %v4505 = vpop.f32.mrf.mxu0
      %v4506 = vadd.f32 %v4477, %v4505
      %4507 = vmatmul.bf16.gmra.mxu0 %v3756
      %v4508 = vpop.f32.mrf.mxu0
      %v4509 = vadd.f32 %v4480, %v4508
      %v4510 = vpop.f32.mrf.mxu0
      %v4511 = vadd.f32 %v4482, %v4510
      %4512 = vdwg.mxu0
      %4513 = vmatpush.bf16.msra.mxu0 %v4227
      %4514 = vmatpush.bf16.msra.mxu0 %v4224
      %4515 = vmatpush.bf16.msra.mxu0 %v4221
      %4516 = vmatpush.bf16.msra.mxu0 %v4218
      %4517 = vmatpush.bf16.msra.mxu0 %v4215
      %4518 = vmatpush.bf16.msra.mxu0 %v4212
      %4519 = vmatpush.bf16.msra.mxu0 %v4209
      %4520 = vmatpush.bf16.msra.mxu0 %v4206
      %4521 = vmatmul.bf16.gmra.mxu0 %v3741
      %v4522 = vpop.f32.mrf.mxu0
      %v4523 = vadd.f32 0.0, %v4522
      %v4524 = vpop.f32.mrf.mxu0
      %v4525 = vadd.f32 0.0, %v4524
      %4526 = vmatmul.bf16.gmra.mxu0 %v3745
      %v4527 = vpop.f32.mrf.mxu0
      %v4528 = vadd.f32 0.0, %v4527
      %v4529 = vpop.f32.mrf.mxu0
      %v4530 = vadd.f32 0.0, %v4529
      %4531 = vmatmul.bf16.gmra.mxu0 %v3749
      %v4532 = vpop.f32.mrf.mxu0
      %v4533 = vadd.f32 0.0, %v4532
      %v4534 = vpop.f32.mrf.mxu0
      %v4535 = vadd.f32 0.0, %v4534
      %4536 = vmatmul.bf16.gmra.mxu0 %v3753
      %v4537 = vpop.f32.mrf.mxu0
      %v4538 = vadd.f32 0.0, %v4537
      %v4539 = vpop.f32.mrf.mxu0
      %v4540 = vadd.f32 0.0, %v4539
      %4541 = vdwg.mxu0
      %4542 = vmatpush.bf16.msra.mxu0 %v4251
      %4543 = vmatpush.bf16.msra.mxu0 %v4248
      %4544 = vmatpush.bf16.msra.mxu0 %v4245
      %4545 = vmatpush.bf16.msra.mxu0 %v4242
      %4546 = vmatpush.bf16.msra.mxu0 %v4239
      %4547 = vmatpush.bf16.msra.mxu0 %v4236
      %4548 = vmatpush.bf16.msra.mxu0 %v4233
      %4549 = vmatpush.bf16.msra.mxu0 %v4230
      %4550 = vmatmul.bf16.gmra.mxu0 %v3742
      %v4551 = vpop.f32.mrf.mxu0
      %v4552 = vadd.f32 %v4523, %v4551
      %v4553 = vpop.f32.mrf.mxu0
      %v4554 = vadd.f32 %v4525, %v4553
      %4555 = vmatmul.bf16.gmra.mxu0 %v3746
      %v4556 = vpop.f32.mrf.mxu0
      %v4557 = vadd.f32 %v4528, %v4556
      %v4558 = vpop.f32.mrf.mxu0
      %v4559 = vadd.f32 %v4530, %v4558
      %4560 = vmatmul.bf16.gmra.mxu0 %v3750
      %v4561 = vpop.f32.mrf.mxu0
      %v4562 = vadd.f32 %v4533, %v4561
      %v4563 = vpop.f32.mrf.mxu0
      %v4564 = vadd.f32 %v4535, %v4563
      %4565 = vmatmul.bf16.gmra.mxu0 %v3754
      %v4566 = vpop.f32.mrf.mxu0
      %v4567 = vadd.f32 %v4538, %v4566
      %v4568 = vpop.f32.mrf.mxu0
      %v4569 = vadd.f32 %v4540, %v4568
      %4570 = vdwg.mxu0
      %4571 = vmatpush.bf16.msra.mxu0 %v4275
      %4572 = vmatpush.bf16.msra.mxu0 %v4272
      %4573 = vmatpush.bf16.msra.mxu0 %v4269
      %4574 = vmatpush.bf16.msra.mxu0 %v4266
      %4575 = vmatpush.bf16.msra.mxu0 %v4263
      %4576 = vmatpush.bf16.msra.mxu0 %v4260
      %4577 = vmatpush.bf16.msra.mxu0 %v4257
      %4578 = vmatpush.bf16.msra.mxu0 %v4254
      %4579 = vmatmul.bf16.gmra.mxu0 %v3743
      %v4580 = vpop.f32.mrf.mxu0
      %v4581 = vadd.f32 %v4552, %v4580
      %v4582 = vpop.f32.mrf.mxu0
      %v4583 = vadd.f32 %v4554, %v4582
      %4584 = vmatmul.bf16.gmra.mxu0 %v3747
      %v4585 = vpop.f32.mrf.mxu0
      %v4586 = vadd.f32 %v4557, %v4585
      %v4587 = vpop.f32.mrf.mxu0
      %v4588 = vadd.f32 %v4559, %v4587
      %4589 = vmatmul.bf16.gmra.mxu0 %v3751
      %v4590 = vpop.f32.mrf.mxu0
      %v4591 = vadd.f32 %v4562, %v4590
      %v4592 = vpop.f32.mrf.mxu0
      %v4593 = vadd.f32 %v4564, %v4592
      %4594 = vmatmul.bf16.gmra.mxu0 %v3755
      %v4595 = vpop.f32.mrf.mxu0
      %v4596 = vadd.f32 %v4567, %v4595
      %v4597 = vpop.f32.mrf.mxu0
      %v4598 = vadd.f32 %v4569, %v4597
      %4599 = vdwg.mxu0
      %4600 = vmatpush.bf16.msra.mxu0 %v4299
      %4601 = vmatpush.bf16.msra.mxu0 %v4296
      %4602 = vmatpush.bf16.msra.mxu0 %v4293
      %4603 = vmatpush.bf16.msra.mxu0 %v4290
      %4604 = vmatpush.bf16.msra.mxu0 %v4287
      %4605 = vmatpush.bf16.msra.mxu0 %v4284
      %4606 = vmatpush.bf16.msra.mxu0 %v4281
      %4607 = vmatpush.bf16.msra.mxu0 %v4278
      %4608 = vmatmul.bf16.gmra.mxu0 %v3744
      %v4609 = vpop.f32.mrf.mxu0
      %v4610 = vadd.f32 %v4581, %v4609
      %v4611 = vpop.f32.mrf.mxu0
      %v4612 = vadd.f32 %v4583, %v4611
      %4613 = vmatmul.bf16.gmra.mxu0 %v3748
      %v4614 = vpop.f32.mrf.mxu0
      %v4615 = vadd.f32 %v4586, %v4614
      %v4616 = vpop.f32.mrf.mxu0
      %v4617 = vadd.f32 %v4588, %v4616
      %4618 = vmatmul.bf16.gmra.mxu0 %v3752
      %v4619 = vpop.f32.mrf.mxu0
      %v4620 = vadd.f32 %v4591, %v4619
      %v4621 = vpop.f32.mrf.mxu0
      %v4622 = vadd.f32 %v4593, %v4621
      %4623 = vmatmul.bf16.gmra.mxu0 %v3756
      %v4624 = vpop.f32.mrf.mxu0
      %v4625 = vadd.f32 %v4596, %v4624
      %v4626 = vpop.f32.mrf.mxu0
      %v4627 = vadd.f32 %v4598, %v4626
      %4628 = vdwg.mxu0
      %4629 = vmatpush.bf16.msra.mxu0 %v4228
      %4630 = vmatpush.bf16.msra.mxu0 %v4225
      %4631 = vmatpush.bf16.msra.mxu0 %v4222
      %4632 = vmatpush.bf16.msra.mxu0 %v4219
      %4633 = vmatpush.bf16.msra.mxu0 %v4216
      %4634 = vmatpush.bf16.msra.mxu0 %v4213
      %4635 = vmatpush.bf16.msra.mxu0 %v4210
      %4636 = vmatpush.bf16.msra.mxu0 %v4207
      %4637 = vmatmul.bf16.gmra.mxu0 %v3741
      %v4638 = vpop.f32.mrf.mxu0
      %v4639 = vadd.f32 0.0, %v4638
      %v4640 = vpop.f32.mrf.mxu0
      %v4641 = vadd.f32 0.0, %v4640
      %4642 = vmatmul.bf16.gmra.mxu0 %v3745
      %v4643 = vpop.f32.mrf.mxu0
      %v4644 = vadd.f32 0.0, %v4643
      %v4645 = vpop.f32.mrf.mxu0
      %v4646 = vadd.f32 0.0, %v4645
      %4647 = vmatmul.bf16.gmra.mxu0 %v3749
      %v4648 = vpop.f32.mrf.mxu0
      %v4649 = vadd.f32 0.0, %v4648
      %v4650 = vpop.f32.mrf.mxu0
      %v4651 = vadd.f32 0.0, %v4650
      %4652 = vmatmul.bf16.gmra.mxu0 %v3753
      %v4653 = vpop.f32.mrf.mxu0
      %v4654 = vadd.f32 0.0, %v4653
      %v4655 = vpop.f32.mrf.mxu0
      %v4656 = vadd.f32 0.0, %v4655
      %4657 = vdwg.mxu0
      %4658 = vmatpush.bf16.msra.mxu0 %v4252
      %4659 = vmatpush.bf16.msra.mxu0 %v4249
      %4660 = vmatpush.bf16.msra.mxu0 %v4246
      %4661 = vmatpush.bf16.msra.mxu0 %v4243
      %4662 = vmatpush.bf16.msra.mxu0 %v4240
      %4663 = vmatpush.bf16.msra.mxu0 %v4237
      %4664 = vmatpush.bf16.msra.mxu0 %v4234
      %4665 = vmatpush.bf16.msra.mxu0 %v4231
      %4666 = vmatmul.bf16.gmra.mxu0 %v3742
      %v4667 = vpop.f32.mrf.mxu0
      %v4668 = vadd.f32 %v4639, %v4667
      %v4669 = vpop.f32.mrf.mxu0
      %v4670 = vadd.f32 %v4641, %v4669
      %4671 = vmatmul.bf16.gmra.mxu0 %v3746
      %v4672 = vpop.f32.mrf.mxu0
      %v4673 = vadd.f32 %v4644, %v4672
      %v4674 = vpop.f32.mrf.mxu0
      %v4675 = vadd.f32 %v4646, %v4674
      %4676 = vmatmul.bf16.gmra.mxu0 %v3750
      %v4677 = vpop.f32.mrf.mxu0
      %v4678 = vadd.f32 %v4649, %v4677
      %v4679 = vpop.f32.mrf.mxu0
      %v4680 = vadd.f32 %v4651, %v4679
      %4681 = vmatmul.bf16.gmra.mxu0 %v3754
      %v4682 = vpop.f32.mrf.mxu0
      %v4683 = vadd.f32 %v4654, %v4682
      %v4684 = vpop.f32.mrf.mxu0
      %v4685 = vadd.f32 %v4656, %v4684
      %4686 = vdwg.mxu0
      %4687 = vmatpush.bf16.msra.mxu0 %v4276
      %4688 = vmatpush.bf16.msra.mxu0 %v4273
      %4689 = vmatpush.bf16.msra.mxu0 %v4270
      %4690 = vmatpush.bf16.msra.mxu0 %v4267
      %4691 = vmatpush.bf16.msra.mxu0 %v4264
      %4692 = vmatpush.bf16.msra.mxu0 %v4261
      %4693 = vmatpush.bf16.msra.mxu0 %v4258
      %4694 = vmatpush.bf16.msra.mxu0 %v4255
      %4695 = vmatmul.bf16.gmra.mxu0 %v3743
      %v4696 = vpop.f32.mrf.mxu0
      %v4697 = vadd.f32 %v4668, %v4696
      %v4698 = vpop.f32.mrf.mxu0
      %v4699 = vadd.f32 %v4670, %v4698
      %4700 = vmatmul.bf16.gmra.mxu0 %v3747
      %v4701 = vpop.f32.mrf.mxu0
      %v4702 = vadd.f32 %v4673, %v4701
      %v4703 = vpop.f32.mrf.mxu0
      %v4704 = vadd.f32 %v4675, %v4703
      %4705 = vmatmul.bf16.gmra.mxu0 %v3751
      %v4706 = vpop.f32.mrf.mxu0
      %v4707 = vadd.f32 %v4678, %v4706
      %v4708 = vpop.f32.mrf.mxu0
      %v4709 = vadd.f32 %v4680, %v4708
      %4710 = vmatmul.bf16.gmra.mxu0 %v3755
      %v4711 = vpop.f32.mrf.mxu0
      %v4712 = vadd.f32 %v4683, %v4711
      %v4713 = vpop.f32.mrf.mxu0
      %v4714 = vadd.f32 %v4685, %v4713
      %4715 = vdwg.mxu0
      %4716 = vmatpush.bf16.msra.mxu0 %v4300
      %4717 = vmatpush.bf16.msra.mxu0 %v4297
      %4718 = vmatpush.bf16.msra.mxu0 %v4294
      %4719 = vmatpush.bf16.msra.mxu0 %v4291
      %4720 = vmatpush.bf16.msra.mxu0 %v4288
      %4721 = vmatpush.bf16.msra.mxu0 %v4285
      %4722 = vmatpush.bf16.msra.mxu0 %v4282
      %4723 = vmatpush.bf16.msra.mxu0 %v4279
      %4724 = vmatmul.bf16.gmra.mxu0 %v3744
      %v4725 = vpop.f32.mrf.mxu0
      %v4726 = vadd.f32 %v4697, %v4725
      %v4727 = vpop.f32.mrf.mxu0
      %v4728 = vadd.f32 %v4699, %v4727
      %4729 = vmatmul.bf16.gmra.mxu0 %v3748
      %v4730 = vpop.f32.mrf.mxu0
      %v4731 = vadd.f32 %v4702, %v4730
      %v4732 = vpop.f32.mrf.mxu0
      %v4733 = vadd.f32 %v4704, %v4732
      %4734 = vmatmul.bf16.gmra.mxu0 %v3752
      %v4735 = vpop.f32.mrf.mxu0
      %v4736 = vadd.f32 %v4707, %v4735
      %v4737 = vpop.f32.mrf.mxu0
      %v4738 = vadd.f32 %v4709, %v4737
      %4739 = vmatmul.bf16.gmra.mxu0 %v3756
      %v4740 = vpop.f32.mrf.mxu0
      %v4741 = vadd.f32 %v4712, %v4740
      %v4742 = vpop.f32.mrf.mxu0
      %v4743 = vadd.f32 %v4714, %v4742
      %4744 = vdwg.mxu0
      %v4745 = vld [vmem:[%s10] sm:$0x7]
      %v4746 = vld [vmem:[%s6] sm:$0xf]
      %v4747 = vld [vmem:[%s6 + $0x4] sm:$0xf]
      %v4748 = vld [vmem:[%s6 + $0x8] sm:$0xf]
      %v4749 = vld [vmem:[%s6 + $0xc] sm:$0xf]
      %v4750 = vld [vmem:[%s6 + $0x10] sm:$0xf]
      %v4751 = vld [vmem:[%s6 + $0x14] sm:$0xf]
      %v4752 = vld [vmem:[%s6 + $0x18] sm:$0xf]
      %v4753 = vld [vmem:[%s6 + $0x1c] sm:$0xf]
      %v4754 = vpack.c.bf16 %v4496, %v4494
      %v4755 = vpack.c.bf16 %v4612, %v4610
      %v4756 = vpack.c.bf16 %v4728, %v4726
      %v4757 = vpack.c.bf16 %v4501, %v4499
      %v4758 = vpack.c.bf16 %v4617, %v4615
      %v4759 = vpack.c.bf16 %v4733, %v4731
      %v4760 = vpack.c.bf16 %v4506, %v4504
      %v4761 = vpack.c.bf16 %v4622, %v4620
      %v4762 = vpack.c.bf16 %v4738, %v4736
      %v4763 = vpack.c.bf16 %v4511, %v4509
      %v4764 = vpack.c.bf16 %v4627, %v4625
      %v4765 = vpack.c.bf16 %v4743, %v4741
      %v4766 = vld [vmem:[%s8] sm:$0xff]
      %v4767 = vld [vmem:[%s8 + $0x8] sm:$0xff]
      %v4768 = vld [vmem:[%s8 + $0x10] sm:$0xff]
      %v4769 = vld [vmem:[%s8 + $0x18] sm:$0xff]
      %v4770 = vld [vmem:[%s8 + $0x20] sm:$0xff]
      %v4771 = vld [vmem:[%s8 + $0x28] sm:$0xff]
      %v4772 = vld [vmem:[%s8 + $0x30] sm:$0xff]
      %v4773 = vld [vmem:[%s8 + $0x38] sm:$0xff]
      %4775 = vset.pattern.permute.xlu0 0
      %4776 = vperm.xlu0 %4775, %v4766
      %v4777 = vpop.permute.xlu0 %4776
      %4780 = vset.pattern.permute.xlu0 0
      %4781 = vperm.xlu0 %4780, %v4767
      %v4782 = vpop.permute.xlu0 %4781
      %4785 = vset.pattern.permute.xlu0 0
      %4786 = vperm.xlu0 %4785, %v4768
      %v4787 = vpop.permute.xlu0 %4786
      %4790 = vset.pattern.permute.xlu0 0
      %4791 = vperm.xlu0 %4790, %v4769
      %v4792 = vpop.permute.xlu0 %4791
      %4795 = vset.pattern.permute.xlu0 0
      %4796 = vperm.xlu0 %4795, %v4770
      %v4797 = vpop.permute.xlu0 %4796
      %4800 = vset.pattern.permute.xlu0 0
      %4801 = vperm.xlu0 %4800, %v4771
      %v4802 = vpop.permute.xlu0 %4801
      %4805 = vset.pattern.permute.xlu0 0
      %4806 = vperm.xlu0 %4805, %v4772
      %v4807 = vpop.permute.xlu0 %4806
      %4810 = vset.pattern.permute.xlu0 0
      %4811 = vperm.xlu0 %4810, %v4773
      %v4812 = vpop.permute.xlu0 %4811
      %v4822 = vunpack.c.l.b16 %v4746
      %v4823 = vunpack.c.l.b16 %v4747
      %v4824 = vunpack.c.l.b16 %v4748
      %v4825 = vunpack.c.l.b16 %v4749
      %v4826 = vunpack.c.l.b16 %v4750
      %v4827 = vunpack.c.l.b16 %v4751
      %v4828 = vunpack.c.l.b16 %v4752
      %v4829 = vunpack.c.l.b16 %v4753
      %v4830 = vpack.c.b16 %v4823, %v4822
      %v4831 = vpack.c.b16 %v4825, %v4824
      %v4832 = vpack.c.b16 %v4827, %v4826
      %v4833 = vpack.c.b16 %v4829, %v4828
      %v4835 = vsel %vm872, %v4830, 0
      %v4838 = vsel %vm872, %v4831, 0
      %v4841 = vsel %vm872, %v4832, 0
      %v4844 = vsel %vm872, %v4833, 0
      %4846 = vmatpush.bf16.msra.mxu0 0
      %4847 = vmatpush.bf16.msra.mxu0 0
      %4848 = vmatpush.bf16.msra.mxu0 0
      %4849 = vmatpush.bf16.msra.mxu0 0
      %4850 = vmatpush.bf16.msra.mxu0 %v4763
      %4851 = vmatpush.bf16.msra.mxu0 %v4760
      %4852 = vmatpush.bf16.msra.mxu0 %v4757
      %4853 = vmatpush.bf16.msra.mxu0 %v4754
      %4854 = vmatmul.bf16.gmra.mxu0 %v4835
      %v4855 = vpop.f32.mrf.mxu0
      %v4856 = vadd.f32 %v4777, %v4855
      %v4857 = vpop.f32.mrf.mxu0
      %v4858 = vadd.f32 %v4782, %v4857
      %4859 = vmatmul.bf16.gmra.mxu0 %v4838
      %v4860 = vpop.f32.mrf.mxu0
      %v4861 = vadd.f32 %v4787, %v4860
      %v4862 = vpop.f32.mrf.mxu0
      %v4863 = vadd.f32 %v4792, %v4862
      %4864 = vmatmul.bf16.gmra.mxu0 %v4841
      %v4865 = vpop.f32.mrf.mxu0
      %v4866 = vadd.f32 %v4797, %v4865
      %v4867 = vpop.f32.mrf.mxu0
      %v4868 = vadd.f32 %v4802, %v4867
      %4869 = vmatmul.bf16.gmra.mxu0 %v4844
      %v4870 = vpop.f32.mrf.mxu0
      %v4871 = vadd.f32 %v4807, %v4870
      %v4872 = vpop.f32.mrf.mxu0
      %v4873 = vadd.f32 %v4812, %v4872
      %4874 = vdwg.mxu0
      %4875 = vmatpush.bf16.msra.mxu0 0
      %4876 = vmatpush.bf16.msra.mxu0 0
      %4877 = vmatpush.bf16.msra.mxu0 0
      %4878 = vmatpush.bf16.msra.mxu0 0
      %4879 = vmatpush.bf16.msra.mxu0 %v4764
      %4880 = vmatpush.bf16.msra.mxu0 %v4761
      %4881 = vmatpush.bf16.msra.mxu0 %v4758
      %4882 = vmatpush.bf16.msra.mxu0 %v4755
      %4883 = vmatmul.bf16.gmra.mxu0 %v4835
      %v4884 = vpop.f32.mrf.mxu0
      %v4885 = vadd.f32 %v4777, %v4884
      %v4886 = vpop.f32.mrf.mxu0
      %v4887 = vadd.f32 %v4782, %v4886
      %4888 = vmatmul.bf16.gmra.mxu0 %v4838
      %v4889 = vpop.f32.mrf.mxu0
      %v4890 = vadd.f32 %v4787, %v4889
      %v4891 = vpop.f32.mrf.mxu0
      %v4892 = vadd.f32 %v4792, %v4891
      %4893 = vmatmul.bf16.gmra.mxu0 %v4841
      %v4894 = vpop.f32.mrf.mxu0
      %v4895 = vadd.f32 %v4797, %v4894
      %v4896 = vpop.f32.mrf.mxu0
      %v4897 = vadd.f32 %v4802, %v4896
      %4898 = vmatmul.bf16.gmra.mxu0 %v4844
      %v4899 = vpop.f32.mrf.mxu0
      %v4900 = vadd.f32 %v4807, %v4899
      %v4901 = vpop.f32.mrf.mxu0
      %v4902 = vadd.f32 %v4812, %v4901
      %4903 = vdwg.mxu0
      %4904 = vmatpush.bf16.msra.mxu0 0
      %4905 = vmatpush.bf16.msra.mxu0 0
      %4906 = vmatpush.bf16.msra.mxu0 0
      %4907 = vmatpush.bf16.msra.mxu0 0
      %4908 = vmatpush.bf16.msra.mxu0 %v4765
      %4909 = vmatpush.bf16.msra.mxu0 %v4762
      %4910 = vmatpush.bf16.msra.mxu0 %v4759
      %4911 = vmatpush.bf16.msra.mxu0 %v4756
      %4912 = vmatmul.bf16.gmra.mxu0 %v4835
      %v4913 = vpop.f32.mrf.mxu0
      %v4914 = vadd.f32 %v4777, %v4913
      %v4915 = vpop.f32.mrf.mxu0
      %v4916 = vadd.f32 %v4782, %v4915
      %4917 = vmatmul.bf16.gmra.mxu0 %v4838
      %v4918 = vpop.f32.mrf.mxu0
      %v4919 = vadd.f32 %v4787, %v4918
      %v4920 = vpop.f32.mrf.mxu0
      %v4921 = vadd.f32 %v4792, %v4920
      %4922 = vmatmul.bf16.gmra.mxu0 %v4841
      %v4923 = vpop.f32.mrf.mxu0
      %v4924 = vadd.f32 %v4797, %v4923
      %v4925 = vpop.f32.mrf.mxu0
      %v4926 = vadd.f32 %v4802, %v4925
      %4927 = vmatmul.bf16.gmra.mxu0 %v4844
      %v4928 = vpop.f32.mrf.mxu0
      %v4929 = vadd.f32 %v4807, %v4928
      %v4930 = vpop.f32.mrf.mxu0
      %v4931 = vadd.f32 %v4812, %v4930
      %4932 = vdwg.mxu0
      %v4934 = vperm.slane %v4745, 0
      %v4935 = vperm.slane %v4745, 1
      %v4936 = vperm.slane %v4745, 2
      %v4940 = vmul.f32 %v4856, %v4934
      %v4941 = vmul.f32 %v4885, %v4935
      %v4942 = vmul.f32 %v4914, %v4936
      %v4943 = vmul.f32 %v4858, %v4934
      %v4944 = vmul.f32 %v4887, %v4935
      %v4945 = vmul.f32 %v4916, %v4936
      %v4946 = vmul.f32 %v4861, %v4934
      %v4947 = vmul.f32 %v4890, %v4935
      %v4948 = vmul.f32 %v4919, %v4936
      %v4949 = vmul.f32 %v4863, %v4934
      %v4950 = vmul.f32 %v4892, %v4935
      %v4951 = vmul.f32 %v4921, %v4936
      %v4952 = vmul.f32 %v4866, %v4934
      %v4953 = vmul.f32 %v4895, %v4935
      %v4954 = vmul.f32 %v4924, %v4936
      %v4955 = vmul.f32 %v4868, %v4934
      %v4956 = vmul.f32 %v4897, %v4935
      %v4957 = vmul.f32 %v4926, %v4936
      %v4958 = vmul.f32 %v4871, %v4934
      %v4959 = vmul.f32 %v4900, %v4935
      %v4960 = vmul.f32 %v4929, %v4936
      %v4961 = vmul.f32 %v4873, %v4934
      %v4962 = vmul.f32 %v4902, %v4935
      %v4963 = vmul.f32 %v4931, %v4936
      %v4964 = vld [vmem:[%s7] sm:$0xff]
      %v4965 = vld [vmem:[%s7 + $0x8] sm:$0xff]
      %v4966 = vld [vmem:[%s7 + $0x10] sm:$0xff]
      %v4967 = vld [vmem:[%s7 + $0x18] sm:$0xff]
      %v4968 = vld [vmem:[%s7 + $0x20] sm:$0xff]
      %v4969 = vld [vmem:[%s7 + $0x28] sm:$0xff]
      %v4970 = vld [vmem:[%s7 + $0x30] sm:$0xff]
      %v4971 = vld [vmem:[%s7 + $0x38] sm:$0xff]
      %s4972 = scalar_lea.vmem %s8, 64
      %v4973 = vld [vmem:[%s4972] sm:$0xff]
      %v4974 = vld [vmem:[%s4972 + $0x8] sm:$0xff]
      %v4975 = vld [vmem:[%s4972 + $0x10] sm:$0xff]
      %v4976 = vld [vmem:[%s4972 + $0x18] sm:$0xff]
      %v4977 = vld [vmem:[%s4972 + $0x20] sm:$0xff]
      %v4978 = vld [vmem:[%s4972 + $0x28] sm:$0xff]
      %v4979 = vld [vmem:[%s4972 + $0x30] sm:$0xff]
      %v4980 = vld [vmem:[%s4972 + $0x38] sm:$0xff]
      %4981 = vrot.lane.b32.xlu0 %v4940, 1
      %v4982 = vpop.permute.xlu0 %4981
      %4983 = vrot.lane.b32.xlu0 %v4943, 1
      %v4984 = vpop.permute.xlu0 %4983
      %4985 = vrot.lane.b32.xlu0 %v4946, 1
      %v4986 = vpop.permute.xlu0 %4985
      %4987 = vrot.lane.b32.xlu0 %v4949, 1
      %v4988 = vpop.permute.xlu0 %4987
      %4989 = vrot.lane.b32.xlu0 %v4952, 1
      %v4990 = vpop.permute.xlu0 %4989
      %4991 = vrot.lane.b32.xlu0 %v4955, 1
      %v4992 = vpop.permute.xlu0 %4991
      %4993 = vrot.lane.b32.xlu0 %v4958, 1
      %v4994 = vpop.permute.xlu0 %4993
      %4995 = vrot.lane.b32.xlu0 %v4961, 1
      %v4996 = vpop.permute.xlu0 %4995
      %4997 = vrot.lane.b32.xlu0 %v4941, 1
      %v4998 = vpop.permute.xlu0 %4997
      %4999 = vrot.lane.b32.xlu0 %v4944, 1
      %v5000 = vpop.permute.xlu0 %4999
      %5001 = vrot.lane.b32.xlu0 %v4947, 1
      %v5002 = vpop.permute.xlu0 %5001
      %5003 = vrot.lane.b32.xlu0 %v4950, 1
      %v5004 = vpop.permute.xlu0 %5003
      %5005 = vrot.lane.b32.xlu0 %v4953, 1
      %v5006 = vpop.permute.xlu0 %5005
      %5007 = vrot.lane.b32.xlu0 %v4956, 1
      %v5008 = vpop.permute.xlu0 %5007
      %5009 = vrot.lane.b32.xlu0 %v4959, 1
      %v5010 = vpop.permute.xlu0 %5009
      %5011 = vrot.lane.b32.xlu0 %v4962, 1
      %v5012 = vpop.permute.xlu0 %5011
      %5013 = vrot.lane.b32.xlu0 %v4942, 1
      %v5014 = vpop.permute.xlu0 %5013
      %5015 = vrot.lane.b32.xlu0 %v4945, 1
      %v5016 = vpop.permute.xlu0 %5015
      %5017 = vrot.lane.b32.xlu0 %v4948, 1
      %v5018 = vpop.permute.xlu0 %5017
      %5019 = vrot.lane.b32.xlu0 %v4951, 1
      %v5020 = vpop.permute.xlu0 %5019
      %5021 = vrot.lane.b32.xlu0 %v4954, 1
      %v5022 = vpop.permute.xlu0 %5021
      %5023 = vrot.lane.b32.xlu0 %v4957, 1
      %v5024 = vpop.permute.xlu0 %5023
      %5025 = vrot.lane.b32.xlu0 %v4960, 1
      %v5026 = vpop.permute.xlu0 %5025
      %5027 = vrot.lane.b32.xlu0 %v4963, 1
      %v5028 = vpop.permute.xlu0 %5027
      %v5029 = vsel %vm1125, %v4998, %v5014
      %v5030 = vsel %vm1125, %v5000, %v5016
      %v5031 = vsel %vm1125, %v5002, %v5018
      %v5032 = vsel %vm1125, %v5004, %v5020
      %v5033 = vsel %vm1125, %v5006, %v5022
      %v5034 = vsel %vm1125, %v5008, %v5024
      %v5035 = vsel %vm1125, %v5010, %v5026
      %v5036 = vsel %vm1125, %v5012, %v5028
      %v5037 = vsel %vm1125, %v4982, %v4998
      %v5038 = vsel %vm1125, %v4984, %v5000
      %v5039 = vsel %vm1125, %v4986, %v5002
      %v5040 = vsel %vm1125, %v4988, %v5004
      %v5041 = vsel %vm1125, %v4990, %v5006
      %v5042 = vsel %vm1125, %v4992, %v5008
      %v5043 = vsel %vm1125, %v4994, %v5010
      %v5044 = vsel %vm1125, %v4996, %v5012
      %v5045 = vsel %vm1125, %v5014, %v4982
      %v5046 = vsel %vm1125, %v5016, %v4984
      %v5047 = vsel %vm1125, %v5018, %v4986
      %v5048 = vsel %vm1125, %v5020, %v4988
      %v5049 = vsel %vm1125, %v5022, %v4990
      %v5050 = vsel %vm1125, %v5024, %v4992
      %v5051 = vsel %vm1125, %v5026, %v4994
      %v5052 = vsel %vm1125, %v5028, %v4996
      %5053 = vrot.lane.b32.xlu0 %v4940, 127
      %v5054 = vpop.permute.xlu0 %5053
      %5055 = vrot.lane.b32.xlu0 %v4943, 127
      %v5056 = vpop.permute.xlu0 %5055
      %5057 = vrot.lane.b32.xlu0 %v4946, 127
      %v5058 = vpop.permute.xlu0 %5057
      %5059 = vrot.lane.b32.xlu0 %v4949, 127
      %v5060 = vpop.permute.xlu0 %5059
      %5061 = vrot.lane.b32.xlu0 %v4952, 127
      %v5062 = vpop.permute.xlu0 %5061
      %5063 = vrot.lane.b32.xlu0 %v4955, 127
      %v5064 = vpop.permute.xlu0 %5063
      %5065 = vrot.lane.b32.xlu0 %v4958, 127
      %v5066 = vpop.permute.xlu0 %5065
      %5067 = vrot.lane.b32.xlu0 %v4961, 127
      %v5068 = vpop.permute.xlu0 %5067
      %5069 = vrot.lane.b32.xlu0 %v4941, 127
      %v5070 = vpop.permute.xlu0 %5069
      %5071 = vrot.lane.b32.xlu0 %v4944, 127
      %v5072 = vpop.permute.xlu0 %5071
      %5073 = vrot.lane.b32.xlu0 %v4947, 127
      %v5074 = vpop.permute.xlu0 %5073
      %5075 = vrot.lane.b32.xlu0 %v4950, 127
      %v5076 = vpop.permute.xlu0 %5075
      %5077 = vrot.lane.b32.xlu0 %v4953, 127
      %v5078 = vpop.permute.xlu0 %5077
      %5079 = vrot.lane.b32.xlu0 %v4956, 127
      %v5080 = vpop.permute.xlu0 %5079
      %5081 = vrot.lane.b32.xlu0 %v4959, 127
      %v5082 = vpop.permute.xlu0 %5081
      %5083 = vrot.lane.b32.xlu0 %v4962, 127
      %v5084 = vpop.permute.xlu0 %5083
      %5085 = vrot.lane.b32.xlu0 %v4942, 127
      %v5086 = vpop.permute.xlu0 %5085
      %5087 = vrot.lane.b32.xlu0 %v4945, 127
      %v5088 = vpop.permute.xlu0 %5087
      %5089 = vrot.lane.b32.xlu0 %v4948, 127
      %v5090 = vpop.permute.xlu0 %5089
      %5091 = vrot.lane.b32.xlu0 %v4951, 127
      %v5092 = vpop.permute.xlu0 %5091
      %5093 = vrot.lane.b32.xlu0 %v4954, 127
      %v5094 = vpop.permute.xlu0 %5093
      %5095 = vrot.lane.b32.xlu0 %v4957, 127
      %v5096 = vpop.permute.xlu0 %5095
      %5097 = vrot.lane.b32.xlu0 %v4960, 127
      %v5098 = vpop.permute.xlu0 %5097
      %5099 = vrot.lane.b32.xlu0 %v4963, 127
      %v5100 = vpop.permute.xlu0 %5099
      %v5101 = vsel %vm1222, %v5070, %v5086
      %v5102 = vsel %vm1222, %v5072, %v5088
      %v5103 = vsel %vm1222, %v5074, %v5090
      %v5104 = vsel %vm1222, %v5076, %v5092
      %v5105 = vsel %vm1222, %v5078, %v5094
      %v5106 = vsel %vm1222, %v5080, %v5096
      %v5107 = vsel %vm1222, %v5082, %v5098
      %v5108 = vsel %vm1222, %v5084, %v5100
      %v5109 = vsel %vm1222, %v5054, %v5070
      %v5110 = vsel %vm1222, %v5056, %v5072
      %v5111 = vsel %vm1222, %v5058, %v5074
      %v5112 = vsel %vm1222, %v5060, %v5076
      %v5113 = vsel %vm1222, %v5062, %v5078
      %v5114 = vsel %vm1222, %v5064, %v5080
      %v5115 = vsel %vm1222, %v5066, %v5082
      %v5116 = vsel %vm1222, %v5068, %v5084
      %v5117 = vsel %vm1222, %v5086, %v5054
      %v5118 = vsel %vm1222, %v5088, %v5056
      %v5119 = vsel %vm1222, %v5090, %v5058
      %v5120 = vsel %vm1222, %v5092, %v5060
      %v5121 = vsel %vm1222, %v5094, %v5062
      %v5122 = vsel %vm1222, %v5096, %v5064
      %v5123 = vsel %vm1222, %v5098, %v5066
      %v5124 = vsel %vm1222, %v5100, %v5068
      %v5125 = vpack.c.bf16 %v5046, %v5045
      %v5126 = vpack.c.bf16 %v5038, %v5037
      %v5127 = vpack.c.bf16 %v5030, %v5029
      %v5128 = vpack.c.bf16 %v5048, %v5047
      %v5129 = vpack.c.bf16 %v5040, %v5039
      %v5130 = vpack.c.bf16 %v5032, %v5031
      %v5131 = vpack.c.bf16 %v5050, %v5049
      %v5132 = vpack.c.bf16 %v5042, %v5041
      %v5133 = vpack.c.bf16 %v5034, %v5033
      %v5134 = vpack.c.bf16 %v5052, %v5051
      %v5135 = vpack.c.bf16 %v5044, %v5043
      %v5136 = vpack.c.bf16 %v5036, %v5035
      %v5137 = vpack.c.bf16 %v4943, %v4940
      %v5138 = vpack.c.bf16 %v4944, %v4941
      %v5139 = vpack.c.bf16 %v4945, %v4942
      %v5140 = vpack.c.bf16 %v4949, %v4946
      %v5141 = vpack.c.bf16 %v4950, %v4947
      %v5142 = vpack.c.bf16 %v4951, %v4948
      %v5143 = vpack.c.bf16 %v4955, %v4952
      %v5144 = vpack.c.bf16 %v4956, %v4953
      %v5145 = vpack.c.bf16 %v4957, %v4954
      %v5146 = vpack.c.bf16 %v4961, %v4958
      %v5147 = vpack.c.bf16 %v4962, %v4959
      %v5148 = vpack.c.bf16 %v4963, %v4960
      %v5149 = vpack.c.bf16 %v5110, %v5109
      %v5150 = vpack.c.bf16 %v5102, %v5101
      %v5151 = vpack.c.bf16 %v5118, %v5117
      %v5152 = vpack.c.bf16 %v5112, %v5111
      %v5153 = vpack.c.bf16 %v5104, %v5103
      %v5154 = vpack.c.bf16 %v5120, %v5119
      %v5155 = vpack.c.bf16 %v5114, %v5113
      %v5156 = vpack.c.bf16 %v5106, %v5105
      %v5157 = vpack.c.bf16 %v5122, %v5121
      %v5158 = vpack.c.bf16 %v5116, %v5115
      %v5159 = vpack.c.bf16 %v5108, %v5107
      %v5160 = vpack.c.bf16 %v5124, %v5123
      %5162 = vset.pattern.permute.xlu0 0
      %5163 = vperm.xlu0 %5162, %v4973
      %v5164 = vpop.permute.xlu0 %5163
      %5167 = vset.pattern.permute.xlu0 0
      %5168 = vperm.xlu0 %5167, %v4974
      %v5169 = vpop.permute.xlu0 %5168
      %5172 = vset.pattern.permute.xlu0 0
      %5173 = vperm.xlu0 %5172, %v4975
      %v5174 = vpop.permute.xlu0 %5173
      %5177 = vset.pattern.permute.xlu0 0
      %5178 = vperm.xlu0 %5177, %v4976
      %v5179 = vpop.permute.xlu0 %5178
      %5182 = vset.pattern.permute.xlu0 0
      %5183 = vperm.xlu0 %5182, %v4977
      %v5184 = vpop.permute.xlu0 %5183
      %5187 = vset.pattern.permute.xlu0 0
      %5188 = vperm.xlu0 %5187, %v4978
      %v5189 = vpop.permute.xlu0 %5188
      %5192 = vset.pattern.permute.xlu0 0
      %5193 = vperm.xlu0 %5192, %v4979
      %v5194 = vpop.permute.xlu0 %5193
      %5197 = vset.pattern.permute.xlu0 0
      %5198 = vperm.xlu0 %5197, %v4980
      %v5199 = vpop.permute.xlu0 %5198
      %v5209 = vunpack.c.l.b16 %v4964
      %v5210 = vunpack.c.h.b16 %v4964
      %v5211 = vunpack.c.l.b16 %v4965
      %v5212 = vunpack.c.h.b16 %v4965
      %v5213 = vunpack.c.l.b16 %v4966
      %v5214 = vunpack.c.h.b16 %v4966
      %v5215 = vunpack.c.l.b16 %v4967
      %v5216 = vunpack.c.h.b16 %v4967
      %v5217 = vunpack.c.l.b16 %v4968
      %v5218 = vunpack.c.h.b16 %v4968
      %v5219 = vunpack.c.l.b16 %v4969
      %v5220 = vunpack.c.h.b16 %v4969
      %v5221 = vunpack.c.l.b16 %v4970
      %v5222 = vunpack.c.h.b16 %v4970
      %v5223 = vunpack.c.l.b16 %v4971
      %v5224 = vunpack.c.h.b16 %v4971
      %v5225 = vpack.c.b16 %v5211, %v5209
      %v5226 = vpack.c.b16 %v5212, %v5210
      %v5227 = vpack.c.b16 %v5215, %v5213
      %v5228 = vpack.c.b16 %v5216, %v5214
      %v5229 = vpack.c.b16 %v5219, %v5217
      %v5230 = vpack.c.b16 %v5220, %v5218
      %v5231 = vpack.c.b16 %v5223, %v5221
      %v5232 = vpack.c.b16 %v5224, %v5222
      %v5238 = vsel %vm872, %v5226, 0
      %v5241 = vsel %vm872, %v5228, 0
      %v5244 = vsel %vm872, %v5230, 0
      %v5247 = vsel %vm872, %v5232, 0
      %5249 = vmatpush.bf16.msra.mxu0 %v5146
      %5250 = vmatpush.bf16.msra.mxu0 %v5143
      %5251 = vmatpush.bf16.msra.mxu0 %v5140
      %5252 = vmatpush.bf16.msra.mxu0 %v5137
      %5253 = vmatpush.bf16.msra.mxu0 %v5134
      %5254 = vmatpush.bf16.msra.mxu0 %v5131
      %5255 = vmatpush.bf16.msra.mxu0 %v5128
      %5256 = vmatpush.bf16.msra.mxu0 %v5125
      %5257 = vmatmul.bf16.gmra.mxu0 %v5225
      %v5258 = vpop.f32.mrf.mxu0
      %v5259 = vadd.f32 %v5164, %v5258
      %v5260 = vpop.f32.mrf.mxu0
      %v5261 = vadd.f32 %v5169, %v5260
      %5262 = vmatmul.bf16.gmra.mxu0 %v5227
      %v5263 = vpop.f32.mrf.mxu0
      %v5264 = vadd.f32 %v5174, %v5263
      %v5265 = vpop.f32.mrf.mxu0
      %v5266 = vadd.f32 %v5179, %v5265
      %5267 = vmatmul.bf16.gmra.mxu0 %v5229
      %v5268 = vpop.f32.mrf.mxu0
      %v5269 = vadd.f32 %v5184, %v5268
      %v5270 = vpop.f32.mrf.mxu0
      %v5271 = vadd.f32 %v5189, %v5270
      %5272 = vmatmul.bf16.gmra.mxu0 %v5231
      %v5273 = vpop.f32.mrf.mxu0
      %v5274 = vadd.f32 %v5194, %v5273
      %v5275 = vpop.f32.mrf.mxu0
      %v5276 = vadd.f32 %v5199, %v5275
      %5277 = vdwg.mxu0
      %5278 = vmatpush.bf16.msra.mxu0 0
      %5279 = vmatpush.bf16.msra.mxu0 0
      %5280 = vmatpush.bf16.msra.mxu0 0
      %5281 = vmatpush.bf16.msra.mxu0 0
      %5282 = vmatpush.bf16.msra.mxu0 %v5158
      %5283 = vmatpush.bf16.msra.mxu0 %v5155
      %5284 = vmatpush.bf16.msra.mxu0 %v5152
      %5285 = vmatpush.bf16.msra.mxu0 %v5149
      %5286 = vmatmul.bf16.gmra.mxu0 %v5238
      %v5287 = vpop.f32.mrf.mxu0
      %v5288 = vadd.f32 %v5259, %v5287
      %v5289 = vpop.f32.mrf.mxu0
      %v5290 = vadd.f32 %v5261, %v5289
      %5291 = vmatmul.bf16.gmra.mxu0 %v5241
      %v5292 = vpop.f32.mrf.mxu0
      %v5293 = vadd.f32 %v5264, %v5292
      %v5294 = vpop.f32.mrf.mxu0
      %v5295 = vadd.f32 %v5266, %v5294
      %5296 = vmatmul.bf16.gmra.mxu0 %v5244
      %v5297 = vpop.f32.mrf.mxu0
      %v5298 = vadd.f32 %v5269, %v5297
      %v5299 = vpop.f32.mrf.mxu0
      %v5300 = vadd.f32 %v5271, %v5299
      %5301 = vmatmul.bf16.gmra.mxu0 %v5247
      %v5302 = vpop.f32.mrf.mxu0
      %v5303 = vadd.f32 %v5274, %v5302
      %v5304 = vpop.f32.mrf.mxu0
      %v5305 = vadd.f32 %v5276, %v5304
      %5306 = vdwg.mxu0
      %5307 = vmatpush.bf16.msra.mxu0 %v5147
      %5308 = vmatpush.bf16.msra.mxu0 %v5144
      %5309 = vmatpush.bf16.msra.mxu0 %v5141
      %5310 = vmatpush.bf16.msra.mxu0 %v5138
      %5311 = vmatpush.bf16.msra.mxu0 %v5135
      %5312 = vmatpush.bf16.msra.mxu0 %v5132
      %5313 = vmatpush.bf16.msra.mxu0 %v5129
      %5314 = vmatpush.bf16.msra.mxu0 %v5126
      %5315 = vmatmul.bf16.gmra.mxu0 %v5225
      %v5316 = vpop.f32.mrf.mxu0
      %v5317 = vadd.f32 %v5164, %v5316
      %v5318 = vpop.f32.mrf.mxu0
      %v5319 = vadd.f32 %v5169, %v5318
      %5320 = vmatmul.bf16.gmra.mxu0 %v5227
      %v5321 = vpop.f32.mrf.mxu0
      %v5322 = vadd.f32 %v5174, %v5321
      %v5323 = vpop.f32.mrf.mxu0
      %v5324 = vadd.f32 %v5179, %v5323
      %5325 = vmatmul.bf16.gmra.mxu0 %v5229
      %v5326 = vpop.f32.mrf.mxu0
      %v5327 = vadd.f32 %v5184, %v5326
      %v5328 = vpop.f32.mrf.mxu0
      %v5329 = vadd.f32 %v5189, %v5328
      %5330 = vmatmul.bf16.gmra.mxu0 %v5231
      %v5331 = vpop.f32.mrf.mxu0
      %v5332 = vadd.f32 %v5194, %v5331
      %v5333 = vpop.f32.mrf.mxu0
      %v5334 = vadd.f32 %v5199, %v5333
      %5335 = vdwg.mxu0
      %5336 = vmatpush.bf16.msra.mxu0 0
      %5337 = vmatpush.bf16.msra.mxu0 0
      %5338 = vmatpush.bf16.msra.mxu0 0
      %5339 = vmatpush.bf16.msra.mxu0 0
      %5340 = vmatpush.bf16.msra.mxu0 %v5159
      %5341 = vmatpush.bf16.msra.mxu0 %v5156
      %5342 = vmatpush.bf16.msra.mxu0 %v5153
      %5343 = vmatpush.bf16.msra.mxu0 %v5150
      %5344 = vmatmul.bf16.gmra.mxu0 %v5238
      %v5345 = vpop.f32.mrf.mxu0
      %v5346 = vadd.f32 %v5317, %v5345
      %v5347 = vpop.f32.mrf.mxu0
      %v5348 = vadd.f32 %v5319, %v5347
      %5349 = vmatmul.bf16.gmra.mxu0 %v5241
      %v5350 = vpop.f32.mrf.mxu0
      %v5351 = vadd.f32 %v5322, %v5350
      %v5352 = vpop.f32.mrf.mxu0
      %v5353 = vadd.f32 %v5324, %v5352
      %5354 = vmatmul.bf16.gmra.mxu0 %v5244
      %v5355 = vpop.f32.mrf.mxu0
      %v5356 = vadd.f32 %v5327, %v5355
      %v5357 = vpop.f32.mrf.mxu0
      %v5358 = vadd.f32 %v5329, %v5357
      %5359 = vmatmul.bf16.gmra.mxu0 %v5247
      %v5360 = vpop.f32.mrf.mxu0
      %v5361 = vadd.f32 %v5332, %v5360
      %v5362 = vpop.f32.mrf.mxu0
      %v5363 = vadd.f32 %v5334, %v5362
      %5364 = vdwg.mxu0
      %5365 = vmatpush.bf16.msra.mxu0 %v5148
      %5366 = vmatpush.bf16.msra.mxu0 %v5145
      %5367 = vmatpush.bf16.msra.mxu0 %v5142
      %5368 = vmatpush.bf16.msra.mxu0 %v5139
      %5369 = vmatpush.bf16.msra.mxu0 %v5136
      %5370 = vmatpush.bf16.msra.mxu0 %v5133
      %5371 = vmatpush.bf16.msra.mxu0 %v5130
      %5372 = vmatpush.bf16.msra.mxu0 %v5127
      %5373 = vmatmul.bf16.gmra.mxu0 %v5225
      %v5374 = vpop.f32.mrf.mxu0
      %v5375 = vadd.f32 %v5164, %v5374
      %v5376 = vpop.f32.mrf.mxu0
      %v5377 = vadd.f32 %v5169, %v5376
      %5378 = vmatmul.bf16.gmra.mxu0 %v5227
      %v5379 = vpop.f32.mrf.mxu0
      %v5380 = vadd.f32 %v5174, %v5379
      %v5381 = vpop.f32.mrf.mxu0
      %v5382 = vadd.f32 %v5179, %v5381
      %5383 = vmatmul.bf16.gmra.mxu0 %v5229
      %v5384 = vpop.f32.mrf.mxu0
      %v5385 = vadd.f32 %v5184, %v5384
      %v5386 = vpop.f32.mrf.mxu0
      %v5387 = vadd.f32 %v5189, %v5386
      %5388 = vmatmul.bf16.gmra.mxu0 %v5231
      %v5389 = vpop.f32.mrf.mxu0
      %v5390 = vadd.f32 %v5194, %v5389
      %v5391 = vpop.f32.mrf.mxu0
      %v5392 = vadd.f32 %v5199, %v5391
      %5393 = vdwg.mxu0
      %5394 = vmatpush.bf16.msra.mxu0 0
      %5395 = vmatpush.bf16.msra.mxu0 0
      %5396 = vmatpush.bf16.msra.mxu0 0
      %5397 = vmatpush.bf16.msra.mxu0 0
      %5398 = vmatpush.bf16.msra.mxu0 %v5160
      %5399 = vmatpush.bf16.msra.mxu0 %v5157
      %5400 = vmatpush.bf16.msra.mxu0 %v5154
      %5401 = vmatpush.bf16.msra.mxu0 %v5151
      %5402 = vmatmul.bf16.gmra.mxu0 %v5238
      %v5403 = vpop.f32.mrf.mxu0
      %v5404 = vadd.f32 %v5375, %v5403
      %v5405 = vpop.f32.mrf.mxu0
      %v5406 = vadd.f32 %v5377, %v5405
      %5407 = vmatmul.bf16.gmra.mxu0 %v5241
      %v5408 = vpop.f32.mrf.mxu0
      %v5409 = vadd.f32 %v5380, %v5408
      %v5410 = vpop.f32.mrf.mxu0
      %v5411 = vadd.f32 %v5382, %v5410
      %5412 = vmatmul.bf16.gmra.mxu0 %v5244
      %v5413 = vpop.f32.mrf.mxu0
      %v5414 = vadd.f32 %v5385, %v5413
      %v5415 = vpop.f32.mrf.mxu0
      %v5416 = vadd.f32 %v5387, %v5415
      %5417 = vmatmul.bf16.gmra.mxu0 %v5247
      %v5418 = vpop.f32.mrf.mxu0
      %v5419 = vadd.f32 %v5390, %v5418
      %v5420 = vpop.f32.mrf.mxu0
      %v5421 = vadd.f32 %v5392, %v5420
      %5422 = vdwg.mxu0
      %v5423 = vmax.f32 %v5288, 0.0
      %v5424 = vmax.f32 %v5346, 0.0
      %v5425 = vmax.f32 %v5404, 0.0
      %v5426 = vmax.f32 %v5290, 0.0
      %v5427 = vmax.f32 %v5348, 0.0
      %v5428 = vmax.f32 %v5406, 0.0
      %v5429 = vmax.f32 %v5293, 0.0
      %v5430 = vmax.f32 %v5351, 0.0
      %v5431 = vmax.f32 %v5409, 0.0
      %v5432 = vmax.f32 %v5295, 0.0
      %v5433 = vmax.f32 %v5353, 0.0
      %v5434 = vmax.f32 %v5411, 0.0
      %v5435 = vmax.f32 %v5298, 0.0
      %v5436 = vmax.f32 %v5356, 0.0
      %v5437 = vmax.f32 %v5414, 0.0
      %v5438 = vmax.f32 %v5300, 0.0
      %v5439 = vmax.f32 %v5358, 0.0
      %v5440 = vmax.f32 %v5416, 0.0
      %v5441 = vmax.f32 %v5303, 0.0
      %v5442 = vmax.f32 %v5361, 0.0
      %v5443 = vmax.f32 %v5419, 0.0
      %v5444 = vmax.f32 %v5305, 0.0
      %v5445 = vmax.f32 %v5363, 0.0
      %v5446 = vmax.f32 %v5421, 0.0
      %v5447 = vmul.f32 %v5423, %v4934
      %v5448 = vmul.f32 %v5424, %v4935
      %v5449 = vmul.f32 %v5425, %v4936
      %v5450 = vmul.f32 %v5426, %v4934
      %v5451 = vmul.f32 %v5427, %v4935
      %v5452 = vmul.f32 %v5428, %v4936
      %v5453 = vmul.f32 %v5429, %v4934
      %v5454 = vmul.f32 %v5430, %v4935
      %v5455 = vmul.f32 %v5431, %v4936
      %v5456 = vmul.f32 %v5432, %v4934
      %v5457 = vmul.f32 %v5433, %v4935
      %v5458 = vmul.f32 %v5434, %v4936
      %v5459 = vmul.f32 %v5435, %v4934
      %v5460 = vmul.f32 %v5436, %v4935
      %v5461 = vmul.f32 %v5437, %v4936
      %v5462 = vmul.f32 %v5438, %v4934
      %v5463 = vmul.f32 %v5439, %v4935
      %v5464 = vmul.f32 %v5440, %v4936
      %v5465 = vmul.f32 %v5441, %v4934
      %v5466 = vmul.f32 %v5442, %v4935
      %v5467 = vmul.f32 %v5443, %v4936
      %v5468 = vmul.f32 %v5444, %v4934
      %v5469 = vmul.f32 %v5445, %v4935
      %v5470 = vmul.f32 %v5446, %v4936
      %s5471 = scalar_lea.vmem %s7, 64
      %v5472 = vld [vmem:[%s5471] sm:$0xff]
      %v5473 = vld [vmem:[%s5471 + $0x8] sm:$0xff]
      %v5474 = vld [vmem:[%s5471 + $0x10] sm:$0xff]
      %v5475 = vld [vmem:[%s5471 + $0x18] sm:$0xff]
      %v5476 = vld [vmem:[%s5471 + $0x20] sm:$0xff]
      %v5477 = vld [vmem:[%s5471 + $0x28] sm:$0xff]
      %v5478 = vld [vmem:[%s5471 + $0x30] sm:$0xff]
      %v5479 = vld [vmem:[%s5471 + $0x38] sm:$0xff]
      %s5480 = scalar_lea.vmem %s8, 128
      %v5481 = vld [vmem:[%s5480] sm:$0xff]
      %v5482 = vld [vmem:[%s5480 + $0x8] sm:$0xff]
      %v5483 = vld [vmem:[%s5480 + $0x10] sm:$0xff]
      %v5484 = vld [vmem:[%s5480 + $0x18] sm:$0xff]
      %v5485 = vld [vmem:[%s5480 + $0x20] sm:$0xff]
      %v5486 = vld [vmem:[%s5480 + $0x28] sm:$0xff]
      %v5487 = vld [vmem:[%s5480 + $0x30] sm:$0xff]
      %v5488 = vld [vmem:[%s5480 + $0x38] sm:$0xff]
      %5489 = vrot.lane.b32.xlu0 %v5447, 1
      %v5490 = vpop.permute.xlu0 %5489
      %5491 = vrot.lane.b32.xlu0 %v5450, 1
      %v5492 = vpop.permute.xlu0 %5491
      %5493 = vrot.lane.b32.xlu0 %v5453, 1
      %v5494 = vpop.permute.xlu0 %5493
      %5495 = vrot.lane.b32.xlu0 %v5456, 1
      %v5496 = vpop.permute.xlu0 %5495
      %5497 = vrot.lane.b32.xlu0 %v5459, 1
      %v5498 = vpop.permute.xlu0 %5497
      %5499 = vrot.lane.b32.xlu0 %v5462, 1
      %v5500 = vpop.permute.xlu0 %5499
      %5501 = vrot.lane.b32.xlu0 %v5465, 1
      %v5502 = vpop.permute.xlu0 %5501
      %5503 = vrot.lane.b32.xlu0 %v5468, 1
      %v5504 = vpop.permute.xlu0 %5503
      %5505 = vrot.lane.b32.xlu0 %v5448, 1
      %v5506 = vpop.permute.xlu0 %5505
      %5507 = vrot.lane.b32.xlu0 %v5451, 1
      %v5508 = vpop.permute.xlu0 %5507
      %5509 = vrot.lane.b32.xlu0 %v5454, 1
      %v5510 = vpop.permute.xlu0 %5509
      %5511 = vrot.lane.b32.xlu0 %v5457, 1
      %v5512 = vpop.permute.xlu0 %5511
      %5513 = vrot.lane.b32.xlu0 %v5460, 1
      %v5514 = vpop.permute.xlu0 %5513
      %5515 = vrot.lane.b32.xlu0 %v5463, 1
      %v5516 = vpop.permute.xlu0 %5515
      %5517 = vrot.lane.b32.xlu0 %v5466, 1
      %v5518 = vpop.permute.xlu0 %5517
      %5519 = vrot.lane.b32.xlu0 %v5469, 1
      %v5520 = vpop.permute.xlu0 %5519
      %5521 = vrot.lane.b32.xlu0 %v5449, 1
      %v5522 = vpop.permute.xlu0 %5521
      %5523 = vrot.lane.b32.xlu0 %v5452, 1
      %v5524 = vpop.permute.xlu0 %5523
      %5525 = vrot.lane.b32.xlu0 %v5455, 1
      %v5526 = vpop.permute.xlu0 %5525
      %5527 = vrot.lane.b32.xlu0 %v5458, 1
      %v5528 = vpop.permute.xlu0 %5527
      %5529 = vrot.lane.b32.xlu0 %v5461, 1
      %v5530 = vpop.permute.xlu0 %5529
      %5531 = vrot.lane.b32.xlu0 %v5464, 1
      %v5532 = vpop.permute.xlu0 %5531
      %5533 = vrot.lane.b32.xlu0 %v5467, 1
      %v5534 = vpop.permute.xlu0 %5533
      %5535 = vrot.lane.b32.xlu0 %v5470, 1
      %v5536 = vpop.permute.xlu0 %5535
      %v5537 = vsel %vm1125, %v5506, %v5522
      %v5538 = vsel %vm1125, %v5508, %v5524
      %v5539 = vsel %vm1125, %v5510, %v5526
      %v5540 = vsel %vm1125, %v5512, %v5528
      %v5541 = vsel %vm1125, %v5514, %v5530
      %v5542 = vsel %vm1125, %v5516, %v5532
      %v5543 = vsel %vm1125, %v5518, %v5534
      %v5544 = vsel %vm1125, %v5520, %v5536
      %v5545 = vsel %vm1125, %v5490, %v5506
      %v5546 = vsel %vm1125, %v5492, %v5508
      %v5547 = vsel %vm1125, %v5494, %v5510
      %v5548 = vsel %vm1125, %v5496, %v5512
      %v5549 = vsel %vm1125, %v5498, %v5514
      %v5550 = vsel %vm1125, %v5500, %v5516
      %v5551 = vsel %vm1125, %v5502, %v5518
      %v5552 = vsel %vm1125, %v5504, %v5520
      %v5553 = vsel %vm1125, %v5522, %v5490
      %v5554 = vsel %vm1125, %v5524, %v5492
      %v5555 = vsel %vm1125, %v5526, %v5494
      %v5556 = vsel %vm1125, %v5528, %v5496
      %v5557 = vsel %vm1125, %v5530, %v5498
      %v5558 = vsel %vm1125, %v5532, %v5500
      %v5559 = vsel %vm1125, %v5534, %v5502
      %v5560 = vsel %vm1125, %v5536, %v5504
      %5561 = vrot.lane.b32.xlu0 %v5447, 127
      %v5562 = vpop.permute.xlu0 %5561
      %5563 = vrot.lane.b32.xlu0 %v5450, 127
      %v5564 = vpop.permute.xlu0 %5563
      %5565 = vrot.lane.b32.xlu0 %v5453, 127
      %v5566 = vpop.permute.xlu0 %5565
      %5567 = vrot.lane.b32.xlu0 %v5456, 127
      %v5568 = vpop.permute.xlu0 %5567
      %5569 = vrot.lane.b32.xlu0 %v5459, 127
      %v5570 = vpop.permute.xlu0 %5569
      %5571 = vrot.lane.b32.xlu0 %v5462, 127
      %v5572 = vpop.permute.xlu0 %5571
      %5573 = vrot.lane.b32.xlu0 %v5465, 127
      %v5574 = vpop.permute.xlu0 %5573
      %5575 = vrot.lane.b32.xlu0 %v5468, 127
      %v5576 = vpop.permute.xlu0 %5575
      %5577 = vrot.lane.b32.xlu0 %v5448, 127
      %v5578 = vpop.permute.xlu0 %5577
      %5579 = vrot.lane.b32.xlu0 %v5451, 127
      %v5580 = vpop.permute.xlu0 %5579
      %5581 = vrot.lane.b32.xlu0 %v5454, 127
      %v5582 = vpop.permute.xlu0 %5581
      %5583 = vrot.lane.b32.xlu0 %v5457, 127
      %v5584 = vpop.permute.xlu0 %5583
      %5585 = vrot.lane.b32.xlu0 %v5460, 127
      %v5586 = vpop.permute.xlu0 %5585
      %5587 = vrot.lane.b32.xlu0 %v5463, 127
      %v5588 = vpop.permute.xlu0 %5587
      %5589 = vrot.lane.b32.xlu0 %v5466, 127
      %v5590 = vpop.permute.xlu0 %5589
      %5591 = vrot.lane.b32.xlu0 %v5469, 127
      %v5592 = vpop.permute.xlu0 %5591
      %5593 = vrot.lane.b32.xlu0 %v5449, 127
      %v5594 = vpop.permute.xlu0 %5593
      %5595 = vrot.lane.b32.xlu0 %v5452, 127
      %v5596 = vpop.permute.xlu0 %5595
      %5597 = vrot.lane.b32.xlu0 %v5455, 127
      %v5598 = vpop.permute.xlu0 %5597
      %5599 = vrot.lane.b32.xlu0 %v5458, 127
      %v5600 = vpop.permute.xlu0 %5599
      %5601 = vrot.lane.b32.xlu0 %v5461, 127
      %v5602 = vpop.permute.xlu0 %5601
      %5603 = vrot.lane.b32.xlu0 %v5464, 127
      %v5604 = vpop.permute.xlu0 %5603
      %5605 = vrot.lane.b32.xlu0 %v5467, 127
      %v5606 = vpop.permute.xlu0 %5605
      %5607 = vrot.lane.b32.xlu0 %v5470, 127
      %v5608 = vpop.permute.xlu0 %5607
      %v5609 = vsel %vm1222, %v5578, %v5594
      %v5610 = vsel %vm1222, %v5580, %v5596
      %v5611 = vsel %vm1222, %v5582, %v5598
      %v5612 = vsel %vm1222, %v5584, %v5600
      %v5613 = vsel %vm1222, %v5586, %v5602
      %v5614 = vsel %vm1222, %v5588, %v5604
      %v5615 = vsel %vm1222, %v5590, %v5606
      %v5616 = vsel %vm1222, %v5592, %v5608
      %v5617 = vsel %vm1222, %v5562, %v5578
      %v5618 = vsel %vm1222, %v5564, %v5580
      %v5619 = vsel %vm1222, %v5566, %v5582
      %v5620 = vsel %vm1222, %v5568, %v5584
      %v5621 = vsel %vm1222, %v5570, %v5586
      %v5622 = vsel %vm1222, %v5572, %v5588
      %v5623 = vsel %vm1222, %v5574, %v5590
      %v5624 = vsel %vm1222, %v5576, %v5592
      %v5625 = vsel %vm1222, %v5594, %v5562
      %v5626 = vsel %vm1222, %v5596, %v5564
      %v5627 = vsel %vm1222, %v5598, %v5566
      %v5628 = vsel %vm1222, %v5600, %v5568
      %v5629 = vsel %vm1222, %v5602, %v5570
      %v5630 = vsel %vm1222, %v5604, %v5572
      %v5631 = vsel %vm1222, %v5606, %v5574
      %v5632 = vsel %vm1222, %v5608, %v5576
      %v5633 = vpack.c.bf16 %v5554, %v5553
      %v5634 = vpack.c.bf16 %v5546, %v5545
      %v5635 = vpack.c.bf16 %v5538, %v5537
      %v5636 = vpack.c.bf16 %v5556, %v5555
      %v5637 = vpack.c.bf16 %v5548, %v5547
      %v5638 = vpack.c.bf16 %v5540, %v5539
      %v5639 = vpack.c.bf16 %v5558, %v5557
      %v5640 = vpack.c.bf16 %v5550, %v5549
      %v5641 = vpack.c.bf16 %v5542, %v5541
      %v5642 = vpack.c.bf16 %v5560, %v5559
      %v5643 = vpack.c.bf16 %v5552, %v5551
      %v5644 = vpack.c.bf16 %v5544, %v5543
      %v5645 = vpack.c.bf16 %v5450, %v5447
      %v5646 = vpack.c.bf16 %v5451, %v5448
      %v5647 = vpack.c.bf16 %v5452, %v5449
      %v5648 = vpack.c.bf16 %v5456, %v5453
      %v5649 = vpack.c.bf16 %v5457, %v5454
      %v5650 = vpack.c.bf16 %v5458, %v5455
      %v5651 = vpack.c.bf16 %v5462, %v5459
      %v5652 = vpack.c.bf16 %v5463, %v5460
      %v5653 = vpack.c.bf16 %v5464, %v5461
      %v5654 = vpack.c.bf16 %v5468, %v5465
      %v5655 = vpack.c.bf16 %v5469, %v5466
      %v5656 = vpack.c.bf16 %v5470, %v5467
      %v5657 = vpack.c.bf16 %v5618, %v5617
      %v5658 = vpack.c.bf16 %v5610, %v5609
      %v5659 = vpack.c.bf16 %v5626, %v5625
      %v5660 = vpack.c.bf16 %v5620, %v5619
      %v5661 = vpack.c.bf16 %v5612, %v5611
      %v5662 = vpack.c.bf16 %v5628, %v5627
      %v5663 = vpack.c.bf16 %v5622, %v5621
      %v5664 = vpack.c.bf16 %v5614, %v5613
      %v5665 = vpack.c.bf16 %v5630, %v5629
      %v5666 = vpack.c.bf16 %v5624, %v5623
      %v5667 = vpack.c.bf16 %v5616, %v5615
      %v5668 = vpack.c.bf16 %v5632, %v5631
      %5670 = vset.pattern.permute.xlu0 0
      %5671 = vperm.xlu0 %5670, %v5481
      %v5672 = vpop.permute.xlu0 %5671
      %5675 = vset.pattern.permute.xlu0 0
      %5676 = vperm.xlu0 %5675, %v5482
      %v5677 = vpop.permute.xlu0 %5676
      %5680 = vset.pattern.permute.xlu0 0
      %5681 = vperm.xlu0 %5680, %v5483
      %v5682 = vpop.permute.xlu0 %5681
      %5685 = vset.pattern.permute.xlu0 0
      %5686 = vperm.xlu0 %5685, %v5484
      %v5687 = vpop.permute.xlu0 %5686
      %5690 = vset.pattern.permute.xlu0 0
      %5691 = vperm.xlu0 %5690, %v5485
      %v5692 = vpop.permute.xlu0 %5691
      %5695 = vset.pattern.permute.xlu0 0
      %5696 = vperm.xlu0 %5695, %v5486
      %v5697 = vpop.permute.xlu0 %5696
      %5700 = vset.pattern.permute.xlu0 0
      %5701 = vperm.xlu0 %5700, %v5487
      %v5702 = vpop.permute.xlu0 %5701
      %5705 = vset.pattern.permute.xlu0 0
      %5706 = vperm.xlu0 %5705, %v5488
      %v5707 = vpop.permute.xlu0 %5706
      %v5717 = vunpack.c.l.b16 %v5472
      %v5718 = vunpack.c.h.b16 %v5472
      %v5719 = vunpack.c.l.b16 %v5473
      %v5720 = vunpack.c.h.b16 %v5473
      %v5721 = vunpack.c.l.b16 %v5474
      %v5722 = vunpack.c.h.b16 %v5474
      %v5723 = vunpack.c.l.b16 %v5475
      %v5724 = vunpack.c.h.b16 %v5475
      %v5725 = vunpack.c.l.b16 %v5476
      %v5726 = vunpack.c.h.b16 %v5476
      %v5727 = vunpack.c.l.b16 %v5477
      %v5728 = vunpack.c.h.b16 %v5477
      %v5729 = vunpack.c.l.b16 %v5478
      %v5730 = vunpack.c.h.b16 %v5478
      %v5731 = vunpack.c.l.b16 %v5479
      %v5732 = vunpack.c.h.b16 %v5479
      %v5733 = vpack.c.b16 %v5719, %v5717
      %v5734 = vpack.c.b16 %v5720, %v5718
      %v5735 = vpack.c.b16 %v5723, %v5721
      %v5736 = vpack.c.b16 %v5724, %v5722
      %v5737 = vpack.c.b16 %v5727, %v5725
      %v5738 = vpack.c.b16 %v5728, %v5726
      %v5739 = vpack.c.b16 %v5731, %v5729
      %v5740 = vpack.c.b16 %v5732, %v5730
      %v5746 = vsel %vm872, %v5734, 0
      %v5749 = vsel %vm872, %v5736, 0
      %v5752 = vsel %vm872, %v5738, 0
      %v5755 = vsel %vm872, %v5740, 0
      %5757 = vmatpush.bf16.msra.mxu0 %v5654
      %5758 = vmatpush.bf16.msra.mxu0 %v5651
      %5759 = vmatpush.bf16.msra.mxu0 %v5648
      %5760 = vmatpush.bf16.msra.mxu0 %v5645
      %5761 = vmatpush.bf16.msra.mxu0 %v5642
      %5762 = vmatpush.bf16.msra.mxu0 %v5639
      %5763 = vmatpush.bf16.msra.mxu0 %v5636
      %5764 = vmatpush.bf16.msra.mxu0 %v5633
      %5765 = vmatmul.bf16.gmra.mxu0 %v5733
      %v5766 = vpop.f32.mrf.mxu0
      %v5767 = vadd.f32 %v5672, %v5766
      %v5768 = vpop.f32.mrf.mxu0
      %v5769 = vadd.f32 %v5677, %v5768
      %5770 = vmatmul.bf16.gmra.mxu0 %v5735
      %v5771 = vpop.f32.mrf.mxu0
      %v5772 = vadd.f32 %v5682, %v5771
      %v5773 = vpop.f32.mrf.mxu0
      %v5774 = vadd.f32 %v5687, %v5773
      %5775 = vmatmul.bf16.gmra.mxu0 %v5737
      %v5776 = vpop.f32.mrf.mxu0
      %v5777 = vadd.f32 %v5692, %v5776
      %v5778 = vpop.f32.mrf.mxu0
      %v5779 = vadd.f32 %v5697, %v5778
      %5780 = vmatmul.bf16.gmra.mxu0 %v5739
      %v5781 = vpop.f32.mrf.mxu0
      %v5782 = vadd.f32 %v5702, %v5781
      %v5783 = vpop.f32.mrf.mxu0
      %v5784 = vadd.f32 %v5707, %v5783
      %5785 = vdwg.mxu0
      %5786 = vmatpush.bf16.msra.mxu0 0
      %5787 = vmatpush.bf16.msra.mxu0 0
      %5788 = vmatpush.bf16.msra.mxu0 0
      %5789 = vmatpush.bf16.msra.mxu0 0
      %5790 = vmatpush.bf16.msra.mxu0 %v5666
      %5791 = vmatpush.bf16.msra.mxu0 %v5663
      %5792 = vmatpush.bf16.msra.mxu0 %v5660
      %5793 = vmatpush.bf16.msra.mxu0 %v5657
      %5794 = vmatmul.bf16.gmra.mxu0 %v5746
      %v5795 = vpop.f32.mrf.mxu0
      %v5796 = vadd.f32 %v5767, %v5795
      %v5797 = vpop.f32.mrf.mxu0
      %v5798 = vadd.f32 %v5769, %v5797
      %5799 = vmatmul.bf16.gmra.mxu0 %v5749
      %v5800 = vpop.f32.mrf.mxu0
      %v5801 = vadd.f32 %v5772, %v5800
      %v5802 = vpop.f32.mrf.mxu0
      %v5803 = vadd.f32 %v5774, %v5802
      %5804 = vmatmul.bf16.gmra.mxu0 %v5752
      %v5805 = vpop.f32.mrf.mxu0
      %v5806 = vadd.f32 %v5777, %v5805
      %v5807 = vpop.f32.mrf.mxu0
      %v5808 = vadd.f32 %v5779, %v5807
      %5809 = vmatmul.bf16.gmra.mxu0 %v5755
      %v5810 = vpop.f32.mrf.mxu0
      %v5811 = vadd.f32 %v5782, %v5810
      %v5812 = vpop.f32.mrf.mxu0
      %v5813 = vadd.f32 %v5784, %v5812
      %5814 = vdwg.mxu0
      %5815 = vmatpush.bf16.msra.mxu0 %v5655
      %5816 = vmatpush.bf16.msra.mxu0 %v5652
      %5817 = vmatpush.bf16.msra.mxu0 %v5649
      %5818 = vmatpush.bf16.msra.mxu0 %v5646
      %5819 = vmatpush.bf16.msra.mxu0 %v5643
      %5820 = vmatpush.bf16.msra.mxu0 %v5640
      %5821 = vmatpush.bf16.msra.mxu0 %v5637
      %5822 = vmatpush.bf16.msra.mxu0 %v5634
      %5823 = vmatmul.bf16.gmra.mxu0 %v5733
      %v5824 = vpop.f32.mrf.mxu0
      %v5825 = vadd.f32 %v5672, %v5824
      %v5826 = vpop.f32.mrf.mxu0
      %v5827 = vadd.f32 %v5677, %v5826
      %5828 = vmatmul.bf16.gmra.mxu0 %v5735
      %v5829 = vpop.f32.mrf.mxu0
      %v5830 = vadd.f32 %v5682, %v5829
      %v5831 = vpop.f32.mrf.mxu0
      %v5832 = vadd.f32 %v5687, %v5831
      %5833 = vmatmul.bf16.gmra.mxu0 %v5737
      %v5834 = vpop.f32.mrf.mxu0
      %v5835 = vadd.f32 %v5692, %v5834
      %v5836 = vpop.f32.mrf.mxu0
      %v5837 = vadd.f32 %v5697, %v5836
      %5838 = vmatmul.bf16.gmra.mxu0 %v5739
      %v5839 = vpop.f32.mrf.mxu0
      %v5840 = vadd.f32 %v5702, %v5839
      %v5841 = vpop.f32.mrf.mxu0
      %v5842 = vadd.f32 %v5707, %v5841
      %5843 = vdwg.mxu0
      %5844 = vmatpush.bf16.msra.mxu0 0
      %5845 = vmatpush.bf16.msra.mxu0 0
      %5846 = vmatpush.bf16.msra.mxu0 0
      %5847 = vmatpush.bf16.msra.mxu0 0
      %5848 = vmatpush.bf16.msra.mxu0 %v5667
      %5849 = vmatpush.bf16.msra.mxu0 %v5664
      %5850 = vmatpush.bf16.msra.mxu0 %v5661
      %5851 = vmatpush.bf16.msra.mxu0 %v5658
      %5852 = vmatmul.bf16.gmra.mxu0 %v5746
      %v5853 = vpop.f32.mrf.mxu0
      %v5854 = vadd.f32 %v5825, %v5853
      %v5855 = vpop.f32.mrf.mxu0
      %v5856 = vadd.f32 %v5827, %v5855
      %5857 = vmatmul.bf16.gmra.mxu0 %v5749
      %v5858 = vpop.f32.mrf.mxu0
      %v5859 = vadd.f32 %v5830, %v5858
      %v5860 = vpop.f32.mrf.mxu0
      %v5861 = vadd.f32 %v5832, %v5860
      %5862 = vmatmul.bf16.gmra.mxu0 %v5752
      %v5863 = vpop.f32.mrf.mxu0
      %v5864 = vadd.f32 %v5835, %v5863
      %v5865 = vpop.f32.mrf.mxu0
      %v5866 = vadd.f32 %v5837, %v5865
      %5867 = vmatmul.bf16.gmra.mxu0 %v5755
      %v5868 = vpop.f32.mrf.mxu0
      %v5869 = vadd.f32 %v5840, %v5868
      %v5870 = vpop.f32.mrf.mxu0
      %v5871 = vadd.f32 %v5842, %v5870
      %5872 = vdwg.mxu0
      %5873 = vmatpush.bf16.msra.mxu0 %v5656
      %5874 = vmatpush.bf16.msra.mxu0 %v5653
      %5875 = vmatpush.bf16.msra.mxu0 %v5650
      %5876 = vmatpush.bf16.msra.mxu0 %v5647
      %5877 = vmatpush.bf16.msra.mxu0 %v5644
      %5878 = vmatpush.bf16.msra.mxu0 %v5641
      %5879 = vmatpush.bf16.msra.mxu0 %v5638
      %5880 = vmatpush.bf16.msra.mxu0 %v5635
      %5881 = vmatmul.bf16.gmra.mxu0 %v5733
      %v5882 = vpop.f32.mrf.mxu0
      %v5883 = vadd.f32 %v5672, %v5882
      %v5884 = vpop.f32.mrf.mxu0
      %v5885 = vadd.f32 %v5677, %v5884
      %5886 = vmatmul.bf16.gmra.mxu0 %v5735
      %v5887 = vpop.f32.mrf.mxu0
      %v5888 = vadd.f32 %v5682, %v5887
      %v5889 = vpop.f32.mrf.mxu0
      %v5890 = vadd.f32 %v5687, %v5889
      %5891 = vmatmul.bf16.gmra.mxu0 %v5737
      %v5892 = vpop.f32.mrf.mxu0
      %v5893 = vadd.f32 %v5692, %v5892
      %v5894 = vpop.f32.mrf.mxu0
      %v5895 = vadd.f32 %v5697, %v5894
      %5896 = vmatmul.bf16.gmra.mxu0 %v5739
      %v5897 = vpop.f32.mrf.mxu0
      %v5898 = vadd.f32 %v5702, %v5897
      %v5899 = vpop.f32.mrf.mxu0
      %v5900 = vadd.f32 %v5707, %v5899
      %5901 = vdwg.mxu0
      %5902 = vmatpush.bf16.msra.mxu0 0
      %5903 = vmatpush.bf16.msra.mxu0 0
      %5904 = vmatpush.bf16.msra.mxu0 0
      %5905 = vmatpush.bf16.msra.mxu0 0
      %5906 = vmatpush.bf16.msra.mxu0 %v5668
      %5907 = vmatpush.bf16.msra.mxu0 %v5665
      %5908 = vmatpush.bf16.msra.mxu0 %v5662
      %5909 = vmatpush.bf16.msra.mxu0 %v5659
      %5910 = vmatmul.bf16.gmra.mxu0 %v5746
      %v5911 = vpop.f32.mrf.mxu0
      %v5912 = vadd.f32 %v5883, %v5911
      %v5913 = vpop.f32.mrf.mxu0
      %v5914 = vadd.f32 %v5885, %v5913
      %5915 = vmatmul.bf16.gmra.mxu0 %v5749
      %v5916 = vpop.f32.mrf.mxu0
      %v5917 = vadd.f32 %v5888, %v5916
      %v5918 = vpop.f32.mrf.mxu0
      %v5919 = vadd.f32 %v5890, %v5918
      %5920 = vmatmul.bf16.gmra.mxu0 %v5752
      %v5921 = vpop.f32.mrf.mxu0
      %v5922 = vadd.f32 %v5893, %v5921
      %v5923 = vpop.f32.mrf.mxu0
      %v5924 = vadd.f32 %v5895, %v5923
      %5925 = vmatmul.bf16.gmra.mxu0 %v5755
      %v5926 = vpop.f32.mrf.mxu0
      %v5927 = vadd.f32 %v5898, %v5926
      %v5928 = vpop.f32.mrf.mxu0
      %v5929 = vadd.f32 %v5900, %v5928
      %5930 = vdwg.mxu0
      %v5931 = vmax.f32 %v5796, 0.0
      %v5932 = vmax.f32 %v5854, 0.0
      %v5933 = vmax.f32 %v5912, 0.0
      %v5934 = vmax.f32 %v5798, 0.0
      %v5935 = vmax.f32 %v5856, 0.0
      %v5936 = vmax.f32 %v5914, 0.0
      %v5937 = vmax.f32 %v5801, 0.0
      %v5938 = vmax.f32 %v5859, 0.0
      %v5939 = vmax.f32 %v5917, 0.0
      %v5940 = vmax.f32 %v5803, 0.0
      %v5941 = vmax.f32 %v5861, 0.0
      %v5942 = vmax.f32 %v5919, 0.0
      %v5943 = vmax.f32 %v5806, 0.0
      %v5944 = vmax.f32 %v5864, 0.0
      %v5945 = vmax.f32 %v5922, 0.0
      %v5946 = vmax.f32 %v5808, 0.0
      %v5947 = vmax.f32 %v5866, 0.0
      %v5948 = vmax.f32 %v5924, 0.0
      %v5949 = vmax.f32 %v5811, 0.0
      %v5950 = vmax.f32 %v5869, 0.0
      %v5951 = vmax.f32 %v5927, 0.0
      %v5952 = vmax.f32 %v5813, 0.0
      %v5953 = vmax.f32 %v5871, 0.0
      %v5954 = vmax.f32 %v5929, 0.0
      %v5955 = vmul.f32 %v5931, %v4934
      %v5956 = vmul.f32 %v5932, %v4935
      %v5957 = vmul.f32 %v5933, %v4936
      %v5958 = vmul.f32 %v5934, %v4934
      %v5959 = vmul.f32 %v5935, %v4935
      %v5960 = vmul.f32 %v5936, %v4936
      %v5961 = vmul.f32 %v5937, %v4934
      %v5962 = vmul.f32 %v5938, %v4935
      %v5963 = vmul.f32 %v5939, %v4936
      %v5964 = vmul.f32 %v5940, %v4934
      %v5965 = vmul.f32 %v5941, %v4935
      %v5966 = vmul.f32 %v5942, %v4936
      %v5967 = vmul.f32 %v5943, %v4934
      %v5968 = vmul.f32 %v5944, %v4935
      %v5969 = vmul.f32 %v5945, %v4936
      %v5970 = vmul.f32 %v5946, %v4934
      %v5971 = vmul.f32 %v5947, %v4935
      %v5972 = vmul.f32 %v5948, %v4936
      %v5973 = vmul.f32 %v5949, %v4934
      %v5974 = vmul.f32 %v5950, %v4935
      %v5975 = vmul.f32 %v5951, %v4936
      %v5976 = vmul.f32 %v5952, %v4934
      %v5977 = vmul.f32 %v5953, %v4935
      %v5978 = vmul.f32 %v5954, %v4936
      %s5979 = scalar_lea.vmem %s7, 128
      %v5980 = vld [vmem:[%s5979] sm:$0xff]
      %v5981 = vld [vmem:[%s5979 + $0x8] sm:$0xff]
      %v5982 = vld [vmem:[%s5979 + $0x10] sm:$0xff]
      %v5983 = vld [vmem:[%s5979 + $0x18] sm:$0xff]
      %v5984 = vld [vmem:[%s5979 + $0x20] sm:$0xff]
      %v5985 = vld [vmem:[%s5979 + $0x28] sm:$0xff]
      %v5986 = vld [vmem:[%s5979 + $0x30] sm:$0xff]
      %v5987 = vld [vmem:[%s5979 + $0x38] sm:$0xff]
      %s5988 = scalar_lea.vmem %s8, 192
      %v5989 = vld [vmem:[%s5988] sm:$0xff]
      %v5990 = vld [vmem:[%s5988 + $0x8] sm:$0xff]
      %v5991 = vld [vmem:[%s5988 + $0x10] sm:$0xff]
      %v5992 = vld [vmem:[%s5988 + $0x18] sm:$0xff]
      %v5993 = vld [vmem:[%s5988 + $0x20] sm:$0xff]
      %v5994 = vld [vmem:[%s5988 + $0x28] sm:$0xff]
      %v5995 = vld [vmem:[%s5988 + $0x30] sm:$0xff]
      %v5996 = vld [vmem:[%s5988 + $0x38] sm:$0xff]
      %5997 = vrot.lane.b32.xlu0 %v5955, 1
      %v5998 = vpop.permute.xlu0 %5997
      %5999 = vrot.lane.b32.xlu0 %v5958, 1
      %v6000 = vpop.permute.xlu0 %5999
      %6001 = vrot.lane.b32.xlu0 %v5961, 1
      %v6002 = vpop.permute.xlu0 %6001
      %6003 = vrot.lane.b32.xlu0 %v5964, 1
      %v6004 = vpop.permute.xlu0 %6003
      %6005 = vrot.lane.b32.xlu0 %v5967, 1
      %v6006 = vpop.permute.xlu0 %6005
      %6007 = vrot.lane.b32.xlu0 %v5970, 1
      %v6008 = vpop.permute.xlu0 %6007
      %6009 = vrot.lane.b32.xlu0 %v5973, 1
      %v6010 = vpop.permute.xlu0 %6009
      %6011 = vrot.lane.b32.xlu0 %v5976, 1
      %v6012 = vpop.permute.xlu0 %6011
      %6013 = vrot.lane.b32.xlu0 %v5956, 1
      %v6014 = vpop.permute.xlu0 %6013
      %6015 = vrot.lane.b32.xlu0 %v5959, 1
      %v6016 = vpop.permute.xlu0 %6015
      %6017 = vrot.lane.b32.xlu0 %v5962, 1
      %v6018 = vpop.permute.xlu0 %6017
      %6019 = vrot.lane.b32.xlu0 %v5965, 1
      %v6020 = vpop.permute.xlu0 %6019
      %6021 = vrot.lane.b32.xlu0 %v5968, 1
      %v6022 = vpop.permute.xlu0 %6021
      %6023 = vrot.lane.b32.xlu0 %v5971, 1
      %v6024 = vpop.permute.xlu0 %6023
      %6025 = vrot.lane.b32.xlu0 %v5974, 1
      %v6026 = vpop.permute.xlu0 %6025
      %6027 = vrot.lane.b32.xlu0 %v5977, 1
      %v6028 = vpop.permute.xlu0 %6027
      %6029 = vrot.lane.b32.xlu0 %v5957, 1
      %v6030 = vpop.permute.xlu0 %6029
      %6031 = vrot.lane.b32.xlu0 %v5960, 1
      %v6032 = vpop.permute.xlu0 %6031
      %6033 = vrot.lane.b32.xlu0 %v5963, 1
      %v6034 = vpop.permute.xlu0 %6033
      %6035 = vrot.lane.b32.xlu0 %v5966, 1
      %v6036 = vpop.permute.xlu0 %6035
      %6037 = vrot.lane.b32.xlu0 %v5969, 1
      %v6038 = vpop.permute.xlu0 %6037
      %6039 = vrot.lane.b32.xlu0 %v5972, 1
      %v6040 = vpop.permute.xlu0 %6039
      %6041 = vrot.lane.b32.xlu0 %v5975, 1
      %v6042 = vpop.permute.xlu0 %6041
      %6043 = vrot.lane.b32.xlu0 %v5978, 1
      %v6044 = vpop.permute.xlu0 %6043
      %v6045 = vsel %vm1125, %v6014, %v6030
      %v6046 = vsel %vm1125, %v6016, %v6032
      %v6047 = vsel %vm1125, %v6018, %v6034
      %v6048 = vsel %vm1125, %v6020, %v6036
      %v6049 = vsel %vm1125, %v6022, %v6038
      %v6050 = vsel %vm1125, %v6024, %v6040
      %v6051 = vsel %vm1125, %v6026, %v6042
      %v6052 = vsel %vm1125, %v6028, %v6044
      %v6053 = vsel %vm1125, %v5998, %v6014
      %v6054 = vsel %vm1125, %v6000, %v6016
      %v6055 = vsel %vm1125, %v6002, %v6018
      %v6056 = vsel %vm1125, %v6004, %v6020
      %v6057 = vsel %vm1125, %v6006, %v6022
      %v6058 = vsel %vm1125, %v6008, %v6024
      %v6059 = vsel %vm1125, %v6010, %v6026
      %v6060 = vsel %vm1125, %v6012, %v6028
      %v6061 = vsel %vm1125, %v6030, %v5998
      %v6062 = vsel %vm1125, %v6032, %v6000
      %v6063 = vsel %vm1125, %v6034, %v6002
      %v6064 = vsel %vm1125, %v6036, %v6004
      %v6065 = vsel %vm1125, %v6038, %v6006
      %v6066 = vsel %vm1125, %v6040, %v6008
      %v6067 = vsel %vm1125, %v6042, %v6010
      %v6068 = vsel %vm1125, %v6044, %v6012
      %6069 = vrot.lane.b32.xlu0 %v5955, 127
      %v6070 = vpop.permute.xlu0 %6069
      %6071 = vrot.lane.b32.xlu0 %v5958, 127
      %v6072 = vpop.permute.xlu0 %6071
      %6073 = vrot.lane.b32.xlu0 %v5961, 127
      %v6074 = vpop.permute.xlu0 %6073
      %6075 = vrot.lane.b32.xlu0 %v5964, 127
      %v6076 = vpop.permute.xlu0 %6075
      %6077 = vrot.lane.b32.xlu0 %v5967, 127
      %v6078 = vpop.permute.xlu0 %6077
      %6079 = vrot.lane.b32.xlu0 %v5970, 127
      %v6080 = vpop.permute.xlu0 %6079
      %6081 = vrot.lane.b32.xlu0 %v5973, 127
      %v6082 = vpop.permute.xlu0 %6081
      %6083 = vrot.lane.b32.xlu0 %v5976, 127
      %v6084 = vpop.permute.xlu0 %6083
      %6085 = vrot.lane.b32.xlu0 %v5956, 127
      %v6086 = vpop.permute.xlu0 %6085
      %6087 = vrot.lane.b32.xlu0 %v5959, 127
      %v6088 = vpop.permute.xlu0 %6087
      %6089 = vrot.lane.b32.xlu0 %v5962, 127
      %v6090 = vpop.permute.xlu0 %6089
      %6091 = vrot.lane.b32.xlu0 %v5965, 127
      %v6092 = vpop.permute.xlu0 %6091
      %6093 = vrot.lane.b32.xlu0 %v5968, 127
      %v6094 = vpop.permute.xlu0 %6093
      %6095 = vrot.lane.b32.xlu0 %v5971, 127
      %v6096 = vpop.permute.xlu0 %6095
      %6097 = vrot.lane.b32.xlu0 %v5974, 127
      %v6098 = vpop.permute.xlu0 %6097
      %6099 = vrot.lane.b32.xlu0 %v5977, 127
      %v6100 = vpop.permute.xlu0 %6099
      %6101 = vrot.lane.b32.xlu0 %v5957, 127
      %v6102 = vpop.permute.xlu0 %6101
      %6103 = vrot.lane.b32.xlu0 %v5960, 127
      %v6104 = vpop.permute.xlu0 %6103
      %6105 = vrot.lane.b32.xlu0 %v5963, 127
      %v6106 = vpop.permute.xlu0 %6105
      %6107 = vrot.lane.b32.xlu0 %v5966, 127
      %v6108 = vpop.permute.xlu0 %6107
      %6109 = vrot.lane.b32.xlu0 %v5969, 127
      %v6110 = vpop.permute.xlu0 %6109
      %6111 = vrot.lane.b32.xlu0 %v5972, 127
      %v6112 = vpop.permute.xlu0 %6111
      %6113 = vrot.lane.b32.xlu0 %v5975, 127
      %v6114 = vpop.permute.xlu0 %6113
      %6115 = vrot.lane.b32.xlu0 %v5978, 127
      %v6116 = vpop.permute.xlu0 %6115
      %v6117 = vsel %vm1222, %v6086, %v6102
      %v6118 = vsel %vm1222, %v6088, %v6104
      %v6119 = vsel %vm1222, %v6090, %v6106
      %v6120 = vsel %vm1222, %v6092, %v6108
      %v6121 = vsel %vm1222, %v6094, %v6110
      %v6122 = vsel %vm1222, %v6096, %v6112
      %v6123 = vsel %vm1222, %v6098, %v6114
      %v6124 = vsel %vm1222, %v6100, %v6116
      %v6125 = vsel %vm1222, %v6070, %v6086
      %v6126 = vsel %vm1222, %v6072, %v6088
      %v6127 = vsel %vm1222, %v6074, %v6090
      %v6128 = vsel %vm1222, %v6076, %v6092
      %v6129 = vsel %vm1222, %v6078, %v6094
      %v6130 = vsel %vm1222, %v6080, %v6096
      %v6131 = vsel %vm1222, %v6082, %v6098
      %v6132 = vsel %vm1222, %v6084, %v6100
      %v6133 = vsel %vm1222, %v6102, %v6070
      %v6134 = vsel %vm1222, %v6104, %v6072
      %v6135 = vsel %vm1222, %v6106, %v6074
      %v6136 = vsel %vm1222, %v6108, %v6076
      %v6137 = vsel %vm1222, %v6110, %v6078
      %v6138 = vsel %vm1222, %v6112, %v6080
      %v6139 = vsel %vm1222, %v6114, %v6082
      %v6140 = vsel %vm1222, %v6116, %v6084
      %v6141 = vpack.c.bf16 %v6062, %v6061
      %v6142 = vpack.c.bf16 %v6054, %v6053
      %v6143 = vpack.c.bf16 %v6046, %v6045
      %v6144 = vpack.c.bf16 %v6064, %v6063
      %v6145 = vpack.c.bf16 %v6056, %v6055
      %v6146 = vpack.c.bf16 %v6048, %v6047
      %v6147 = vpack.c.bf16 %v6066, %v6065
      %v6148 = vpack.c.bf16 %v6058, %v6057
      %v6149 = vpack.c.bf16 %v6050, %v6049
      %v6150 = vpack.c.bf16 %v6068, %v6067
      %v6151 = vpack.c.bf16 %v6060, %v6059
      %v6152 = vpack.c.bf16 %v6052, %v6051
      %v6153 = vpack.c.bf16 %v5958, %v5955
      %v6154 = vpack.c.bf16 %v5959, %v5956
      %v6155 = vpack.c.bf16 %v5960, %v5957
      %v6156 = vpack.c.bf16 %v5964, %v5961
      %v6157 = vpack.c.bf16 %v5965, %v5962
      %v6158 = vpack.c.bf16 %v5966, %v5963
      %v6159 = vpack.c.bf16 %v5970, %v5967
      %v6160 = vpack.c.bf16 %v5971, %v5968
      %v6161 = vpack.c.bf16 %v5972, %v5969
      %v6162 = vpack.c.bf16 %v5976, %v5973
      %v6163 = vpack.c.bf16 %v5977, %v5974
      %v6164 = vpack.c.bf16 %v5978, %v5975
      %v6165 = vpack.c.bf16 %v6126, %v6125
      %v6166 = vpack.c.bf16 %v6118, %v6117
      %v6167 = vpack.c.bf16 %v6134, %v6133
      %v6168 = vpack.c.bf16 %v6128, %v6127
      %v6169 = vpack.c.bf16 %v6120, %v6119
      %v6170 = vpack.c.bf16 %v6136, %v6135
      %v6171 = vpack.c.bf16 %v6130, %v6129
      %v6172 = vpack.c.bf16 %v6122, %v6121
      %v6173 = vpack.c.bf16 %v6138, %v6137
      %v6174 = vpack.c.bf16 %v6132, %v6131
      %v6175 = vpack.c.bf16 %v6124, %v6123
      %v6176 = vpack.c.bf16 %v6140, %v6139
      %6178 = vset.pattern.permute.xlu0 0
      %6179 = vperm.xlu0 %6178, %v5989
      %v6180 = vpop.permute.xlu0 %6179
      %6183 = vset.pattern.permute.xlu0 0
      %6184 = vperm.xlu0 %6183, %v5990
      %v6185 = vpop.permute.xlu0 %6184
      %6188 = vset.pattern.permute.xlu0 0
      %6189 = vperm.xlu0 %6188, %v5991
      %v6190 = vpop.permute.xlu0 %6189
      %6193 = vset.pattern.permute.xlu0 0
      %6194 = vperm.xlu0 %6193, %v5992
      %v6195 = vpop.permute.xlu0 %6194
      %6198 = vset.pattern.permute.xlu0 0
      %6199 = vperm.xlu0 %6198, %v5993
      %v6200 = vpop.permute.xlu0 %6199
      %6203 = vset.pattern.permute.xlu0 0
      %6204 = vperm.xlu0 %6203, %v5994
      %v6205 = vpop.permute.xlu0 %6204
      %6208 = vset.pattern.permute.xlu0 0
      %6209 = vperm.xlu0 %6208, %v5995
      %v6210 = vpop.permute.xlu0 %6209
      %6213 = vset.pattern.permute.xlu0 0
      %6214 = vperm.xlu0 %6213, %v5996
      %v6215 = vpop.permute.xlu0 %6214
      %v6225 = vunpack.c.l.b16 %v5980
      %v6226 = vunpack.c.h.b16 %v5980
      %v6227 = vunpack.c.l.b16 %v5981
      %v6228 = vunpack.c.h.b16 %v5981
      %v6229 = vunpack.c.l.b16 %v5982
      %v6230 = vunpack.c.h.b16 %v5982
      %v6231 = vunpack.c.l.b16 %v5983
      %v6232 = vunpack.c.h.b16 %v5983
      %v6233 = vunpack.c.l.b16 %v5984
      %v6234 = vunpack.c.h.b16 %v5984
      %v6235 = vunpack.c.l.b16 %v5985
      %v6236 = vunpack.c.h.b16 %v5985
      %v6237 = vunpack.c.l.b16 %v5986
      %v6238 = vunpack.c.h.b16 %v5986
      %v6239 = vunpack.c.l.b16 %v5987
      %v6240 = vunpack.c.h.b16 %v5987
      %v6241 = vpack.c.b16 %v6227, %v6225
      %v6242 = vpack.c.b16 %v6228, %v6226
      %v6243 = vpack.c.b16 %v6231, %v6229
      %v6244 = vpack.c.b16 %v6232, %v6230
      %v6245 = vpack.c.b16 %v6235, %v6233
      %v6246 = vpack.c.b16 %v6236, %v6234
      %v6247 = vpack.c.b16 %v6239, %v6237
      %v6248 = vpack.c.b16 %v6240, %v6238
      %v6254 = vsel %vm872, %v6242, 0
      %v6257 = vsel %vm872, %v6244, 0
      %v6260 = vsel %vm872, %v6246, 0
      %v6263 = vsel %vm872, %v6248, 0
      %6265 = vmatpush.bf16.msra.mxu0 %v6162
      %6266 = vmatpush.bf16.msra.mxu0 %v6159
      %6267 = vmatpush.bf16.msra.mxu0 %v6156
      %6268 = vmatpush.bf16.msra.mxu0 %v6153
      %6269 = vmatpush.bf16.msra.mxu0 %v6150
      %6270 = vmatpush.bf16.msra.mxu0 %v6147
      %6271 = vmatpush.bf16.msra.mxu0 %v6144
      %6272 = vmatpush.bf16.msra.mxu0 %v6141
      %6273 = vmatmul.bf16.gmra.mxu0 %v6241
      %v6274 = vpop.f32.mrf.mxu0
      %v6275 = vadd.f32 %v6180, %v6274
      %v6276 = vpop.f32.mrf.mxu0
      %v6277 = vadd.f32 %v6185, %v6276
      %6278 = vmatmul.bf16.gmra.mxu0 %v6243
      %v6279 = vpop.f32.mrf.mxu0
      %v6280 = vadd.f32 %v6190, %v6279
      %v6281 = vpop.f32.mrf.mxu0
      %v6282 = vadd.f32 %v6195, %v6281
      %6283 = vmatmul.bf16.gmra.mxu0 %v6245
      %v6284 = vpop.f32.mrf.mxu0
      %v6285 = vadd.f32 %v6200, %v6284
      %v6286 = vpop.f32.mrf.mxu0
      %v6287 = vadd.f32 %v6205, %v6286
      %6288 = vmatmul.bf16.gmra.mxu0 %v6247
      %v6289 = vpop.f32.mrf.mxu0
      %v6290 = vadd.f32 %v6210, %v6289
      %v6291 = vpop.f32.mrf.mxu0
      %v6292 = vadd.f32 %v6215, %v6291
      %6293 = vdwg.mxu0
      %6294 = vmatpush.bf16.msra.mxu0 0
      %6295 = vmatpush.bf16.msra.mxu0 0
      %6296 = vmatpush.bf16.msra.mxu0 0
      %6297 = vmatpush.bf16.msra.mxu0 0
      %6298 = vmatpush.bf16.msra.mxu0 %v6174
      %6299 = vmatpush.bf16.msra.mxu0 %v6171
      %6300 = vmatpush.bf16.msra.mxu0 %v6168
      %6301 = vmatpush.bf16.msra.mxu0 %v6165
      %6302 = vmatmul.bf16.gmra.mxu0 %v6254
      %v6303 = vpop.f32.mrf.mxu0
      %v6304 = vadd.f32 %v6275, %v6303
      %v6305 = vpop.f32.mrf.mxu0
      %v6306 = vadd.f32 %v6277, %v6305
      %6307 = vmatmul.bf16.gmra.mxu0 %v6257
      %v6308 = vpop.f32.mrf.mxu0
      %v6309 = vadd.f32 %v6280, %v6308
      %v6310 = vpop.f32.mrf.mxu0
      %v6311 = vadd.f32 %v6282, %v6310
      %6312 = vmatmul.bf16.gmra.mxu0 %v6260
      %v6313 = vpop.f32.mrf.mxu0
      %v6314 = vadd.f32 %v6285, %v6313
      %v6315 = vpop.f32.mrf.mxu0
      %v6316 = vadd.f32 %v6287, %v6315
      %6317 = vmatmul.bf16.gmra.mxu0 %v6263
      %v6318 = vpop.f32.mrf.mxu0
      %v6319 = vadd.f32 %v6290, %v6318
      %v6320 = vpop.f32.mrf.mxu0
      %v6321 = vadd.f32 %v6292, %v6320
      %6322 = vdwg.mxu0
      %6323 = vmatpush.bf16.msra.mxu0 %v6163
      %6324 = vmatpush.bf16.msra.mxu0 %v6160
      %6325 = vmatpush.bf16.msra.mxu0 %v6157
      %6326 = vmatpush.bf16.msra.mxu0 %v6154
      %6327 = vmatpush.bf16.msra.mxu0 %v6151
      %6328 = vmatpush.bf16.msra.mxu0 %v6148
      %6329 = vmatpush.bf16.msra.mxu0 %v6145
      %6330 = vmatpush.bf16.msra.mxu0 %v6142
      %6331 = vmatmul.bf16.gmra.mxu0 %v6241
      %v6332 = vpop.f32.mrf.mxu0
      %v6333 = vadd.f32 %v6180, %v6332
      %v6334 = vpop.f32.mrf.mxu0
      %v6335 = vadd.f32 %v6185, %v6334
      %6336 = vmatmul.bf16.gmra.mxu0 %v6243
      %v6337 = vpop.f32.mrf.mxu0
      %v6338 = vadd.f32 %v6190, %v6337
      %v6339 = vpop.f32.mrf.mxu0
      %v6340 = vadd.f32 %v6195, %v6339
      %6341 = vmatmul.bf16.gmra.mxu0 %v6245
      %v6342 = vpop.f32.mrf.mxu0
      %v6343 = vadd.f32 %v6200, %v6342
      %v6344 = vpop.f32.mrf.mxu0
      %v6345 = vadd.f32 %v6205, %v6344
      %6346 = vmatmul.bf16.gmra.mxu0 %v6247
      %v6347 = vpop.f32.mrf.mxu0
      %v6348 = vadd.f32 %v6210, %v6347
      %v6349 = vpop.f32.mrf.mxu0
      %v6350 = vadd.f32 %v6215, %v6349
      %6351 = vdwg.mxu0
      %6352 = vmatpush.bf16.msra.mxu0 0
      %6353 = vmatpush.bf16.msra.mxu0 0
      %6354 = vmatpush.bf16.msra.mxu0 0
      %6355 = vmatpush.bf16.msra.mxu0 0
      %6356 = vmatpush.bf16.msra.mxu0 %v6175
      %6357 = vmatpush.bf16.msra.mxu0 %v6172
      %6358 = vmatpush.bf16.msra.mxu0 %v6169
      %6359 = vmatpush.bf16.msra.mxu0 %v6166
      %6360 = vmatmul.bf16.gmra.mxu0 %v6254
      %v6361 = vpop.f32.mrf.mxu0
      %v6362 = vadd.f32 %v6333, %v6361
      %v6363 = vpop.f32.mrf.mxu0
      %v6364 = vadd.f32 %v6335, %v6363
      %6365 = vmatmul.bf16.gmra.mxu0 %v6257
      %v6366 = vpop.f32.mrf.mxu0
      %v6367 = vadd.f32 %v6338, %v6366
      %v6368 = vpop.f32.mrf.mxu0
      %v6369 = vadd.f32 %v6340, %v6368
      %6370 = vmatmul.bf16.gmra.mxu0 %v6260
      %v6371 = vpop.f32.mrf.mxu0
      %v6372 = vadd.f32 %v6343, %v6371
      %v6373 = vpop.f32.mrf.mxu0
      %v6374 = vadd.f32 %v6345, %v6373
      %6375 = vmatmul.bf16.gmra.mxu0 %v6263
      %v6376 = vpop.f32.mrf.mxu0
      %v6377 = vadd.f32 %v6348, %v6376
      %v6378 = vpop.f32.mrf.mxu0
      %v6379 = vadd.f32 %v6350, %v6378
      %6380 = vdwg.mxu0
      %6381 = vmatpush.bf16.msra.mxu0 %v6164
      %6382 = vmatpush.bf16.msra.mxu0 %v6161
      %6383 = vmatpush.bf16.msra.mxu0 %v6158
      %6384 = vmatpush.bf16.msra.mxu0 %v6155
      %6385 = vmatpush.bf16.msra.mxu0 %v6152
      %6386 = vmatpush.bf16.msra.mxu0 %v6149
      %6387 = vmatpush.bf16.msra.mxu0 %v6146
      %6388 = vmatpush.bf16.msra.mxu0 %v6143
      %6389 = vmatmul.bf16.gmra.mxu0 %v6241
      %v6390 = vpop.f32.mrf.mxu0
      %v6391 = vadd.f32 %v6180, %v6390
      %v6392 = vpop.f32.mrf.mxu0
      %v6393 = vadd.f32 %v6185, %v6392
      %6394 = vmatmul.bf16.gmra.mxu0 %v6243
      %v6395 = vpop.f32.mrf.mxu0
      %v6396 = vadd.f32 %v6190, %v6395
      %v6397 = vpop.f32.mrf.mxu0
      %v6398 = vadd.f32 %v6195, %v6397
      %6399 = vmatmul.bf16.gmra.mxu0 %v6245
      %v6400 = vpop.f32.mrf.mxu0
      %v6401 = vadd.f32 %v6200, %v6400
      %v6402 = vpop.f32.mrf.mxu0
      %v6403 = vadd.f32 %v6205, %v6402
      %6404 = vmatmul.bf16.gmra.mxu0 %v6247
      %v6405 = vpop.f32.mrf.mxu0
      %v6406 = vadd.f32 %v6210, %v6405
      %v6407 = vpop.f32.mrf.mxu0
      %v6408 = vadd.f32 %v6215, %v6407
      %6409 = vdwg.mxu0
      %6410 = vmatpush.bf16.msra.mxu0 0
      %6411 = vmatpush.bf16.msra.mxu0 0
      %6412 = vmatpush.bf16.msra.mxu0 0
      %6413 = vmatpush.bf16.msra.mxu0 0
      %6414 = vmatpush.bf16.msra.mxu0 %v6176
      %6415 = vmatpush.bf16.msra.mxu0 %v6173
      %6416 = vmatpush.bf16.msra.mxu0 %v6170
      %6417 = vmatpush.bf16.msra.mxu0 %v6167
      %6418 = vmatmul.bf16.gmra.mxu0 %v6254
      %v6419 = vpop.f32.mrf.mxu0
      %v6420 = vadd.f32 %v6391, %v6419
      %v6421 = vpop.f32.mrf.mxu0
      %v6422 = vadd.f32 %v6393, %v6421
      %6423 = vmatmul.bf16.gmra.mxu0 %v6257
      %v6424 = vpop.f32.mrf.mxu0
      %v6425 = vadd.f32 %v6396, %v6424
      %v6426 = vpop.f32.mrf.mxu0
      %v6427 = vadd.f32 %v6398, %v6426
      %6428 = vmatmul.bf16.gmra.mxu0 %v6260
      %v6429 = vpop.f32.mrf.mxu0
      %v6430 = vadd.f32 %v6401, %v6429
      %v6431 = vpop.f32.mrf.mxu0
      %v6432 = vadd.f32 %v6403, %v6431
      %6433 = vmatmul.bf16.gmra.mxu0 %v6263
      %v6434 = vpop.f32.mrf.mxu0
      %v6435 = vadd.f32 %v6406, %v6434
      %v6436 = vpop.f32.mrf.mxu0
      %v6437 = vadd.f32 %v6408, %v6436
      %6438 = vdwg.mxu0
      %v6439 = vmax.f32 %v6304, 0.0
      %v6440 = vmax.f32 %v6362, 0.0
      %v6441 = vmax.f32 %v6420, 0.0
      %v6442 = vmax.f32 %v6306, 0.0
      %v6443 = vmax.f32 %v6364, 0.0
      %v6444 = vmax.f32 %v6422, 0.0
      %v6445 = vmax.f32 %v6309, 0.0
      %v6446 = vmax.f32 %v6367, 0.0
      %v6447 = vmax.f32 %v6425, 0.0
      %v6448 = vmax.f32 %v6311, 0.0
      %v6449 = vmax.f32 %v6369, 0.0
      %v6450 = vmax.f32 %v6427, 0.0
      %v6451 = vmax.f32 %v6314, 0.0
      %v6452 = vmax.f32 %v6372, 0.0
      %v6453 = vmax.f32 %v6430, 0.0
      %v6454 = vmax.f32 %v6316, 0.0
      %v6455 = vmax.f32 %v6374, 0.0
      %v6456 = vmax.f32 %v6432, 0.0
      %v6457 = vmax.f32 %v6319, 0.0
      %v6458 = vmax.f32 %v6377, 0.0
      %v6459 = vmax.f32 %v6435, 0.0
      %v6460 = vmax.f32 %v6321, 0.0
      %v6461 = vmax.f32 %v6379, 0.0
      %v6462 = vmax.f32 %v6437, 0.0
      %v6463 = vmul.f32 %v6439, %v4934
      %v6464 = vmul.f32 %v6440, %v4935
      %v6465 = vmul.f32 %v6441, %v4936
      %v6466 = vmul.f32 %v6442, %v4934
      %v6467 = vmul.f32 %v6443, %v4935
      %v6468 = vmul.f32 %v6444, %v4936
      %v6469 = vmul.f32 %v6445, %v4934
      %v6470 = vmul.f32 %v6446, %v4935
      %v6471 = vmul.f32 %v6447, %v4936
      %v6472 = vmul.f32 %v6448, %v4934
      %v6473 = vmul.f32 %v6449, %v4935
      %v6474 = vmul.f32 %v6450, %v4936
      %v6475 = vmul.f32 %v6451, %v4934
      %v6476 = vmul.f32 %v6452, %v4935
      %v6477 = vmul.f32 %v6453, %v4936
      %v6478 = vmul.f32 %v6454, %v4934
      %v6479 = vmul.f32 %v6455, %v4935
      %v6480 = vmul.f32 %v6456, %v4936
      %v6481 = vmul.f32 %v6457, %v4934
      %v6482 = vmul.f32 %v6458, %v4935
      %v6483 = vmul.f32 %v6459, %v4936
      %v6484 = vmul.f32 %v6460, %v4934
      %v6485 = vmul.f32 %v6461, %v4935
      %v6486 = vmul.f32 %v6462, %v4936
      %s6487 = scalar_lea.vmem %s7, 192
      %v6488 = vld [vmem:[%s6487] sm:$0xff]
      %v6489 = vld [vmem:[%s6487 + $0x8] sm:$0xff]
      %v6490 = vld [vmem:[%s6487 + $0x10] sm:$0xff]
      %v6491 = vld [vmem:[%s6487 + $0x18] sm:$0xff]
      %v6492 = vld [vmem:[%s6487 + $0x20] sm:$0xff]
      %v6493 = vld [vmem:[%s6487 + $0x28] sm:$0xff]
      %v6494 = vld [vmem:[%s6487 + $0x30] sm:$0xff]
      %v6495 = vld [vmem:[%s6487 + $0x38] sm:$0xff]
      %s6496 = scalar_lea.vmem %s8, 256
      %v6497 = vld [vmem:[%s6496] sm:$0xff]
      %v6498 = vld [vmem:[%s6496 + $0x8] sm:$0xff]
      %v6499 = vld [vmem:[%s6496 + $0x10] sm:$0xff]
      %v6500 = vld [vmem:[%s6496 + $0x18] sm:$0xff]
      %v6501 = vld [vmem:[%s6496 + $0x20] sm:$0xff]
      %v6502 = vld [vmem:[%s6496 + $0x28] sm:$0xff]
      %v6503 = vld [vmem:[%s6496 + $0x30] sm:$0xff]
      %v6504 = vld [vmem:[%s6496 + $0x38] sm:$0xff]
      %6505 = vrot.lane.b32.xlu0 %v6463, 1
      %v6506 = vpop.permute.xlu0 %6505
      %6507 = vrot.lane.b32.xlu0 %v6466, 1
      %v6508 = vpop.permute.xlu0 %6507
      %6509 = vrot.lane.b32.xlu0 %v6469, 1
      %v6510 = vpop.permute.xlu0 %6509
      %6511 = vrot.lane.b32.xlu0 %v6472, 1
      %v6512 = vpop.permute.xlu0 %6511
      %6513 = vrot.lane.b32.xlu0 %v6475, 1
      %v6514 = vpop.permute.xlu0 %6513
      %6515 = vrot.lane.b32.xlu0 %v6478, 1
      %v6516 = vpop.permute.xlu0 %6515
      %6517 = vrot.lane.b32.xlu0 %v6481, 1
      %v6518 = vpop.permute.xlu0 %6517
      %6519 = vrot.lane.b32.xlu0 %v6484, 1
      %v6520 = vpop.permute.xlu0 %6519
      %6521 = vrot.lane.b32.xlu0 %v6464, 1
      %v6522 = vpop.permute.xlu0 %6521
      %6523 = vrot.lane.b32.xlu0 %v6467, 1
      %v6524 = vpop.permute.xlu0 %6523
      %6525 = vrot.lane.b32.xlu0 %v6470, 1
      %v6526 = vpop.permute.xlu0 %6525
      %6527 = vrot.lane.b32.xlu0 %v6473, 1
      %v6528 = vpop.permute.xlu0 %6527
      %6529 = vrot.lane.b32.xlu0 %v6476, 1
      %v6530 = vpop.permute.xlu0 %6529
      %6531 = vrot.lane.b32.xlu0 %v6479, 1
      %v6532 = vpop.permute.xlu0 %6531
      %6533 = vrot.lane.b32.xlu0 %v6482, 1
      %v6534 = vpop.permute.xlu0 %6533
      %6535 = vrot.lane.b32.xlu0 %v6485, 1
      %v6536 = vpop.permute.xlu0 %6535
      %6537 = vrot.lane.b32.xlu0 %v6465, 1
      %v6538 = vpop.permute.xlu0 %6537
      %6539 = vrot.lane.b32.xlu0 %v6468, 1
      %v6540 = vpop.permute.xlu0 %6539
      %6541 = vrot.lane.b32.xlu0 %v6471, 1
      %v6542 = vpop.permute.xlu0 %6541
      %6543 = vrot.lane.b32.xlu0 %v6474, 1
      %v6544 = vpop.permute.xlu0 %6543
      %6545 = vrot.lane.b32.xlu0 %v6477, 1
      %v6546 = vpop.permute.xlu0 %6545
      %6547 = vrot.lane.b32.xlu0 %v6480, 1
      %v6548 = vpop.permute.xlu0 %6547
      %6549 = vrot.lane.b32.xlu0 %v6483, 1
      %v6550 = vpop.permute.xlu0 %6549
      %6551 = vrot.lane.b32.xlu0 %v6486, 1
      %v6552 = vpop.permute.xlu0 %6551
      %v6553 = vsel %vm1125, %v6522, %v6538
      %v6554 = vsel %vm1125, %v6524, %v6540
      %v6555 = vsel %vm1125, %v6526, %v6542
      %v6556 = vsel %vm1125, %v6528, %v6544
      %v6557 = vsel %vm1125, %v6530, %v6546
      %v6558 = vsel %vm1125, %v6532, %v6548
      %v6559 = vsel %vm1125, %v6534, %v6550
      %v6560 = vsel %vm1125, %v6536, %v6552
      %v6561 = vsel %vm1125, %v6506, %v6522
      %v6562 = vsel %vm1125, %v6508, %v6524
      %v6563 = vsel %vm1125, %v6510, %v6526
      %v6564 = vsel %vm1125, %v6512, %v6528
      %v6565 = vsel %vm1125, %v6514, %v6530
      %v6566 = vsel %vm1125, %v6516, %v6532
      %v6567 = vsel %vm1125, %v6518, %v6534
      %v6568 = vsel %vm1125, %v6520, %v6536
      %v6569 = vsel %vm1125, %v6538, %v6506
      %v6570 = vsel %vm1125, %v6540, %v6508
      %v6571 = vsel %vm1125, %v6542, %v6510
      %v6572 = vsel %vm1125, %v6544, %v6512
      %v6573 = vsel %vm1125, %v6546, %v6514
      %v6574 = vsel %vm1125, %v6548, %v6516
      %v6575 = vsel %vm1125, %v6550, %v6518
      %v6576 = vsel %vm1125, %v6552, %v6520
      %6577 = vrot.lane.b32.xlu0 %v6463, 127
      %v6578 = vpop.permute.xlu0 %6577
      %6579 = vrot.lane.b32.xlu0 %v6466, 127
      %v6580 = vpop.permute.xlu0 %6579
      %6581 = vrot.lane.b32.xlu0 %v6469, 127
      %v6582 = vpop.permute.xlu0 %6581
      %6583 = vrot.lane.b32.xlu0 %v6472, 127
      %v6584 = vpop.permute.xlu0 %6583
      %6585 = vrot.lane.b32.xlu0 %v6475, 127
      %v6586 = vpop.permute.xlu0 %6585
      %6587 = vrot.lane.b32.xlu0 %v6478, 127
      %v6588 = vpop.permute.xlu0 %6587
      %6589 = vrot.lane.b32.xlu0 %v6481, 127
      %v6590 = vpop.permute.xlu0 %6589
      %6591 = vrot.lane.b32.xlu0 %v6484, 127
      %v6592 = vpop.permute.xlu0 %6591
      %6593 = vrot.lane.b32.xlu0 %v6464, 127
      %v6594 = vpop.permute.xlu0 %6593
      %6595 = vrot.lane.b32.xlu0 %v6467, 127
      %v6596 = vpop.permute.xlu0 %6595
      %6597 = vrot.lane.b32.xlu0 %v6470, 127
      %v6598 = vpop.permute.xlu0 %6597
      %6599 = vrot.lane.b32.xlu0 %v6473, 127
      %v6600 = vpop.permute.xlu0 %6599
      %6601 = vrot.lane.b32.xlu0 %v6476, 127
      %v6602 = vpop.permute.xlu0 %6601
      %6603 = vrot.lane.b32.xlu0 %v6479, 127
      %v6604 = vpop.permute.xlu0 %6603
      %6605 = vrot.lane.b32.xlu0 %v6482, 127
      %v6606 = vpop.permute.xlu0 %6605
      %6607 = vrot.lane.b32.xlu0 %v6485, 127
      %v6608 = vpop.permute.xlu0 %6607
      %6609 = vrot.lane.b32.xlu0 %v6465, 127
      %v6610 = vpop.permute.xlu0 %6609
      %6611 = vrot.lane.b32.xlu0 %v6468, 127
      %v6612 = vpop.permute.xlu0 %6611
      %6613 = vrot.lane.b32.xlu0 %v6471, 127
      %v6614 = vpop.permute.xlu0 %6613
      %6615 = vrot.lane.b32.xlu0 %v6474, 127
      %v6616 = vpop.permute.xlu0 %6615
      %6617 = vrot.lane.b32.xlu0 %v6477, 127
      %v6618 = vpop.permute.xlu0 %6617
      %6619 = vrot.lane.b32.xlu0 %v6480, 127
      %v6620 = vpop.permute.xlu0 %6619
      %6621 = vrot.lane.b32.xlu0 %v6483, 127
      %v6622 = vpop.permute.xlu0 %6621
      %6623 = vrot.lane.b32.xlu0 %v6486, 127
      %v6624 = vpop.permute.xlu0 %6623
      %v6625 = vsel %vm1222, %v6594, %v6610
      %v6626 = vsel %vm1222, %v6596, %v6612
      %v6627 = vsel %vm1222, %v6598, %v6614
      %v6628 = vsel %vm1222, %v6600, %v6616
      %v6629 = vsel %vm1222, %v6602, %v6618
      %v6630 = vsel %vm1222, %v6604, %v6620
      %v6631 = vsel %vm1222, %v6606, %v6622
      %v6632 = vsel %vm1222, %v6608, %v6624
      %v6633 = vsel %vm1222, %v6578, %v6594
      %v6634 = vsel %vm1222, %v6580, %v6596
      %v6635 = vsel %vm1222, %v6582, %v6598
      %v6636 = vsel %vm1222, %v6584, %v6600
      %v6637 = vsel %vm1222, %v6586, %v6602
      %v6638 = vsel %vm1222, %v6588, %v6604
      %v6639 = vsel %vm1222, %v6590, %v6606
      %v6640 = vsel %vm1222, %v6592, %v6608
      %v6641 = vsel %vm1222, %v6610, %v6578
      %v6642 = vsel %vm1222, %v6612, %v6580
      %v6643 = vsel %vm1222, %v6614, %v6582
      %v6644 = vsel %vm1222, %v6616, %v6584
      %v6645 = vsel %vm1222, %v6618, %v6586
      %v6646 = vsel %vm1222, %v6620, %v6588
      %v6647 = vsel %vm1222, %v6622, %v6590
      %v6648 = vsel %vm1222, %v6624, %v6592
      %v6649 = vpack.c.bf16 %v6570, %v6569
      %v6650 = vpack.c.bf16 %v6562, %v6561
      %v6651 = vpack.c.bf16 %v6554, %v6553
      %v6652 = vpack.c.bf16 %v6572, %v6571
      %v6653 = vpack.c.bf16 %v6564, %v6563
      %v6654 = vpack.c.bf16 %v6556, %v6555
      %v6655 = vpack.c.bf16 %v6574, %v6573
      %v6656 = vpack.c.bf16 %v6566, %v6565
      %v6657 = vpack.c.bf16 %v6558, %v6557
      %v6658 = vpack.c.bf16 %v6576, %v6575
      %v6659 = vpack.c.bf16 %v6568, %v6567
      %v6660 = vpack.c.bf16 %v6560, %v6559
      %v6661 = vpack.c.bf16 %v6466, %v6463
      %v6662 = vpack.c.bf16 %v6467, %v6464
      %v6663 = vpack.c.bf16 %v6468, %v6465
      %v6664 = vpack.c.bf16 %v6472, %v6469
      %v6665 = vpack.c.bf16 %v6473, %v6470
      %v6666 = vpack.c.bf16 %v6474, %v6471
      %v6667 = vpack.c.bf16 %v6478, %v6475
      %v6668 = vpack.c.bf16 %v6479, %v6476
      %v6669 = vpack.c.bf16 %v6480, %v6477
      %v6670 = vpack.c.bf16 %v6484, %v6481
      %v6671 = vpack.c.bf16 %v6485, %v6482
      %v6672 = vpack.c.bf16 %v6486, %v6483
      %v6673 = vpack.c.bf16 %v6634, %v6633
      %v6674 = vpack.c.bf16 %v6626, %v6625
      %v6675 = vpack.c.bf16 %v6642, %v6641
      %v6676 = vpack.c.bf16 %v6636, %v6635
      %v6677 = vpack.c.bf16 %v6628, %v6627
      %v6678 = vpack.c.bf16 %v6644, %v6643
      %v6679 = vpack.c.bf16 %v6638, %v6637
      %v6680 = vpack.c.bf16 %v6630, %v6629
      %v6681 = vpack.c.bf16 %v6646, %v6645
      %v6682 = vpack.c.bf16 %v6640, %v6639
      %v6683 = vpack.c.bf16 %v6632, %v6631
      %v6684 = vpack.c.bf16 %v6648, %v6647
      %6686 = vset.pattern.permute.xlu0 0
      %6687 = vperm.xlu0 %6686, %v6497
      %v6688 = vpop.permute.xlu0 %6687
      %6691 = vset.pattern.permute.xlu0 0
      %6692 = vperm.xlu0 %6691, %v6498
      %v6693 = vpop.permute.xlu0 %6692
      %6696 = vset.pattern.permute.xlu0 0
      %6697 = vperm.xlu0 %6696, %v6499
      %v6698 = vpop.permute.xlu0 %6697
      %6701 = vset.pattern.permute.xlu0 0
      %6702 = vperm.xlu0 %6701, %v6500
      %v6703 = vpop.permute.xlu0 %6702
      %6706 = vset.pattern.permute.xlu0 0
      %6707 = vperm.xlu0 %6706, %v6501
      %v6708 = vpop.permute.xlu0 %6707
      %6711 = vset.pattern.permute.xlu0 0
      %6712 = vperm.xlu0 %6711, %v6502
      %v6713 = vpop.permute.xlu0 %6712
      %6716 = vset.pattern.permute.xlu0 0
      %6717 = vperm.xlu0 %6716, %v6503
      %v6718 = vpop.permute.xlu0 %6717
      %6721 = vset.pattern.permute.xlu0 0
      %6722 = vperm.xlu0 %6721, %v6504
      %v6723 = vpop.permute.xlu0 %6722
      %v6733 = vunpack.c.l.b16 %v6488
      %v6734 = vunpack.c.h.b16 %v6488
      %v6735 = vunpack.c.l.b16 %v6489
      %v6736 = vunpack.c.h.b16 %v6489
      %v6737 = vunpack.c.l.b16 %v6490
      %v6738 = vunpack.c.h.b16 %v6490
      %v6739 = vunpack.c.l.b16 %v6491
      %v6740 = vunpack.c.h.b16 %v6491
      %v6741 = vunpack.c.l.b16 %v6492
      %v6742 = vunpack.c.h.b16 %v6492
      %v6743 = vunpack.c.l.b16 %v6493
      %v6744 = vunpack.c.h.b16 %v6493
      %v6745 = vunpack.c.l.b16 %v6494
      %v6746 = vunpack.c.h.b16 %v6494
      %v6747 = vunpack.c.l.b16 %v6495
      %v6748 = vunpack.c.h.b16 %v6495
      %v6749 = vpack.c.b16 %v6735, %v6733
      %v6750 = vpack.c.b16 %v6736, %v6734
      %v6751 = vpack.c.b16 %v6739, %v6737
      %v6752 = vpack.c.b16 %v6740, %v6738
      %v6753 = vpack.c.b16 %v6743, %v6741
      %v6754 = vpack.c.b16 %v6744, %v6742
      %v6755 = vpack.c.b16 %v6747, %v6745
      %v6756 = vpack.c.b16 %v6748, %v6746
      %v6762 = vsel %vm872, %v6750, 0
      %v6765 = vsel %vm872, %v6752, 0
      %v6768 = vsel %vm872, %v6754, 0
      %v6771 = vsel %vm872, %v6756, 0
      %6773 = vmatpush.bf16.msra.mxu0 %v6670
      %6774 = vmatpush.bf16.msra.mxu0 %v6667
      %6775 = vmatpush.bf16.msra.mxu0 %v6664
      %6776 = vmatpush.bf16.msra.mxu0 %v6661
      %6777 = vmatpush.bf16.msra.mxu0 %v6658
      %6778 = vmatpush.bf16.msra.mxu0 %v6655
      %6779 = vmatpush.bf16.msra.mxu0 %v6652
      %6780 = vmatpush.bf16.msra.mxu0 %v6649
      %6781 = vmatmul.bf16.gmra.mxu0 %v6749
      %v6782 = vpop.f32.mrf.mxu0
      %v6783 = vadd.f32 %v6688, %v6782
      %v6784 = vpop.f32.mrf.mxu0
      %v6785 = vadd.f32 %v6693, %v6784
      %6786 = vmatmul.bf16.gmra.mxu0 %v6751
      %v6787 = vpop.f32.mrf.mxu0
      %v6788 = vadd.f32 %v6698, %v6787
      %v6789 = vpop.f32.mrf.mxu0
      %v6790 = vadd.f32 %v6703, %v6789
      %6791 = vmatmul.bf16.gmra.mxu0 %v6753
      %v6792 = vpop.f32.mrf.mxu0
      %v6793 = vadd.f32 %v6708, %v6792
      %v6794 = vpop.f32.mrf.mxu0
      %v6795 = vadd.f32 %v6713, %v6794
      %6796 = vmatmul.bf16.gmra.mxu0 %v6755
      %v6797 = vpop.f32.mrf.mxu0
      %v6798 = vadd.f32 %v6718, %v6797
      %v6799 = vpop.f32.mrf.mxu0
      %v6800 = vadd.f32 %v6723, %v6799
      %6801 = vdwg.mxu0
      %6802 = vmatpush.bf16.msra.mxu0 0
      %6803 = vmatpush.bf16.msra.mxu0 0
      %6804 = vmatpush.bf16.msra.mxu0 0
      %6805 = vmatpush.bf16.msra.mxu0 0
      %6806 = vmatpush.bf16.msra.mxu0 %v6682
      %6807 = vmatpush.bf16.msra.mxu0 %v6679
      %6808 = vmatpush.bf16.msra.mxu0 %v6676
      %6809 = vmatpush.bf16.msra.mxu0 %v6673
      %6810 = vmatmul.bf16.gmra.mxu0 %v6762
      %v6811 = vpop.f32.mrf.mxu0
      %v6812 = vadd.f32 %v6783, %v6811
      %v6813 = vpop.f32.mrf.mxu0
      %v6814 = vadd.f32 %v6785, %v6813
      %6815 = vmatmul.bf16.gmra.mxu0 %v6765
      %v6816 = vpop.f32.mrf.mxu0
      %v6817 = vadd.f32 %v6788, %v6816
      %v6818 = vpop.f32.mrf.mxu0
      %v6819 = vadd.f32 %v6790, %v6818
      %6820 = vmatmul.bf16.gmra.mxu0 %v6768
      %v6821 = vpop.f32.mrf.mxu0
      %v6822 = vadd.f32 %v6793, %v6821
      %v6823 = vpop.f32.mrf.mxu0
      %v6824 = vadd.f32 %v6795, %v6823
      %6825 = vmatmul.bf16.gmra.mxu0 %v6771
      %v6826 = vpop.f32.mrf.mxu0
      %v6827 = vadd.f32 %v6798, %v6826
      %v6828 = vpop.f32.mrf.mxu0
      %v6829 = vadd.f32 %v6800, %v6828
      %6830 = vdwg.mxu0
      %6831 = vmatpush.bf16.msra.mxu0 %v6671
      %6832 = vmatpush.bf16.msra.mxu0 %v6668
      %6833 = vmatpush.bf16.msra.mxu0 %v6665
      %6834 = vmatpush.bf16.msra.mxu0 %v6662
      %6835 = vmatpush.bf16.msra.mxu0 %v6659
      %6836 = vmatpush.bf16.msra.mxu0 %v6656
      %6837 = vmatpush.bf16.msra.mxu0 %v6653
      %6838 = vmatpush.bf16.msra.mxu0 %v6650
      %6839 = vmatmul.bf16.gmra.mxu0 %v6749
      %v6840 = vpop.f32.mrf.mxu0
      %v6841 = vadd.f32 %v6688, %v6840
      %v6842 = vpop.f32.mrf.mxu0
      %v6843 = vadd.f32 %v6693, %v6842
      %6844 = vmatmul.bf16.gmra.mxu0 %v6751
      %v6845 = vpop.f32.mrf.mxu0
      %v6846 = vadd.f32 %v6698, %v6845
      %v6847 = vpop.f32.mrf.mxu0
      %v6848 = vadd.f32 %v6703, %v6847
      %6849 = vmatmul.bf16.gmra.mxu0 %v6753
      %v6850 = vpop.f32.mrf.mxu0
      %v6851 = vadd.f32 %v6708, %v6850
      %v6852 = vpop.f32.mrf.mxu0
      %v6853 = vadd.f32 %v6713, %v6852
      %6854 = vmatmul.bf16.gmra.mxu0 %v6755
      %v6855 = vpop.f32.mrf.mxu0
      %v6856 = vadd.f32 %v6718, %v6855
      %v6857 = vpop.f32.mrf.mxu0
      %v6858 = vadd.f32 %v6723, %v6857
      %6859 = vdwg.mxu0
      %6860 = vmatpush.bf16.msra.mxu0 0
      %6861 = vmatpush.bf16.msra.mxu0 0
      %6862 = vmatpush.bf16.msra.mxu0 0
      %6863 = vmatpush.bf16.msra.mxu0 0
      %6864 = vmatpush.bf16.msra.mxu0 %v6683
      %6865 = vmatpush.bf16.msra.mxu0 %v6680
      %6866 = vmatpush.bf16.msra.mxu0 %v6677
      %6867 = vmatpush.bf16.msra.mxu0 %v6674
      %6868 = vmatmul.bf16.gmra.mxu0 %v6762
      %v6869 = vpop.f32.mrf.mxu0
      %v6870 = vadd.f32 %v6841, %v6869
      %v6871 = vpop.f32.mrf.mxu0
      %v6872 = vadd.f32 %v6843, %v6871
      %6873 = vmatmul.bf16.gmra.mxu0 %v6765
      %v6874 = vpop.f32.mrf.mxu0
      %v6875 = vadd.f32 %v6846, %v6874
      %v6876 = vpop.f32.mrf.mxu0
      %v6877 = vadd.f32 %v6848, %v6876
      %6878 = vmatmul.bf16.gmra.mxu0 %v6768
      %v6879 = vpop.f32.mrf.mxu0
      %v6880 = vadd.f32 %v6851, %v6879
      %v6881 = vpop.f32.mrf.mxu0
      %v6882 = vadd.f32 %v6853, %v6881
      %6883 = vmatmul.bf16.gmra.mxu0 %v6771
      %v6884 = vpop.f32.mrf.mxu0
      %v6885 = vadd.f32 %v6856, %v6884
      %v6886 = vpop.f32.mrf.mxu0
      %v6887 = vadd.f32 %v6858, %v6886
      %6888 = vdwg.mxu0
      %6889 = vmatpush.bf16.msra.mxu0 %v6672
      %6890 = vmatpush.bf16.msra.mxu0 %v6669
      %6891 = vmatpush.bf16.msra.mxu0 %v6666
      %6892 = vmatpush.bf16.msra.mxu0 %v6663
      %6893 = vmatpush.bf16.msra.mxu0 %v6660
      %6894 = vmatpush.bf16.msra.mxu0 %v6657
      %6895 = vmatpush.bf16.msra.mxu0 %v6654
      %6896 = vmatpush.bf16.msra.mxu0 %v6651
      %6897 = vmatmul.bf16.gmra.mxu0 %v6749
      %v6898 = vpop.f32.mrf.mxu0
      %v6899 = vadd.f32 %v6688, %v6898
      %v6900 = vpop.f32.mrf.mxu0
      %v6901 = vadd.f32 %v6693, %v6900
      %6902 = vmatmul.bf16.gmra.mxu0 %v6751
      %v6903 = vpop.f32.mrf.mxu0
      %v6904 = vadd.f32 %v6698, %v6903
      %v6905 = vpop.f32.mrf.mxu0
      %v6906 = vadd.f32 %v6703, %v6905
      %6907 = vmatmul.bf16.gmra.mxu0 %v6753
      %v6908 = vpop.f32.mrf.mxu0
      %v6909 = vadd.f32 %v6708, %v6908
      %v6910 = vpop.f32.mrf.mxu0
      %v6911 = vadd.f32 %v6713, %v6910
      %6912 = vmatmul.bf16.gmra.mxu0 %v6755
      %v6913 = vpop.f32.mrf.mxu0
      %v6914 = vadd.f32 %v6718, %v6913
      %v6915 = vpop.f32.mrf.mxu0
      %v6916 = vadd.f32 %v6723, %v6915
      %6917 = vdwg.mxu0
      %6918 = vmatpush.bf16.msra.mxu0 0
      %6919 = vmatpush.bf16.msra.mxu0 0
      %6920 = vmatpush.bf16.msra.mxu0 0
      %6921 = vmatpush.bf16.msra.mxu0 0
      %6922 = vmatpush.bf16.msra.mxu0 %v6684
      %6923 = vmatpush.bf16.msra.mxu0 %v6681
      %6924 = vmatpush.bf16.msra.mxu0 %v6678
      %6925 = vmatpush.bf16.msra.mxu0 %v6675
      %6926 = vmatmul.bf16.gmra.mxu0 %v6762
      %v6927 = vpop.f32.mrf.mxu0
      %v6928 = vadd.f32 %v6899, %v6927
      %v6929 = vpop.f32.mrf.mxu0
      %v6930 = vadd.f32 %v6901, %v6929
      %6931 = vmatmul.bf16.gmra.mxu0 %v6765
      %v6932 = vpop.f32.mrf.mxu0
      %v6933 = vadd.f32 %v6904, %v6932
      %v6934 = vpop.f32.mrf.mxu0
      %v6935 = vadd.f32 %v6906, %v6934
      %6936 = vmatmul.bf16.gmra.mxu0 %v6768
      %v6937 = vpop.f32.mrf.mxu0
      %v6938 = vadd.f32 %v6909, %v6937
      %v6939 = vpop.f32.mrf.mxu0
      %v6940 = vadd.f32 %v6911, %v6939
      %6941 = vmatmul.bf16.gmra.mxu0 %v6771
      %v6942 = vpop.f32.mrf.mxu0
      %v6943 = vadd.f32 %v6914, %v6942
      %v6944 = vpop.f32.mrf.mxu0
      %v6945 = vadd.f32 %v6916, %v6944
      %6946 = vdwg.mxu0
      %v6947 = vmax.f32 %v6812, 0.0
      %v6948 = vmax.f32 %v6870, 0.0
      %v6949 = vmax.f32 %v6928, 0.0
      %v6950 = vmax.f32 %v6814, 0.0
      %v6951 = vmax.f32 %v6872, 0.0
      %v6952 = vmax.f32 %v6930, 0.0
      %v6953 = vmax.f32 %v6817, 0.0
      %v6954 = vmax.f32 %v6875, 0.0
      %v6955 = vmax.f32 %v6933, 0.0
      %v6956 = vmax.f32 %v6819, 0.0
      %v6957 = vmax.f32 %v6877, 0.0
      %v6958 = vmax.f32 %v6935, 0.0
      %v6959 = vmax.f32 %v6822, 0.0
      %v6960 = vmax.f32 %v6880, 0.0
      %v6961 = vmax.f32 %v6938, 0.0
      %v6962 = vmax.f32 %v6824, 0.0
      %v6963 = vmax.f32 %v6882, 0.0
      %v6964 = vmax.f32 %v6940, 0.0
      %v6965 = vmax.f32 %v6827, 0.0
      %v6966 = vmax.f32 %v6885, 0.0
      %v6967 = vmax.f32 %v6943, 0.0
      %v6968 = vmax.f32 %v6829, 0.0
      %v6969 = vmax.f32 %v6887, 0.0
      %v6970 = vmax.f32 %v6945, 0.0
      %v6971 = vmul.f32 %v6947, %v4934
      %v6972 = vmul.f32 %v6948, %v4935
      %v6973 = vmul.f32 %v6949, %v4936
      %v6974 = vmul.f32 %v6950, %v4934
      %v6975 = vmul.f32 %v6951, %v4935
      %v6976 = vmul.f32 %v6952, %v4936
      %v6977 = vmul.f32 %v6953, %v4934
      %v6978 = vmul.f32 %v6954, %v4935
      %v6979 = vmul.f32 %v6955, %v4936
      %v6980 = vmul.f32 %v6956, %v4934
      %v6981 = vmul.f32 %v6957, %v4935
      %v6982 = vmul.f32 %v6958, %v4936
      %v6983 = vmul.f32 %v6959, %v4934
      %v6984 = vmul.f32 %v6960, %v4935
      %v6985 = vmul.f32 %v6961, %v4936
      %v6986 = vmul.f32 %v6962, %v4934
      %v6987 = vmul.f32 %v6963, %v4935
      %v6988 = vmul.f32 %v6964, %v4936
      %v6989 = vmul.f32 %v6965, %v4934
      %v6990 = vmul.f32 %v6966, %v4935
      %v6991 = vmul.f32 %v6967, %v4936
      %v6992 = vmul.f32 %v6968, %v4934
      %v6993 = vmul.f32 %v6969, %v4935
      %v6994 = vmul.f32 %v6970, %v4936
      %6995 = vrot.lane.b32.xlu0 %v6971, 127
      %v6996 = vpop.permute.xlu0 %6995
      %6997 = vrot.lane.b32.xlu0 %v6974, 127
      %v6998 = vpop.permute.xlu0 %6997
      %6999 = vrot.lane.b32.xlu0 %v6977, 127
      %v7000 = vpop.permute.xlu0 %6999
      %7001 = vrot.lane.b32.xlu0 %v6980, 127
      %v7002 = vpop.permute.xlu0 %7001
      %7003 = vrot.lane.b32.xlu0 %v6983, 127
      %v7004 = vpop.permute.xlu0 %7003
      %7005 = vrot.lane.b32.xlu0 %v6986, 127
      %v7006 = vpop.permute.xlu0 %7005
      %7007 = vrot.lane.b32.xlu0 %v6989, 127
      %v7008 = vpop.permute.xlu0 %7007
      %7009 = vrot.lane.b32.xlu0 %v6992, 127
      %v7010 = vpop.permute.xlu0 %7009
      %7011 = vrot.lane.b32.xlu0 %v6972, 127
      %v7012 = vpop.permute.xlu0 %7011
      %7013 = vrot.lane.b32.xlu0 %v6975, 127
      %v7014 = vpop.permute.xlu0 %7013
      %7015 = vrot.lane.b32.xlu0 %v6978, 127
      %v7016 = vpop.permute.xlu0 %7015
      %7017 = vrot.lane.b32.xlu0 %v6981, 127
      %v7018 = vpop.permute.xlu0 %7017
      %7019 = vrot.lane.b32.xlu0 %v6984, 127
      %v7020 = vpop.permute.xlu0 %7019
      %7021 = vrot.lane.b32.xlu0 %v6987, 127
      %v7022 = vpop.permute.xlu0 %7021
      %7023 = vrot.lane.b32.xlu0 %v6990, 127
      %v7024 = vpop.permute.xlu0 %7023
      %7025 = vrot.lane.b32.xlu0 %v6993, 127
      %v7026 = vpop.permute.xlu0 %7025
      %7027 = vrot.lane.b32.xlu0 %v6973, 127
      %v7028 = vpop.permute.xlu0 %7027
      %7029 = vrot.lane.b32.xlu0 %v6976, 127
      %v7030 = vpop.permute.xlu0 %7029
      %7031 = vrot.lane.b32.xlu0 %v6979, 127
      %v7032 = vpop.permute.xlu0 %7031
      %7033 = vrot.lane.b32.xlu0 %v6982, 127
      %v7034 = vpop.permute.xlu0 %7033
      %7035 = vrot.lane.b32.xlu0 %v6985, 127
      %v7036 = vpop.permute.xlu0 %7035
      %7037 = vrot.lane.b32.xlu0 %v6988, 127
      %v7038 = vpop.permute.xlu0 %7037
      %7039 = vrot.lane.b32.xlu0 %v6991, 127
      %v7040 = vpop.permute.xlu0 %7039
      %7041 = vrot.lane.b32.xlu0 %v6994, 127
      %v7042 = vpop.permute.xlu0 %7041
      %v7043 = vsel %vm1222, %v7012, %v7028
      %v7044 = vsel %vm1222, %v7014, %v7030
      %v7045 = vsel %vm1222, %v7016, %v7032
      %v7046 = vsel %vm1222, %v7018, %v7034
      %v7047 = vsel %vm1222, %v7020, %v7036
      %v7048 = vsel %vm1222, %v7022, %v7038
      %v7049 = vsel %vm1222, %v7024, %v7040
      %v7050 = vsel %vm1222, %v7026, %v7042
      %v7051 = vsel %vm1222, %v6996, %v7012
      %v7052 = vsel %vm1222, %v6998, %v7014
      %v7053 = vsel %vm1222, %v7000, %v7016
      %v7054 = vsel %vm1222, %v7002, %v7018
      %v7055 = vsel %vm1222, %v7004, %v7020
      %v7056 = vsel %vm1222, %v7006, %v7022
      %v7057 = vsel %vm1222, %v7008, %v7024
      %v7058 = vsel %vm1222, %v7010, %v7026
      %v7059 = vsel %vm1222, %v7028, %v6996
      %v7060 = vsel %vm1222, %v7030, %v6998
      %v7061 = vsel %vm1222, %v7032, %v7000
      %v7062 = vsel %vm1222, %v7034, %v7002
      %v7063 = vsel %vm1222, %v7036, %v7004
      %v7064 = vsel %vm1222, %v7038, %v7006
      %v7065 = vsel %vm1222, %v7040, %v7008
      %v7066 = vsel %vm1222, %v7042, %v7010
      %v7067 = vmax.f32 %v6971, %v7051
      %v7068 = vmax.f32 %v6972, %v7043
      %v7069 = vmax.f32 %v6973, %v7059
      %v7070 = vmax.f32 %v6974, %v7052
      %v7071 = vmax.f32 %v6975, %v7044
      %v7072 = vmax.f32 %v6976, %v7060
      %v7073 = vmax.f32 %v6977, %v7053
      %v7074 = vmax.f32 %v6978, %v7045
      %v7075 = vmax.f32 %v6979, %v7061
      %v7076 = vmax.f32 %v6980, %v7054
      %v7077 = vmax.f32 %v6981, %v7046
      %v7078 = vmax.f32 %v6982, %v7062
      %v7079 = vmax.f32 %v6983, %v7055
      %v7080 = vmax.f32 %v6984, %v7047
      %v7081 = vmax.f32 %v6985, %v7063
      %v7082 = vmax.f32 %v6986, %v7056
      %v7083 = vmax.f32 %v6987, %v7048
      %v7084 = vmax.f32 %v6988, %v7064
      %v7085 = vmax.f32 %v6989, %v7057
      %v7086 = vmax.f32 %v6990, %v7049
      %v7087 = vmax.f32 %v6991, %v7065
      %v7088 = vmax.f32 %v6992, %v7058
      %v7089 = vmax.f32 %v6993, %v7050
      %v7090 = vmax.f32 %v6994, %v7066
      %v7091 = vpack.c.bf16 %v7070, %v7067
      %v7092 = vpack.c.bf16 %v7071, %v7068
      %v7093 = vpack.c.bf16 %v7072, %v7069
      %v7094 = vpack.c.bf16 %v7076, %v7073
      %v7095 = vpack.c.bf16 %v7077, %v7074
      %v7096 = vpack.c.bf16 %v7078, %v7075
      %v7097 = vpack.c.bf16 %v7082, %v7079
      %v7098 = vpack.c.bf16 %v7083, %v7080
      %v7099 = vpack.c.bf16 %v7084, %v7081
      %v7100 = vpack.c.bf16 %v7088, %v7085
      %v7101 = vpack.c.bf16 %v7089, %v7086
      %v7102 = vpack.c.bf16 %v7090, %v7087
      %v7103 = vld [vmem:[%s12] sm:$0xf]
      %v7104 = vld [vmem:[%s12 + $0x4] sm:$0xf]
      %v7105 = vld [vmem:[%s12 + $0x8] sm:$0xf]
      %v7106 = vld [vmem:[%s12 + $0xc] sm:$0xf]
      %v7107 = vld [vmem:[%s12 + $0x10] sm:$0xf]
      %v7108 = vld [vmem:[%s12 + $0x14] sm:$0xf]
      %v7109 = vld [vmem:[%s12 + $0x18] sm:$0xf]
      %v7110 = vld [vmem:[%s12 + $0x1c] sm:$0xf]
      %v7111 = vld [vmem:[%s12 + $0x20] sm:$0xf]
      %v7112 = vld [vmem:[%s12 + $0x24] sm:$0xf]
      %v7113 = vld [vmem:[%s12 + $0x28] sm:$0xf]
      %v7114 = vld [vmem:[%s12 + $0x2c] sm:$0xf]
      %v7115 = vld [vmem:[%s12 + $0x30] sm:$0xf]
      %v7116 = vld [vmem:[%s12 + $0x34] sm:$0xf]
      %v7117 = vld [vmem:[%s12 + $0x38] sm:$0xf]
      %v7118 = vld [vmem:[%s12 + $0x3c] sm:$0xf]
      %v7119 = vld [vmem:[%s12 + $0x40] sm:$0xf]
      %v7120 = vld [vmem:[%s12 + $0x44] sm:$0xf]
      %v7121 = vld [vmem:[%s12 + $0x48] sm:$0xf]
      %v7122 = vld [vmem:[%s12 + $0x4c] sm:$0xf]
      %v7123 = vld [vmem:[%s12 + $0x50] sm:$0xf]
      %v7124 = vld [vmem:[%s12 + $0x54] sm:$0xf]
      %v7125 = vld [vmem:[%s12 + $0x58] sm:$0xf]
      %v7126 = vld [vmem:[%s12 + $0x5c] sm:$0xf]
      %v7127 = vld [vmem:[%s12 + $0x60] sm:$0xf]
      %v7128 = vld [vmem:[%s12 + $0x64] sm:$0xf]
      %v7129 = vld [vmem:[%s12 + $0x68] sm:$0xf]
      %v7130 = vld [vmem:[%s12 + $0x6c] sm:$0xf]
      %v7131 = vld [vmem:[%s12 + $0x70] sm:$0xf]
      %v7132 = vld [vmem:[%s12 + $0x74] sm:$0xf]
      %v7133 = vld [vmem:[%s12 + $0x78] sm:$0xf]
      %v7134 = vld [vmem:[%s12 + $0x7c] sm:$0xf]
      %v7135 = vld [vmem:[%s12 + $0x80] sm:$0xf]
      %v7136 = vld [vmem:[%s12 + $0x84] sm:$0xf]
      %v7137 = vld [vmem:[%s12 + $0x88] sm:$0xf]
      %v7138 = vld [vmem:[%s12 + $0x8c] sm:$0xf]
      %v7139 = vld [vmem:[%s12 + $0x90] sm:$0xf]
      %v7140 = vld [vmem:[%s12 + $0x94] sm:$0xf]
      %v7141 = vld [vmem:[%s12 + $0x98] sm:$0xf]
      %v7142 = vld [vmem:[%s12 + $0x9c] sm:$0xf]
      %v7143 = vld [vmem:[%s12 + $0xa0] sm:$0xf]
      %v7144 = vld [vmem:[%s12 + $0xa4] sm:$0xf]
      %v7145 = vld [vmem:[%s12 + $0xa8] sm:$0xf]
      %v7146 = vld [vmem:[%s12 + $0xac] sm:$0xf]
      %v7147 = vld [vmem:[%s12 + $0xb0] sm:$0xf]
      %v7148 = vld [vmem:[%s12 + $0xb4] sm:$0xf]
      %v7149 = vld [vmem:[%s12 + $0xb8] sm:$0xf]
      %v7150 = vld [vmem:[%s12 + $0xbc] sm:$0xf]
      %v7199 = vunpack.c.l.b16 %v7103
      %v7200 = vunpack.c.l.b16 %v7104
      %v7201 = vunpack.c.l.b16 %v7105
      %v7202 = vunpack.c.l.b16 %v7106
      %v7203 = vunpack.c.l.b16 %v7107
      %v7204 = vunpack.c.l.b16 %v7108
      %v7205 = vunpack.c.l.b16 %v7109
      %v7206 = vunpack.c.l.b16 %v7110
      %v7207 = vunpack.c.l.b16 %v7111
      %v7208 = vunpack.c.l.b16 %v7112
      %v7209 = vunpack.c.l.b16 %v7113
      %v7210 = vunpack.c.l.b16 %v7114
      %v7211 = vunpack.c.l.b16 %v7115
      %v7212 = vunpack.c.l.b16 %v7116
      %v7213 = vunpack.c.l.b16 %v7117
      %v7214 = vunpack.c.l.b16 %v7118
      %v7215 = vunpack.c.l.b16 %v7119
      %v7216 = vunpack.c.l.b16 %v7120
      %v7217 = vunpack.c.l.b16 %v7121
      %v7218 = vunpack.c.l.b16 %v7122
      %v7219 = vunpack.c.l.b16 %v7123
      %v7220 = vunpack.c.l.b16 %v7124
      %v7221 = vunpack.c.l.b16 %v7125
      %v7222 = vunpack.c.l.b16 %v7126
      %v7223 = vunpack.c.l.b16 %v7127
      %v7224 = vunpack.c.l.b16 %v7128
      %v7225 = vunpack.c.l.b16 %v7129
      %v7226 = vunpack.c.l.b16 %v7130
      %v7227 = vunpack.c.l.b16 %v7131
      %v7228 = vunpack.c.l.b16 %v7132
      %v7229 = vunpack.c.l.b16 %v7133
      %v7230 = vunpack.c.l.b16 %v7134
      %v7231 = vunpack.c.l.b16 %v7135
      %v7232 = vunpack.c.l.b16 %v7136
      %v7233 = vunpack.c.l.b16 %v7137
      %v7234 = vunpack.c.l.b16 %v7138
      %v7235 = vunpack.c.l.b16 %v7139
      %v7236 = vunpack.c.l.b16 %v7140
      %v7237 = vunpack.c.l.b16 %v7141
      %v7238 = vunpack.c.l.b16 %v7142
      %v7239 = vunpack.c.l.b16 %v7143
      %v7240 = vunpack.c.l.b16 %v7144
      %v7241 = vunpack.c.l.b16 %v7145
      %v7242 = vunpack.c.l.b16 %v7146
      %v7243 = vunpack.c.l.b16 %v7147
      %v7244 = vunpack.c.l.b16 %v7148
      %v7245 = vunpack.c.l.b16 %v7149
      %v7246 = vunpack.c.l.b16 %v7150
      %v7247 = vpack.c.b16 %v7200, %v7199
      %v7248 = vpack.c.b16 %v7202, %v7201
      %v7249 = vpack.c.b16 %v7204, %v7203
      %v7250 = vpack.c.b16 %v7206, %v7205
      %v7251 = vpack.c.b16 %v7208, %v7207
      %v7252 = vpack.c.b16 %v7210, %v7209
      %v7253 = vpack.c.b16 %v7212, %v7211
      %v7254 = vpack.c.b16 %v7214, %v7213
      %v7255 = vpack.c.b16 %v7216, %v7215
      %v7256 = vpack.c.b16 %v7218, %v7217
      %v7257 = vpack.c.b16 %v7220, %v7219
      %v7258 = vpack.c.b16 %v7222, %v7221
      %v7259 = vpack.c.b16 %v7224, %v7223
      %v7260 = vpack.c.b16 %v7226, %v7225
      %v7261 = vpack.c.b16 %v7228, %v7227
      %v7262 = vpack.c.b16 %v7230, %v7229
      %v7263 = vpack.c.b16 %v7232, %v7231
      %v7264 = vpack.c.b16 %v7234, %v7233
      %v7265 = vpack.c.b16 %v7236, %v7235
      %v7266 = vpack.c.b16 %v7238, %v7237
      %v7267 = vpack.c.b16 %v7240, %v7239
      %v7268 = vpack.c.b16 %v7242, %v7241
      %v7269 = vpack.c.b16 %v7244, %v7243
      %v7270 = vpack.c.b16 %v7246, %v7245
      %7295 = vmatpush.bf16.msra.mxu0 %v7254
      %7296 = vmatpush.bf16.msra.mxu0 %v7253
      %7297 = vmatpush.bf16.msra.mxu0 %v7252
      %7298 = vmatpush.bf16.msra.mxu0 %v7251
      %7299 = vmatpush.bf16.msra.mxu0 %v7250
      %7300 = vmatpush.bf16.msra.mxu0 %v7249
      %7301 = vmatpush.bf16.msra.mxu0 %v7248
      %7302 = vmatpush.bf16.msra.mxu0 %v7247
      %7303 = vmatmul.bf16.gmra.mxu0 %v7091
      %v7304 = vpop.f32.mrf.mxu0
      %v7305 = vadd.f32 0.0, %v7304
      %v7306 = vpop.f32.mrf.mxu0
      %v7307 = vadd.f32 0.0, %v7306
      %7308 = vmatmul.bf16.gmra.mxu0 %v7094
      %v7309 = vpop.f32.mrf.mxu0
      %v7310 = vadd.f32 0.0, %v7309
      %v7311 = vpop.f32.mrf.mxu0
      %v7312 = vadd.f32 0.0, %v7311
      %7313 = vmatmul.bf16.gmra.mxu0 %v7097
      %v7314 = vpop.f32.mrf.mxu0
      %v7315 = vadd.f32 0.0, %v7314
      %v7316 = vpop.f32.mrf.mxu0
      %v7317 = vadd.f32 0.0, %v7316
      %7318 = vmatmul.bf16.gmra.mxu0 %v7100
      %v7319 = vpop.f32.mrf.mxu0
      %v7320 = vadd.f32 0.0, %v7319
      %v7321 = vpop.f32.mrf.mxu0
      %v7322 = vadd.f32 0.0, %v7321
      %7323 = vdwg.mxu0
      %7324 = vmatpush.bf16.msra.mxu0 %v7262
      %7325 = vmatpush.bf16.msra.mxu0 %v7261
      %7326 = vmatpush.bf16.msra.mxu0 %v7260
      %7327 = vmatpush.bf16.msra.mxu0 %v7259
      %7328 = vmatpush.bf16.msra.mxu0 %v7258
      %7329 = vmatpush.bf16.msra.mxu0 %v7257
      %7330 = vmatpush.bf16.msra.mxu0 %v7256
      %7331 = vmatpush.bf16.msra.mxu0 %v7255
      %7332 = vmatmul.bf16.gmra.mxu0 %v7092
      %v7333 = vpop.f32.mrf.mxu0
      %v7334 = vadd.f32 %v7305, %v7333
      %v7335 = vpop.f32.mrf.mxu0
      %v7336 = vadd.f32 %v7307, %v7335
      %7337 = vmatmul.bf16.gmra.mxu0 %v7095
      %v7338 = vpop.f32.mrf.mxu0
      %v7339 = vadd.f32 %v7310, %v7338
      %v7340 = vpop.f32.mrf.mxu0
      %v7341 = vadd.f32 %v7312, %v7340
      %7342 = vmatmul.bf16.gmra.mxu0 %v7098
      %v7343 = vpop.f32.mrf.mxu0
      %v7344 = vadd.f32 %v7315, %v7343
      %v7345 = vpop.f32.mrf.mxu0
      %v7346 = vadd.f32 %v7317, %v7345
      %7347 = vmatmul.bf16.gmra.mxu0 %v7101
      %v7348 = vpop.f32.mrf.mxu0
      %v7349 = vadd.f32 %v7320, %v7348
      %v7350 = vpop.f32.mrf.mxu0
      %v7351 = vadd.f32 %v7322, %v7350
      %7352 = vdwg.mxu0
      %7353 = vmatpush.bf16.msra.mxu0 %v7270
      %7354 = vmatpush.bf16.msra.mxu0 %v7269
      %7355 = vmatpush.bf16.msra.mxu0 %v7268
      %7356 = vmatpush.bf16.msra.mxu0 %v7267
      %7357 = vmatpush.bf16.msra.mxu0 %v7266
      %7358 = vmatpush.bf16.msra.mxu0 %v7265
      %7359 = vmatpush.bf16.msra.mxu0 %v7264
      %7360 = vmatpush.bf16.msra.mxu0 %v7263
      %7361 = vmatmul.bf16.gmra.mxu0 %v7093
      %v7362 = vpop.f32.mrf.mxu0
      %v7363 = vadd.f32 %v7334, %v7362
      %v7364 = vpop.f32.mrf.mxu0
      %v7365 = vadd.f32 %v7336, %v7364
      %7366 = vmatmul.bf16.gmra.mxu0 %v7096
      %v7367 = vpop.f32.mrf.mxu0
      %v7368 = vadd.f32 %v7339, %v7367
      %v7369 = vpop.f32.mrf.mxu0
      %v7370 = vadd.f32 %v7341, %v7369
      %7371 = vmatmul.bf16.gmra.mxu0 %v7099
      %v7372 = vpop.f32.mrf.mxu0
      %v7373 = vadd.f32 %v7344, %v7372
      %v7374 = vpop.f32.mrf.mxu0
      %v7375 = vadd.f32 %v7346, %v7374
      %7376 = vmatmul.bf16.gmra.mxu0 %v7102
      %v7377 = vpop.f32.mrf.mxu0
      %v7378 = vadd.f32 %v7349, %v7377
      %v7379 = vpop.f32.mrf.mxu0
      %v7380 = vadd.f32 %v7351, %v7379
      %7381 = vdwg.mxu0
      %v7382 = vld [vmem:[%s13] sm:$0xf]
      %v7383 = vld [vmem:[%s13 + $0x4] sm:$0xf]
      %v7384 = vld [vmem:[%s13 + $0x8] sm:$0xf]
      %v7385 = vld [vmem:[%s13 + $0xc] sm:$0xf]
      %v7386 = vld [vmem:[%s13 + $0x10] sm:$0xf]
      %v7387 = vld [vmem:[%s13 + $0x14] sm:$0xf]
      %v7388 = vld [vmem:[%s13 + $0x18] sm:$0xf]
      %v7389 = vld [vmem:[%s13 + $0x1c] sm:$0xf]
      %v7390 = vunpack.c.l.bf16 %v7382
      %v7391 = vunpack.c.l.bf16 %v7383
      %v7392 = vunpack.c.l.bf16 %v7384
      %v7393 = vunpack.c.l.bf16 %v7385
      %v7394 = vunpack.c.l.bf16 %v7386
      %v7395 = vunpack.c.l.bf16 %v7387
      %v7396 = vunpack.c.l.bf16 %v7388
      %v7397 = vunpack.c.l.bf16 %v7389
      %v7398 = vmul.f32 %v7390, %v7363
      %v7399 = vmul.f32 %v7391, %v7365
      %v7400 = vmul.f32 %v7392, %v7368
      %v7401 = vmul.f32 %v7393, %v7370
      %v7402 = vmul.f32 %v7394, %v7373
      %v7403 = vmul.f32 %v7395, %v7375
      %v7404 = vmul.f32 %v7396, %v7378
      %v7405 = vmul.f32 %v7397, %v7380
      %vm7406 = vcmask 1014784
      %v7407 = vsel %vm7406, %v7398, 0.0
      %v7408 = vsel %vm7406, %v7399, 0.0
      %v7409 = vadd.f32 %v7407, %v7408
      %v7410 = vsel %vm7406, %v7400, 0.0
      %v7411 = vadd.f32 %v7409, %v7410
      %v7412 = vsel %vm7406, %v7401, 0.0
      %v7413 = vadd.f32 %v7411, %v7412
      %v7414 = vsel %vm7406, %v7402, 0.0
      %v7415 = vadd.f32 %v7413, %v7414
      %v7416 = vsel %vm7406, %v7403, 0.0
      %v7417 = vadd.f32 %v7415, %v7416
      %v7418 = vsel %vm7406, %v7404, 0.0
      %v7419 = vadd.f32 %v7417, %v7418
      %v7420 = vsel %vm7406, %v7405, 0.0
      %v7421 = vadd.f32 %v7419, %v7420
      %v7422 = vrot.slane %v7421, 4
      %v7423 = vadd.f32 %v7421, %v7422
      %v7424 = vrot.slane %v7423, 2
      %v7425 = vadd.f32 %v7423, %v7424
      %v7426 = vrot.slane %v7425, 1
      %v7427 = vadd.f32 %v7425, %v7426
      %s7428 = scalar_lea.vmem %s13, 32
      %v7429 = vld [vmem:[%s7428] sm:$0xf]
      %v7430 = vld [vmem:[%s7428 + $0x4] sm:$0xf]
      %v7431 = vld [vmem:[%s7428 + $0x8] sm:$0xf]
      %v7432 = vld [vmem:[%s7428 + $0xc] sm:$0xf]
      %v7433 = vld [vmem:[%s7428 + $0x10] sm:$0xf]
      %v7434 = vld [vmem:[%s7428 + $0x14] sm:$0xf]
      %v7435 = vld [vmem:[%s7428 + $0x18] sm:$0xf]
      %v7436 = vld [vmem:[%s7428 + $0x1c] sm:$0xf]
      %v7437 = vunpack.c.l.bf16 %v7429
      %v7438 = vunpack.c.l.bf16 %v7430
      %v7439 = vunpack.c.l.bf16 %v7431
      %v7440 = vunpack.c.l.bf16 %v7432
      %v7441 = vunpack.c.l.bf16 %v7433
      %v7442 = vunpack.c.l.bf16 %v7434
      %v7443 = vunpack.c.l.bf16 %v7435
      %v7444 = vunpack.c.l.bf16 %v7436
      %v7445 = vmul.f32 %v7437, %v7363
      %v7446 = vmul.f32 %v7438, %v7365
      %v7447 = vmul.f32 %v7439, %v7368
      %v7448 = vmul.f32 %v7440, %v7370
      %v7449 = vmul.f32 %v7441, %v7373
      %v7450 = vmul.f32 %v7442, %v7375
      %v7451 = vmul.f32 %v7443, %v7378
      %v7452 = vmul.f32 %v7444, %v7380
      %v7453 = vsel %vm7406, %v7445, 0.0
      %v7454 = vsel %vm7406, %v7446, 0.0
      %v7455 = vadd.f32 %v7453, %v7454
      %v7456 = vsel %vm7406, %v7447, 0.0
      %v7457 = vadd.f32 %v7455, %v7456
      %v7458 = vsel %vm7406, %v7448, 0.0
      %v7459 = vadd.f32 %v7457, %v7458
      %v7460 = vsel %vm7406, %v7449, 0.0
      %v7461 = vadd.f32 %v7459, %v7460
      %v7462 = vsel %vm7406, %v7450, 0.0
      %v7463 = vadd.f32 %v7461, %v7462
      %v7464 = vsel %vm7406, %v7451, 0.0
      %v7465 = vadd.f32 %v7463, %v7464
      %v7466 = vsel %vm7406, %v7452, 0.0
      %v7467 = vadd.f32 %v7465, %v7466
      %v7468 = vrot.slane %v7467, 4
      %v7469 = vadd.f32 %v7467, %v7468
      %v7470 = vrot.slane %v7469, 2
      %v7471 = vadd.f32 %v7469, %v7470
      %v7472 = vrot.slane %v7471, 1
      %v7473 = vadd.f32 %v7471, %v7472
      %s7474 = scalar_lea.vmem %s13, 64
      %v7475 = vld [vmem:[%s7474] sm:$0xf]
      %v7476 = vld [vmem:[%s7474 + $0x4] sm:$0xf]
      %v7477 = vld [vmem:[%s7474 + $0x8] sm:$0xf]
      %v7478 = vld [vmem:[%s7474 + $0xc] sm:$0xf]
      %v7479 = vld [vmem:[%s7474 + $0x10] sm:$0xf]
      %v7480 = vld [vmem:[%s7474 + $0x14] sm:$0xf]
      %v7481 = vld [vmem:[%s7474 + $0x18] sm:$0xf]
      %v7482 = vld [vmem:[%s7474 + $0x1c] sm:$0xf]
      %v7483 = vunpack.c.l.bf16 %v7475
      %v7484 = vunpack.c.l.bf16 %v7476
      %v7485 = vunpack.c.l.bf16 %v7477
      %v7486 = vunpack.c.l.bf16 %v7478
      %v7487 = vunpack.c.l.bf16 %v7479
      %v7488 = vunpack.c.l.bf16 %v7480
      %v7489 = vunpack.c.l.bf16 %v7481
      %v7490 = vunpack.c.l.bf16 %v7482
      %v7491 = vmul.f32 %v7483, %v7363
      %v7492 = vmul.f32 %v7484, %v7365
      %v7493 = vmul.f32 %v7485, %v7368
      %v7494 = vmul.f32 %v7486, %v7370
      %v7495 = vmul.f32 %v7487, %v7373
      %v7496 = vmul.f32 %v7488, %v7375
      %v7497 = vmul.f32 %v7489, %v7378
      %v7498 = vmul.f32 %v7490, %v7380
      %v7499 = vsel %vm7406, %v7491, 0.0
      %v7500 = vsel %vm7406, %v7492, 0.0
      %v7501 = vadd.f32 %v7499, %v7500
      %v7502 = vsel %vm7406, %v7493, 0.0
      %v7503 = vadd.f32 %v7501, %v7502
      %v7504 = vsel %vm7406, %v7494, 0.0
      %v7505 = vadd.f32 %v7503, %v7504
      %v7506 = vsel %vm7406, %v7495, 0.0
      %v7507 = vadd.f32 %v7505, %v7506
      %v7508 = vsel %vm7406, %v7496, 0.0
      %v7509 = vadd.f32 %v7507, %v7508
      %v7510 = vsel %vm7406, %v7497, 0.0
      %v7511 = vadd.f32 %v7509, %v7510
      %v7512 = vsel %vm7406, %v7498, 0.0
      %v7513 = vadd.f32 %v7511, %v7512
      %v7514 = vrot.slane %v7513, 4
      %v7515 = vadd.f32 %v7513, %v7514
      %v7516 = vrot.slane %v7515, 2
      %v7517 = vadd.f32 %v7515, %v7516
      %v7518 = vrot.slane %v7517, 1
      %v7519 = vadd.f32 %v7517, %v7518
      %s7520 = scalar_lea.vmem %s13, 96
      %v7521 = vld [vmem:[%s7520] sm:$0xf]
      %v7522 = vld [vmem:[%s7520 + $0x4] sm:$0xf]
      %v7523 = vld [vmem:[%s7520 + $0x8] sm:$0xf]
      %v7524 = vld [vmem:[%s7520 + $0xc] sm:$0xf]
      %v7525 = vld [vmem:[%s7520 + $0x10] sm:$0xf]
      %v7526 = vld [vmem:[%s7520 + $0x14] sm:$0xf]
      %v7527 = vld [vmem:[%s7520 + $0x18] sm:$0xf]
      %v7528 = vld [vmem:[%s7520 + $0x1c] sm:$0xf]
      %v7529 = vunpack.c.l.bf16 %v7521
      %v7530 = vunpack.c.l.bf16 %v7522
      %v7531 = vunpack.c.l.bf16 %v7523
      %v7532 = vunpack.c.l.bf16 %v7524
      %v7533 = vunpack.c.l.bf16 %v7525
      %v7534 = vunpack.c.l.bf16 %v7526
      %v7535 = vunpack.c.l.bf16 %v7527
      %v7536 = vunpack.c.l.bf16 %v7528
      %v7537 = vmul.f32 %v7529, %v7363
      %v7538 = vmul.f32 %v7530, %v7365
      %v7539 = vmul.f32 %v7531, %v7368
      %v7540 = vmul.f32 %v7532, %v7370
      %v7541 = vmul.f32 %v7533, %v7373
      %v7542 = vmul.f32 %v7534, %v7375
      %v7543 = vmul.f32 %v7535, %v7378
      %v7544 = vmul.f32 %v7536, %v7380
      %v7545 = vsel %vm7406, %v7537, 0.0
      %v7546 = vsel %vm7406, %v7538, 0.0
      %v7547 = vadd.f32 %v7545, %v7546
      %v7548 = vsel %vm7406, %v7539, 0.0
      %v7549 = vadd.f32 %v7547, %v7548
      %v7550 = vsel %vm7406, %v7540, 0.0
      %v7551 = vadd.f32 %v7549, %v7550
      %v7552 = vsel %vm7406, %v7541, 0.0
      %v7553 = vadd.f32 %v7551, %v7552
      %v7554 = vsel %vm7406, %v7542, 0.0
      %v7555 = vadd.f32 %v7553, %v7554
      %v7556 = vsel %vm7406, %v7543, 0.0
      %v7557 = vadd.f32 %v7555, %v7556
      %v7558 = vsel %vm7406, %v7544, 0.0
      %v7559 = vadd.f32 %v7557, %v7558
      %v7560 = vrot.slane %v7559, 4
      %v7561 = vadd.f32 %v7559, %v7560
      %v7562 = vrot.slane %v7561, 2
      %v7563 = vadd.f32 %v7561, %v7562
      %v7564 = vrot.slane %v7563, 1
      %v7565 = vadd.f32 %v7563, %v7564
      %s7566 = scalar_lea.vmem %s13, 128
      %v7567 = vld [vmem:[%s7566] sm:$0xf]
      %v7568 = vld [vmem:[%s7566 + $0x4] sm:$0xf]
      %v7569 = vld [vmem:[%s7566 + $0x8] sm:$0xf]
      %v7570 = vld [vmem:[%s7566 + $0xc] sm:$0xf]
      %v7571 = vld [vmem:[%s7566 + $0x10] sm:$0xf]
      %v7572 = vld [vmem:[%s7566 + $0x14] sm:$0xf]
      %v7573 = vld [vmem:[%s7566 + $0x18] sm:$0xf]
      %v7574 = vld [vmem:[%s7566 + $0x1c] sm:$0xf]
      %v7575 = vunpack.c.l.bf16 %v7567
      %v7576 = vunpack.c.l.bf16 %v7568
      %v7577 = vunpack.c.l.bf16 %v7569
      %v7578 = vunpack.c.l.bf16 %v7570
      %v7579 = vunpack.c.l.bf16 %v7571
      %v7580 = vunpack.c.l.bf16 %v7572
      %v7581 = vunpack.c.l.bf16 %v7573
      %v7582 = vunpack.c.l.bf16 %v7574
      %v7583 = vmul.f32 %v7575, %v7363
      %v7584 = vmul.f32 %v7576, %v7365
      %v7585 = vmul.f32 %v7577, %v7368
      %v7586 = vmul.f32 %v7578, %v7370
      %v7587 = vmul.f32 %v7579, %v7373
      %v7588 = vmul.f32 %v7580, %v7375
      %v7589 = vmul.f32 %v7581, %v7378
      %v7590 = vmul.f32 %v7582, %v7380
      %v7591 = vsel %vm7406, %v7583, 0.0
      %v7592 = vsel %vm7406, %v7584, 0.0
      %v7593 = vadd.f32 %v7591, %v7592
      %v7594 = vsel %vm7406, %v7585, 0.0
      %v7595 = vadd.f32 %v7593, %v7594
      %v7596 = vsel %vm7406, %v7586, 0.0
      %v7597 = vadd.f32 %v7595, %v7596
      %v7598 = vsel %vm7406, %v7587, 0.0
      %v7599 = vadd.f32 %v7597, %v7598
      %v7600 = vsel %vm7406, %v7588, 0.0
      %v7601 = vadd.f32 %v7599, %v7600
      %v7602 = vsel %vm7406, %v7589, 0.0
      %v7603 = vadd.f32 %v7601, %v7602
      %v7604 = vsel %vm7406, %v7590, 0.0
      %v7605 = vadd.f32 %v7603, %v7604
      %v7606 = vrot.slane %v7605, 4
      %v7607 = vadd.f32 %v7605, %v7606
      %v7608 = vrot.slane %v7607, 2
      %v7609 = vadd.f32 %v7607, %v7608
      %v7610 = vrot.slane %v7609, 1
      %v7611 = vadd.f32 %v7609, %v7610
      %s7612 = scalar_lea.vmem %s13, 160
      %v7613 = vld [vmem:[%s7612] sm:$0xf]
      %v7614 = vld [vmem:[%s7612 + $0x4] sm:$0xf]
      %v7615 = vld [vmem:[%s7612 + $0x8] sm:$0xf]
      %v7616 = vld [vmem:[%s7612 + $0xc] sm:$0xf]
      %v7617 = vld [vmem:[%s7612 + $0x10] sm:$0xf]
      %v7618 = vld [vmem:[%s7612 + $0x14] sm:$0xf]
      %v7619 = vld [vmem:[%s7612 + $0x18] sm:$0xf]
      %v7620 = vld [vmem:[%s7612 + $0x1c] sm:$0xf]
      %v7621 = vunpack.c.l.bf16 %v7613
      %v7622 = vunpack.c.l.bf16 %v7614
      %v7623 = vunpack.c.l.bf16 %v7615
      %v7624 = vunpack.c.l.bf16 %v7616
      %v7625 = vunpack.c.l.bf16 %v7617
      %v7626 = vunpack.c.l.bf16 %v7618
      %v7627 = vunpack.c.l.bf16 %v7619
      %v7628 = vunpack.c.l.bf16 %v7620
      %v7629 = vmul.f32 %v7621, %v7363
      %v7630 = vmul.f32 %v7622, %v7365
      %v7631 = vmul.f32 %v7623, %v7368
      %v7632 = vmul.f32 %v7624, %v7370
      %v7633 = vmul.f32 %v7625, %v7373
      %v7634 = vmul.f32 %v7626, %v7375
      %v7635 = vmul.f32 %v7627, %v7378
      %v7636 = vmul.f32 %v7628, %v7380
      %v7637 = vsel %vm7406, %v7629, 0.0
      %v7638 = vsel %vm7406, %v7630, 0.0
      %v7639 = vadd.f32 %v7637, %v7638
      %v7640 = vsel %vm7406, %v7631, 0.0
      %v7641 = vadd.f32 %v7639, %v7640
      %v7642 = vsel %vm7406, %v7632, 0.0
      %v7643 = vadd.f32 %v7641, %v7642
      %v7644 = vsel %vm7406, %v7633, 0.0
      %v7645 = vadd.f32 %v7643, %v7644
      %v7646 = vsel %vm7406, %v7634, 0.0
      %v7647 = vadd.f32 %v7645, %v7646
      %v7648 = vsel %vm7406, %v7635, 0.0
      %v7649 = vadd.f32 %v7647, %v7648
      %v7650 = vsel %vm7406, %v7636, 0.0
      %v7651 = vadd.f32 %v7649, %v7650
      %v7652 = vrot.slane %v7651, 4
      %v7653 = vadd.f32 %v7651, %v7652
      %v7654 = vrot.slane %v7653, 2
      %v7655 = vadd.f32 %v7653, %v7654
      %v7656 = vrot.slane %v7655, 1
      %v7657 = vadd.f32 %v7655, %v7656
      %s7658 = scalar_lea.vmem %s13, 192
      %v7659 = vld [vmem:[%s7658] sm:$0xf]
      %v7660 = vld [vmem:[%s7658 + $0x4] sm:$0xf]
      %v7661 = vld [vmem:[%s7658 + $0x8] sm:$0xf]
      %v7662 = vld [vmem:[%s7658 + $0xc] sm:$0xf]
      %v7663 = vld [vmem:[%s7658 + $0x10] sm:$0xf]
      %v7664 = vld [vmem:[%s7658 + $0x14] sm:$0xf]
      %v7665 = vld [vmem:[%s7658 + $0x18] sm:$0xf]
      %v7666 = vld [vmem:[%s7658 + $0x1c] sm:$0xf]
      %v7667 = vunpack.c.l.bf16 %v7659
      %v7668 = vunpack.c.l.bf16 %v7660
      %v7669 = vunpack.c.l.bf16 %v7661
      %v7670 = vunpack.c.l.bf16 %v7662
      %v7671 = vunpack.c.l.bf16 %v7663
      %v7672 = vunpack.c.l.bf16 %v7664
      %v7673 = vunpack.c.l.bf16 %v7665
      %v7674 = vunpack.c.l.bf16 %v7666
      %v7675 = vmul.f32 %v7667, %v7363
      %v7676 = vmul.f32 %v7668, %v7365
      %v7677 = vmul.f32 %v7669, %v7368
      %v7678 = vmul.f32 %v7670, %v7370
      %v7679 = vmul.f32 %v7671, %v7373
      %v7680 = vmul.f32 %v7672, %v7375
      %v7681 = vmul.f32 %v7673, %v7378
      %v7682 = vmul.f32 %v7674, %v7380
      %v7683 = vsel %vm7406, %v7675, 0.0
      %v7684 = vsel %vm7406, %v7676, 0.0
      %v7685 = vadd.f32 %v7683, %v7684
      %v7686 = vsel %vm7406, %v7677, 0.0
      %v7687 = vadd.f32 %v7685, %v7686
      %v7688 = vsel %vm7406, %v7678, 0.0
      %v7689 = vadd.f32 %v7687, %v7688
      %v7690 = vsel %vm7406, %v7679, 0.0
      %v7691 = vadd.f32 %v7689, %v7690
      %v7692 = vsel %vm7406, %v7680, 0.0
      %v7693 = vadd.f32 %v7691, %v7692
      %v7694 = vsel %vm7406, %v7681, 0.0
      %v7695 = vadd.f32 %v7693, %v7694
      %v7696 = vsel %vm7406, %v7682, 0.0
      %v7697 = vadd.f32 %v7695, %v7696
      %v7698 = vrot.slane %v7697, 4
      %v7699 = vadd.f32 %v7697, %v7698
      %v7700 = vrot.slane %v7699, 2
      %v7701 = vadd.f32 %v7699, %v7700
      %v7702 = vrot.slane %v7701, 1
      %v7703 = vadd.f32 %v7701, %v7702
      %s7704 = scalar_lea.vmem %s13, 224
      %v7705 = vld [vmem:[%s7704] sm:$0xf]
      %v7706 = vld [vmem:[%s7704 + $0x4] sm:$0xf]
      %v7707 = vld [vmem:[%s7704 + $0x8] sm:$0xf]
      %v7708 = vld [vmem:[%s7704 + $0xc] sm:$0xf]
      %v7709 = vld [vmem:[%s7704 + $0x10] sm:$0xf]
      %v7710 = vld [vmem:[%s7704 + $0x14] sm:$0xf]
      %v7711 = vld [vmem:[%s7704 + $0x18] sm:$0xf]
      %v7712 = vld [vmem:[%s7704 + $0x1c] sm:$0xf]
      %v7713 = vunpack.c.l.bf16 %v7705
      %v7714 = vunpack.c.l.bf16 %v7706
      %v7715 = vunpack.c.l.bf16 %v7707
      %v7716 = vunpack.c.l.bf16 %v7708
      %v7717 = vunpack.c.l.bf16 %v7709
      %v7718 = vunpack.c.l.bf16 %v7710
      %v7719 = vunpack.c.l.bf16 %v7711
      %v7720 = vunpack.c.l.bf16 %v7712
      %v7721 = vmul.f32 %v7713, %v7363
      %v7722 = vmul.f32 %v7714, %v7365
      %v7723 = vmul.f32 %v7715, %v7368
      %v7724 = vmul.f32 %v7716, %v7370
      %v7725 = vmul.f32 %v7717, %v7373
      %v7726 = vmul.f32 %v7718, %v7375
      %v7727 = vmul.f32 %v7719, %v7378
      %v7728 = vmul.f32 %v7720, %v7380
      %v7729 = vsel %vm7406, %v7721, 0.0
      %v7730 = vsel %vm7406, %v7722, 0.0
      %v7731 = vadd.f32 %v7729, %v7730
      %v7732 = vsel %vm7406, %v7723, 0.0
      %v7733 = vadd.f32 %v7731, %v7732
      %v7734 = vsel %vm7406, %v7724, 0.0
      %v7735 = vadd.f32 %v7733, %v7734
      %v7736 = vsel %vm7406, %v7725, 0.0
      %v7737 = vadd.f32 %v7735, %v7736
      %v7738 = vsel %vm7406, %v7726, 0.0
      %v7739 = vadd.f32 %v7737, %v7738
      %v7740 = vsel %vm7406, %v7727, 0.0
      %v7741 = vadd.f32 %v7739, %v7740
      %v7742 = vsel %vm7406, %v7728, 0.0
      %v7743 = vadd.f32 %v7741, %v7742
      %v7744 = vrot.slane %v7743, 4
      %v7745 = vadd.f32 %v7743, %v7744
      %v7746 = vrot.slane %v7745, 2
      %v7747 = vadd.f32 %v7745, %v7746
      %v7748 = vrot.slane %v7747, 1
      %v7749 = vadd.f32 %v7747, %v7748
      %vm7750 = vcmask 1040384
      %v7751 = vsel %vm7750, %v7427, %v7473
      %vm7752 = vcmask 1041408
      %v7753 = vsel %vm7752, %v7751, %v7519
      %v7754 = vsel %vm618, %v7753, %v7565
      %vm7755 = vcmask 1043456
      %v7756 = vsel %vm7755, %v7754, %v7611
      %vm7757 = vcmask 1044480
      %v7758 = vsel %vm7757, %v7756, %v7657
      %vm7759 = vcmask 1045504
      %v7760 = vsel %vm7759, %v7758, %v7703
      %vm7761 = vcmask 1046528
      %v7762 = vsel %vm7761, %v7760, %v7749
      %v7763 = vpack.c.bf16 %v7762, %v7762
      %v7764 = vld [vmem:[%s14] sm:$0xf]
      %v7765 = vld [vmem:[%s14 + $0x4] sm:$0xf]
      %v7766 = vld [vmem:[%s14 + $0x8] sm:$0xf]
      %v7767 = vld [vmem:[%s14 + $0xc] sm:$0xf]
      %v7768 = vld [vmem:[%s14 + $0x10] sm:$0xf]
      %v7769 = vld [vmem:[%s14 + $0x14] sm:$0xf]
      %v7770 = vld [vmem:[%s14 + $0x18] sm:$0xf]
      %v7771 = vld [vmem:[%s14 + $0x1c] sm:$0xf]
      %v7772 = vld [vmem:[%s14 + $0x20] sm:$0xf]
      %v7773 = vld [vmem:[%s14 + $0x24] sm:$0xf]
      %v7774 = vld [vmem:[%s14 + $0x28] sm:$0xf]
      %v7775 = vld [vmem:[%s14 + $0x2c] sm:$0xf]
      %v7776 = vld [vmem:[%s14 + $0x30] sm:$0xf]
      %v7777 = vld [vmem:[%s14 + $0x34] sm:$0xf]
      %v7778 = vld [vmem:[%s14 + $0x38] sm:$0xf]
      %v7779 = vld [vmem:[%s14 + $0x3c] sm:$0x3]
      %v7780 = vld [vmem:[%s15] sm:$0xff]
      %7782 = vset.pattern.permute.xlu0 0
      %7783 = vperm.xlu0 %7782, %v7780
      %v7784 = vpop.permute.xlu0 %7783
      %v7802 = vunpack.c.l.b16 %v7764
      %v7803 = vunpack.c.l.b16 %v7765
      %v7804 = vunpack.c.l.b16 %v7766
      %v7805 = vunpack.c.l.b16 %v7767
      %v7806 = vunpack.c.l.b16 %v7768
      %v7807 = vunpack.c.l.b16 %v7769
      %v7808 = vunpack.c.l.b16 %v7770
      %v7809 = vunpack.c.l.b16 %v7771
      %v7810 = vunpack.c.l.b16 %v7772
      %v7811 = vunpack.c.l.b16 %v7773
      %v7812 = vunpack.c.l.b16 %v7774
      %v7813 = vunpack.c.l.b16 %v7775
      %v7814 = vunpack.c.l.b16 %v7776
      %v7815 = vunpack.c.l.b16 %v7777
      %v7816 = vunpack.c.l.b16 %v7778
      %v7817 = vunpack.c.l.b16 %v7779
      %v7818 = vpack.c.b16 %v7803, %v7802
      %v7819 = vpack.c.b16 %v7805, %v7804
      %v7820 = vpack.c.b16 %v7807, %v7806
      %v7821 = vpack.c.b16 %v7809, %v7808
      %v7822 = vpack.c.b16 %v7811, %v7810
      %v7823 = vpack.c.b16 %v7813, %v7812
      %v7824 = vpack.c.b16 %v7815, %v7814
      %v7825 = vpack.c.b16 %v7817, %v7816
      %v7834 = vsel %vm7406, %v7763, 0
      %v7837 = vsel %vm7759, %v7825, 0
      %7839 = vmatpush.bf16.msra.mxu0 %v7837
      %7840 = vmatpush.bf16.msra.mxu0 %v7824
      %7841 = vmatpush.bf16.msra.mxu0 %v7823
      %7842 = vmatpush.bf16.msra.mxu0 %v7822
      %7843 = vmatpush.bf16.msra.mxu0 %v7821
      %7844 = vmatpush.bf16.msra.mxu0 %v7820
      %7845 = vmatpush.bf16.msra.mxu0 %v7819
      %7846 = vmatpush.bf16.msra.mxu0 %v7818
      %7847 = vmatmul.bf16.gmra.mxu0 %v7834
      %v7848 = vpop.f32.mrf.mxu0
      %v7849 = vadd.f32 %v7784, %v7848
      %v7850 = vpop.f32.mrf.mxu0
      %7851 = vdwg.mxu0
      %vm7852 = vcmask 31744
      %7853 = vst.msk [vmem:[%s519] sm:$0xff] %vm7852, %v7849
      %p7854 = scmp.lt.s32.totalorder %s27, 1
      %s7855 = scalar_select %p7854, %s27, 1
      %s7856 = smul.addr %s7855, 8
      %s7857 = scalar_lea.vmem %s16, %s7856
      // Predicated region
      $region85: #{resnet1d_forward.1} parent=83 // pred_check
        %p7858 = pneg %p386
      $region86: #{resnet1d_forward.1} parent=83 // pred_check_branch
        %7860 = sbr.rel (%p7858) target = $region88
      $region87: #{resnet1d_forward.1} parent=83 // pred_region
        _
      $region88: #{resnet1d_forward.1} parent=83 // pred_fallthru
        _
    $region84: #{resnet1d_forward.1} parent=5 // pred_fallthru
      _
    %p7861 = scmp.le.s32.totalorder 2, %s22
    // Predicated region
    $region89: #{resnet1d_forward.1} parent=5 // pred_check
      %p7862 = pneg %p7861
    $region90: #{resnet1d_forward.1} parent=5 // pred_check_branch
      %7864 = sbr.rel (%p7862) target = $region92
    $region91: #{resnet1d_forward.1} parent=5 // pred_region
      %s7865 = ssub.s32 %s22, 2
      // Predicated region
      $region93: #{resnet1d_forward.1} parent=91 // pred_check
        %p7866 = pneg %p392
      $region94: #{resnet1d_forward.1} parent=91 // pred_check_branch
        %7868 = sbr.rel (%p7866) target = $region96
      $region95: #{resnet1d_forward.1} parent=91 // pred_region
        %p7869 = scmp.lt.s32.totalorder %s28, 1
        %s7870 = scalar_select %p7869, %s28, 1
        %s7871 = smul.addr %s7870, 8
        %s7872 = scalar_lea.vmem %s16, %s7871
      $region96: #{resnet1d_forward.1} parent=91 // pred_fallthru
        _
    $region92: #{resnet1d_forward.1} parent=5 // pred_fallthru
      _
  $region6: #{resnet1d_forward.1} parent=0 // loop_footer
    %s26 = sadd.s32 1, %s22
  $region7: #{resnet1d_forward.1} parent=0 // loop_footer_branch
    %21 = sbr.rel target = $region3
  $region8: #{resnet1d_forward.1} parent=0 // loop_exit
    _

</llo_original>
